<compile_context>
chip_gen: v5e
topology: v5e:2x2
jax: 0.10.0
libtpu: 0.0.40
codegen_flags: <defaults>
</compile_context>

<pallas_src>
import functools

import jax
import jax.numpy as jnp
import numpy as np
from jax import lax
from jax.experimental import pallas as pl
from jax.experimental.pallas import tpu as pltpu

N = 2              # batch
C_IN = 16          # in_channels (small, synthetic)
H = W = 14         # spatial (required so flatten gives 128*4*4 == 2048 features)
C_CONV = 128       # aux 1x1 conv output channels
POOL_K, POOL_S = 5, 3
OH = OW = (H - POOL_K) // POOL_S + 1      # 4
HW_OUT = OH * OW                          # 16 pooled spatial positions
HIDDEN = 1024
FEAT = C_CONV * HW_OUT                    # 2048
NUM_CLASSES = 10


def _num_tensorcores():
    """2 for megacore parts (v4 / v5p / v7x), 1 for single-TC v5e / v6e."""
    try:
        kind = jax.devices()[0].device_kind.lower()
    except Exception:  # pragma: no cover
        return 1
    return 2 if any(t in kind for t in ("v4", "v5p", "v7", "7x")) else 1


NUM_BLOCKS = _num_tensorcores()   # grid blocks over the fc1 hidden dim
BH = HIDDEN // NUM_BLOCKS         # fc1 columns per grid step


def _aux_kernel(n_batch, c_in, x_ref, p_ref, wcT_ref, bc_ref,
                w1_ref, b1_ref, w2_ref, b2_ref, o_ref):
    """Fused avgpool(5,3) + 1x1 conv + ReLU + fc1(+ReLU) + fc2, one hidden block.

    x_ref : (N*C, H*W) f32        input, free reshape of NCHW (no transpose)
    p_ref : (H*W, 16)  f32        pooling matrix (avg over 5x5 windows, stride 3)
    wcT_ref: (C, 128)  f32        1x1 conv weight, transposed
    bc_ref: (1, 128)   f32        conv bias
    w1_ref: (16, 128, BH) bf16    fc1 weight block, pre-permuted to [s, k, j]
    b1_ref: (1, BH)    f32        fc1 bias block
    w2_ref: (BH, NUM_CLASSES) f32 fc2 weight block (transposed)
    b2_ref: (1, NUM_CLASSES) f32  fc2 bias (added on grid block 0 only)
    o_ref : (N, NUM_CLASSES) f32  (partial) fc2 logits for this hidden block
    """
    hw_out = w1_ref.shape[0]
    bh = w1_ref.shape[2]

    # AvgPool as ONE matmul over all (n, c) rows: (N*C, H*W) @ (H*W, 16).
    pooled = jnp.dot(x_ref[...], p_ref[...], preferred_element_type=jnp.float32)

    # 1x1 conv + ReLU per batch element, computed "transposed":
    #   conv_t[n][s, k] = relu(sum_c pooled[n, c, s] * Wc[k, c] + bc[k]).
    # Contraction is over the LEADING dim of both operands (TN form), so no
    # in-kernel transpose of x / pooled is required.
    wc_t = wcT_ref[...]
    bc = bc_ref[...]
    convs = []
    for n in range(n_batch):                        # static unroll, N is tiny
        pn = pooled[n * c_in:(n + 1) * c_in, :]     # (C, 16)
        ct = lax.dot_general(pn, wc_t, (((0,), (0,)), ((), ())),
                             preferred_element_type=jnp.float32)     # (16, 128)
        convs.append(jnp.maximum(ct + bc, 0.0).astype(jnp.bfloat16))
    conv_s = jnp.stack(convs, axis=1)               # (16, N, 128), s leading

    # fc1: h[n, j] = sum_{k, s} conv[n, k, s] * W1[j, k*16 + s].
    # w1_ref is pre-permuted to [s, k, j]; each step is one contiguous slice of
    # conv_s and one (N,128)@(128,BH) MXU matmul -- no per-step concatenates.
    h = jnp.zeros((n_batch, bh), jnp.float32)
    for s in range(hw_out):
        h = h + jnp.dot(conv_s[s], w1_ref[s], preferred_element_type=jnp.float32)
    h = jnp.maximum(h + b1_ref[...], 0.0)

    # TODO(synk): training-mode dropout not implemented (eval mode -> identity).
    logits = jnp.dot(h, w2_ref[...], preferred_element_type=jnp.float32)
    is_first = (pl.program_id(0) == 0).astype(jnp.float32)
    o_ref[...] = logits + is_first * b2_ref[...]


def _make_pool_matrix(h, w, k, s):
    """Pooling matrix P: (h*w, oh*ow), average over kxk windows, stride s."""
    oh = (h - k) // s + 1
    ow = (w - k) // s + 1
    p = np.zeros((h * w, oh * ow), dtype=np.float32)
    inv = 1.0 / (k * k)
    for i in range(oh):
        for j in range(ow):
            for di in range(k):
                for dj in range(k):
                    p[(i * s + di) * w + (j * s + dj), i * ow + j] = inv
    return p


def pack_params(raw_params):
    """One-time host-side re-layout of torch-style weights for the kernel."""
    wc, bc, w1, b1, w2, b2 = raw_params
    wc_t = wc.T                                                 # (C, 128)
    bc_row = bc.reshape(1, C_CONV)
    # fc1 weight W1[j, f] with f = k*16 + s (channel-major torch flatten):
    # permute to [s, k, j], split hidden into NUM_BLOCKS contiguous slabs with
    # the block index LEADING (each grid step's DMA is one contiguous block),
    # and store bf16 (halves the dominant HBM stream).
    w1_packed = (w1.reshape(HIDDEN, C_CONV, HW_OUT)
                   .transpose(2, 1, 0)                          # (s, k, j)
                   .reshape(HW_OUT, C_CONV, NUM_BLOCKS, BH)
                   .transpose(2, 0, 1, 3)                       # (blk, s, k, jb)
                   .astype(jnp.bfloat16))
    b1_row = b1.reshape(1, HIDDEN)
    w2_t = w2.T                                                 # (HIDDEN, CLASSES)
    b2_row = b2.reshape(1, NUM_CLASSES)
    pool = jnp.asarray(_make_pool_matrix(H, W, POOL_K, POOL_S)) # (H*W, 16)
    return wc_t, bc_row, w1_packed, b1_row, w2_t, b2_row, pool


@jax.jit
def inception_aux_forward(x, kparams):
    """x: (N, C, H, W) float32.  Returns (N, num_classes)."""
    wc_t, bc_row, w1_packed, b1_row, w2_t, b2_row, pool = kparams
    n, c, h, w = x.shape
    hw = h * w
    x2 = x.reshape(n * c, hw)          # free reshape of contiguous NCHW

    if NUM_BLOCKS == 1:
        out_shape = jax.ShapeDtypeStruct((n, NUM_CLASSES), jnp.float32)
        out_specs = pl.BlockSpec((n, NUM_CLASSES), lambda j: (0, 0))
    else:
        out_shape = jax.ShapeDtypeStruct((NUM_BLOCKS, n, NUM_CLASSES), jnp.float32)
        out_specs = pl.BlockSpec((None, n, NUM_CLASSES), lambda j: (j, 0, 0))

    res = pl.pallas_call(
        functools.partial(_aux_kernel, n, c),
        grid=(NUM_BLOCKS,),
        in_specs=[
            pl.BlockSpec((n * c, hw), lambda j: (0, 0)),               # x (resident)
            pl.BlockSpec((hw, HW_OUT), lambda j: (0, 0)),              # pool matrix
            pl.BlockSpec((c, C_CONV), lambda j: (0, 0)),               # conv weight^T
            pl.BlockSpec((1, C_CONV), lambda j: (0, 0)),               # conv bias
            pl.BlockSpec((None, HW_OUT, C_CONV, BH),
                         lambda j: (j, 0, 0, 0)),                      # fc1 W slab
            pl.BlockSpec((1, BH), lambda j: (0, j)),                   # fc1 bias blk
            pl.BlockSpec((BH, NUM_CLASSES), lambda j: (j, 0)),         # fc2 W block
            pl.BlockSpec((1, NUM_CLASSES), lambda j: (0, 0)),          # fc2 bias
        ],
        out_specs=out_specs,
        out_shape=out_shape,
        compiler_params=pltpu.CompilerParams(
            dimension_semantics=("parallel",),
            vmem_limit_bytes=32 * 1024 * 1024),
    )(x2, pool, wc_t, bc_row, w1_packed, b1_row, w2_t, b2_row)

    if NUM_BLOCKS == 1:
        return res                     # b2 already added inside the kernel
    return res.sum(axis=0)             # sum per-hidden-block partial logits


def init_params(key):
    k1, k2, k3, k4, k5, k6 = jax.random.split(key, 6)
    wc = jax.random.normal(k1, (C_CONV, C_IN), jnp.float32) * 0.05         # conv 1x1
    bc = jax.random.normal(k2, (C_CONV,), jnp.float32) * 0.01
    w1 = jax.random.normal(k3, (HIDDEN, FEAT), jnp.float32) * 0.02         # fc1
    b1 = jax.random.normal(k4, (HIDDEN,), jnp.float32) * 0.01
    w2 = jax.random.normal(k5, (NUM_CLASSES, HIDDEN), jnp.float32) * 0.02  # fc2
    b2 = jax.random.normal(k6, (NUM_CLASSES,), jnp.float32) * 0.01
    return wc, bc, w1, b1, w2, b2


def reference_forward(x, raw_params):
    """Pure-JAX reference mirroring the PyTorch forward (eval mode, bf16 fc1 weight)."""
    wc, bc, w1, b1, w2, b2 = raw_params
    pooled = lax.reduce_window(
        x, 0.0, lax.add,
        window_dimensions=(1, 1, POOL_K, POOL_K),
        window_strides=(1, 1, POOL_S, POOL_S),
        padding="VALID") / float(POOL_K * POOL_K)
    conv = jnp.einsum("kc,nchw->nkhw", wc, pooled) + bc[None, :, None, None]
    conv = jnp.maximum(conv, 0.0)
    feat = conv.reshape(conv.shape[0], -1)                       # torch.flatten(x, 1)
    h = lax.dot_general(feat.astype(jnp.bfloat16), w1.astype(jnp.bfloat16),
                        (((1,), (1,)), ((), ())),
                        preferred_element_type=jnp.float32)
    h = jnp.maximum(h + b1, 0.0)
    return h @ w2.T + b2


if __name__ == "__main__":
    key = jax.random.PRNGKey(0)
    kx, kp = jax.random.split(key)
    x = jax.random.normal(kx, (N, C_IN, H, W), jnp.float32)
    raw_params = init_params(kp)
    kparams = pack_params(raw_params)

    out = inception_aux_forward(x, kparams)
    out = jax.block_until_ready(out)

    ref = reference_forward(x, raw_params)
    np.testing.assert_allclose(np.asarray(out), np.asarray(ref), rtol=2e-3, atol=2e-3)
    assert out.shape == (N, NUM_CLASSES)
    print("KERNEL_OK")
</pallas_src>

<mosaic_0001>
module attributes {stable_mosaic.version = 11 : i64} {
  func.func @_aux_kernel(%arg0: i32, %arg1: memref<32x196xf32, #tpu.memory_space<vmem>>, %arg2: memref<196x16xf32, #tpu.memory_space<vmem>>, %arg3: memref<16x128xf32, #tpu.memory_space<vmem>>, %arg4: memref<1x128xf32, #tpu.memory_space<vmem>>, %arg5: memref<1x16x128x1024xbf16, #tpu.memory_space<vmem>>, %arg6: memref<1x1024xf32, #tpu.memory_space<vmem>>, %arg7: memref<1024x10xf32, #tpu.memory_space<vmem>>, %arg8: memref<1x10xf32, #tpu.memory_space<vmem>>, %arg9: memref<2x10xf32, #tpu.memory_space<vmem>>) attributes {dimension_semantics = [#tpu.dimension_semantics<parallel>], iteration_bounds = array<i64: 1>, scalar_prefetch = 0 : i64, scratch_operands = 0 : i64, tpu.core_type = #tpu.core_type<tc>, window_params = [{pipeline_mode = #tpu.pipeline_mode<synchronous>, transform_indices = @transform_0, window_bounds = array<i64: 32, 196>}, {pipeline_mode = #tpu.pipeline_mode<synchronous>, transform_indices = @transform_1, window_bounds = array<i64: 196, 16>}, {pipeline_mode = #tpu.pipeline_mode<synchronous>, transform_indices = @transform_2, window_bounds = array<i64: 16, 128>}, {pipeline_mode = #tpu.pipeline_mode<synchronous>, transform_indices = @transform_3, window_bounds = array<i64: 1, 128>}, {transform_indices = @transform_4, window_bounds = array<i64: 1, 16, 128, 1024>}, {transform_indices = @transform_5, window_bounds = array<i64: 1, 1024>}, {transform_indices = @transform_6, window_bounds = array<i64: 1024, 10>}, {pipeline_mode = #tpu.pipeline_mode<synchronous>, transform_indices = @transform_7, window_bounds = array<i64: 1, 10>}, {pipeline_mode = #tpu.pipeline_mode<synchronous>, transform_indices = @transform_8, window_bounds = array<i64: 2, 10>}]} {
    %c0 = arith.constant 0 : index
    %c0_0 = arith.constant 0 : index
    %0 = vector.load %arg1[%c0, %c0_0] : memref<32x196xf32, #tpu.memory_space<vmem>>, vector<32x196xf32>
    %c0_1 = arith.constant 0 : index
    %c0_2 = arith.constant 0 : index
    %1 = vector.load %arg2[%c0_1, %c0_2] : memref<196x16xf32, #tpu.memory_space<vmem>>, vector<196x16xf32>
    %cst = arith.constant dense<0.000000e+00> : vector<32x16xf32>
    %2 = tpu.matmul %0, %1, %cst {dimension_numbers = #tpu.dot_dimension_numbers<[1], [0], [0], [1], [0, 0, 1, 1], [], []>} : vector<32x196xf32>, vector<196x16xf32>, vector<32x16xf32> -> vector<32x16xf32>
    %c0_3 = arith.constant 0 : index
    %c0_4 = arith.constant 0 : index
    %3 = vector.load %arg3[%c0_3, %c0_4] : memref<16x128xf32, #tpu.memory_space<vmem>>, vector<16x128xf32>
    %c0_5 = arith.constant 0 : index
    %c0_6 = arith.constant 0 : index
    %4 = vector.load %arg4[%c0_5, %c0_6] : memref<1x128xf32, #tpu.memory_space<vmem>>, vector<1x128xf32>
    %5 = vector.extract_strided_slice %2 {offsets = [0, 0], sizes = [16, 16], strides = [1, 1]} : vector<32x16xf32> to vector<16x16xf32>
    %cst_7 = arith.constant dense<0.000000e+00> : vector<16x128xf32>
    %6 = tpu.matmul %5, %3, %cst_7 {dimension_numbers = #tpu.dot_dimension_numbers<[0], [0], [1], [1], [0, 1, 1, 1], [], []>} : vector<16x16xf32>, vector<16x128xf32>, vector<16x128xf32> -> vector<16x128xf32>
    %7 = vector.broadcast %4 : vector<1x128xf32> to vector<16x128xf32>
    %8 = arith.addf %6, %7 : vector<16x128xf32>
    %cst_8 = arith.constant 0.000000e+00 : f32
    %9 = vector.broadcast %cst_8 : f32 to vector<16x128xf32>
    %10 = arith.maximumf %8, %9 : vector<16x128xf32>
    %11 = arith.truncf %10 : vector<16x128xf32> to vector<16x128xbf16>
    %12 = vector.extract_strided_slice %2 {offsets = [16, 0], sizes = [16, 16], strides = [1, 1]} : vector<32x16xf32> to vector<16x16xf32>
    %cst_9 = arith.constant dense<0.000000e+00> : vector<16x128xf32>
    %13 = tpu.matmul %12, %3, %cst_9 {dimension_numbers = #tpu.dot_dimension_numbers<[0], [0], [1], [1], [0, 1, 1, 1], [], []>} : vector<16x16xf32>, vector<16x128xf32>, vector<16x128xf32> -> vector<16x128xf32>
    %14 = vector.broadcast %4 : vector<1x128xf32> to vector<16x128xf32>
    %15 = arith.addf %13, %14 : vector<16x128xf32>
    %cst_10 = arith.constant 0.000000e+00 : f32
    %16 = vector.broadcast %cst_10 : f32 to vector<16x128xf32>
    %17 = arith.maximumf %15, %16 : vector<16x128xf32>
    %18 = arith.truncf %17 : vector<16x128xf32> to vector<16x128xbf16>
    %19 = vector.shape_cast %11 : vector<16x128xbf16> to vector<16x1x128xbf16>
    %20 = vector.shape_cast %18 : vector<16x128xbf16> to vector<16x1x128xbf16>
    %21 = tpu.concatenate %19, %20 in 1 : vector<16x1x128xbf16>, vector<16x1x128xbf16> -> vector<16x2x128xbf16>
    %cst_11 = arith.constant 0.000000e+00 : f32
    %22 = vector.broadcast %cst_11 : f32 to vector<2x1024xf32>
    %23 = vector.extract_strided_slice %21 {offsets = [0, 0, 0], sizes = [1, 2, 128], strides = [1, 1, 1]} : vector<16x2x128xbf16> to vector<1x2x128xbf16>
    %24 = vector.shape_cast %23 : vector<1x2x128xbf16> to vector<2x128xbf16>
    %c0_12 = arith.constant 0 : index
    %c0_13 = arith.constant 0 : index
    %c0_14 = arith.constant 0 : index
    %c0_15 = arith.constant 0 : index
    %25 = vector.load %arg5[%c0_12, %c0_13, %c0_14, %c0_15] : memref<1x16x128x1024xbf16, #tpu.memory_space<vmem>>, vector<1x1x128x1024xbf16>
    %26 = vector.shape_cast %25 : vector<1x1x128x1024xbf16> to vector<128x1024xbf16>
    %cst_16 = arith.constant dense<0.000000e+00> : vector<2x1024xf32>
    %27 = tpu.matmul %24, %26, %cst_16 {dimension_numbers = #tpu.dot_dimension_numbers<[1], [0], [0], [1], [0, 0, 1, 1], [], []>} : vector<2x128xbf16>, vector<128x1024xbf16>, vector<2x1024xf32> -> vector<2x1024xf32>
    %28 = arith.addf %22, %27 : vector<2x1024xf32>
    %29 = vector.extract_strided_slice %21 {offsets = [1, 0, 0], sizes = [1, 2, 128], strides = [1, 1, 1]} : vector<16x2x128xbf16> to vector<1x2x128xbf16>
    %30 = vector.shape_cast %29 : vector<1x2x128xbf16> to vector<2x128xbf16>
    %c0_17 = arith.constant 0 : index
    %c1 = arith.constant 1 : index
    %c0_18 = arith.constant 0 : index
    %c0_19 = arith.constant 0 : index
    %31 = vector.load %arg5[%c0_17, %c1, %c0_18, %c0_19] : memref<1x16x128x1024xbf16, #tpu.memory_space<vmem>>, vector<1x1x128x1024xbf16>
    %32 = vector.shape_cast %31 : vector<1x1x128x1024xbf16> to vector<128x1024xbf16>
    %cst_20 = arith.constant dense<0.000000e+00> : vector<2x1024xf32>
    %33 = tpu.matmul %30, %32, %cst_20 {dimension_numbers = #tpu.dot_dimension_numbers<[1], [0], [0], [1], [0, 0, 1, 1], [], []>} : vector<2x128xbf16>, vector<128x1024xbf16>, vector<2x1024xf32> -> vector<2x1024xf32>
    %34 = arith.addf %28, %33 : vector<2x1024xf32>
    %35 = vector.extract_strided_slice %21 {offsets = [2, 0, 0], sizes = [1, 2, 128], strides = [1, 1, 1]} : vector<16x2x128xbf16> to vector<1x2x128xbf16>
    %36 = vector.shape_cast %35 : vector<1x2x128xbf16> to vector<2x128xbf16>
    %c0_21 = arith.constant 0 : index
    %c2 = arith.constant 2 : index
    %c0_22 = arith.constant 0 : index
    %c0_23 = arith.constant 0 : index
    %37 = vector.load %arg5[%c0_21, %c2, %c0_22, %c0_23] : memref<1x16x128x1024xbf16, #tpu.memory_space<vmem>>, vector<1x1x128x1024xbf16>
    %38 = vector.shape_cast %37 : vector<1x1x128x1024xbf16> to vector<128x1024xbf16>
    %cst_24 = arith.constant dense<0.000000e+00> : vector<2x1024xf32>
    %39 = tpu.matmul %36, %38, %cst_24 {dimension_numbers = #tpu.dot_dimension_numbers<[1], [0], [0], [1], [0, 0, 1, 1], [], []>} : vector<2x128xbf16>, vector<128x1024xbf16>, vector<2x1024xf32> -> vector<2x1024xf32>
    %40 = arith.addf %34, %39 : vector<2x1024xf32>
    %41 = vector.extract_strided_slice %21 {offsets = [3, 0, 0], sizes = [1, 2, 128], strides = [1, 1, 1]} : vector<16x2x128xbf16> to vector<1x2x128xbf16>
    %42 = vector.shape_cast %41 : vector<1x2x128xbf16> to vector<2x128xbf16>
    %c0_25 = arith.constant 0 : index
    %c3 = arith.constant 3 : index
    %c0_26 = arith.constant 0 : index
    %c0_27 = arith.constant 0 : index
    %43 = vector.load %arg5[%c0_25, %c3, %c0_26, %c0_27] : memref<1x16x128x1024xbf16, #tpu.memory_space<vmem>>, vector<1x1x128x1024xbf16>
    %44 = vector.shape_cast %43 : vector<1x1x128x1024xbf16> to vector<128x1024xbf16>
    %cst_28 = arith.constant dense<0.000000e+00> : vector<2x1024xf32>
    %45 = tpu.matmul %42, %44, %cst_28 {dimension_numbers = #tpu.dot_dimension_numbers<[1], [0], [0], [1], [0, 0, 1, 1], [], []>} : vector<2x128xbf16>, vector<128x1024xbf16>, vector<2x1024xf32> -> vector<2x1024xf32>
    %46 = arith.addf %40, %45 : vector<2x1024xf32>
    %47 = vector.extract_strided_slice %21 {offsets = [4, 0, 0], sizes = [1, 2, 128], strides = [1, 1, 1]} : vector<16x2x128xbf16> to vector<1x2x128xbf16>
    %48 = vector.shape_cast %47 : vector<1x2x128xbf16> to vector<2x128xbf16>
    %c0_29 = arith.constant 0 : index
    %c4 = arith.constant 4 : index
    %c0_30 = arith.constant 0 : index
    %c0_31 = arith.constant 0 : index
    %49 = vector.load %arg5[%c0_29, %c4, %c0_30, %c0_31] : memref<1x16x128x1024xbf16, #tpu.memory_space<vmem>>, vector<1x1x128x1024xbf16>
    %50 = vector.shape_cast %49 : vector<1x1x128x1024xbf16> to vector<128x1024xbf16>
    %cst_32 = arith.constant dense<0.000000e+00> : vector<2x1024xf32>
    %51 = tpu.matmul %48, %50, %cst_32 {dimension_numbers = #tpu.dot_dimension_numbers<[1], [0], [0], [1], [0, 0, 1, 1], [], []>} : vector<2x128xbf16>, vector<128x1024xbf16>, vector<2x1024xf32> -> vector<2x1024xf32>
    %52 = arith.addf %46, %51 : vector<2x1024xf32>
    %53 = vector.extract_strided_slice %21 {offsets = [5, 0, 0], sizes = [1, 2, 128], strides = [1, 1, 1]} : vector<16x2x128xbf16> to vector<1x2x128xbf16>
    %54 = vector.shape_cast %53 : vector<1x2x128xbf16> to vector<2x128xbf16>
    %c0_33 = arith.constant 0 : index
    %c5 = arith.constant 5 : index
    %c0_34 = arith.constant 0 : index
    %c0_35 = arith.constant 0 : index
    %55 = vector.load %arg5[%c0_33, %c5, %c0_34, %c0_35] : memref<1x16x128x1024xbf16, #tpu.memory_space<vmem>>, vector<1x1x128x1024xbf16>
    %56 = vector.shape_cast %55 : vector<1x1x128x1024xbf16> to vector<128x1024xbf16>
    %cst_36 = arith.constant dense<0.000000e+00> : vector<2x1024xf32>
    %57 = tpu.matmul %54, %56, %cst_36 {dimension_numbers = #tpu.dot_dimension_numbers<[1], [0], [0], [1], [0, 0, 1, 1], [], []>} : vector<2x128xbf16>, vector<128x1024xbf16>, vector<2x1024xf32> -> vector<2x1024xf32>
    %58 = arith.addf %52, %57 : vector<2x1024xf32>
    %59 = vector.extract_strided_slice %21 {offsets = [6, 0, 0], sizes = [1, 2, 128], strides = [1, 1, 1]} : vector<16x2x128xbf16> to vector<1x2x128xbf16>
    %60 = vector.shape_cast %59 : vector<1x2x128xbf16> to vector<2x128xbf16>
    %c0_37 = arith.constant 0 : index
    %c6 = arith.constant 6 : index
    %c0_38 = arith.constant 0 : index
    %c0_39 = arith.constant 0 : index
    %61 = vector.load %arg5[%c0_37, %c6, %c0_38, %c0_39] : memref<1x16x128x1024xbf16, #tpu.memory_space<vmem>>, vector<1x1x128x1024xbf16>
    %62 = vector.shape_cast %61 : vector<1x1x128x1024xbf16> to vector<128x1024xbf16>
    %cst_40 = arith.constant dense<0.000000e+00> : vector<2x1024xf32>
    %63 = tpu.matmul %60, %62, %cst_40 {dimension_numbers = #tpu.dot_dimension_numbers<[1], [0], [0], [1], [0, 0, 1, 1], [], []>} : vector<2x128xbf16>, vector<128x1024xbf16>, vector<2x1024xf32> -> vector<2x1024xf32>
    %64 = arith.addf %58, %63 : vector<2x1024xf32>
    %65 = vector.extract_strided_slice %21 {offsets = [7, 0, 0], sizes = [1, 2, 128], strides = [1, 1, 1]} : vector<16x2x128xbf16> to vector<1x2x128xbf16>
    %66 = vector.shape_cast %65 : vector<1x2x128xbf16> to vector<2x128xbf16>
    %c0_41 = arith.constant 0 : index
    %c7 = arith.constant 7 : index
    %c0_42 = arith.constant 0 : index
    %c0_43 = arith.constant 0 : index
    %67 = vector.load %arg5[%c0_41, %c7, %c0_42, %c0_43] : memref<1x16x128x1024xbf16, #tpu.memory_space<vmem>>, vector<1x1x128x1024xbf16>
    %68 = vector.shape_cast %67 : vector<1x1x128x1024xbf16> to vector<128x1024xbf16>
    %cst_44 = arith.constant dense<0.000000e+00> : vector<2x1024xf32>
    %69 = tpu.matmul %66, %68, %cst_44 {dimension_numbers = #tpu.dot_dimension_numbers<[1], [0], [0], [1], [0, 0, 1, 1], [], []>} : vector<2x128xbf16>, vector<128x1024xbf16>, vector<2x1024xf32> -> vector<2x1024xf32>
    %70 = arith.addf %64, %69 : vector<2x1024xf32>
    %71 = vector.extract_strided_slice %21 {offsets = [8, 0, 0], sizes = [1, 2, 128], strides = [1, 1, 1]} : vector<16x2x128xbf16> to vector<1x2x128xbf16>
    %72 = vector.shape_cast %71 : vector<1x2x128xbf16> to vector<2x128xbf16>
    %c0_45 = arith.constant 0 : index
    %c8 = arith.constant 8 : index
    %c0_46 = arith.constant 0 : index
    %c0_47 = arith.constant 0 : index
    %73 = vector.load %arg5[%c0_45, %c8, %c0_46, %c0_47] : memref<1x16x128x1024xbf16, #tpu.memory_space<vmem>>, vector<1x1x128x1024xbf16>
    %74 = vector.shape_cast %73 : vector<1x1x128x1024xbf16> to vector<128x1024xbf16>
    %cst_48 = arith.constant dense<0.000000e+00> : vector<2x1024xf32>
    %75 = tpu.matmul %72, %74, %cst_48 {dimension_numbers = #tpu.dot_dimension_numbers<[1], [0], [0], [1], [0, 0, 1, 1], [], []>} : vector<2x128xbf16>, vector<128x1024xbf16>, vector<2x1024xf32> -> vector<2x1024xf32>
    %76 = arith.addf %70, %75 : vector<2x1024xf32>
    %77 = vector.extract_strided_slice %21 {offsets = [9, 0, 0], sizes = [1, 2, 128], strides = [1, 1, 1]} : vector<16x2x128xbf16> to vector<1x2x128xbf16>
    %78 = vector.shape_cast %77 : vector<1x2x128xbf16> to vector<2x128xbf16>
    %c0_49 = arith.constant 0 : index
    %c9 = arith.constant 9 : index
    %c0_50 = arith.constant 0 : index
    %c0_51 = arith.constant 0 : index
    %79 = vector.load %arg5[%c0_49, %c9, %c0_50, %c0_51] : memref<1x16x128x1024xbf16, #tpu.memory_space<vmem>>, vector<1x1x128x1024xbf16>
    %80 = vector.shape_cast %79 : vector<1x1x128x1024xbf16> to vector<128x1024xbf16>
    %cst_52 = arith.constant dense<0.000000e+00> : vector<2x1024xf32>
    %81 = tpu.matmul %78, %80, %cst_52 {dimension_numbers = #tpu.dot_dimension_numbers<[1], [0], [0], [1], [0, 0, 1, 1], [], []>} : vector<2x128xbf16>, vector<128x1024xbf16>, vector<2x1024xf32> -> vector<2x1024xf32>
    %82 = arith.addf %76, %81 : vector<2x1024xf32>
    %83 = vector.extract_strided_slice %21 {offsets = [10, 0, 0], sizes = [1, 2, 128], strides = [1, 1, 1]} : vector<16x2x128xbf16> to vector<1x2x128xbf16>
    %84 = vector.shape_cast %83 : vector<1x2x128xbf16> to vector<2x128xbf16>
    %c0_53 = arith.constant 0 : index
    %c10 = arith.constant 10 : index
    %c0_54 = arith.constant 0 : index
    %c0_55 = arith.constant 0 : index
    %85 = vector.load %arg5[%c0_53, %c10, %c0_54, %c0_55] : memref<1x16x128x1024xbf16, #tpu.memory_space<vmem>>, vector<1x1x128x1024xbf16>
    %86 = vector.shape_cast %85 : vector<1x1x128x1024xbf16> to vector<128x1024xbf16>
    %cst_56 = arith.constant dense<0.000000e+00> : vector<2x1024xf32>
    %87 = tpu.matmul %84, %86, %cst_56 {dimension_numbers = #tpu.dot_dimension_numbers<[1], [0], [0], [1], [0, 0, 1, 1], [], []>} : vector<2x128xbf16>, vector<128x1024xbf16>, vector<2x1024xf32> -> vector<2x1024xf32>
    %88 = arith.addf %82, %87 : vector<2x1024xf32>
    %89 = vector.extract_strided_slice %21 {offsets = [11, 0, 0], sizes = [1, 2, 128], strides = [1, 1, 1]} : vector<16x2x128xbf16> to vector<1x2x128xbf16>
    %90 = vector.shape_cast %89 : vector<1x2x128xbf16> to vector<2x128xbf16>
    %c0_57 = arith.constant 0 : index
    %c11 = arith.constant 11 : index
    %c0_58 = arith.constant 0 : index
    %c0_59 = arith.constant 0 : index
    %91 = vector.load %arg5[%c0_57, %c11, %c0_58, %c0_59] : memref<1x16x128x1024xbf16, #tpu.memory_space<vmem>>, vector<1x1x128x1024xbf16>
    %92 = vector.shape_cast %91 : vector<1x1x128x1024xbf16> to vector<128x1024xbf16>
    %cst_60 = arith.constant dense<0.000000e+00> : vector<2x1024xf32>
    %93 = tpu.matmul %90, %92, %cst_60 {dimension_numbers = #tpu.dot_dimension_numbers<[1], [0], [0], [1], [0, 0, 1, 1], [], []>} : vector<2x128xbf16>, vector<128x1024xbf16>, vector<2x1024xf32> -> vector<2x1024xf32>
    %94 = arith.addf %88, %93 : vector<2x1024xf32>
    %95 = vector.extract_strided_slice %21 {offsets = [12, 0, 0], sizes = [1, 2, 128], strides = [1, 1, 1]} : vector<16x2x128xbf16> to vector<1x2x128xbf16>
    %96 = vector.shape_cast %95 : vector<1x2x128xbf16> to vector<2x128xbf16>
    %c0_61 = arith.constant 0 : index
    %c12 = arith.constant 12 : index
    %c0_62 = arith.constant 0 : index
    %c0_63 = arith.constant 0 : index
    %97 = vector.load %arg5[%c0_61, %c12, %c0_62, %c0_63] : memref<1x16x128x1024xbf16, #tpu.memory_space<vmem>>, vector<1x1x128x1024xbf16>
    %98 = vector.shape_cast %97 : vector<1x1x128x1024xbf16> to vector<128x1024xbf16>
    %cst_64 = arith.constant dense<0.000000e+00> : vector<2x1024xf32>
    %99 = tpu.matmul %96, %98, %cst_64 {dimension_numbers = #tpu.dot_dimension_numbers<[1], [0], [0], [1], [0, 0, 1, 1], [], []>} : vector<2x128xbf16>, vector<128x1024xbf16>, vector<2x1024xf32> -> vector<2x1024xf32>
    %100 = arith.addf %94, %99 : vector<2x1024xf32>
    %101 = vector.extract_strided_slice %21 {offsets = [13, 0, 0], sizes = [1, 2, 128], strides = [1, 1, 1]} : vector<16x2x128xbf16> to vector<1x2x128xbf16>
    %102 = vector.shape_cast %101 : vector<1x2x128xbf16> to vector<2x128xbf16>
    %c0_65 = arith.constant 0 : index
    %c13 = arith.constant 13 : index
    %c0_66 = arith.constant 0 : index
    %c0_67 = arith.constant 0 : index
    %103 = vector.load %arg5[%c0_65, %c13, %c0_66, %c0_67] : memref<1x16x128x1024xbf16, #tpu.memory_space<vmem>>, vector<1x1x128x1024xbf16>
    %104 = vector.shape_cast %103 : vector<1x1x128x1024xbf16> to vector<128x1024xbf16>
    %cst_68 = arith.constant dense<0.000000e+00> : vector<2x1024xf32>
    %105 = tpu.matmul %102, %104, %cst_68 {dimension_numbers = #tpu.dot_dimension_numbers<[1], [0], [0], [1], [0, 0, 1, 1], [], []>} : vector<2x128xbf16>, vector<128x1024xbf16>, vector<2x1024xf32> -> vector<2x1024xf32>
    %106 = arith.addf %100, %105 : vector<2x1024xf32>
    %107 = vector.extract_strided_slice %21 {offsets = [14, 0, 0], sizes = [1, 2, 128], strides = [1, 1, 1]} : vector<16x2x128xbf16> to vector<1x2x128xbf16>
    %108 = vector.shape_cast %107 : vector<1x2x128xbf16> to vector<2x128xbf16>
    %c0_69 = arith.constant 0 : index
    %c14 = arith.constant 14 : index
    %c0_70 = arith.constant 0 : index
    %c0_71 = arith.constant 0 : index
    %109 = vector.load %arg5[%c0_69, %c14, %c0_70, %c0_71] : memref<1x16x128x1024xbf16, #tpu.memory_space<vmem>>, vector<1x1x128x1024xbf16>
    %110 = vector.shape_cast %109 : vector<1x1x128x1024xbf16> to vector<128x1024xbf16>
    %cst_72 = arith.constant dense<0.000000e+00> : vector<2x1024xf32>
    %111 = tpu.matmul %108, %110, %cst_72 {dimension_numbers = #tpu.dot_dimension_numbers<[1], [0], [0], [1], [0, 0, 1, 1], [], []>} : vector<2x128xbf16>, vector<128x1024xbf16>, vector<2x1024xf32> -> vector<2x1024xf32>
    %112 = arith.addf %106, %111 : vector<2x1024xf32>
    %113 = vector.extract_strided_slice %21 {offsets = [15, 0, 0], sizes = [1, 2, 128], strides = [1, 1, 1]} : vector<16x2x128xbf16> to vector<1x2x128xbf16>
    %114 = vector.shape_cast %113 : vector<1x2x128xbf16> to vector<2x128xbf16>
    %c0_73 = arith.constant 0 : index
    %c15 = arith.constant 15 : index
    %c0_74 = arith.constant 0 : index
    %c0_75 = arith.constant 0 : index
    %115 = vector.load %arg5[%c0_73, %c15, %c0_74, %c0_75] : memref<1x16x128x1024xbf16, #tpu.memory_space<vmem>>, vector<1x1x128x1024xbf16>
    %116 = vector.shape_cast %115 : vector<1x1x128x1024xbf16> to vector<128x1024xbf16>
    %cst_76 = arith.constant dense<0.000000e+00> : vector<2x1024xf32>
    %117 = tpu.matmul %114, %116, %cst_76 {dimension_numbers = #tpu.dot_dimension_numbers<[1], [0], [0], [1], [0, 0, 1, 1], [], []>} : vector<2x128xbf16>, vector<128x1024xbf16>, vector<2x1024xf32> -> vector<2x1024xf32>
    %118 = arith.addf %112, %117 : vector<2x1024xf32>
    %c0_77 = arith.constant 0 : index
    %c0_78 = arith.constant 0 : index
    %119 = vector.load %arg6[%c0_77, %c0_78] : memref<1x1024xf32, #tpu.memory_space<vmem>>, vector<1x1024xf32>
    %120 = vector.broadcast %119 : vector<1x1024xf32> to vector<2x1024xf32>
    %121 = arith.addf %118, %120 : vector<2x1024xf32>
    %cst_79 = arith.constant 0.000000e+00 : f32
    %122 = vector.broadcast %cst_79 : f32 to vector<2x1024xf32>
    %123 = arith.maximumf %121, %122 : vector<2x1024xf32>
    %c0_80 = arith.constant 0 : index
    %c0_81 = arith.constant 0 : index
    %124 = vector.load %arg7[%c0_80, %c0_81] : memref<1024x10xf32, #tpu.memory_space<vmem>>, vector<1024x10xf32>
    %cst_82 = arith.constant dense<0.000000e+00> : vector<2x10xf32>
    %125 = tpu.matmul %123, %124, %cst_82 {dimension_numbers = #tpu.dot_dimension_numbers<[1], [0], [0], [1], [0, 0, 1, 1], [], []>} : vector<2x1024xf32>, vector<1024x10xf32>, vector<2x10xf32> -> vector<2x10xf32>
    %c0_i32 = arith.constant 0 : i32
    %126 = arith.cmpi eq, %arg0, %c0_i32 : i32
    %127 = arith.extui %126 : i1 to i32
    %128 = arith.sitofp %127 : i32 to f32
    %c0_83 = arith.constant 0 : index
    %c0_84 = arith.constant 0 : index
    %129 = vector.load %arg8[%c0_83, %c0_84] : memref<1x10xf32, #tpu.memory_space<vmem>>, vector<1x10xf32>
    %130 = vector.broadcast %128 : f32 to vector<1x10xf32>
    %131 = arith.mulf %130, %129 : vector<1x10xf32>
    %132 = vector.broadcast %131 : vector<1x10xf32> to vector<2x10xf32>
    %133 = arith.addf %125, %132 : vector<2x10xf32>
    %c0_85 = arith.constant 0 : index
    %c0_86 = arith.constant 0 : index
    %134 = vector.load %arg9[%c0_85, %c0_86] : memref<2x10xf32, #tpu.memory_space<vmem>>, vector<2x10xf32>
    tpu.vector_store %arg9[%c0_85, %c0_86], %133 {strides = array<i32>} : memref<2x10xf32, #tpu.memory_space<vmem>>, vector<2x10xf32>,
    return
  }
  func.func @transform_0(%arg0: i32) -> (i32, i32) {
    %c0_i32 = arith.constant 0 : i32
    %c0_i32_0 = arith.constant 0 : i32
    %c0_i32_1 = arith.constant 0 : i32
    return %c0_i32, %c0_i32_0 : i32, i32
  }
  func.func @transform_1(%arg0: i32) -> (i32, i32) {
    %c0_i32 = arith.constant 0 : i32
    %c0_i32_0 = arith.constant 0 : i32
    %c0_i32_1 = arith.constant 0 : i32
    return %c0_i32, %c0_i32_0 : i32, i32
  }
  func.func @transform_2(%arg0: i32) -> (i32, i32) {
    %c0_i32 = arith.constant 0 : i32
    %c0_i32_0 = arith.constant 0 : i32
    %c0_i32_1 = arith.constant 0 : i32
    return %c0_i32, %c0_i32_0 : i32, i32
  }
  func.func @transform_3(%arg0: i32) -> (i32, i32) {
    %c0_i32 = arith.constant 0 : i32
    %c0_i32_0 = arith.constant 0 : i32
    %c0_i32_1 = arith.constant 0 : i32
    return %c0_i32, %c0_i32_0 : i32, i32
  }
  func.func @transform_4(%arg0: i32) -> (i32, i32, i32, i32) {
    %c0_i32 = arith.constant 0 : i32
    %c0_i32_0 = arith.constant 0 : i32
    %c0_i32_1 = arith.constant 0 : i32
    %c0_i32_2 = arith.constant 0 : i32
    return %arg0, %c0_i32, %c0_i32_0, %c0_i32_1 : i32, i32, i32, i32
  }
  func.func @transform_5(%arg0: i32) -> (i32, i32) {
    %c0_i32 = arith.constant 0 : i32
    %c0_i32_0 = arith.constant 0 : i32
    return %c0_i32, %arg0 : i32, i32
  }
  func.func @transform_6(%arg0: i32) -> (i32, i32) {
    %c0_i32 = arith.constant 0 : i32
    %c0_i32_0 = arith.constant 0 : i32
    return %arg0, %c0_i32 : i32, i32
  }
  func.func @transform_7(%arg0: i32) -> (i32, i32) {
    %c0_i32 = arith.constant 0 : i32
    %c0_i32_0 = arith.constant 0 : i32
    %c0_i32_1 = arith.constant 0 : i32
    return %c0_i32, %c0_i32_0 : i32, i32
  }
  func.func @transform_8(%arg0: i32) -> (i32, i32) {
    %c0_i32 = arith.constant 0 : i32
    %c0_i32_0 = arith.constant 0 : i32
    %c0_i32_1 = arith.constant 0 : i32
    return %c0_i32, %c0_i32_0 : i32, i32
  }
}

</mosaic_0001>

<llo_original>
// kernel: inception_aux_forward.1
$region0: #{inception_aux_forward.1}
  #allocation0 [shape = 'u32[]', space=smem, size = 0x4, offset = 0x4, fixed_abs, tag = 'smem constant byte address 0x4 - core index']
  #allocation1 [shape = 'u32[72,128]{1,0:T(1,128)}', space=vmem, size = 0x9000, scoped, tag = 'internal scratch']
  %s0 = inlined_call_operand.vmem [shape: f32[32,196], index: 0, kind: input, shape index: {}]
  %s1 = inlined_call_operand.vmem [shape: f32[196,16], index: 1, kind: input, shape index: {}]
  %s2 = inlined_call_operand.hbm [shape: f32[16,128], index: 2, kind: input, shape index: {}]
  %s3 = inlined_call_operand.hbm [shape: f32[1,128], index: 3, kind: input, shape index: {}]
  %s4 = inlined_call_operand.hbm [shape: bf16[1,16,128,1024], index: 4, kind: input, shape index: {}]
  %s5 = inlined_call_operand.hbm [shape: f32[1,1024], index: 5, kind: input, shape index: {}]
  %s6 = inlined_call_operand.vmem [shape: f32[1024,10], index: 6, kind: input, shape index: {}]
  %s7 = inlined_call_operand.hbm [shape: f32[1,10], index: 7, kind: input, shape index: {}]
  %s8 = inlined_call_operand.hbm [shape: f32[2,10], index: 8, kind: output, shape index: {}]
  %s9 = sld [smem:[#allocation0]]
  $region62: #{inception_aux_forward.1} parent=0
    _
  %s11 = ssub.s32 1, %s9
  %s12 = scalar_select 0, %s11, %s9
  $region1: #{inception_aux_forward.1} parent=0
    #allocation2 [shape = 'u8[8192]{0}', space=vmem, size = 0x2000, scoped, tag = 'input window, operand 2, single buffered']
    #allocation3 [shape = 's32[1]{0}', space=sflag, size = 0x4, scoped, tag = 'scoped memory for inception_aux_forward.1']
    #allocation4 [shape = 's32[1]{0}', space=sflag, size = 0x4, scoped, tag = 'scoped memory for inception_aux_forward.1']
    #allocation5 [shape = 'u8[512]{0}', space=vmem, size = 0x400, scoped, tag = 'input window, operand 3, single buffered']
    #allocation6 [shape = 's32[1]{0}', space=sflag, size = 0x4, scoped, tag = 'scoped memory for inception_aux_forward.1']
    #allocation7 [shape = 'u8[4194304]{0}', space=vmem, size = 0x400000, scoped, tag = 'input window, operand 4, single buffered']
    #allocation8 [shape = 'u8[4096]{0}', space=vmem, size = 0x1000, scoped, tag = 'input window, operand 5, single buffered']
    #allocation9 [shape = 's32[1]{0}', space=sflag, size = 0x4, scoped, tag = 'scoped memory for inception_aux_forward.1']
    #allocation10 [shape = 'u8[512]{0}', space=vmem, size = 0x400, scoped, tag = 'input window, operand 7, single buffered']
    #allocation11 [shape = 'u8[1024]{0}', space=vmem, size = 0x400, scoped, tag = 'output window, operand 0, single buffered']
    %13 = vsyncpa [#allocation3], 0
    %14 = vsyncpa [#allocation6], 0
    %15 = vsyncpa [#allocation9], 0
    %16 = vsyncpa [#allocation4], 0
    // Predicated region
    $region2: #{inception_aux_forward.1} parent=1 // pred_check
      _
    $region3: #{inception_aux_forward.1} parent=1 // pred_check_branch
      %18 = sbr.rel (0) target = $region5
    $region4: #{inception_aux_forward.1} parent=1 // pred_region
      _
    $region5: #{inception_aux_forward.1} parent=1 // pred_fallthru
      _
    // Predicated region
    $region6: #{inception_aux_forward.1} parent=1 // pred_check
      _
    $region7: #{inception_aux_forward.1} parent=1 // pred_check_branch
      %20 = sbr.rel (0) target = $region9
    $region8: #{inception_aux_forward.1} parent=1 // pred_region
      _
    $region9: #{inception_aux_forward.1} parent=1 // pred_fallthru
      _
    // Predicated region
    $region10: #{inception_aux_forward.1} parent=1 // pred_check
      _
    $region11: #{inception_aux_forward.1} parent=1 // pred_check_branch
      %22 = sbr.rel (0) target = $region13
    $region12: #{inception_aux_forward.1} parent=1 // pred_region
      %24 = vsyncadd [#allocation3], 0
      %s25 = sshll.u32 %s2, 4
      %s26 = int_to_ptr.hbm [resolvable:$true] %s25
      %s27 = sshll.u32 [#allocation2], 4
      %s28 = int_to_ptr.vmem [resolvable:$true] %s27
      %33 = dma.hbm_to_vmem [thread:$0]  %s26, 256, %s28, [#allocation3], 128, 128, 8
    $region13: #{inception_aux_forward.1} parent=1 // pred_fallthru
      _
    // Predicated region
    $region14: #{inception_aux_forward.1} parent=1 // pred_check
      _
    $region15: #{inception_aux_forward.1} parent=1 // pred_check_branch
      %35 = sbr.rel (0) target = $region17
    $region16: #{inception_aux_forward.1} parent=1 // pred_region
      %37 = vsyncadd [#allocation6], 0
      %s39 = sshll.u32 %s3, 4
      %s40 = int_to_ptr.hbm [resolvable:$true] %s39
      %s41 = sshll.u32 [#allocation5], 4
      %s42 = int_to_ptr.vmem [resolvable:$true] %s41
      %44 = dma.hbm_to_vmem [thread:$0]  %s40, 16, %s42, [#allocation6]
    $region17: #{inception_aux_forward.1} parent=1 // pred_fallthru
      _
    // Predicated region
    $region18: #{inception_aux_forward.1} parent=1 // pred_check
      _
    $region19: #{inception_aux_forward.1} parent=1 // pred_check_branch
      %46 = sbr.rel (0) target = $region21
    $region20: #{inception_aux_forward.1} parent=1 // pred_region
      %48 = vsyncadd [#allocation6], 0
      %s49 = sshll.u32 %s4, 4
      %s50 = int_to_ptr.hbm [resolvable:$true] %s49
      %s51 = sshll.u32 [#allocation7], 4
      %s52 = int_to_ptr.vmem [resolvable:$true] %s51
      %57 = dma.hbm_to_vmem [thread:$0]  %s50, 131072, %s52, [#allocation6], 512, 512, 32
    $region21: #{inception_aux_forward.1} parent=1 // pred_fallthru
      _
    // Predicated region
    $region22: #{inception_aux_forward.1} parent=1 // pred_check
      _
    $region23: #{inception_aux_forward.1} parent=1 // pred_check_branch
      %59 = sbr.rel (0) target = $region25
    $region24: #{inception_aux_forward.1} parent=1 // pred_region
      %61 = vsyncadd [#allocation9], 0
      %s63 = sshll.u32 %s5, 4
      %s64 = int_to_ptr.hbm [resolvable:$true] %s63
      %s65 = sshll.u32 [#allocation8], 4
      %s66 = int_to_ptr.vmem [resolvable:$true] %s65
      %68 = dma.hbm_to_vmem [thread:$0]  %s64, 128, %s66, [#allocation9]
    $region25: #{inception_aux_forward.1} parent=1 // pred_fallthru
      _
    // Predicated region
    $region26: #{inception_aux_forward.1} parent=1 // pred_check
      _
    $region27: #{inception_aux_forward.1} parent=1 // pred_check_branch
      %70 = sbr.rel (0) target = $region29
    $region28: #{inception_aux_forward.1} parent=1 // pred_region
      _
    $region29: #{inception_aux_forward.1} parent=1 // pred_fallthru
      _
    // Predicated region
    $region30: #{inception_aux_forward.1} parent=1 // pred_check
      _
    $region31: #{inception_aux_forward.1} parent=1 // pred_check_branch
      %72 = sbr.rel (0) target = $region33
    $region32: #{inception_aux_forward.1} parent=1 // pred_region
      %74 = vsyncadd [#allocation9], 0
      %s76 = sshll.u32 %s7, 4
      %s77 = int_to_ptr.hbm [resolvable:$true] %s76
      %s78 = sshll.u32 [#allocation10], 4
      %s79 = int_to_ptr.vmem [resolvable:$true] %s78
      %81 = dma.hbm_to_vmem [thread:$0]  %s77, 16, %s79, [#allocation9]
    $region33: #{inception_aux_forward.1} parent=1 // pred_fallthru
      _
    // Predicated region
    $region34: #{inception_aux_forward.1} parent=1 // pred_check
      _
    $region35: #{inception_aux_forward.1} parent=1 // pred_check_branch
      %83 = sbr.rel (0) target = $region37
    $region36: #{inception_aux_forward.1} parent=1 // pred_region
      %85 = dma.done [#allocation3], 256
    $region37: #{inception_aux_forward.1} parent=1 // pred_fallthru
      _
    // Predicated region
    $region38: #{inception_aux_forward.1} parent=1 // pred_check
      _
    $region39: #{inception_aux_forward.1} parent=1 // pred_check_branch
      %87 = sbr.rel (0) target = $region41
    $region40: #{inception_aux_forward.1} parent=1 // pred_region
      %89 = dma.done [#allocation6], 16
    $region41: #{inception_aux_forward.1} parent=1 // pred_fallthru
      _
    // Predicated region
    $region42: #{inception_aux_forward.1} parent=1 // pred_check
      _
    $region43: #{inception_aux_forward.1} parent=1 // pred_check_branch
      %91 = sbr.rel (0) target = $region45
    $region44: #{inception_aux_forward.1} parent=1 // pred_region
      %93 = dma.done [#allocation6], 131072
    $region45: #{inception_aux_forward.1} parent=1 // pred_fallthru
      _
    // Predicated region
    $region46: #{inception_aux_forward.1} parent=1 // pred_check
      _
    $region47: #{inception_aux_forward.1} parent=1 // pred_check_branch
      %95 = sbr.rel (0) target = $region49
    $region48: #{inception_aux_forward.1} parent=1 // pred_region
      %97 = dma.done [#allocation9], 128
    $region49: #{inception_aux_forward.1} parent=1 // pred_fallthru
      _
    // Predicated region
    $region50: #{inception_aux_forward.1} parent=1 // pred_check
      _
    $region51: #{inception_aux_forward.1} parent=1 // pred_check_branch
      %99 = sbr.rel (0) target = $region53
    $region52: #{inception_aux_forward.1} parent=1 // pred_region
      %101 = dma.done [#allocation9], 16
    $region53: #{inception_aux_forward.1} parent=1 // pred_fallthru
      _
    %v102 = vld [vmem:[%s0] sm:$0xff]
    %v103 = vld [vmem:[%s0 + $0x8] sm:$0xff]
    %v104 = vld [vmem:[%s0 + $0x10] sm:$0xff]
    %v105 = vld [vmem:[%s0 + $0x18] sm:$0xff]
    %v106 = vld [vmem:[%s0 + $0x20] sm:$0xff]
    %v107 = vld [vmem:[%s0 + $0x28] sm:$0xff]
    %v108 = vld [vmem:[%s0 + $0x30] sm:$0xff]
    %v109 = vld [vmem:[%s0 + $0x38] sm:$0xff]
    %v110 = vld [vmem:[%s1] sm:$0xff]
    %v111 = vld [vmem:[%s1 + $0x8] sm:$0xff]
    %v112 = vld [vmem:[%s1 + $0x10] sm:$0xff]
    %v113 = vld [vmem:[%s1 + $0x18] sm:$0xff]
    %v114 = vld [vmem:[%s1 + $0x20] sm:$0xff]
    %v115 = vld [vmem:[%s1 + $0x28] sm:$0xff]
    %v116 = vld [vmem:[%s1 + $0x30] sm:$0xff]
    %v117 = vld [vmem:[%s1 + $0x38] sm:$0xff]
    %v118 = vld [vmem:[%s1 + $0x40] sm:$0xff]
    %v119 = vld [vmem:[%s1 + $0x48] sm:$0xff]
    %v120 = vld [vmem:[%s1 + $0x50] sm:$0xff]
    %v121 = vld [vmem:[%s1 + $0x58] sm:$0xff]
    %v122 = vld [vmem:[%s1 + $0x60] sm:$0xff]
    %v123 = vld [vmem:[%s1 + $0x68] sm:$0xff]
    %v124 = vld [vmem:[%s1 + $0x70] sm:$0xff]
    %v125 = vld [vmem:[%s1 + $0x78] sm:$0xff]
    %v126 = vld [vmem:[%s1 + $0x80] sm:$0xff]
    %v127 = vld [vmem:[%s1 + $0x88] sm:$0xff]
    %v128 = vld [vmem:[%s1 + $0x90] sm:$0xff]
    %v129 = vld [vmem:[%s1 + $0x98] sm:$0xff]
    %v130 = vld [vmem:[%s1 + $0xa0] sm:$0xff]
    %v131 = vld [vmem:[%s1 + $0xa8] sm:$0xff]
    %v132 = vld [vmem:[%s1 + $0xb0] sm:$0xff]
    %v133 = vld [vmem:[%s1 + $0xb8] sm:$0xff]
    %v134 = vld [vmem:[%s1 + $0xc0] sm:$0xf]
    %vm135 = vcmask 556032
    %v137 = vsel %vm135, %v103, 0
    %v140 = vsel %vm135, %v105, 0
    %v143 = vsel %vm135, %v107, 0
    %v146 = vsel %vm135, %v109, 0
    %vm148 = vcmask 1043456
    %v150 = vsel %vm148, %v134, 0
    %152 = vmatpush.msra.mxu0 %v125
    %153 = vmatpush.msra.mxu0 %v124
    %154 = vmatpush.msra.mxu0 %v123
    %155 = vmatpush.msra.mxu0 %v122
    %156 = vmatpush.msra.mxu0 %v121
    %157 = vmatpush.msra.mxu0 %v120
    %158 = vmatpush.msra.mxu0 %v119
    %159 = vmatpush.msra.mxu0 %v118
    %160 = vmatpush.msra.mxu0 %v117
    %161 = vmatpush.msra.mxu0 %v116
    %162 = vmatpush.msra.mxu0 %v115
    %163 = vmatpush.msra.mxu0 %v114
    %164 = vmatpush.msra.mxu0 %v113
    %165 = vmatpush.msra.mxu0 %v112
    %166 = vmatpush.msra.mxu0 %v111
    %167 = vmatpush.msra.mxu0 %v110
    %168 = vmatmul.f32.gmra.mxu0 %v102
    %v169 = vpop.f32.mrf.mxu0
    %v170 = vadd.f32 0.0, %v169
    %171 = vmatmul.f32.gmra.mxu0 %v104
    %v172 = vpop.f32.mrf.mxu0
    %v173 = vadd.f32 0.0, %v172
    %174 = vmatmul.f32.gmra.mxu0 %v106
    %v175 = vpop.f32.mrf.mxu0
    %v176 = vadd.f32 0.0, %v175
    %177 = vmatmul.f32.gmra.mxu0 %v108
    %v178 = vpop.f32.mrf.mxu0
    %v179 = vadd.f32 0.0, %v178
    %180 = vdwg.mxu0
    %181 = vmatpush.msra.mxu0 0.0
    %182 = vmatpush.msra.mxu0 0.0
    %183 = vmatpush.msra.mxu0 0.0
    %184 = vmatpush.msra.mxu0 0.0
    %185 = vmatpush.msra.mxu0 0.0
    %186 = vmatpush.msra.mxu0 0.0
    %187 = vmatpush.msra.mxu0 0.0
    %188 = vmatpush.msra.mxu0 %v150
    %189 = vmatpush.msra.mxu0 %v133
    %190 = vmatpush.msra.mxu0 %v132
    %191 = vmatpush.msra.mxu0 %v131
    %192 = vmatpush.msra.mxu0 %v130
    %193 = vmatpush.msra.mxu0 %v129
    %194 = vmatpush.msra.mxu0 %v128
    %195 = vmatpush.msra.mxu0 %v127
    %196 = vmatpush.msra.mxu0 %v126
    %197 = vmatmul.f32.gmra.mxu0 %v137
    %v198 = vpop.f32.mrf.mxu0
    %v199 = vadd.f32 %v170, %v198
    %200 = vmatmul.f32.gmra.mxu0 %v140
    %v201 = vpop.f32.mrf.mxu0
    %v202 = vadd.f32 %v173, %v201
    %203 = vmatmul.f32.gmra.mxu0 %v143
    %v204 = vpop.f32.mrf.mxu0
    %v205 = vadd.f32 %v176, %v204
    %206 = vmatmul.f32.gmra.mxu0 %v146
    %v207 = vpop.f32.mrf.mxu0
    %v208 = vadd.f32 %v179, %v207
    %209 = vdwg.mxu0
    %v210 = vld [vmem:[#allocation2] sm:$0xff]
    %v211 = vld [vmem:[#allocation2 + $0x8] sm:$0xff]
    %v212 = vld [vmem:[#allocation5] sm:$0x1]
    %v214 = vperm.slane %v212, 0
    %216 = vxpose.xlu0.b32.start [1/16] %v199, 128
    %217 = vxpose.xlu0.b32.cont [2/16] %v202, 128
    %218 = vxpose.xlu0.b32.cont [3/16] 0.0, 128
    %219 = vxpose.xlu0.b32.cont [4/16] 0.0, 128
    %220 = vxpose.xlu0.b32.cont [5/16] 0.0, 128
    %221 = vxpose.xlu0.b32.cont [6/16] 0.0, 128
    %222 = vxpose.xlu0.b32.cont [7/16] 0.0, 128
    %223 = vxpose.xlu0.b32.cont [8/16] 0.0, 128
    %224 = vxpose.xlu0.b32.cont [9/16] 0.0, 128
    %225 = vxpose.xlu0.b32.cont [10/16] 0.0, 128
    %226 = vxpose.xlu0.b32.cont [11/16] 0.0, 128
    %227 = vxpose.xlu0.b32.cont [12/16] 0.0, 128
    %228 = vxpose.xlu0.b32.cont [13/16] 0.0, 128
    %229 = vxpose.xlu0.b32.cont [14/16] 0.0, 128
    %230 = vxpose.xlu0.b32.cont [15/16] 0.0, 128
    %231 = vxpose.xlu0.b32.end [16/16] 0.0, 128
    %v232 = vpop.trf.xlu0
    %v233 = vpop.trf.xlu0
    %v234 = vpop.trf.xlu0
    %v235 = vpop.trf.xlu0
    %v236 = vpop.trf.xlu0
    %v237 = vpop.trf.xlu0
    %v238 = vpop.trf.xlu0
    %v239 = vpop.trf.xlu0
    %v240 = vpop.trf.xlu0
    %v241 = vpop.trf.xlu0
    %v242 = vpop.trf.xlu0
    %v243 = vpop.trf.xlu0
    %v244 = vpop.trf.xlu0
    %v245 = vpop.trf.xlu0
    %v246 = vpop.trf.xlu0
    %v247 = vpop.trf.xlu0
    %vm248 = vcmask 130048
    %v250 = vsel %vm248, %v232, 0
    %v253 = vsel %vm248, %v233, 0
    %255 = vmatpush.msra.mxu0 0.0
    %256 = vmatpush.msra.mxu0 0.0
    %257 = vmatpush.msra.mxu0 0.0
    %258 = vmatpush.msra.mxu0 0.0
    %259 = vmatpush.msra.mxu0 0.0
    %260 = vmatpush.msra.mxu0 0.0
    %261 = vmatpush.msra.mxu0 0.0
    %262 = vmatpush.msra.mxu0 0.0
    %263 = vmatpush.msra.mxu0 0.0
    %264 = vmatpush.msra.mxu0 0.0
    %265 = vmatpush.msra.mxu0 0.0
    %266 = vmatpush.msra.mxu0 0.0
    %267 = vmatpush.msra.mxu0 0.0
    %268 = vmatpush.msra.mxu0 0.0
    %269 = vmatpush.msra.mxu0 %v211
    %270 = vmatpush.msra.mxu0 %v210
    %271 = vmatmul.f32.gmra.mxu0 %v250
    %v272 = vpop.f32.mrf.mxu0
    %v273 = vadd.f32 %v214, %v272
    %274 = vmatmul.f32.gmra.mxu0 %v253
    %v275 = vpop.f32.mrf.mxu0
    %v276 = vadd.f32 %v214, %v275
    %277 = vdwg.mxu0
    %v278 = vmax.f32 %v273, 0.0
    %v279 = vmax.f32 %v276, 0.0
    %v280 = vpack.c.bf16 %v278, %v278
    %v281 = vpack.c.bf16 %v279, %v279
    %282 = vxpose.xlu0.b32.start [1/16] %v205, 128
    %283 = vxpose.xlu0.b32.cont [2/16] %v208, 128
    %284 = vxpose.xlu0.b32.cont [3/16] 0.0, 128
    %285 = vxpose.xlu0.b32.cont [4/16] 0.0, 128
    %286 = vxpose.xlu0.b32.cont [5/16] 0.0, 128
    %287 = vxpose.xlu0.b32.cont [6/16] 0.0, 128
    %288 = vxpose.xlu0.b32.cont [7/16] 0.0, 128
    %289 = vxpose.xlu0.b32.cont [8/16] 0.0, 128
    %290 = vxpose.xlu0.b32.cont [9/16] 0.0, 128
    %291 = vxpose.xlu0.b32.cont [10/16] 0.0, 128
    %292 = vxpose.xlu0.b32.cont [11/16] 0.0, 128
    %293 = vxpose.xlu0.b32.cont [12/16] 0.0, 128
    %294 = vxpose.xlu0.b32.cont [13/16] 0.0, 128
    %295 = vxpose.xlu0.b32.cont [14/16] 0.0, 128
    %296 = vxpose.xlu0.b32.cont [15/16] 0.0, 128
    %297 = vxpose.xlu0.b32.end [16/16] 0.0, 128
    %v298 = vpop.trf.xlu0
    %v299 = vpop.trf.xlu0
    %v300 = vpop.trf.xlu0
    %v301 = vpop.trf.xlu0
    %v302 = vpop.trf.xlu0
    %v303 = vpop.trf.xlu0
    %v304 = vpop.trf.xlu0
    %v305 = vpop.trf.xlu0
    %v306 = vpop.trf.xlu0
    %v307 = vpop.trf.xlu0
    %v308 = vpop.trf.xlu0
    %v309 = vpop.trf.xlu0
    %v310 = vpop.trf.xlu0
    %v311 = vpop.trf.xlu0
    %v312 = vpop.trf.xlu0
    %v313 = vpop.trf.xlu0
    %v315 = vsel %vm248, %v298, 0
    %v318 = vsel %vm248, %v299, 0
    %320 = vmatpush.msra.mxu0 0.0
    %321 = vmatpush.msra.mxu0 0.0
    %322 = vmatpush.msra.mxu0 0.0
    %323 = vmatpush.msra.mxu0 0.0
    %324 = vmatpush.msra.mxu0 0.0
    %325 = vmatpush.msra.mxu0 0.0
    %326 = vmatpush.msra.mxu0 0.0
    %327 = vmatpush.msra.mxu0 0.0
    %328 = vmatpush.msra.mxu0 0.0
    %329 = vmatpush.msra.mxu0 0.0
    %330 = vmatpush.msra.mxu0 0.0
    %331 = vmatpush.msra.mxu0 0.0
    %332 = vmatpush.msra.mxu0 0.0
    %333 = vmatpush.msra.mxu0 0.0
    %334 = vmatpush.msra.mxu0 %v211
    %335 = vmatpush.msra.mxu0 %v210
    %336 = vmatmul.f32.gmra.mxu0 %v315
    %v337 = vpop.f32.mrf.mxu0
    %v338 = vadd.f32 %v214, %v337
    %339 = vmatmul.f32.gmra.mxu0 %v318
    %v340 = vpop.f32.mrf.mxu0
    %v341 = vadd.f32 %v214, %v340
    %342 = vdwg.mxu0
    %v343 = vmax.f32 %v338, 0.0
    %v344 = vmax.f32 %v341, 0.0
    %v345 = vpack.c.bf16 %v343, %v343
    %v346 = vpack.c.bf16 %v344, %v344
    %v349 = vrot.slane %v280, 3
    %v350 = vrot.slane %v281, 3
    %vm351 = vcmask 1040384
    %v354 = vsel %vm351, %v280, %v349
    %vm356 = vcmask 1041409
    %v357 = vsel %vm356, %v280, %v349
    %v359 = vrot.slane %v357, 1
    %vm360 = vcmask 1042434
    %v361 = vsel %vm360, %v280, %v349
    %v363 = vrot.slane %v361, 2
    %vm364 = vcmask 1043459
    %v365 = vsel %vm364, %v280, %v349
    %v367 = vrot.slane %v365, 3
    %v370 = vsel %vm351, %v281, %v350
    %v372 = vsel %vm356, %v281, %v350
    %v374 = vrot.slane %v372, 1
    %v375 = vsel %vm360, %v281, %v350
    %v377 = vrot.slane %v375, 2
    %v378 = vsel %vm364, %v281, %v350
    %v380 = vrot.slane %v378, 3
    %v381 = vunpack.i.l.s16 %v354
    %v382 = vunpack.i.h.s16 %v354
    %v383 = vunpack.i.l.s16 %v359
    %v384 = vunpack.i.h.s16 %v359
    %v385 = vunpack.i.l.s16 %v363
    %v386 = vunpack.i.h.s16 %v363
    %v387 = vunpack.i.l.s16 %v367
    %v388 = vunpack.i.h.s16 %v367
    %v389 = vunpack.i.l.s16 %v370
    %v390 = vunpack.i.h.s16 %v370
    %v391 = vunpack.i.l.s16 %v374
    %v392 = vunpack.i.h.s16 %v374
    %v393 = vunpack.i.l.s16 %v377
    %v394 = vunpack.i.h.s16 %v377
    %v395 = vunpack.i.l.s16 %v380
    %v396 = vunpack.i.h.s16 %v380
    %v399 = vrot.slane %v345, 3
    %v400 = vrot.slane %v346, 3
    %v403 = vsel %vm351, %v345, %v399
    %v405 = vsel %vm356, %v345, %v399
    %v407 = vrot.slane %v405, 1
    %v408 = vsel %vm360, %v345, %v399
    %v410 = vrot.slane %v408, 2
    %v411 = vsel %vm364, %v345, %v399
    %v413 = vrot.slane %v411, 3
    %v416 = vsel %vm351, %v346, %v400
    %v418 = vsel %vm356, %v346, %v400
    %v420 = vrot.slane %v418, 1
    %v421 = vsel %vm360, %v346, %v400
    %v423 = vrot.slane %v421, 2
    %v424 = vsel %vm364, %v346, %v400
    %v426 = vrot.slane %v424, 3
    %v427 = vunpack.i.l.s16 %v403
    %v428 = vunpack.i.h.s16 %v403
    %v429 = vunpack.i.l.s16 %v407
    %v430 = vunpack.i.h.s16 %v407
    %v431 = vunpack.i.l.s16 %v410
    %v432 = vunpack.i.h.s16 %v410
    %v433 = vunpack.i.l.s16 %v413
    %v434 = vunpack.i.h.s16 %v413
    %v435 = vunpack.i.l.s16 %v416
    %v436 = vunpack.i.h.s16 %v416
    %v437 = vunpack.i.l.s16 %v420
    %v438 = vunpack.i.h.s16 %v420
    %v439 = vunpack.i.l.s16 %v423
    %v440 = vunpack.i.h.s16 %v423
    %v441 = vunpack.i.l.s16 %v426
    %v442 = vunpack.i.h.s16 %v426
    %v443 = vpack.i.b16 %v381, %v381
    %v444 = vpack.i.b16 %v382, %v382
    %v445 = vpack.i.b16 %v383, %v383
    %v446 = vpack.i.b16 %v384, %v384
    %v447 = vpack.i.b16 %v385, %v385
    %v448 = vpack.i.b16 %v386, %v386
    %v449 = vpack.i.b16 %v387, %v387
    %v450 = vpack.i.b16 %v388, %v388
    %v451 = vpack.i.b16 %v389, %v389
    %v452 = vpack.i.b16 %v390, %v390
    %v453 = vpack.i.b16 %v391, %v391
    %v454 = vpack.i.b16 %v392, %v392
    %v455 = vpack.i.b16 %v393, %v393
    %v456 = vpack.i.b16 %v394, %v394
    %v457 = vpack.i.b16 %v395, %v395
    %v458 = vpack.i.b16 %v396, %v396
    %v459 = vperm.slane %v443, 0
    %v460 = vperm.slane %v444, 0
    %v461 = vperm.slane %v445, 0
    %v462 = vperm.slane %v446, 0
    %v463 = vperm.slane %v447, 0
    %v464 = vperm.slane %v448, 0
    %v465 = vperm.slane %v449, 0
    %v466 = vperm.slane %v450, 0
    %v467 = vperm.slane %v451, 0
    %v468 = vperm.slane %v452, 0
    %v469 = vperm.slane %v453, 0
    %v470 = vperm.slane %v454, 0
    %v471 = vperm.slane %v455, 0
    %v472 = vperm.slane %v456, 0
    %v473 = vperm.slane %v457, 0
    %v474 = vperm.slane %v458, 0
    %v491 = vpack.i.b16 %v427, %v427
    %v492 = vpack.i.b16 %v428, %v428
    %v493 = vpack.i.b16 %v429, %v429
    %v494 = vpack.i.b16 %v430, %v430
    %v495 = vpack.i.b16 %v431, %v431
    %v496 = vpack.i.b16 %v432, %v432
    %v497 = vpack.i.b16 %v433, %v433
    %v498 = vpack.i.b16 %v434, %v434
    %v499 = vpack.i.b16 %v435, %v435
    %v500 = vpack.i.b16 %v436, %v436
    %v501 = vpack.i.b16 %v437, %v437
    %v502 = vpack.i.b16 %v438, %v438
    %v503 = vpack.i.b16 %v439, %v439
    %v504 = vpack.i.b16 %v440, %v440
    %v505 = vpack.i.b16 %v441, %v441
    %v506 = vpack.i.b16 %v442, %v442
    %v507 = vperm.slane %v491, 0
    %v508 = vperm.slane %v492, 0
    %v509 = vperm.slane %v493, 0
    %v510 = vperm.slane %v494, 0
    %v511 = vperm.slane %v495, 0
    %v512 = vperm.slane %v496, 0
    %v513 = vperm.slane %v497, 0
    %v514 = vperm.slane %v498, 0
    %v515 = vperm.slane %v499, 0
    %v516 = vperm.slane %v500, 0
    %v517 = vperm.slane %v501, 0
    %v518 = vperm.slane %v502, 0
    %v519 = vperm.slane %v503, 0
    %v520 = vperm.slane %v504, 0
    %v521 = vperm.slane %v505, 0
    %v522 = vperm.slane %v506, 0
    %vm539 = vcmask 1040384
    %vm540 = vsmask.f32 256
    %vm541 = vmand %vm539, %vm540
    %v542 = vsel %vm541, %v459, %v507
    %v543 = vsel %vm541, %v460, %v508
    %v544 = vsel %vm541, %v461, %v509
    %v545 = vsel %vm541, %v462, %v510
    %v546 = vsel %vm541, %v463, %v511
    %v547 = vsel %vm541, %v464, %v512
    %v548 = vsel %vm541, %v465, %v513
    %v549 = vsel %vm541, %v466, %v514
    %v550 = vsel %vm541, %v467, %v515
    %v551 = vsel %vm541, %v468, %v516
    %v552 = vsel %vm541, %v469, %v517
    %v553 = vsel %vm541, %v470, %v518
    %v554 = vsel %vm541, %v471, %v519
    %v555 = vsel %vm541, %v472, %v520
    %v556 = vsel %vm541, %v473, %v521
    %v557 = vsel %vm541, %v474, %v522
    %v558 = vld [vmem:[#allocation7] sm:$0xff]
    %v559 = vld [vmem:[#allocation7 + $0x8] sm:$0xff]
    %v560 = vld [vmem:[#allocation7 + $0x10] sm:$0xff]
    %v561 = vld [vmem:[#allocation7 + $0x18] sm:$0xff]
    %v562 = vld [vmem:[#allocation7 + $0x20] sm:$0xff]
    %v563 = vld [vmem:[#allocation7 + $0x28] sm:$0xff]
    %v564 = vld [vmem:[#allocation7 + $0x30] sm:$0xff]
    %v565 = vld [vmem:[#allocation7 + $0x38] sm:$0xff]
    %v566 = vld [vmem:[#allocation7 + $0x40] sm:$0xff]
    %v567 = vld [vmem:[#allocation7 + $0x48] sm:$0xff]
    %v568 = vld [vmem:[#allocation7 + $0x50] sm:$0xff]
    %v569 = vld [vmem:[#allocation7 + $0x58] sm:$0xff]
    %v570 = vld [vmem:[#allocation7 + $0x60] sm:$0xff]
    %v571 = vld [vmem:[#allocation7 + $0x68] sm:$0xff]
    %v572 = vld [vmem:[#allocation7 + $0x70] sm:$0xff]
    %v573 = vld [vmem:[#allocation7 + $0x78] sm:$0xff]
    %v574 = vld [vmem:[#allocation7 + $0x80] sm:$0xff]
    %v575 = vld [vmem:[#allocation7 + $0x88] sm:$0xff]
    %v576 = vld [vmem:[#allocation7 + $0x90] sm:$0xff]
    %v577 = vld [vmem:[#allocation7 + $0x98] sm:$0xff]
    %v578 = vld [vmem:[#allocation7 + $0xa0] sm:$0xff]
    %v579 = vld [vmem:[#allocation7 + $0xa8] sm:$0xff]
    %v580 = vld [vmem:[#allocation7 + $0xb0] sm:$0xff]
    %v581 = vld [vmem:[#allocation7 + $0xb8] sm:$0xff]
    %v582 = vld [vmem:[#allocation7 + $0xc0] sm:$0xff]
    %v583 = vld [vmem:[#allocation7 + $0xc8] sm:$0xff]
    %v584 = vld [vmem:[#allocation7 + $0xd0] sm:$0xff]
    %v585 = vld [vmem:[#allocation7 + $0xd8] sm:$0xff]
    %v586 = vld [vmem:[#allocation7 + $0xe0] sm:$0xff]
    %v587 = vld [vmem:[#allocation7 + $0xe8] sm:$0xff]
    %v588 = vld [vmem:[#allocation7 + $0xf0] sm:$0xff]
    %v589 = vld [vmem:[#allocation7 + $0xf8] sm:$0xff]
    %v590 = vld [vmem:[#allocation7 + $0x100] sm:$0xff]
    %v591 = vld [vmem:[#allocation7 + $0x108] sm:$0xff]
    %v592 = vld [vmem:[#allocation7 + $0x110] sm:$0xff]
    %v593 = vld [vmem:[#allocation7 + $0x118] sm:$0xff]
    %v594 = vld [vmem:[#allocation7 + $0x120] sm:$0xff]
    %v595 = vld [vmem:[#allocation7 + $0x128] sm:$0xff]
    %v596 = vld [vmem:[#allocation7 + $0x130] sm:$0xff]
    %v597 = vld [vmem:[#allocation7 + $0x138] sm:$0xff]
    %v598 = vld [vmem:[#allocation7 + $0x140] sm:$0xff]
    %v599 = vld [vmem:[#allocation7 + $0x148] sm:$0xff]
    %v600 = vld [vmem:[#allocation7 + $0x150] sm:$0xff]
    %v601 = vld [vmem:[#allocation7 + $0x158] sm:$0xff]
    %v602 = vld [vmem:[#allocation7 + $0x160] sm:$0xff]
    %v603 = vld [vmem:[#allocation7 + $0x168] sm:$0xff]
    %v604 = vld [vmem:[#allocation7 + $0x170] sm:$0xff]
    %v605 = vld [vmem:[#allocation7 + $0x178] sm:$0xff]
    %v606 = vld [vmem:[#allocation7 + $0x180] sm:$0xff]
    %v607 = vld [vmem:[#allocation7 + $0x188] sm:$0xff]
    %v608 = vld [vmem:[#allocation7 + $0x190] sm:$0xff]
    %v609 = vld [vmem:[#allocation7 + $0x198] sm:$0xff]
    %v610 = vld [vmem:[#allocation7 + $0x1a0] sm:$0xff]
    %v611 = vld [vmem:[#allocation7 + $0x1a8] sm:$0xff]
    %v612 = vld [vmem:[#allocation7 + $0x1b0] sm:$0xff]
    %v613 = vld [vmem:[#allocation7 + $0x1b8] sm:$0xff]
    %v614 = vld [vmem:[#allocation7 + $0x1c0] sm:$0xff]
    %v615 = vld [vmem:[#allocation7 + $0x1c8] sm:$0xff]
    %v616 = vld [vmem:[#allocation7 + $0x1d0] sm:$0xff]
    %v617 = vld [vmem:[#allocation7 + $0x1d8] sm:$0xff]
    %v618 = vld [vmem:[#allocation7 + $0x1e0] sm:$0xff]
    %v619 = vld [vmem:[#allocation7 + $0x1e8] sm:$0xff]
    %v620 = vld [vmem:[#allocation7 + $0x1f0] sm:$0xff]
    %v621 = vld [vmem:[#allocation7 + $0x1f8] sm:$0xff]
    %s622 = scalar_lea.vmem [#allocation7], 512
    %v623 = vld [vmem:[%s622] sm:$0xff]
    %v624 = vld [vmem:[%s622 + $0x8] sm:$0xff]
    %v625 = vld [vmem:[%s622 + $0x10] sm:$0xff]
    %v626 = vld [vmem:[%s622 + $0x18] sm:$0xff]
    %v627 = vld [vmem:[%s622 + $0x20] sm:$0xff]
    %v628 = vld [vmem:[%s622 + $0x28] sm:$0xff]
    %v629 = vld [vmem:[%s622 + $0x30] sm:$0xff]
    %v630 = vld [vmem:[%s622 + $0x38] sm:$0xff]
    %v631 = vld [vmem:[%s622 + $0x40] sm:$0xff]
    %v632 = vld [vmem:[%s622 + $0x48] sm:$0xff]
    %v633 = vld [vmem:[%s622 + $0x50] sm:$0xff]
    %v634 = vld [vmem:[%s622 + $0x58] sm:$0xff]
    %v635 = vld [vmem:[%s622 + $0x60] sm:$0xff]
    %v636 = vld [vmem:[%s622 + $0x68] sm:$0xff]
    %v637 = vld [vmem:[%s622 + $0x70] sm:$0xff]
    %v638 = vld [vmem:[%s622 + $0x78] sm:$0xff]
    %v639 = vld [vmem:[%s622 + $0x80] sm:$0xff]
    %v640 = vld [vmem:[%s622 + $0x88] sm:$0xff]
    %v641 = vld [vmem:[%s622 + $0x90] sm:$0xff]
    %v642 = vld [vmem:[%s622 + $0x98] sm:$0xff]
    %v643 = vld [vmem:[%s622 + $0xa0] sm:$0xff]
    %v644 = vld [vmem:[%s622 + $0xa8] sm:$0xff]
    %v645 = vld [vmem:[%s622 + $0xb0] sm:$0xff]
    %v646 = vld [vmem:[%s622 + $0xb8] sm:$0xff]
    %v647 = vld [vmem:[%s622 + $0xc0] sm:$0xff]
    %v648 = vld [vmem:[%s622 + $0xc8] sm:$0xff]
    %v649 = vld [vmem:[%s622 + $0xd0] sm:$0xff]
    %v650 = vld [vmem:[%s622 + $0xd8] sm:$0xff]
    %v651 = vld [vmem:[%s622 + $0xe0] sm:$0xff]
    %v652 = vld [vmem:[%s622 + $0xe8] sm:$0xff]
    %v653 = vld [vmem:[%s622 + $0xf0] sm:$0xff]
    %v654 = vld [vmem:[%s622 + $0xf8] sm:$0xff]
    %v655 = vld [vmem:[%s622 + $0x100] sm:$0xff]
    %v656 = vld [vmem:[%s622 + $0x108] sm:$0xff]
    %v657 = vld [vmem:[%s622 + $0x110] sm:$0xff]
    %v658 = vld [vmem:[%s622 + $0x118] sm:$0xff]
    %v659 = vld [vmem:[%s622 + $0x120] sm:$0xff]
    %v660 = vld [vmem:[%s622 + $0x128] sm:$0xff]
    %v661 = vld [vmem:[%s622 + $0x130] sm:$0xff]
    %v662 = vld [vmem:[%s622 + $0x138] sm:$0xff]
    %v663 = vld [vmem:[%s622 + $0x140] sm:$0xff]
    %v664 = vld [vmem:[%s622 + $0x148] sm:$0xff]
    %v665 = vld [vmem:[%s622 + $0x150] sm:$0xff]
    %v666 = vld [vmem:[%s622 + $0x158] sm:$0xff]
    %v667 = vld [vmem:[%s622 + $0x160] sm:$0xff]
    %v668 = vld [vmem:[%s622 + $0x168] sm:$0xff]
    %v669 = vld [vmem:[%s622 + $0x170] sm:$0xff]
    %v670 = vld [vmem:[%s622 + $0x178] sm:$0xff]
    %v671 = vld [vmem:[%s622 + $0x180] sm:$0xff]
    %v672 = vld [vmem:[%s622 + $0x188] sm:$0xff]
    %v673 = vld [vmem:[%s622 + $0x190] sm:$0xff]
    %v674 = vld [vmem:[%s622 + $0x198] sm:$0xff]
    %v675 = vld [vmem:[%s622 + $0x1a0] sm:$0xff]
    %v676 = vld [vmem:[%s622 + $0x1a8] sm:$0xff]
    %v677 = vld [vmem:[%s622 + $0x1b0] sm:$0xff]
    %v678 = vld [vmem:[%s622 + $0x1b8] sm:$0xff]
    %v679 = vld [vmem:[%s622 + $0x1c0] sm:$0xff]
    %v680 = vld [vmem:[%s622 + $0x1c8] sm:$0xff]
    %v681 = vld [vmem:[%s622 + $0x1d0] sm:$0xff]
    %v682 = vld [vmem:[%s622 + $0x1d8] sm:$0xff]
    %v683 = vld [vmem:[%s622 + $0x1e0] sm:$0xff]
    %v684 = vld [vmem:[%s622 + $0x1e8] sm:$0xff]
    %v685 = vld [vmem:[%s622 + $0x1f0] sm:$0xff]
    %v686 = vld [vmem:[%s622 + $0x1f8] sm:$0xff]
    %v751 = vunpack.c.l.b16 %v623
    %v752 = vunpack.c.h.b16 %v623
    %v753 = vunpack.c.l.b16 %v624
    %v754 = vunpack.c.h.b16 %v624
    %v755 = vunpack.c.l.b16 %v625
    %v756 = vunpack.c.h.b16 %v625
    %v757 = vunpack.c.l.b16 %v626
    %v758 = vunpack.c.h.b16 %v626
    %v759 = vunpack.c.l.b16 %v627
    %v760 = vunpack.c.h.b16 %v627
    %v761 = vunpack.c.l.b16 %v628
    %v762 = vunpack.c.h.b16 %v628
    %v763 = vunpack.c.l.b16 %v629
    %v764 = vunpack.c.h.b16 %v629
    %v765 = vunpack.c.l.b16 %v630
    %v766 = vunpack.c.h.b16 %v630
    %v767 = vunpack.c.l.b16 %v631
    %v768 = vunpack.c.h.b16 %v631
    %v769 = vunpack.c.l.b16 %v632
    %v770 = vunpack.c.h.b16 %v632
    %v771 = vunpack.c.l.b16 %v633
    %v772 = vunpack.c.h.b16 %v633
    %v773 = vunpack.c.l.b16 %v634
    %v774 = vunpack.c.h.b16 %v634
    %v775 = vunpack.c.l.b16 %v635
    %v776 = vunpack.c.h.b16 %v635
    %v777 = vunpack.c.l.b16 %v636
    %v778 = vunpack.c.h.b16 %v636
    %v779 = vunpack.c.l.b16 %v637
    %v780 = vunpack.c.h.b16 %v637
    %v781 = vunpack.c.l.b16 %v638
    %v782 = vunpack.c.h.b16 %v638
    %v783 = vunpack.c.l.b16 %v639
    %v784 = vunpack.c.h.b16 %v639
    %v785 = vunpack.c.l.b16 %v640
    %v786 = vunpack.c.h.b16 %v640
    %v787 = vunpack.c.l.b16 %v641
    %v788 = vunpack.c.h.b16 %v641
    %v789 = vunpack.c.l.b16 %v642
    %v790 = vunpack.c.h.b16 %v642
    %v791 = vunpack.c.l.b16 %v643
    %v792 = vunpack.c.h.b16 %v643
    %v793 = vunpack.c.l.b16 %v644
    %v794 = vunpack.c.h.b16 %v644
    %v795 = vunpack.c.l.b16 %v645
    %v796 = vunpack.c.h.b16 %v645
    %v797 = vunpack.c.l.b16 %v646
    %v798 = vunpack.c.h.b16 %v646
    %v799 = vunpack.c.l.b16 %v647
    %v800 = vunpack.c.h.b16 %v647
    %v801 = vunpack.c.l.b16 %v648
    %v802 = vunpack.c.h.b16 %v648
    %v803 = vunpack.c.l.b16 %v649
    %v804 = vunpack.c.h.b16 %v649
    %v805 = vunpack.c.l.b16 %v650
    %v806 = vunpack.c.h.b16 %v650
    %v807 = vunpack.c.l.b16 %v651
    %v808 = vunpack.c.h.b16 %v651
    %v809 = vunpack.c.l.b16 %v652
    %v810 = vunpack.c.h.b16 %v652
    %v811 = vunpack.c.l.b16 %v653
    %v812 = vunpack.c.h.b16 %v653
    %v813 = vunpack.c.l.b16 %v654
    %v814 = vunpack.c.h.b16 %v654
    %v815 = vunpack.c.l.b16 %v655
    %v816 = vunpack.c.h.b16 %v655
    %v817 = vunpack.c.l.b16 %v656
    %v818 = vunpack.c.h.b16 %v656
    %v819 = vunpack.c.l.b16 %v657
    %v820 = vunpack.c.h.b16 %v657
    %v821 = vunpack.c.l.b16 %v658
    %v822 = vunpack.c.h.b16 %v658
    %v823 = vunpack.c.l.b16 %v659
    %v824 = vunpack.c.h.b16 %v659
    %v825 = vunpack.c.l.b16 %v660
    %v826 = vunpack.c.h.b16 %v660
    %v827 = vunpack.c.l.b16 %v661
    %v828 = vunpack.c.h.b16 %v661
    %v829 = vunpack.c.l.b16 %v662
    %v830 = vunpack.c.h.b16 %v662
    %v831 = vunpack.c.l.b16 %v663
    %v832 = vunpack.c.h.b16 %v663
    %v833 = vunpack.c.l.b16 %v664
    %v834 = vunpack.c.h.b16 %v664
    %v835 = vunpack.c.l.b16 %v665
    %v836 = vunpack.c.h.b16 %v665
    %v837 = vunpack.c.l.b16 %v666
    %v838 = vunpack.c.h.b16 %v666
    %v839 = vunpack.c.l.b16 %v667
    %v840 = vunpack.c.h.b16 %v667
    %v841 = vunpack.c.l.b16 %v668
    %v842 = vunpack.c.h.b16 %v668
    %v843 = vunpack.c.l.b16 %v669
    %v844 = vunpack.c.h.b16 %v669
    %v845 = vunpack.c.l.b16 %v670
    %v846 = vunpack.c.h.b16 %v670
    %v847 = vunpack.c.l.b16 %v671
    %v848 = vunpack.c.h.b16 %v671
    %v849 = vunpack.c.l.b16 %v672
    %v850 = vunpack.c.h.b16 %v672
    %v851 = vunpack.c.l.b16 %v673
    %v852 = vunpack.c.h.b16 %v673
    %v853 = vunpack.c.l.b16 %v674
    %v854 = vunpack.c.h.b16 %v674
    %v855 = vunpack.c.l.b16 %v675
    %v856 = vunpack.c.h.b16 %v675
    %v857 = vunpack.c.l.b16 %v676
    %v858 = vunpack.c.h.b16 %v676
    %v859 = vunpack.c.l.b16 %v677
    %v860 = vunpack.c.h.b16 %v677
    %v861 = vunpack.c.l.b16 %v678
    %v862 = vunpack.c.h.b16 %v678
    %v863 = vunpack.c.l.b16 %v679
    %v864 = vunpack.c.h.b16 %v679
    %v865 = vunpack.c.l.b16 %v680
    %v866 = vunpack.c.h.b16 %v680
    %v867 = vunpack.c.l.b16 %v681
    %v868 = vunpack.c.h.b16 %v681
    %v869 = vunpack.c.l.b16 %v682
    %v870 = vunpack.c.h.b16 %v682
    %v871 = vunpack.c.l.b16 %v683
    %v872 = vunpack.c.h.b16 %v683
    %v873 = vunpack.c.l.b16 %v684
    %v874 = vunpack.c.h.b16 %v684
    %v875 = vunpack.c.l.b16 %v685
    %v876 = vunpack.c.h.b16 %v685
    %v877 = vunpack.c.l.b16 %v686
    %v878 = vunpack.c.h.b16 %v686
    %v879 = vpack.c.b16 %v759, %v751
    %v880 = vpack.c.b16 %v760, %v752
    %v881 = vpack.c.b16 %v761, %v753
    %v882 = vpack.c.b16 %v762, %v754
    %v883 = vpack.c.b16 %v763, %v755
    %v884 = vpack.c.b16 %v764, %v756
    %v885 = vpack.c.b16 %v765, %v757
    %v886 = vpack.c.b16 %v766, %v758
    %v887 = vpack.c.b16 %v775, %v767
    %v888 = vpack.c.b16 %v776, %v768
    %v889 = vpack.c.b16 %v777, %v769
    %v890 = vpack.c.b16 %v778, %v770
    %v891 = vpack.c.b16 %v779, %v771
    %v892 = vpack.c.b16 %v780, %v772
    %v893 = vpack.c.b16 %v781, %v773
    %v894 = vpack.c.b16 %v782, %v774
    %v895 = vpack.c.b16 %v791, %v783
    %v896 = vpack.c.b16 %v792, %v784
    %v897 = vpack.c.b16 %v793, %v785
    %v898 = vpack.c.b16 %v794, %v786
    %v899 = vpack.c.b16 %v795, %v787
    %v900 = vpack.c.b16 %v796, %v788
    %v901 = vpack.c.b16 %v797, %v789
    %v902 = vpack.c.b16 %v798, %v790
    %v903 = vpack.c.b16 %v807, %v799
    %v904 = vpack.c.b16 %v808, %v800
    %v905 = vpack.c.b16 %v809, %v801
    %v906 = vpack.c.b16 %v810, %v802
    %v907 = vpack.c.b16 %v811, %v803
    %v908 = vpack.c.b16 %v812, %v804
    %v909 = vpack.c.b16 %v813, %v805
    %v910 = vpack.c.b16 %v814, %v806
    %v911 = vpack.c.b16 %v823, %v815
    %v912 = vpack.c.b16 %v824, %v816
    %v913 = vpack.c.b16 %v825, %v817
    %v914 = vpack.c.b16 %v826, %v818
    %v915 = vpack.c.b16 %v827, %v819
    %v916 = vpack.c.b16 %v828, %v820
    %v917 = vpack.c.b16 %v829, %v821
    %v918 = vpack.c.b16 %v830, %v822
    %v919 = vpack.c.b16 %v839, %v831
    %v920 = vpack.c.b16 %v840, %v832
    %v921 = vpack.c.b16 %v841, %v833
    %v922 = vpack.c.b16 %v842, %v834
    %v923 = vpack.c.b16 %v843, %v835
    %v924 = vpack.c.b16 %v844, %v836
    %v925 = vpack.c.b16 %v845, %v837
    %v926 = vpack.c.b16 %v846, %v838
    %v927 = vpack.c.b16 %v855, %v847
    %v928 = vpack.c.b16 %v856, %v848
    %v929 = vpack.c.b16 %v857, %v849
    %v930 = vpack.c.b16 %v858, %v850
    %v931 = vpack.c.b16 %v859, %v851
    %v932 = vpack.c.b16 %v860, %v852
    %v933 = vpack.c.b16 %v861, %v853
    %v934 = vpack.c.b16 %v862, %v854
    %v935 = vpack.c.b16 %v871, %v863
    %v936 = vpack.c.b16 %v872, %v864
    %v937 = vpack.c.b16 %v873, %v865
    %v938 = vpack.c.b16 %v874, %v866
    %v939 = vpack.c.b16 %v875, %v867
    %v940 = vpack.c.b16 %v876, %v868
    %v941 = vpack.c.b16 %v877, %v869
    %v942 = vpack.c.b16 %v878, %v870
    %1007 = vmatpush.bf16.msra.mxu0 %v935
    %1008 = vmatpush.bf16.msra.mxu0 %v927
    %1009 = vmatpush.bf16.msra.mxu0 %v919
    %1010 = vmatpush.bf16.msra.mxu0 %v911
    %1011 = vmatpush.bf16.msra.mxu0 %v903
    %1012 = vmatpush.bf16.msra.mxu0 %v895
    %1013 = vmatpush.bf16.msra.mxu0 %v887
    %1014 = vmatpush.bf16.msra.mxu0 %v879
    %1015 = vmatmul.bf16.gmra.mxu0 %v543
    %v1016 = vpop.f32.mrf.mxu0
    %v1017 = vadd.f32 0.0, %v1016
    %v1018 = vpop.f32.mrf.mxu0
    %1019 = vdwg.mxu0
    %1020 = vmatpush.bf16.msra.mxu0 %v936
    %1021 = vmatpush.bf16.msra.mxu0 %v928
    %1022 = vmatpush.bf16.msra.mxu0 %v920
    %1023 = vmatpush.bf16.msra.mxu0 %v912
    %1024 = vmatpush.bf16.msra.mxu0 %v904
    %1025 = vmatpush.bf16.msra.mxu0 %v896
    %1026 = vmatpush.bf16.msra.mxu0 %v888
    %1027 = vmatpush.bf16.msra.mxu0 %v880
    %1028 = vmatmul.bf16.gmra.mxu0 %v543
    %v1029 = vpop.f32.mrf.mxu0
    %v1030 = vadd.f32 0.0, %v1029
    %v1031 = vpop.f32.mrf.mxu0
    %1032 = vdwg.mxu0
    %1033 = vmatpush.bf16.msra.mxu0 %v937
    %1034 = vmatpush.bf16.msra.mxu0 %v929
    %1035 = vmatpush.bf16.msra.mxu0 %v921
    %1036 = vmatpush.bf16.msra.mxu0 %v913
    %1037 = vmatpush.bf16.msra.mxu0 %v905
    %1038 = vmatpush.bf16.msra.mxu0 %v897
    %1039 = vmatpush.bf16.msra.mxu0 %v889
    %1040 = vmatpush.bf16.msra.mxu0 %v881
    %1041 = vmatmul.bf16.gmra.mxu0 %v543
    %v1042 = vpop.f32.mrf.mxu0
    %v1043 = vadd.f32 0.0, %v1042
    %v1044 = vpop.f32.mrf.mxu0
    %1045 = vdwg.mxu0
    %1046 = vmatpush.bf16.msra.mxu0 %v938
    %1047 = vmatpush.bf16.msra.mxu0 %v930
    %1048 = vmatpush.bf16.msra.mxu0 %v922
    %1049 = vmatpush.bf16.msra.mxu0 %v914
    %1050 = vmatpush.bf16.msra.mxu0 %v906
    %1051 = vmatpush.bf16.msra.mxu0 %v898
    %1052 = vmatpush.bf16.msra.mxu0 %v890
    %1053 = vmatpush.bf16.msra.mxu0 %v882
    %1054 = vmatmul.bf16.gmra.mxu0 %v543
    %v1055 = vpop.f32.mrf.mxu0
    %v1056 = vadd.f32 0.0, %v1055
    %v1057 = vpop.f32.mrf.mxu0
    %1058 = vdwg.mxu0
    %1059 = vmatpush.bf16.msra.mxu0 %v939
    %1060 = vmatpush.bf16.msra.mxu0 %v931
    %1061 = vmatpush.bf16.msra.mxu0 %v923
    %1062 = vmatpush.bf16.msra.mxu0 %v915
    %1063 = vmatpush.bf16.msra.mxu0 %v907
    %1064 = vmatpush.bf16.msra.mxu0 %v899
    %1065 = vmatpush.bf16.msra.mxu0 %v891
    %1066 = vmatpush.bf16.msra.mxu0 %v883
    %1067 = vmatmul.bf16.gmra.mxu0 %v543
    %v1068 = vpop.f32.mrf.mxu0
    %v1069 = vadd.f32 0.0, %v1068
    %v1070 = vpop.f32.mrf.mxu0
    %1071 = vdwg.mxu0
    %1072 = vmatpush.bf16.msra.mxu0 %v940
    %1073 = vmatpush.bf16.msra.mxu0 %v932
    %1074 = vmatpush.bf16.msra.mxu0 %v924
    %1075 = vmatpush.bf16.msra.mxu0 %v916
    %1076 = vmatpush.bf16.msra.mxu0 %v908
    %1077 = vmatpush.bf16.msra.mxu0 %v900
    %1078 = vmatpush.bf16.msra.mxu0 %v892
    %1079 = vmatpush.bf16.msra.mxu0 %v884
    %1080 = vmatmul.bf16.gmra.mxu0 %v543
    %v1081 = vpop.f32.mrf.mxu0
    %v1082 = vadd.f32 0.0, %v1081
    %v1083 = vpop.f32.mrf.mxu0
    %1084 = vdwg.mxu0
    %1085 = vmatpush.bf16.msra.mxu0 %v941
    %1086 = vmatpush.bf16.msra.mxu0 %v933
    %1087 = vmatpush.bf16.msra.mxu0 %v925
    %1088 = vmatpush.bf16.msra.mxu0 %v917
    %1089 = vmatpush.bf16.msra.mxu0 %v909
    %1090 = vmatpush.bf16.msra.mxu0 %v901
    %1091 = vmatpush.bf16.msra.mxu0 %v893
    %1092 = vmatpush.bf16.msra.mxu0 %v885
    %1093 = vmatmul.bf16.gmra.mxu0 %v543
    %v1094 = vpop.f32.mrf.mxu0
    %v1095 = vadd.f32 0.0, %v1094
    %v1096 = vpop.f32.mrf.mxu0
    %1097 = vdwg.mxu0
    %1098 = vmatpush.bf16.msra.mxu0 %v942
    %1099 = vmatpush.bf16.msra.mxu0 %v934
    %1100 = vmatpush.bf16.msra.mxu0 %v926
    %1101 = vmatpush.bf16.msra.mxu0 %v918
    %1102 = vmatpush.bf16.msra.mxu0 %v910
    %1103 = vmatpush.bf16.msra.mxu0 %v902
    %1104 = vmatpush.bf16.msra.mxu0 %v894
    %1105 = vmatpush.bf16.msra.mxu0 %v886
    %1106 = vmatmul.bf16.gmra.mxu0 %v543
    %v1107 = vpop.f32.mrf.mxu0
    %v1108 = vadd.f32 0.0, %v1107
    %v1109 = vpop.f32.mrf.mxu0
    %1110 = vdwg.mxu0
    %v1175 = vunpack.c.l.b16 %v558
    %v1176 = vunpack.c.h.b16 %v558
    %v1177 = vunpack.c.l.b16 %v559
    %v1178 = vunpack.c.h.b16 %v559
    %v1179 = vunpack.c.l.b16 %v560
    %v1180 = vunpack.c.h.b16 %v560
    %v1181 = vunpack.c.l.b16 %v561
    %v1182 = vunpack.c.h.b16 %v561
    %v1183 = vunpack.c.l.b16 %v562
    %v1184 = vunpack.c.h.b16 %v562
    %v1185 = vunpack.c.l.b16 %v563
    %v1186 = vunpack.c.h.b16 %v563
    %v1187 = vunpack.c.l.b16 %v564
    %v1188 = vunpack.c.h.b16 %v564
    %v1189 = vunpack.c.l.b16 %v565
    %v1190 = vunpack.c.h.b16 %v565
    %v1191 = vunpack.c.l.b16 %v566
    %v1192 = vunpack.c.h.b16 %v566
    %v1193 = vunpack.c.l.b16 %v567
    %v1194 = vunpack.c.h.b16 %v567
    %v1195 = vunpack.c.l.b16 %v568
    %v1196 = vunpack.c.h.b16 %v568
    %v1197 = vunpack.c.l.b16 %v569
    %v1198 = vunpack.c.h.b16 %v569
    %v1199 = vunpack.c.l.b16 %v570
    %v1200 = vunpack.c.h.b16 %v570
    %v1201 = vunpack.c.l.b16 %v571
    %v1202 = vunpack.c.h.b16 %v571
    %v1203 = vunpack.c.l.b16 %v572
    %v1204 = vunpack.c.h.b16 %v572
    %v1205 = vunpack.c.l.b16 %v573
    %v1206 = vunpack.c.h.b16 %v573
    %v1207 = vunpack.c.l.b16 %v574
    %v1208 = vunpack.c.h.b16 %v574
    %v1209 = vunpack.c.l.b16 %v575
    %v1210 = vunpack.c.h.b16 %v575
    %v1211 = vunpack.c.l.b16 %v576
    %v1212 = vunpack.c.h.b16 %v576
    %v1213 = vunpack.c.l.b16 %v577
    %v1214 = vunpack.c.h.b16 %v577
    %v1215 = vunpack.c.l.b16 %v578
    %v1216 = vunpack.c.h.b16 %v578
    %v1217 = vunpack.c.l.b16 %v579
    %v1218 = vunpack.c.h.b16 %v579
    %v1219 = vunpack.c.l.b16 %v580
    %v1220 = vunpack.c.h.b16 %v580
    %v1221 = vunpack.c.l.b16 %v581
    %v1222 = vunpack.c.h.b16 %v581
    %v1223 = vunpack.c.l.b16 %v582
    %v1224 = vunpack.c.h.b16 %v582
    %v1225 = vunpack.c.l.b16 %v583
    %v1226 = vunpack.c.h.b16 %v583
    %v1227 = vunpack.c.l.b16 %v584
    %v1228 = vunpack.c.h.b16 %v584
    %v1229 = vunpack.c.l.b16 %v585
    %v1230 = vunpack.c.h.b16 %v585
    %v1231 = vunpack.c.l.b16 %v586
    %v1232 = vunpack.c.h.b16 %v586
    %v1233 = vunpack.c.l.b16 %v587
    %v1234 = vunpack.c.h.b16 %v587
    %v1235 = vunpack.c.l.b16 %v588
    %v1236 = vunpack.c.h.b16 %v588
    %v1237 = vunpack.c.l.b16 %v589
    %v1238 = vunpack.c.h.b16 %v589
    %v1239 = vunpack.c.l.b16 %v590
    %v1240 = vunpack.c.h.b16 %v590
    %v1241 = vunpack.c.l.b16 %v591
    %v1242 = vunpack.c.h.b16 %v591
    %v1243 = vunpack.c.l.b16 %v592
    %v1244 = vunpack.c.h.b16 %v592
    %v1245 = vunpack.c.l.b16 %v593
    %v1246 = vunpack.c.h.b16 %v593
    %v1247 = vunpack.c.l.b16 %v594
    %v1248 = vunpack.c.h.b16 %v594
    %v1249 = vunpack.c.l.b16 %v595
    %v1250 = vunpack.c.h.b16 %v595
    %v1251 = vunpack.c.l.b16 %v596
    %v1252 = vunpack.c.h.b16 %v596
    %v1253 = vunpack.c.l.b16 %v597
    %v1254 = vunpack.c.h.b16 %v597
    %v1255 = vunpack.c.l.b16 %v598
    %v1256 = vunpack.c.h.b16 %v598
    %v1257 = vunpack.c.l.b16 %v599
    %v1258 = vunpack.c.h.b16 %v599
    %v1259 = vunpack.c.l.b16 %v600
    %v1260 = vunpack.c.h.b16 %v600
    %v1261 = vunpack.c.l.b16 %v601
    %v1262 = vunpack.c.h.b16 %v601
    %v1263 = vunpack.c.l.b16 %v602
    %v1264 = vunpack.c.h.b16 %v602
    %v1265 = vunpack.c.l.b16 %v603
    %v1266 = vunpack.c.h.b16 %v603
    %v1267 = vunpack.c.l.b16 %v604
    %v1268 = vunpack.c.h.b16 %v604
    %v1269 = vunpack.c.l.b16 %v605
    %v1270 = vunpack.c.h.b16 %v605
    %v1271 = vunpack.c.l.b16 %v606
    %v1272 = vunpack.c.h.b16 %v606
    %v1273 = vunpack.c.l.b16 %v607
    %v1274 = vunpack.c.h.b16 %v607
    %v1275 = vunpack.c.l.b16 %v608
    %v1276 = vunpack.c.h.b16 %v608
    %v1277 = vunpack.c.l.b16 %v609
    %v1278 = vunpack.c.h.b16 %v609
    %v1279 = vunpack.c.l.b16 %v610
    %v1280 = vunpack.c.h.b16 %v610
    %v1281 = vunpack.c.l.b16 %v611
    %v1282 = vunpack.c.h.b16 %v611
    %v1283 = vunpack.c.l.b16 %v612
    %v1284 = vunpack.c.h.b16 %v612
    %v1285 = vunpack.c.l.b16 %v613
    %v1286 = vunpack.c.h.b16 %v613
    %v1287 = vunpack.c.l.b16 %v614
    %v1288 = vunpack.c.h.b16 %v614
    %v1289 = vunpack.c.l.b16 %v615
    %v1290 = vunpack.c.h.b16 %v615
    %v1291 = vunpack.c.l.b16 %v616
    %v1292 = vunpack.c.h.b16 %v616
    %v1293 = vunpack.c.l.b16 %v617
    %v1294 = vunpack.c.h.b16 %v617
    %v1295 = vunpack.c.l.b16 %v618
    %v1296 = vunpack.c.h.b16 %v618
    %v1297 = vunpack.c.l.b16 %v619
    %v1298 = vunpack.c.h.b16 %v619
    %v1299 = vunpack.c.l.b16 %v620
    %v1300 = vunpack.c.h.b16 %v620
    %v1301 = vunpack.c.l.b16 %v621
    %v1302 = vunpack.c.h.b16 %v621
    %v1303 = vpack.c.b16 %v1183, %v1175
    %v1304 = vpack.c.b16 %v1184, %v1176
    %v1305 = vpack.c.b16 %v1185, %v1177
    %v1306 = vpack.c.b16 %v1186, %v1178
    %v1307 = vpack.c.b16 %v1187, %v1179
    %v1308 = vpack.c.b16 %v1188, %v1180
    %v1309 = vpack.c.b16 %v1189, %v1181
    %v1310 = vpack.c.b16 %v1190, %v1182
    %v1311 = vpack.c.b16 %v1199, %v1191
    %v1312 = vpack.c.b16 %v1200, %v1192
    %v1313 = vpack.c.b16 %v1201, %v1193
    %v1314 = vpack.c.b16 %v1202, %v1194
    %v1315 = vpack.c.b16 %v1203, %v1195
    %v1316 = vpack.c.b16 %v1204, %v1196
    %v1317 = vpack.c.b16 %v1205, %v1197
    %v1318 = vpack.c.b16 %v1206, %v1198
    %v1319 = vpack.c.b16 %v1215, %v1207
    %v1320 = vpack.c.b16 %v1216, %v1208
    %v1321 = vpack.c.b16 %v1217, %v1209
    %v1322 = vpack.c.b16 %v1218, %v1210
    %v1323 = vpack.c.b16 %v1219, %v1211
    %v1324 = vpack.c.b16 %v1220, %v1212
    %v1325 = vpack.c.b16 %v1221, %v1213
    %v1326 = vpack.c.b16 %v1222, %v1214
    %v1327 = vpack.c.b16 %v1231, %v1223
    %v1328 = vpack.c.b16 %v1232, %v1224
    %v1329 = vpack.c.b16 %v1233, %v1225
    %v1330 = vpack.c.b16 %v1234, %v1226
    %v1331 = vpack.c.b16 %v1235, %v1227
    %v1332 = vpack.c.b16 %v1236, %v1228
    %v1333 = vpack.c.b16 %v1237, %v1229
    %v1334 = vpack.c.b16 %v1238, %v1230
    %v1335 = vpack.c.b16 %v1247, %v1239
    %v1336 = vpack.c.b16 %v1248, %v1240
    %v1337 = vpack.c.b16 %v1249, %v1241
    %v1338 = vpack.c.b16 %v1250, %v1242
    %v1339 = vpack.c.b16 %v1251, %v1243
    %v1340 = vpack.c.b16 %v1252, %v1244
    %v1341 = vpack.c.b16 %v1253, %v1245
    %v1342 = vpack.c.b16 %v1254, %v1246
    %v1343 = vpack.c.b16 %v1263, %v1255
    %v1344 = vpack.c.b16 %v1264, %v1256
    %v1345 = vpack.c.b16 %v1265, %v1257
    %v1346 = vpack.c.b16 %v1266, %v1258
    %v1347 = vpack.c.b16 %v1267, %v1259
    %v1348 = vpack.c.b16 %v1268, %v1260
    %v1349 = vpack.c.b16 %v1269, %v1261
    %v1350 = vpack.c.b16 %v1270, %v1262
    %v1351 = vpack.c.b16 %v1279, %v1271
    %v1352 = vpack.c.b16 %v1280, %v1272
    %v1353 = vpack.c.b16 %v1281, %v1273
    %v1354 = vpack.c.b16 %v1282, %v1274
    %v1355 = vpack.c.b16 %v1283, %v1275
    %v1356 = vpack.c.b16 %v1284, %v1276
    %v1357 = vpack.c.b16 %v1285, %v1277
    %v1358 = vpack.c.b16 %v1286, %v1278
    %v1359 = vpack.c.b16 %v1295, %v1287
    %v1360 = vpack.c.b16 %v1296, %v1288
    %v1361 = vpack.c.b16 %v1297, %v1289
    %v1362 = vpack.c.b16 %v1298, %v1290
    %v1363 = vpack.c.b16 %v1299, %v1291
    %v1364 = vpack.c.b16 %v1300, %v1292
    %v1365 = vpack.c.b16 %v1301, %v1293
    %v1366 = vpack.c.b16 %v1302, %v1294
    %1431 = vmatpush.bf16.msra.mxu0 %v1359
    %1432 = vmatpush.bf16.msra.mxu0 %v1351
    %1433 = vmatpush.bf16.msra.mxu0 %v1343
    %1434 = vmatpush.bf16.msra.mxu0 %v1335
    %1435 = vmatpush.bf16.msra.mxu0 %v1327
    %1436 = vmatpush.bf16.msra.mxu0 %v1319
    %1437 = vmatpush.bf16.msra.mxu0 %v1311
    %1438 = vmatpush.bf16.msra.mxu0 %v1303
    %1439 = vmatmul.bf16.gmra.mxu0 %v542
    %v1440 = vpop.f32.mrf.mxu0
    %v1441 = vadd.f32 %v1017, %v1440
    %v1442 = vpop.f32.mrf.mxu0
    %1443 = vdwg.mxu0
    %1444 = vmatpush.bf16.msra.mxu0 %v1360
    %1445 = vmatpush.bf16.msra.mxu0 %v1352
    %1446 = vmatpush.bf16.msra.mxu0 %v1344
    %1447 = vmatpush.bf16.msra.mxu0 %v1336
    %1448 = vmatpush.bf16.msra.mxu0 %v1328
    %1449 = vmatpush.bf16.msra.mxu0 %v1320
    %1450 = vmatpush.bf16.msra.mxu0 %v1312
    %1451 = vmatpush.bf16.msra.mxu0 %v1304
    %1452 = vmatmul.bf16.gmra.mxu0 %v542
    %v1453 = vpop.f32.mrf.mxu0
    %v1454 = vadd.f32 %v1030, %v1453
    %v1455 = vpop.f32.mrf.mxu0
    %1456 = vdwg.mxu0
    %1457 = vmatpush.bf16.msra.mxu0 %v1361
    %1458 = vmatpush.bf16.msra.mxu0 %v1353
    %1459 = vmatpush.bf16.msra.mxu0 %v1345
    %1460 = vmatpush.bf16.msra.mxu0 %v1337
    %1461 = vmatpush.bf16.msra.mxu0 %v1329
    %1462 = vmatpush.bf16.msra.mxu0 %v1321
    %1463 = vmatpush.bf16.msra.mxu0 %v1313
    %1464 = vmatpush.bf16.msra.mxu0 %v1305
    %1465 = vmatmul.bf16.gmra.mxu0 %v542
    %v1466 = vpop.f32.mrf.mxu0
    %v1467 = vadd.f32 %v1043, %v1466
    %v1468 = vpop.f32.mrf.mxu0
    %1469 = vdwg.mxu0
    %1470 = vmatpush.bf16.msra.mxu0 %v1362
    %1471 = vmatpush.bf16.msra.mxu0 %v1354
    %1472 = vmatpush.bf16.msra.mxu0 %v1346
    %1473 = vmatpush.bf16.msra.mxu0 %v1338
    %1474 = vmatpush.bf16.msra.mxu0 %v1330
    %1475 = vmatpush.bf16.msra.mxu0 %v1322
    %1476 = vmatpush.bf16.msra.mxu0 %v1314
    %1477 = vmatpush.bf16.msra.mxu0 %v1306
    %1478 = vmatmul.bf16.gmra.mxu0 %v542
    %v1479 = vpop.f32.mrf.mxu0
    %v1480 = vadd.f32 %v1056, %v1479
    %v1481 = vpop.f32.mrf.mxu0
    %1482 = vdwg.mxu0
    %1483 = vmatpush.bf16.msra.mxu0 %v1363
    %1484 = vmatpush.bf16.msra.mxu0 %v1355
    %1485 = vmatpush.bf16.msra.mxu0 %v1347
    %1486 = vmatpush.bf16.msra.mxu0 %v1339
    %1487 = vmatpush.bf16.msra.mxu0 %v1331
    %1488 = vmatpush.bf16.msra.mxu0 %v1323
    %1489 = vmatpush.bf16.msra.mxu0 %v1315
    %1490 = vmatpush.bf16.msra.mxu0 %v1307
    %1491 = vmatmul.bf16.gmra.mxu0 %v542
    %v1492 = vpop.f32.mrf.mxu0
    %v1493 = vadd.f32 %v1069, %v1492
    %v1494 = vpop.f32.mrf.mxu0
    %1495 = vdwg.mxu0
    %1496 = vmatpush.bf16.msra.mxu0 %v1364
    %1497 = vmatpush.bf16.msra.mxu0 %v1356
    %1498 = vmatpush.bf16.msra.mxu0 %v1348
    %1499 = vmatpush.bf16.msra.mxu0 %v1340
    %1500 = vmatpush.bf16.msra.mxu0 %v1332
    %1501 = vmatpush.bf16.msra.mxu0 %v1324
    %1502 = vmatpush.bf16.msra.mxu0 %v1316
    %1503 = vmatpush.bf16.msra.mxu0 %v1308
    %1504 = vmatmul.bf16.gmra.mxu0 %v542
    %v1505 = vpop.f32.mrf.mxu0
    %v1506 = vadd.f32 %v1082, %v1505
    %v1507 = vpop.f32.mrf.mxu0
    %1508 = vdwg.mxu0
    %1509 = vmatpush.bf16.msra.mxu0 %v1365
    %1510 = vmatpush.bf16.msra.mxu0 %v1357
    %1511 = vmatpush.bf16.msra.mxu0 %v1349
    %1512 = vmatpush.bf16.msra.mxu0 %v1341
    %1513 = vmatpush.bf16.msra.mxu0 %v1333
    %1514 = vmatpush.bf16.msra.mxu0 %v1325
    %1515 = vmatpush.bf16.msra.mxu0 %v1317
    %1516 = vmatpush.bf16.msra.mxu0 %v1309
    %1517 = vmatmul.bf16.gmra.mxu0 %v542
    %v1518 = vpop.f32.mrf.mxu0
    %v1519 = vadd.f32 %v1095, %v1518
    %v1520 = vpop.f32.mrf.mxu0
    %1521 = vdwg.mxu0
    %1522 = vmatpush.bf16.msra.mxu0 %v1366
    %1523 = vmatpush.bf16.msra.mxu0 %v1358
    %1524 = vmatpush.bf16.msra.mxu0 %v1350
    %1525 = vmatpush.bf16.msra.mxu0 %v1342
    %1526 = vmatpush.bf16.msra.mxu0 %v1334
    %1527 = vmatpush.bf16.msra.mxu0 %v1326
    %1528 = vmatpush.bf16.msra.mxu0 %v1318
    %1529 = vmatpush.bf16.msra.mxu0 %v1310
    %1530 = vmatmul.bf16.gmra.mxu0 %v542
    %v1531 = vpop.f32.mrf.mxu0
    %v1532 = vadd.f32 %v1108, %v1531
    %v1533 = vpop.f32.mrf.mxu0
    %1534 = vdwg.mxu0
    %s1535 = scalar_lea.vmem [#allocation7], 1024
    %v1536 = vld [vmem:[%s1535] sm:$0xff]
    %v1537 = vld [vmem:[%s1535 + $0x8] sm:$0xff]
    %v1538 = vld [vmem:[%s1535 + $0x10] sm:$0xff]
    %v1539 = vld [vmem:[%s1535 + $0x18] sm:$0xff]
    %v1540 = vld [vmem:[%s1535 + $0x20] sm:$0xff]
    %v1541 = vld [vmem:[%s1535 + $0x28] sm:$0xff]
    %v1542 = vld [vmem:[%s1535 + $0x30] sm:$0xff]
    %v1543 = vld [vmem:[%s1535 + $0x38] sm:$0xff]
    %v1544 = vld [vmem:[%s1535 + $0x40] sm:$0xff]
    %v1545 = vld [vmem:[%s1535 + $0x48] sm:$0xff]
    %v1546 = vld [vmem:[%s1535 + $0x50] sm:$0xff]
    %v1547 = vld [vmem:[%s1535 + $0x58] sm:$0xff]
    %v1548 = vld [vmem:[%s1535 + $0x60] sm:$0xff]
    %v1549 = vld [vmem:[%s1535 + $0x68] sm:$0xff]
    %v1550 = vld [vmem:[%s1535 + $0x70] sm:$0xff]
    %v1551 = vld [vmem:[%s1535 + $0x78] sm:$0xff]
    %v1552 = vld [vmem:[%s1535 + $0x80] sm:$0xff]
    %v1553 = vld [vmem:[%s1535 + $0x88] sm:$0xff]
    %v1554 = vld [vmem:[%s1535 + $0x90] sm:$0xff]
    %v1555 = vld [vmem:[%s1535 + $0x98] sm:$0xff]
    %v1556 = vld [vmem:[%s1535 + $0xa0] sm:$0xff]
    %v1557 = vld [vmem:[%s1535 + $0xa8] sm:$0xff]
    %v1558 = vld [vmem:[%s1535 + $0xb0] sm:$0xff]
    %v1559 = vld [vmem:[%s1535 + $0xb8] sm:$0xff]
    %v1560 = vld [vmem:[%s1535 + $0xc0] sm:$0xff]
    %v1561 = vld [vmem:[%s1535 + $0xc8] sm:$0xff]
    %v1562 = vld [vmem:[%s1535 + $0xd0] sm:$0xff]
    %v1563 = vld [vmem:[%s1535 + $0xd8] sm:$0xff]
    %v1564 = vld [vmem:[%s1535 + $0xe0] sm:$0xff]
    %v1565 = vld [vmem:[%s1535 + $0xe8] sm:$0xff]
    %v1566 = vld [vmem:[%s1535 + $0xf0] sm:$0xff]
    %v1567 = vld [vmem:[%s1535 + $0xf8] sm:$0xff]
    %v1568 = vld [vmem:[%s1535 + $0x100] sm:$0xff]
    %v1569 = vld [vmem:[%s1535 + $0x108] sm:$0xff]
    %v1570 = vld [vmem:[%s1535 + $0x110] sm:$0xff]
    %v1571 = vld [vmem:[%s1535 + $0x118] sm:$0xff]
    %v1572 = vld [vmem:[%s1535 + $0x120] sm:$0xff]
    %v1573 = vld [vmem:[%s1535 + $0x128] sm:$0xff]
    %v1574 = vld [vmem:[%s1535 + $0x130] sm:$0xff]
    %v1575 = vld [vmem:[%s1535 + $0x138] sm:$0xff]
    %v1576 = vld [vmem:[%s1535 + $0x140] sm:$0xff]
    %v1577 = vld [vmem:[%s1535 + $0x148] sm:$0xff]
    %v1578 = vld [vmem:[%s1535 + $0x150] sm:$0xff]
    %v1579 = vld [vmem:[%s1535 + $0x158] sm:$0xff]
    %v1580 = vld [vmem:[%s1535 + $0x160] sm:$0xff]
    %v1581 = vld [vmem:[%s1535 + $0x168] sm:$0xff]
    %v1582 = vld [vmem:[%s1535 + $0x170] sm:$0xff]
    %v1583 = vld [vmem:[%s1535 + $0x178] sm:$0xff]
    %v1584 = vld [vmem:[%s1535 + $0x180] sm:$0xff]
    %v1585 = vld [vmem:[%s1535 + $0x188] sm:$0xff]
    %v1586 = vld [vmem:[%s1535 + $0x190] sm:$0xff]
    %v1587 = vld [vmem:[%s1535 + $0x198] sm:$0xff]
    %v1588 = vld [vmem:[%s1535 + $0x1a0] sm:$0xff]
    %v1589 = vld [vmem:[%s1535 + $0x1a8] sm:$0xff]
    %v1590 = vld [vmem:[%s1535 + $0x1b0] sm:$0xff]
    %v1591 = vld [vmem:[%s1535 + $0x1b8] sm:$0xff]
    %v1592 = vld [vmem:[%s1535 + $0x1c0] sm:$0xff]
    %v1593 = vld [vmem:[%s1535 + $0x1c8] sm:$0xff]
    %v1594 = vld [vmem:[%s1535 + $0x1d0] sm:$0xff]
    %v1595 = vld [vmem:[%s1535 + $0x1d8] sm:$0xff]
    %v1596 = vld [vmem:[%s1535 + $0x1e0] sm:$0xff]
    %v1597 = vld [vmem:[%s1535 + $0x1e8] sm:$0xff]
    %v1598 = vld [vmem:[%s1535 + $0x1f0] sm:$0xff]
    %v1599 = vld [vmem:[%s1535 + $0x1f8] sm:$0xff]
    %v1664 = vunpack.c.l.b16 %v1536
    %v1665 = vunpack.c.h.b16 %v1536
    %v1666 = vunpack.c.l.b16 %v1537
    %v1667 = vunpack.c.h.b16 %v1537
    %v1668 = vunpack.c.l.b16 %v1538
    %v1669 = vunpack.c.h.b16 %v1538
    %v1670 = vunpack.c.l.b16 %v1539
    %v1671 = vunpack.c.h.b16 %v1539
    %v1672 = vunpack.c.l.b16 %v1540
    %v1673 = vunpack.c.h.b16 %v1540
    %v1674 = vunpack.c.l.b16 %v1541
    %v1675 = vunpack.c.h.b16 %v1541
    %v1676 = vunpack.c.l.b16 %v1542
    %v1677 = vunpack.c.h.b16 %v1542
    %v1678 = vunpack.c.l.b16 %v1543
    %v1679 = vunpack.c.h.b16 %v1543
    %v1680 = vunpack.c.l.b16 %v1544
    %v1681 = vunpack.c.h.b16 %v1544
    %v1682 = vunpack.c.l.b16 %v1545
    %v1683 = vunpack.c.h.b16 %v1545
    %v1684 = vunpack.c.l.b16 %v1546
    %v1685 = vunpack.c.h.b16 %v1546
    %v1686 = vunpack.c.l.b16 %v1547
    %v1687 = vunpack.c.h.b16 %v1547
    %v1688 = vunpack.c.l.b16 %v1548
    %v1689 = vunpack.c.h.b16 %v1548
    %v1690 = vunpack.c.l.b16 %v1549
    %v1691 = vunpack.c.h.b16 %v1549
    %v1692 = vunpack.c.l.b16 %v1550
    %v1693 = vunpack.c.h.b16 %v1550
    %v1694 = vunpack.c.l.b16 %v1551
    %v1695 = vunpack.c.h.b16 %v1551
    %v1696 = vunpack.c.l.b16 %v1552
    %v1697 = vunpack.c.h.b16 %v1552
    %v1698 = vunpack.c.l.b16 %v1553
    %v1699 = vunpack.c.h.b16 %v1553
    %v1700 = vunpack.c.l.b16 %v1554
    %v1701 = vunpack.c.h.b16 %v1554
    %v1702 = vunpack.c.l.b16 %v1555
    %v1703 = vunpack.c.h.b16 %v1555
    %v1704 = vunpack.c.l.b16 %v1556
    %v1705 = vunpack.c.h.b16 %v1556
    %v1706 = vunpack.c.l.b16 %v1557
    %v1707 = vunpack.c.h.b16 %v1557
    %v1708 = vunpack.c.l.b16 %v1558
    %v1709 = vunpack.c.h.b16 %v1558
    %v1710 = vunpack.c.l.b16 %v1559
    %v1711 = vunpack.c.h.b16 %v1559
    %v1712 = vunpack.c.l.b16 %v1560
    %v1713 = vunpack.c.h.b16 %v1560
    %v1714 = vunpack.c.l.b16 %v1561
    %v1715 = vunpack.c.h.b16 %v1561
    %v1716 = vunpack.c.l.b16 %v1562
    %v1717 = vunpack.c.h.b16 %v1562
    %v1718 = vunpack.c.l.b16 %v1563
    %v1719 = vunpack.c.h.b16 %v1563
    %v1720 = vunpack.c.l.b16 %v1564
    %v1721 = vunpack.c.h.b16 %v1564
    %v1722 = vunpack.c.l.b16 %v1565
    %v1723 = vunpack.c.h.b16 %v1565
    %v1724 = vunpack.c.l.b16 %v1566
    %v1725 = vunpack.c.h.b16 %v1566
    %v1726 = vunpack.c.l.b16 %v1567
    %v1727 = vunpack.c.h.b16 %v1567
    %v1728 = vunpack.c.l.b16 %v1568
    %v1729 = vunpack.c.h.b16 %v1568
    %v1730 = vunpack.c.l.b16 %v1569
    %v1731 = vunpack.c.h.b16 %v1569
    %v1732 = vunpack.c.l.b16 %v1570
    %v1733 = vunpack.c.h.b16 %v1570
    %v1734 = vunpack.c.l.b16 %v1571
    %v1735 = vunpack.c.h.b16 %v1571
    %v1736 = vunpack.c.l.b16 %v1572
    %v1737 = vunpack.c.h.b16 %v1572
    %v1738 = vunpack.c.l.b16 %v1573
    %v1739 = vunpack.c.h.b16 %v1573
    %v1740 = vunpack.c.l.b16 %v1574
    %v1741 = vunpack.c.h.b16 %v1574
    %v1742 = vunpack.c.l.b16 %v1575
    %v1743 = vunpack.c.h.b16 %v1575
    %v1744 = vunpack.c.l.b16 %v1576
    %v1745 = vunpack.c.h.b16 %v1576
    %v1746 = vunpack.c.l.b16 %v1577
    %v1747 = vunpack.c.h.b16 %v1577
    %v1748 = vunpack.c.l.b16 %v1578
    %v1749 = vunpack.c.h.b16 %v1578
    %v1750 = vunpack.c.l.b16 %v1579
    %v1751 = vunpack.c.h.b16 %v1579
    %v1752 = vunpack.c.l.b16 %v1580
    %v1753 = vunpack.c.h.b16 %v1580
    %v1754 = vunpack.c.l.b16 %v1581
    %v1755 = vunpack.c.h.b16 %v1581
    %v1756 = vunpack.c.l.b16 %v1582
    %v1757 = vunpack.c.h.b16 %v1582
    %v1758 = vunpack.c.l.b16 %v1583
    %v1759 = vunpack.c.h.b16 %v1583
    %v1760 = vunpack.c.l.b16 %v1584
    %v1761 = vunpack.c.h.b16 %v1584
    %v1762 = vunpack.c.l.b16 %v1585
    %v1763 = vunpack.c.h.b16 %v1585
    %v1764 = vunpack.c.l.b16 %v1586
    %v1765 = vunpack.c.h.b16 %v1586
    %v1766 = vunpack.c.l.b16 %v1587
    %v1767 = vunpack.c.h.b16 %v1587
    %v1768 = vunpack.c.l.b16 %v1588
    %v1769 = vunpack.c.h.b16 %v1588
    %v1770 = vunpack.c.l.b16 %v1589
    %v1771 = vunpack.c.h.b16 %v1589
    %v1772 = vunpack.c.l.b16 %v1590
    %v1773 = vunpack.c.h.b16 %v1590
    %v1774 = vunpack.c.l.b16 %v1591
    %v1775 = vunpack.c.h.b16 %v1591
    %v1776 = vunpack.c.l.b16 %v1592
    %v1777 = vunpack.c.h.b16 %v1592
    %v1778 = vunpack.c.l.b16 %v1593
    %v1779 = vunpack.c.h.b16 %v1593
    %v1780 = vunpack.c.l.b16 %v1594
    %v1781 = vunpack.c.h.b16 %v1594
    %v1782 = vunpack.c.l.b16 %v1595
    %v1783 = vunpack.c.h.b16 %v1595
    %v1784 = vunpack.c.l.b16 %v1596
    %v1785 = vunpack.c.h.b16 %v1596
    %v1786 = vunpack.c.l.b16 %v1597
    %v1787 = vunpack.c.h.b16 %v1597
    %v1788 = vunpack.c.l.b16 %v1598
    %v1789 = vunpack.c.h.b16 %v1598
    %v1790 = vunpack.c.l.b16 %v1599
    %v1791 = vunpack.c.h.b16 %v1599
    %v1792 = vpack.c.b16 %v1672, %v1664
    %v1793 = vpack.c.b16 %v1673, %v1665
    %v1794 = vpack.c.b16 %v1674, %v1666
    %v1795 = vpack.c.b16 %v1675, %v1667
    %v1796 = vpack.c.b16 %v1676, %v1668
    %v1797 = vpack.c.b16 %v1677, %v1669
    %v1798 = vpack.c.b16 %v1678, %v1670
    %v1799 = vpack.c.b16 %v1679, %v1671
    %v1800 = vpack.c.b16 %v1688, %v1680
    %v1801 = vpack.c.b16 %v1689, %v1681
    %v1802 = vpack.c.b16 %v1690, %v1682
    %v1803 = vpack.c.b16 %v1691, %v1683
    %v1804 = vpack.c.b16 %v1692, %v1684
    %v1805 = vpack.c.b16 %v1693, %v1685
    %v1806 = vpack.c.b16 %v1694, %v1686
    %v1807 = vpack.c.b16 %v1695, %v1687
    %v1808 = vpack.c.b16 %v1704, %v1696
    %v1809 = vpack.c.b16 %v1705, %v1697
    %v1810 = vpack.c.b16 %v1706, %v1698
    %v1811 = vpack.c.b16 %v1707, %v1699
    %v1812 = vpack.c.b16 %v1708, %v1700
    %v1813 = vpack.c.b16 %v1709, %v1701
    %v1814 = vpack.c.b16 %v1710, %v1702
    %v1815 = vpack.c.b16 %v1711, %v1703
    %v1816 = vpack.c.b16 %v1720, %v1712
    %v1817 = vpack.c.b16 %v1721, %v1713
    %v1818 = vpack.c.b16 %v1722, %v1714
    %v1819 = vpack.c.b16 %v1723, %v1715
    %v1820 = vpack.c.b16 %v1724, %v1716
    %v1821 = vpack.c.b16 %v1725, %v1717
    %v1822 = vpack.c.b16 %v1726, %v1718
    %v1823 = vpack.c.b16 %v1727, %v1719
    %v1824 = vpack.c.b16 %v1736, %v1728
    %v1825 = vpack.c.b16 %v1737, %v1729
    %v1826 = vpack.c.b16 %v1738, %v1730
    %v1827 = vpack.c.b16 %v1739, %v1731
    %v1828 = vpack.c.b16 %v1740, %v1732
    %v1829 = vpack.c.b16 %v1741, %v1733
    %v1830 = vpack.c.b16 %v1742, %v1734
    %v1831 = vpack.c.b16 %v1743, %v1735
    %v1832 = vpack.c.b16 %v1752, %v1744
    %v1833 = vpack.c.b16 %v1753, %v1745
    %v1834 = vpack.c.b16 %v1754, %v1746
    %v1835 = vpack.c.b16 %v1755, %v1747
    %v1836 = vpack.c.b16 %v1756, %v1748
    %v1837 = vpack.c.b16 %v1757, %v1749
    %v1838 = vpack.c.b16 %v1758, %v1750
    %v1839 = vpack.c.b16 %v1759, %v1751
    %v1840 = vpack.c.b16 %v1768, %v1760
    %v1841 = vpack.c.b16 %v1769, %v1761
    %v1842 = vpack.c.b16 %v1770, %v1762
    %v1843 = vpack.c.b16 %v1771, %v1763
    %v1844 = vpack.c.b16 %v1772, %v1764
    %v1845 = vpack.c.b16 %v1773, %v1765
    %v1846 = vpack.c.b16 %v1774, %v1766
    %v1847 = vpack.c.b16 %v1775, %v1767
    %v1848 = vpack.c.b16 %v1784, %v1776
    %v1849 = vpack.c.b16 %v1785, %v1777
    %v1850 = vpack.c.b16 %v1786, %v1778
    %v1851 = vpack.c.b16 %v1787, %v1779
    %v1852 = vpack.c.b16 %v1788, %v1780
    %v1853 = vpack.c.b16 %v1789, %v1781
    %v1854 = vpack.c.b16 %v1790, %v1782
    %v1855 = vpack.c.b16 %v1791, %v1783
    %1920 = vmatpush.bf16.msra.mxu0 %v1848
    %1921 = vmatpush.bf16.msra.mxu0 %v1840
    %1922 = vmatpush.bf16.msra.mxu0 %v1832
    %1923 = vmatpush.bf16.msra.mxu0 %v1824
    %1924 = vmatpush.bf16.msra.mxu0 %v1816
    %1925 = vmatpush.bf16.msra.mxu0 %v1808
    %1926 = vmatpush.bf16.msra.mxu0 %v1800
    %1927 = vmatpush.bf16.msra.mxu0 %v1792
    %1928 = vmatmul.bf16.gmra.mxu0 %v544
    %v1929 = vpop.f32.mrf.mxu0
    %v1930 = vadd.f32 0.0, %v1929
    %v1931 = vpop.f32.mrf.mxu0
    %1932 = vdwg.mxu0
    %1933 = vmatpush.bf16.msra.mxu0 %v1849
    %1934 = vmatpush.bf16.msra.mxu0 %v1841
    %1935 = vmatpush.bf16.msra.mxu0 %v1833
    %1936 = vmatpush.bf16.msra.mxu0 %v1825
    %1937 = vmatpush.bf16.msra.mxu0 %v1817
    %1938 = vmatpush.bf16.msra.mxu0 %v1809
    %1939 = vmatpush.bf16.msra.mxu0 %v1801
    %1940 = vmatpush.bf16.msra.mxu0 %v1793
    %1941 = vmatmul.bf16.gmra.mxu0 %v544
    %v1942 = vpop.f32.mrf.mxu0
    %v1943 = vadd.f32 0.0, %v1942
    %v1944 = vpop.f32.mrf.mxu0
    %1945 = vdwg.mxu0
    %1946 = vmatpush.bf16.msra.mxu0 %v1850
    %1947 = vmatpush.bf16.msra.mxu0 %v1842
    %1948 = vmatpush.bf16.msra.mxu0 %v1834
    %1949 = vmatpush.bf16.msra.mxu0 %v1826
    %1950 = vmatpush.bf16.msra.mxu0 %v1818
    %1951 = vmatpush.bf16.msra.mxu0 %v1810
    %1952 = vmatpush.bf16.msra.mxu0 %v1802
    %1953 = vmatpush.bf16.msra.mxu0 %v1794
    %1954 = vmatmul.bf16.gmra.mxu0 %v544
    %v1955 = vpop.f32.mrf.mxu0
    %v1956 = vadd.f32 0.0, %v1955
    %v1957 = vpop.f32.mrf.mxu0
    %1958 = vdwg.mxu0
    %1959 = vmatpush.bf16.msra.mxu0 %v1851
    %1960 = vmatpush.bf16.msra.mxu0 %v1843
    %1961 = vmatpush.bf16.msra.mxu0 %v1835
    %1962 = vmatpush.bf16.msra.mxu0 %v1827
    %1963 = vmatpush.bf16.msra.mxu0 %v1819
    %1964 = vmatpush.bf16.msra.mxu0 %v1811
    %1965 = vmatpush.bf16.msra.mxu0 %v1803
    %1966 = vmatpush.bf16.msra.mxu0 %v1795
    %1967 = vmatmul.bf16.gmra.mxu0 %v544
    %v1968 = vpop.f32.mrf.mxu0
    %v1969 = vadd.f32 0.0, %v1968
    %v1970 = vpop.f32.mrf.mxu0
    %1971 = vdwg.mxu0
    %1972 = vmatpush.bf16.msra.mxu0 %v1852
    %1973 = vmatpush.bf16.msra.mxu0 %v1844
    %1974 = vmatpush.bf16.msra.mxu0 %v1836
    %1975 = vmatpush.bf16.msra.mxu0 %v1828
    %1976 = vmatpush.bf16.msra.mxu0 %v1820
    %1977 = vmatpush.bf16.msra.mxu0 %v1812
    %1978 = vmatpush.bf16.msra.mxu0 %v1804
    %1979 = vmatpush.bf16.msra.mxu0 %v1796
    %1980 = vmatmul.bf16.gmra.mxu0 %v544
    %v1981 = vpop.f32.mrf.mxu0
    %v1982 = vadd.f32 0.0, %v1981
    %v1983 = vpop.f32.mrf.mxu0
    %1984 = vdwg.mxu0
    %1985 = vmatpush.bf16.msra.mxu0 %v1853
    %1986 = vmatpush.bf16.msra.mxu0 %v1845
    %1987 = vmatpush.bf16.msra.mxu0 %v1837
    %1988 = vmatpush.bf16.msra.mxu0 %v1829
    %1989 = vmatpush.bf16.msra.mxu0 %v1821
    %1990 = vmatpush.bf16.msra.mxu0 %v1813
    %1991 = vmatpush.bf16.msra.mxu0 %v1805
    %1992 = vmatpush.bf16.msra.mxu0 %v1797
    %1993 = vmatmul.bf16.gmra.mxu0 %v544
    %v1994 = vpop.f32.mrf.mxu0
    %v1995 = vadd.f32 0.0, %v1994
    %v1996 = vpop.f32.mrf.mxu0
    %1997 = vdwg.mxu0
    %1998 = vmatpush.bf16.msra.mxu0 %v1854
    %1999 = vmatpush.bf16.msra.mxu0 %v1846
    %2000 = vmatpush.bf16.msra.mxu0 %v1838
    %2001 = vmatpush.bf16.msra.mxu0 %v1830
    %2002 = vmatpush.bf16.msra.mxu0 %v1822
    %2003 = vmatpush.bf16.msra.mxu0 %v1814
    %2004 = vmatpush.bf16.msra.mxu0 %v1806
    %2005 = vmatpush.bf16.msra.mxu0 %v1798
    %2006 = vmatmul.bf16.gmra.mxu0 %v544
    %v2007 = vpop.f32.mrf.mxu0
    %v2008 = vadd.f32 0.0, %v2007
    %v2009 = vpop.f32.mrf.mxu0
    %2010 = vdwg.mxu0
    %2011 = vmatpush.bf16.msra.mxu0 %v1855
    %2012 = vmatpush.bf16.msra.mxu0 %v1847
    %2013 = vmatpush.bf16.msra.mxu0 %v1839
    %2014 = vmatpush.bf16.msra.mxu0 %v1831
    %2015 = vmatpush.bf16.msra.mxu0 %v1823
    %2016 = vmatpush.bf16.msra.mxu0 %v1815
    %2017 = vmatpush.bf16.msra.mxu0 %v1807
    %2018 = vmatpush.bf16.msra.mxu0 %v1799
    %2019 = vmatmul.bf16.gmra.mxu0 %v544
    %v2020 = vpop.f32.mrf.mxu0
    %v2021 = vadd.f32 0.0, %v2020
    %v2022 = vpop.f32.mrf.mxu0
    %2023 = vdwg.mxu0
    %v2024 = vadd.f32 %v1441, %v1930
    %v2025 = vadd.f32 %v1454, %v1943
    %v2026 = vadd.f32 %v1467, %v1956
    %v2027 = vadd.f32 %v1480, %v1969
    %v2028 = vadd.f32 %v1493, %v1982
    %v2029 = vadd.f32 %v1506, %v1995
    %v2030 = vadd.f32 %v1519, %v2008
    %v2031 = vadd.f32 %v1532, %v2021
    %s2032 = scalar_lea.vmem [#allocation7], 1536
    %v2033 = vld [vmem:[%s2032] sm:$0xff]
    %v2034 = vld [vmem:[%s2032 + $0x8] sm:$0xff]
    %v2035 = vld [vmem:[%s2032 + $0x10] sm:$0xff]
    %v2036 = vld [vmem:[%s2032 + $0x18] sm:$0xff]
    %v2037 = vld [vmem:[%s2032 + $0x20] sm:$0xff]
    %v2038 = vld [vmem:[%s2032 + $0x28] sm:$0xff]
    %v2039 = vld [vmem:[%s2032 + $0x30] sm:$0xff]
    %v2040 = vld [vmem:[%s2032 + $0x38] sm:$0xff]
    %v2041 = vld [vmem:[%s2032 + $0x40] sm:$0xff]
    %v2042 = vld [vmem:[%s2032 + $0x48] sm:$0xff]
    %v2043 = vld [vmem:[%s2032 + $0x50] sm:$0xff]
    %v2044 = vld [vmem:[%s2032 + $0x58] sm:$0xff]
    %v2045 = vld [vmem:[%s2032 + $0x60] sm:$0xff]
    %v2046 = vld [vmem:[%s2032 + $0x68] sm:$0xff]
    %v2047 = vld [vmem:[%s2032 + $0x70] sm:$0xff]
    %v2048 = vld [vmem:[%s2032 + $0x78] sm:$0xff]
    %v2049 = vld [vmem:[%s2032 + $0x80] sm:$0xff]
    %v2050 = vld [vmem:[%s2032 + $0x88] sm:$0xff]
    %v2051 = vld [vmem:[%s2032 + $0x90] sm:$0xff]
    %v2052 = vld [vmem:[%s2032 + $0x98] sm:$0xff]
    %v2053 = vld [vmem:[%s2032 + $0xa0] sm:$0xff]
    %v2054 = vld [vmem:[%s2032 + $0xa8] sm:$0xff]
    %v2055 = vld [vmem:[%s2032 + $0xb0] sm:$0xff]
    %v2056 = vld [vmem:[%s2032 + $0xb8] sm:$0xff]
    %v2057 = vld [vmem:[%s2032 + $0xc0] sm:$0xff]
    %v2058 = vld [vmem:[%s2032 + $0xc8] sm:$0xff]
    %v2059 = vld [vmem:[%s2032 + $0xd0] sm:$0xff]
    %v2060 = vld [vmem:[%s2032 + $0xd8] sm:$0xff]
    %v2061 = vld [vmem:[%s2032 + $0xe0] sm:$0xff]
    %v2062 = vld [vmem:[%s2032 + $0xe8] sm:$0xff]
    %v2063 = vld [vmem:[%s2032 + $0xf0] sm:$0xff]
    %v2064 = vld [vmem:[%s2032 + $0xf8] sm:$0xff]
    %v2065 = vld [vmem:[%s2032 + $0x100] sm:$0xff]
    %v2066 = vld [vmem:[%s2032 + $0x108] sm:$0xff]
    %v2067 = vld [vmem:[%s2032 + $0x110] sm:$0xff]
    %v2068 = vld [vmem:[%s2032 + $0x118] sm:$0xff]
    %v2069 = vld [vmem:[%s2032 + $0x120] sm:$0xff]
    %v2070 = vld [vmem:[%s2032 + $0x128] sm:$0xff]
    %v2071 = vld [vmem:[%s2032 + $0x130] sm:$0xff]
    %v2072 = vld [vmem:[%s2032 + $0x138] sm:$0xff]
    %v2073 = vld [vmem:[%s2032 + $0x140] sm:$0xff]
    %v2074 = vld [vmem:[%s2032 + $0x148] sm:$0xff]
    %v2075 = vld [vmem:[%s2032 + $0x150] sm:$0xff]
    %v2076 = vld [vmem:[%s2032 + $0x158] sm:$0xff]
    %v2077 = vld [vmem:[%s2032 + $0x160] sm:$0xff]
    %v2078 = vld [vmem:[%s2032 + $0x168] sm:$0xff]
    %v2079 = vld [vmem:[%s2032 + $0x170] sm:$0xff]
    %v2080 = vld [vmem:[%s2032 + $0x178] sm:$0xff]
    %v2081 = vld [vmem:[%s2032 + $0x180] sm:$0xff]
    %v2082 = vld [vmem:[%s2032 + $0x188] sm:$0xff]
    %v2083 = vld [vmem:[%s2032 + $0x190] sm:$0xff]
    %v2084 = vld [vmem:[%s2032 + $0x198] sm:$0xff]
    %v2085 = vld [vmem:[%s2032 + $0x1a0] sm:$0xff]
    %v2086 = vld [vmem:[%s2032 + $0x1a8] sm:$0xff]
    %v2087 = vld [vmem:[%s2032 + $0x1b0] sm:$0xff]
    %v2088 = vld [vmem:[%s2032 + $0x1b8] sm:$0xff]
    %v2089 = vld [vmem:[%s2032 + $0x1c0] sm:$0xff]
    %v2090 = vld [vmem:[%s2032 + $0x1c8] sm:$0xff]
    %v2091 = vld [vmem:[%s2032 + $0x1d0] sm:$0xff]
    %v2092 = vld [vmem:[%s2032 + $0x1d8] sm:$0xff]
    %v2093 = vld [vmem:[%s2032 + $0x1e0] sm:$0xff]
    %v2094 = vld [vmem:[%s2032 + $0x1e8] sm:$0xff]
    %v2095 = vld [vmem:[%s2032 + $0x1f0] sm:$0xff]
    %v2096 = vld [vmem:[%s2032 + $0x1f8] sm:$0xff]
    %v2161 = vunpack.c.l.b16 %v2033
    %v2162 = vunpack.c.h.b16 %v2033
    %v2163 = vunpack.c.l.b16 %v2034
    %v2164 = vunpack.c.h.b16 %v2034
    %v2165 = vunpack.c.l.b16 %v2035
    %v2166 = vunpack.c.h.b16 %v2035
    %v2167 = vunpack.c.l.b16 %v2036
    %v2168 = vunpack.c.h.b16 %v2036
    %v2169 = vunpack.c.l.b16 %v2037
    %v2170 = vunpack.c.h.b16 %v2037
    %v2171 = vunpack.c.l.b16 %v2038
    %v2172 = vunpack.c.h.b16 %v2038
    %v2173 = vunpack.c.l.b16 %v2039
    %v2174 = vunpack.c.h.b16 %v2039
    %v2175 = vunpack.c.l.b16 %v2040
    %v2176 = vunpack.c.h.b16 %v2040
    %v2177 = vunpack.c.l.b16 %v2041
    %v2178 = vunpack.c.h.b16 %v2041
    %v2179 = vunpack.c.l.b16 %v2042
    %v2180 = vunpack.c.h.b16 %v2042
    %v2181 = vunpack.c.l.b16 %v2043
    %v2182 = vunpack.c.h.b16 %v2043
    %v2183 = vunpack.c.l.b16 %v2044
    %v2184 = vunpack.c.h.b16 %v2044
    %v2185 = vunpack.c.l.b16 %v2045
    %v2186 = vunpack.c.h.b16 %v2045
    %v2187 = vunpack.c.l.b16 %v2046
    %v2188 = vunpack.c.h.b16 %v2046
    %v2189 = vunpack.c.l.b16 %v2047
    %v2190 = vunpack.c.h.b16 %v2047
    %v2191 = vunpack.c.l.b16 %v2048
    %v2192 = vunpack.c.h.b16 %v2048
    %v2193 = vunpack.c.l.b16 %v2049
    %v2194 = vunpack.c.h.b16 %v2049
    %v2195 = vunpack.c.l.b16 %v2050
    %v2196 = vunpack.c.h.b16 %v2050
    %v2197 = vunpack.c.l.b16 %v2051
    %v2198 = vunpack.c.h.b16 %v2051
    %v2199 = vunpack.c.l.b16 %v2052
    %v2200 = vunpack.c.h.b16 %v2052
    %v2201 = vunpack.c.l.b16 %v2053
    %v2202 = vunpack.c.h.b16 %v2053
    %v2203 = vunpack.c.l.b16 %v2054
    %v2204 = vunpack.c.h.b16 %v2054
    %v2205 = vunpack.c.l.b16 %v2055
    %v2206 = vunpack.c.h.b16 %v2055
    %v2207 = vunpack.c.l.b16 %v2056
    %v2208 = vunpack.c.h.b16 %v2056
    %v2209 = vunpack.c.l.b16 %v2057
    %v2210 = vunpack.c.h.b16 %v2057
    %v2211 = vunpack.c.l.b16 %v2058
    %v2212 = vunpack.c.h.b16 %v2058
    %v2213 = vunpack.c.l.b16 %v2059
    %v2214 = vunpack.c.h.b16 %v2059
    %v2215 = vunpack.c.l.b16 %v2060
    %v2216 = vunpack.c.h.b16 %v2060
    %v2217 = vunpack.c.l.b16 %v2061
    %v2218 = vunpack.c.h.b16 %v2061
    %v2219 = vunpack.c.l.b16 %v2062
    %v2220 = vunpack.c.h.b16 %v2062
    %v2221 = vunpack.c.l.b16 %v2063
    %v2222 = vunpack.c.h.b16 %v2063
    %v2223 = vunpack.c.l.b16 %v2064
    %v2224 = vunpack.c.h.b16 %v2064
    %v2225 = vunpack.c.l.b16 %v2065
    %v2226 = vunpack.c.h.b16 %v2065
    %v2227 = vunpack.c.l.b16 %v2066
    %v2228 = vunpack.c.h.b16 %v2066
    %v2229 = vunpack.c.l.b16 %v2067
    %v2230 = vunpack.c.h.b16 %v2067
    %v2231 = vunpack.c.l.b16 %v2068
    %v2232 = vunpack.c.h.b16 %v2068
    %v2233 = vunpack.c.l.b16 %v2069
    %v2234 = vunpack.c.h.b16 %v2069
    %v2235 = vunpack.c.l.b16 %v2070
    %v2236 = vunpack.c.h.b16 %v2070
    %v2237 = vunpack.c.l.b16 %v2071
    %v2238 = vunpack.c.h.b16 %v2071
    %v2239 = vunpack.c.l.b16 %v2072
    %v2240 = vunpack.c.h.b16 %v2072
    %v2241 = vunpack.c.l.b16 %v2073
    %v2242 = vunpack.c.h.b16 %v2073
    %v2243 = vunpack.c.l.b16 %v2074
    %v2244 = vunpack.c.h.b16 %v2074
    %v2245 = vunpack.c.l.b16 %v2075
    %v2246 = vunpack.c.h.b16 %v2075
    %v2247 = vunpack.c.l.b16 %v2076
    %v2248 = vunpack.c.h.b16 %v2076
    %v2249 = vunpack.c.l.b16 %v2077
    %v2250 = vunpack.c.h.b16 %v2077
    %v2251 = vunpack.c.l.b16 %v2078
    %v2252 = vunpack.c.h.b16 %v2078
    %v2253 = vunpack.c.l.b16 %v2079
    %v2254 = vunpack.c.h.b16 %v2079
    %v2255 = vunpack.c.l.b16 %v2080
    %v2256 = vunpack.c.h.b16 %v2080
    %v2257 = vunpack.c.l.b16 %v2081
    %v2258 = vunpack.c.h.b16 %v2081
    %v2259 = vunpack.c.l.b16 %v2082
    %v2260 = vunpack.c.h.b16 %v2082
    %v2261 = vunpack.c.l.b16 %v2083
    %v2262 = vunpack.c.h.b16 %v2083
    %v2263 = vunpack.c.l.b16 %v2084
    %v2264 = vunpack.c.h.b16 %v2084
    %v2265 = vunpack.c.l.b16 %v2085
    %v2266 = vunpack.c.h.b16 %v2085
    %v2267 = vunpack.c.l.b16 %v2086
    %v2268 = vunpack.c.h.b16 %v2086
    %v2269 = vunpack.c.l.b16 %v2087
    %v2270 = vunpack.c.h.b16 %v2087
    %v2271 = vunpack.c.l.b16 %v2088
    %v2272 = vunpack.c.h.b16 %v2088
    %v2273 = vunpack.c.l.b16 %v2089
    %v2274 = vunpack.c.h.b16 %v2089
    %v2275 = vunpack.c.l.b16 %v2090
    %v2276 = vunpack.c.h.b16 %v2090
    %v2277 = vunpack.c.l.b16 %v2091
    %v2278 = vunpack.c.h.b16 %v2091
    %v2279 = vunpack.c.l.b16 %v2092
    %v2280 = vunpack.c.h.b16 %v2092
    %v2281 = vunpack.c.l.b16 %v2093
    %v2282 = vunpack.c.h.b16 %v2093
    %v2283 = vunpack.c.l.b16 %v2094
    %v2284 = vunpack.c.h.b16 %v2094
    %v2285 = vunpack.c.l.b16 %v2095
    %v2286 = vunpack.c.h.b16 %v2095
    %v2287 = vunpack.c.l.b16 %v2096
    %v2288 = vunpack.c.h.b16 %v2096
    %v2289 = vpack.c.b16 %v2169, %v2161
    %v2290 = vpack.c.b16 %v2170, %v2162
    %v2291 = vpack.c.b16 %v2171, %v2163
    %v2292 = vpack.c.b16 %v2172, %v2164
    %v2293 = vpack.c.b16 %v2173, %v2165
    %v2294 = vpack.c.b16 %v2174, %v2166
    %v2295 = vpack.c.b16 %v2175, %v2167
    %v2296 = vpack.c.b16 %v2176, %v2168
    %v2297 = vpack.c.b16 %v2185, %v2177
    %v2298 = vpack.c.b16 %v2186, %v2178
    %v2299 = vpack.c.b16 %v2187, %v2179
    %v2300 = vpack.c.b16 %v2188, %v2180
    %v2301 = vpack.c.b16 %v2189, %v2181
    %v2302 = vpack.c.b16 %v2190, %v2182
    %v2303 = vpack.c.b16 %v2191, %v2183
    %v2304 = vpack.c.b16 %v2192, %v2184
    %v2305 = vpack.c.b16 %v2201, %v2193
    %v2306 = vpack.c.b16 %v2202, %v2194
    %v2307 = vpack.c.b16 %v2203, %v2195
    %v2308 = vpack.c.b16 %v2204, %v2196
    %v2309 = vpack.c.b16 %v2205, %v2197
    %v2310 = vpack.c.b16 %v2206, %v2198
    %v2311 = vpack.c.b16 %v2207, %v2199
    %v2312 = vpack.c.b16 %v2208, %v2200
    %v2313 = vpack.c.b16 %v2217, %v2209
    %v2314 = vpack.c.b16 %v2218, %v2210
    %v2315 = vpack.c.b16 %v2219, %v2211
    %v2316 = vpack.c.b16 %v2220, %v2212
    %v2317 = vpack.c.b16 %v2221, %v2213
    %v2318 = vpack.c.b16 %v2222, %v2214
    %v2319 = vpack.c.b16 %v2223, %v2215
    %v2320 = vpack.c.b16 %v2224, %v2216
    %v2321 = vpack.c.b16 %v2233, %v2225
    %v2322 = vpack.c.b16 %v2234, %v2226
    %v2323 = vpack.c.b16 %v2235, %v2227
    %v2324 = vpack.c.b16 %v2236, %v2228
    %v2325 = vpack.c.b16 %v2237, %v2229
    %v2326 = vpack.c.b16 %v2238, %v2230
    %v2327 = vpack.c.b16 %v2239, %v2231
    %v2328 = vpack.c.b16 %v2240, %v2232
    %v2329 = vpack.c.b16 %v2249, %v2241
    %v2330 = vpack.c.b16 %v2250, %v2242
    %v2331 = vpack.c.b16 %v2251, %v2243
    %v2332 = vpack.c.b16 %v2252, %v2244
    %v2333 = vpack.c.b16 %v2253, %v2245
    %v2334 = vpack.c.b16 %v2254, %v2246
    %v2335 = vpack.c.b16 %v2255, %v2247
    %v2336 = vpack.c.b16 %v2256, %v2248
    %v2337 = vpack.c.b16 %v2265, %v2257
    %v2338 = vpack.c.b16 %v2266, %v2258
    %v2339 = vpack.c.b16 %v2267, %v2259
    %v2340 = vpack.c.b16 %v2268, %v2260
    %v2341 = vpack.c.b16 %v2269, %v2261
    %v2342 = vpack.c.b16 %v2270, %v2262
    %v2343 = vpack.c.b16 %v2271, %v2263
    %v2344 = vpack.c.b16 %v2272, %v2264
    %v2345 = vpack.c.b16 %v2281, %v2273
    %v2346 = vpack.c.b16 %v2282, %v2274
    %v2347 = vpack.c.b16 %v2283, %v2275
    %v2348 = vpack.c.b16 %v2284, %v2276
    %v2349 = vpack.c.b16 %v2285, %v2277
    %v2350 = vpack.c.b16 %v2286, %v2278
    %v2351 = vpack.c.b16 %v2287, %v2279
    %v2352 = vpack.c.b16 %v2288, %v2280
    %2417 = vmatpush.bf16.msra.mxu0 %v2345
    %2418 = vmatpush.bf16.msra.mxu0 %v2337
    %2419 = vmatpush.bf16.msra.mxu0 %v2329
    %2420 = vmatpush.bf16.msra.mxu0 %v2321
    %2421 = vmatpush.bf16.msra.mxu0 %v2313
    %2422 = vmatpush.bf16.msra.mxu0 %v2305
    %2423 = vmatpush.bf16.msra.mxu0 %v2297
    %2424 = vmatpush.bf16.msra.mxu0 %v2289
    %2425 = vmatmul.bf16.gmra.mxu0 %v545
    %v2426 = vpop.f32.mrf.mxu0
    %v2427 = vadd.f32 0.0, %v2426
    %v2428 = vpop.f32.mrf.mxu0
    %2429 = vdwg.mxu0
    %2430 = vmatpush.bf16.msra.mxu0 %v2346
    %2431 = vmatpush.bf16.msra.mxu0 %v2338
    %2432 = vmatpush.bf16.msra.mxu0 %v2330
    %2433 = vmatpush.bf16.msra.mxu0 %v2322
    %2434 = vmatpush.bf16.msra.mxu0 %v2314
    %2435 = vmatpush.bf16.msra.mxu0 %v2306
    %2436 = vmatpush.bf16.msra.mxu0 %v2298
    %2437 = vmatpush.bf16.msra.mxu0 %v2290
    %2438 = vmatmul.bf16.gmra.mxu0 %v545
    %v2439 = vpop.f32.mrf.mxu0
    %v2440 = vadd.f32 0.0, %v2439
    %v2441 = vpop.f32.mrf.mxu0
    %2442 = vdwg.mxu0
    %2443 = vmatpush.bf16.msra.mxu0 %v2347
    %2444 = vmatpush.bf16.msra.mxu0 %v2339
    %2445 = vmatpush.bf16.msra.mxu0 %v2331
    %2446 = vmatpush.bf16.msra.mxu0 %v2323
    %2447 = vmatpush.bf16.msra.mxu0 %v2315
    %2448 = vmatpush.bf16.msra.mxu0 %v2307
    %2449 = vmatpush.bf16.msra.mxu0 %v2299
    %2450 = vmatpush.bf16.msra.mxu0 %v2291
    %2451 = vmatmul.bf16.gmra.mxu0 %v545
    %v2452 = vpop.f32.mrf.mxu0
    %v2453 = vadd.f32 0.0, %v2452
    %v2454 = vpop.f32.mrf.mxu0
    %2455 = vdwg.mxu0
    %2456 = vmatpush.bf16.msra.mxu0 %v2348
    %2457 = vmatpush.bf16.msra.mxu0 %v2340
    %2458 = vmatpush.bf16.msra.mxu0 %v2332
    %2459 = vmatpush.bf16.msra.mxu0 %v2324
    %2460 = vmatpush.bf16.msra.mxu0 %v2316
    %2461 = vmatpush.bf16.msra.mxu0 %v2308
    %2462 = vmatpush.bf16.msra.mxu0 %v2300
    %2463 = vmatpush.bf16.msra.mxu0 %v2292
    %2464 = vmatmul.bf16.gmra.mxu0 %v545
    %v2465 = vpop.f32.mrf.mxu0
    %v2466 = vadd.f32 0.0, %v2465
    %v2467 = vpop.f32.mrf.mxu0
    %2468 = vdwg.mxu0
    %2469 = vmatpush.bf16.msra.mxu0 %v2349
    %2470 = vmatpush.bf16.msra.mxu0 %v2341
    %2471 = vmatpush.bf16.msra.mxu0 %v2333
    %2472 = vmatpush.bf16.msra.mxu0 %v2325
    %2473 = vmatpush.bf16.msra.mxu0 %v2317
    %2474 = vmatpush.bf16.msra.mxu0 %v2309
    %2475 = vmatpush.bf16.msra.mxu0 %v2301
    %2476 = vmatpush.bf16.msra.mxu0 %v2293
    %2477 = vmatmul.bf16.gmra.mxu0 %v545
    %v2478 = vpop.f32.mrf.mxu0
    %v2479 = vadd.f32 0.0, %v2478
    %v2480 = vpop.f32.mrf.mxu0
    %2481 = vdwg.mxu0
    %2482 = vmatpush.bf16.msra.mxu0 %v2350
    %2483 = vmatpush.bf16.msra.mxu0 %v2342
    %2484 = vmatpush.bf16.msra.mxu0 %v2334
    %2485 = vmatpush.bf16.msra.mxu0 %v2326
    %2486 = vmatpush.bf16.msra.mxu0 %v2318
    %2487 = vmatpush.bf16.msra.mxu0 %v2310
    %2488 = vmatpush.bf16.msra.mxu0 %v2302
    %2489 = vmatpush.bf16.msra.mxu0 %v2294
    %2490 = vmatmul.bf16.gmra.mxu0 %v545
    %v2491 = vpop.f32.mrf.mxu0
    %v2492 = vadd.f32 0.0, %v2491
    %v2493 = vpop.f32.mrf.mxu0
    %2494 = vdwg.mxu0
    %2495 = vmatpush.bf16.msra.mxu0 %v2351
    %2496 = vmatpush.bf16.msra.mxu0 %v2343
    %2497 = vmatpush.bf16.msra.mxu0 %v2335
    %2498 = vmatpush.bf16.msra.mxu0 %v2327
    %2499 = vmatpush.bf16.msra.mxu0 %v2319
    %2500 = vmatpush.bf16.msra.mxu0 %v2311
    %2501 = vmatpush.bf16.msra.mxu0 %v2303
    %2502 = vmatpush.bf16.msra.mxu0 %v2295
    %2503 = vmatmul.bf16.gmra.mxu0 %v545
    %v2504 = vpop.f32.mrf.mxu0
    %v2505 = vadd.f32 0.0, %v2504
    %v2506 = vpop.f32.mrf.mxu0
    %2507 = vdwg.mxu0
    %2508 = vmatpush.bf16.msra.mxu0 %v2352
    %2509 = vmatpush.bf16.msra.mxu0 %v2344
    %2510 = vmatpush.bf16.msra.mxu0 %v2336
    %2511 = vmatpush.bf16.msra.mxu0 %v2328
    %2512 = vmatpush.bf16.msra.mxu0 %v2320
    %2513 = vmatpush.bf16.msra.mxu0 %v2312
    %2514 = vmatpush.bf16.msra.mxu0 %v2304
    %2515 = vmatpush.bf16.msra.mxu0 %v2296
    %2516 = vmatmul.bf16.gmra.mxu0 %v545
    %v2517 = vpop.f32.mrf.mxu0
    %v2518 = vadd.f32 0.0, %v2517
    %v2519 = vpop.f32.mrf.mxu0
    %2520 = vdwg.mxu0
    %v2521 = vadd.f32 %v2024, %v2427
    %v2522 = vadd.f32 %v2025, %v2440
    %v2523 = vadd.f32 %v2026, %v2453
    %v2524 = vadd.f32 %v2027, %v2466
    %v2525 = vadd.f32 %v2028, %v2479
    %v2526 = vadd.f32 %v2029, %v2492
    %v2527 = vadd.f32 %v2030, %v2505
    %v2528 = vadd.f32 %v2031, %v2518
    %s2529 = scalar_lea.vmem [#allocation7], 2048
    %v2530 = vld [vmem:[%s2529] sm:$0xff]
    %v2531 = vld [vmem:[%s2529 + $0x8] sm:$0xff]
    %v2532 = vld [vmem:[%s2529 + $0x10] sm:$0xff]
    %v2533 = vld [vmem:[%s2529 + $0x18] sm:$0xff]
    %v2534 = vld [vmem:[%s2529 + $0x20] sm:$0xff]
    %v2535 = vld [vmem:[%s2529 + $0x28] sm:$0xff]
    %v2536 = vld [vmem:[%s2529 + $0x30] sm:$0xff]
    %v2537 = vld [vmem:[%s2529 + $0x38] sm:$0xff]
    %v2538 = vld [vmem:[%s2529 + $0x40] sm:$0xff]
    %v2539 = vld [vmem:[%s2529 + $0x48] sm:$0xff]
    %v2540 = vld [vmem:[%s2529 + $0x50] sm:$0xff]
    %v2541 = vld [vmem:[%s2529 + $0x58] sm:$0xff]
    %v2542 = vld [vmem:[%s2529 + $0x60] sm:$0xff]
    %v2543 = vld [vmem:[%s2529 + $0x68] sm:$0xff]
    %v2544 = vld [vmem:[%s2529 + $0x70] sm:$0xff]
    %v2545 = vld [vmem:[%s2529 + $0x78] sm:$0xff]
    %v2546 = vld [vmem:[%s2529 + $0x80] sm:$0xff]
    %v2547 = vld [vmem:[%s2529 + $0x88] sm:$0xff]
    %v2548 = vld [vmem:[%s2529 + $0x90] sm:$0xff]
    %v2549 = vld [vmem:[%s2529 + $0x98] sm:$0xff]
    %v2550 = vld [vmem:[%s2529 + $0xa0] sm:$0xff]
    %v2551 = vld [vmem:[%s2529 + $0xa8] sm:$0xff]
    %v2552 = vld [vmem:[%s2529 + $0xb0] sm:$0xff]
    %v2553 = vld [vmem:[%s2529 + $0xb8] sm:$0xff]
    %v2554 = vld [vmem:[%s2529 + $0xc0] sm:$0xff]
    %v2555 = vld [vmem:[%s2529 + $0xc8] sm:$0xff]
    %v2556 = vld [vmem:[%s2529 + $0xd0] sm:$0xff]
    %v2557 = vld [vmem:[%s2529 + $0xd8] sm:$0xff]
    %v2558 = vld [vmem:[%s2529 + $0xe0] sm:$0xff]
    %v2559 = vld [vmem:[%s2529 + $0xe8] sm:$0xff]
    %v2560 = vld [vmem:[%s2529 + $0xf0] sm:$0xff]
    %v2561 = vld [vmem:[%s2529 + $0xf8] sm:$0xff]
    %v2562 = vld [vmem:[%s2529 + $0x100] sm:$0xff]
    %v2563 = vld [vmem:[%s2529 + $0x108] sm:$0xff]
    %v2564 = vld [vmem:[%s2529 + $0x110] sm:$0xff]
    %v2565 = vld [vmem:[%s2529 + $0x118] sm:$0xff]
    %v2566 = vld [vmem:[%s2529 + $0x120] sm:$0xff]
    %v2567 = vld [vmem:[%s2529 + $0x128] sm:$0xff]
    %v2568 = vld [vmem:[%s2529 + $0x130] sm:$0xff]
    %v2569 = vld [vmem:[%s2529 + $0x138] sm:$0xff]
    %v2570 = vld [vmem:[%s2529 + $0x140] sm:$0xff]
    %v2571 = vld [vmem:[%s2529 + $0x148] sm:$0xff]
    %v2572 = vld [vmem:[%s2529 + $0x150] sm:$0xff]
    %v2573 = vld [vmem:[%s2529 + $0x158] sm:$0xff]
    %v2574 = vld [vmem:[%s2529 + $0x160] sm:$0xff]
    %v2575 = vld [vmem:[%s2529 + $0x168] sm:$0xff]
    %v2576 = vld [vmem:[%s2529 + $0x170] sm:$0xff]
    %v2577 = vld [vmem:[%s2529 + $0x178] sm:$0xff]
    %v2578 = vld [vmem:[%s2529 + $0x180] sm:$0xff]
    %v2579 = vld [vmem:[%s2529 + $0x188] sm:$0xff]
    %v2580 = vld [vmem:[%s2529 + $0x190] sm:$0xff]
    %v2581 = vld [vmem:[%s2529 + $0x198] sm:$0xff]
    %v2582 = vld [vmem:[%s2529 + $0x1a0] sm:$0xff]
    %v2583 = vld [vmem:[%s2529 + $0x1a8] sm:$0xff]
    %v2584 = vld [vmem:[%s2529 + $0x1b0] sm:$0xff]
    %v2585 = vld [vmem:[%s2529 + $0x1b8] sm:$0xff]
    %v2586 = vld [vmem:[%s2529 + $0x1c0] sm:$0xff]
    %v2587 = vld [vmem:[%s2529 + $0x1c8] sm:$0xff]
    %v2588 = vld [vmem:[%s2529 + $0x1d0] sm:$0xff]
    %v2589 = vld [vmem:[%s2529 + $0x1d8] sm:$0xff]
    %v2590 = vld [vmem:[%s2529 + $0x1e0] sm:$0xff]
    %v2591 = vld [vmem:[%s2529 + $0x1e8] sm:$0xff]
    %v2592 = vld [vmem:[%s2529 + $0x1f0] sm:$0xff]
    %v2593 = vld [vmem:[%s2529 + $0x1f8] sm:$0xff]
    %v2658 = vunpack.c.l.b16 %v2530
    %v2659 = vunpack.c.h.b16 %v2530
    %v2660 = vunpack.c.l.b16 %v2531
    %v2661 = vunpack.c.h.b16 %v2531
    %v2662 = vunpack.c.l.b16 %v2532
    %v2663 = vunpack.c.h.b16 %v2532
    %v2664 = vunpack.c.l.b16 %v2533
    %v2665 = vunpack.c.h.b16 %v2533
    %v2666 = vunpack.c.l.b16 %v2534
    %v2667 = vunpack.c.h.b16 %v2534
    %v2668 = vunpack.c.l.b16 %v2535
    %v2669 = vunpack.c.h.b16 %v2535
    %v2670 = vunpack.c.l.b16 %v2536
    %v2671 = vunpack.c.h.b16 %v2536
    %v2672 = vunpack.c.l.b16 %v2537
    %v2673 = vunpack.c.h.b16 %v2537
    %v2674 = vunpack.c.l.b16 %v2538
    %v2675 = vunpack.c.h.b16 %v2538
    %v2676 = vunpack.c.l.b16 %v2539
    %v2677 = vunpack.c.h.b16 %v2539
    %v2678 = vunpack.c.l.b16 %v2540
    %v2679 = vunpack.c.h.b16 %v2540
    %v2680 = vunpack.c.l.b16 %v2541
    %v2681 = vunpack.c.h.b16 %v2541
    %v2682 = vunpack.c.l.b16 %v2542
    %v2683 = vunpack.c.h.b16 %v2542
    %v2684 = vunpack.c.l.b16 %v2543
    %v2685 = vunpack.c.h.b16 %v2543
    %v2686 = vunpack.c.l.b16 %v2544
    %v2687 = vunpack.c.h.b16 %v2544
    %v2688 = vunpack.c.l.b16 %v2545
    %v2689 = vunpack.c.h.b16 %v2545
    %v2690 = vunpack.c.l.b16 %v2546
    %v2691 = vunpack.c.h.b16 %v2546
    %v2692 = vunpack.c.l.b16 %v2547
    %v2693 = vunpack.c.h.b16 %v2547
    %v2694 = vunpack.c.l.b16 %v2548
    %v2695 = vunpack.c.h.b16 %v2548
    %v2696 = vunpack.c.l.b16 %v2549
    %v2697 = vunpack.c.h.b16 %v2549
    %v2698 = vunpack.c.l.b16 %v2550
    %v2699 = vunpack.c.h.b16 %v2550
    %v2700 = vunpack.c.l.b16 %v2551
    %v2701 = vunpack.c.h.b16 %v2551
    %v2702 = vunpack.c.l.b16 %v2552
    %v2703 = vunpack.c.h.b16 %v2552
    %v2704 = vunpack.c.l.b16 %v2553
    %v2705 = vunpack.c.h.b16 %v2553
    %v2706 = vunpack.c.l.b16 %v2554
    %v2707 = vunpack.c.h.b16 %v2554
    %v2708 = vunpack.c.l.b16 %v2555
    %v2709 = vunpack.c.h.b16 %v2555
    %v2710 = vunpack.c.l.b16 %v2556
    %v2711 = vunpack.c.h.b16 %v2556
    %v2712 = vunpack.c.l.b16 %v2557
    %v2713 = vunpack.c.h.b16 %v2557
    %v2714 = vunpack.c.l.b16 %v2558
    %v2715 = vunpack.c.h.b16 %v2558
    %v2716 = vunpack.c.l.b16 %v2559
    %v2717 = vunpack.c.h.b16 %v2559
    %v2718 = vunpack.c.l.b16 %v2560
    %v2719 = vunpack.c.h.b16 %v2560
    %v2720 = vunpack.c.l.b16 %v2561
    %v2721 = vunpack.c.h.b16 %v2561
    %v2722 = vunpack.c.l.b16 %v2562
    %v2723 = vunpack.c.h.b16 %v2562
    %v2724 = vunpack.c.l.b16 %v2563
    %v2725 = vunpack.c.h.b16 %v2563
    %v2726 = vunpack.c.l.b16 %v2564
    %v2727 = vunpack.c.h.b16 %v2564
    %v2728 = vunpack.c.l.b16 %v2565
    %v2729 = vunpack.c.h.b16 %v2565
    %v2730 = vunpack.c.l.b16 %v2566
    %v2731 = vunpack.c.h.b16 %v2566
    %v2732 = vunpack.c.l.b16 %v2567
    %v2733 = vunpack.c.h.b16 %v2567
    %v2734 = vunpack.c.l.b16 %v2568
    %v2735 = vunpack.c.h.b16 %v2568
    %v2736 = vunpack.c.l.b16 %v2569
    %v2737 = vunpack.c.h.b16 %v2569
    %v2738 = vunpack.c.l.b16 %v2570
    %v2739 = vunpack.c.h.b16 %v2570
    %v2740 = vunpack.c.l.b16 %v2571
    %v2741 = vunpack.c.h.b16 %v2571
    %v2742 = vunpack.c.l.b16 %v2572
    %v2743 = vunpack.c.h.b16 %v2572
    %v2744 = vunpack.c.l.b16 %v2573
    %v2745 = vunpack.c.h.b16 %v2573
    %v2746 = vunpack.c.l.b16 %v2574
    %v2747 = vunpack.c.h.b16 %v2574
    %v2748 = vunpack.c.l.b16 %v2575
    %v2749 = vunpack.c.h.b16 %v2575
    %v2750 = vunpack.c.l.b16 %v2576
    %v2751 = vunpack.c.h.b16 %v2576
    %v2752 = vunpack.c.l.b16 %v2577
    %v2753 = vunpack.c.h.b16 %v2577
    %v2754 = vunpack.c.l.b16 %v2578
    %v2755 = vunpack.c.h.b16 %v2578
    %v2756 = vunpack.c.l.b16 %v2579
    %v2757 = vunpack.c.h.b16 %v2579
    %v2758 = vunpack.c.l.b16 %v2580
    %v2759 = vunpack.c.h.b16 %v2580
    %v2760 = vunpack.c.l.b16 %v2581
    %v2761 = vunpack.c.h.b16 %v2581
    %v2762 = vunpack.c.l.b16 %v2582
    %v2763 = vunpack.c.h.b16 %v2582
    %v2764 = vunpack.c.l.b16 %v2583
    %v2765 = vunpack.c.h.b16 %v2583
    %v2766 = vunpack.c.l.b16 %v2584
    %v2767 = vunpack.c.h.b16 %v2584
    %v2768 = vunpack.c.l.b16 %v2585
    %v2769 = vunpack.c.h.b16 %v2585
    %v2770 = vunpack.c.l.b16 %v2586
    %v2771 = vunpack.c.h.b16 %v2586
    %v2772 = vunpack.c.l.b16 %v2587
    %v2773 = vunpack.c.h.b16 %v2587
    %v2774 = vunpack.c.l.b16 %v2588
    %v2775 = vunpack.c.h.b16 %v2588
    %v2776 = vunpack.c.l.b16 %v2589
    %v2777 = vunpack.c.h.b16 %v2589
    %v2778 = vunpack.c.l.b16 %v2590
    %v2779 = vunpack.c.h.b16 %v2590
    %v2780 = vunpack.c.l.b16 %v2591
    %v2781 = vunpack.c.h.b16 %v2591
    %v2782 = vunpack.c.l.b16 %v2592
    %v2783 = vunpack.c.h.b16 %v2592
    %v2784 = vunpack.c.l.b16 %v2593
    %v2785 = vunpack.c.h.b16 %v2593
    %v2786 = vpack.c.b16 %v2666, %v2658
    %v2787 = vpack.c.b16 %v2667, %v2659
    %v2788 = vpack.c.b16 %v2668, %v2660
    %v2789 = vpack.c.b16 %v2669, %v2661
    %v2790 = vpack.c.b16 %v2670, %v2662
    %v2791 = vpack.c.b16 %v2671, %v2663
    %v2792 = vpack.c.b16 %v2672, %v2664
    %v2793 = vpack.c.b16 %v2673, %v2665
    %v2794 = vpack.c.b16 %v2682, %v2674
    %v2795 = vpack.c.b16 %v2683, %v2675
    %v2796 = vpack.c.b16 %v2684, %v2676
    %v2797 = vpack.c.b16 %v2685, %v2677
    %v2798 = vpack.c.b16 %v2686, %v2678
    %v2799 = vpack.c.b16 %v2687, %v2679
    %v2800 = vpack.c.b16 %v2688, %v2680
    %v2801 = vpack.c.b16 %v2689, %v2681
    %v2802 = vpack.c.b16 %v2698, %v2690
    %v2803 = vpack.c.b16 %v2699, %v2691
    %v2804 = vpack.c.b16 %v2700, %v2692
    %v2805 = vpack.c.b16 %v2701, %v2693
    %v2806 = vpack.c.b16 %v2702, %v2694
    %v2807 = vpack.c.b16 %v2703, %v2695
    %v2808 = vpack.c.b16 %v2704, %v2696
    %v2809 = vpack.c.b16 %v2705, %v2697
    %v2810 = vpack.c.b16 %v2714, %v2706
    %v2811 = vpack.c.b16 %v2715, %v2707
    %v2812 = vpack.c.b16 %v2716, %v2708
    %v2813 = vpack.c.b16 %v2717, %v2709
    %v2814 = vpack.c.b16 %v2718, %v2710
    %v2815 = vpack.c.b16 %v2719, %v2711
    %v2816 = vpack.c.b16 %v2720, %v2712
    %v2817 = vpack.c.b16 %v2721, %v2713
    %v2818 = vpack.c.b16 %v2730, %v2722
    %v2819 = vpack.c.b16 %v2731, %v2723
    %v2820 = vpack.c.b16 %v2732, %v2724
    %v2821 = vpack.c.b16 %v2733, %v2725
    %v2822 = vpack.c.b16 %v2734, %v2726
    %v2823 = vpack.c.b16 %v2735, %v2727
    %v2824 = vpack.c.b16 %v2736, %v2728
    %v2825 = vpack.c.b16 %v2737, %v2729
    %v2826 = vpack.c.b16 %v2746, %v2738
    %v2827 = vpack.c.b16 %v2747, %v2739
    %v2828 = vpack.c.b16 %v2748, %v2740
    %v2829 = vpack.c.b16 %v2749, %v2741
    %v2830 = vpack.c.b16 %v2750, %v2742
    %v2831 = vpack.c.b16 %v2751, %v2743
    %v2832 = vpack.c.b16 %v2752, %v2744
    %v2833 = vpack.c.b16 %v2753, %v2745
    %v2834 = vpack.c.b16 %v2762, %v2754
    %v2835 = vpack.c.b16 %v2763, %v2755
    %v2836 = vpack.c.b16 %v2764, %v2756
    %v2837 = vpack.c.b16 %v2765, %v2757
    %v2838 = vpack.c.b16 %v2766, %v2758
    %v2839 = vpack.c.b16 %v2767, %v2759
    %v2840 = vpack.c.b16 %v2768, %v2760
    %v2841 = vpack.c.b16 %v2769, %v2761
    %v2842 = vpack.c.b16 %v2778, %v2770
    %v2843 = vpack.c.b16 %v2779, %v2771
    %v2844 = vpack.c.b16 %v2780, %v2772
    %v2845 = vpack.c.b16 %v2781, %v2773
    %v2846 = vpack.c.b16 %v2782, %v2774
    %v2847 = vpack.c.b16 %v2783, %v2775
    %v2848 = vpack.c.b16 %v2784, %v2776
    %v2849 = vpack.c.b16 %v2785, %v2777
    %2914 = vmatpush.bf16.msra.mxu0 %v2842
    %2915 = vmatpush.bf16.msra.mxu0 %v2834
    %2916 = vmatpush.bf16.msra.mxu0 %v2826
    %2917 = vmatpush.bf16.msra.mxu0 %v2818
    %2918 = vmatpush.bf16.msra.mxu0 %v2810
    %2919 = vmatpush.bf16.msra.mxu0 %v2802
    %2920 = vmatpush.bf16.msra.mxu0 %v2794
    %2921 = vmatpush.bf16.msra.mxu0 %v2786
    %2922 = vmatmul.bf16.gmra.mxu0 %v546
    %v2923 = vpop.f32.mrf.mxu0
    %v2924 = vadd.f32 0.0, %v2923
    %v2925 = vpop.f32.mrf.mxu0
    %2926 = vdwg.mxu0
    %2927 = vmatpush.bf16.msra.mxu0 %v2843
    %2928 = vmatpush.bf16.msra.mxu0 %v2835
    %2929 = vmatpush.bf16.msra.mxu0 %v2827
    %2930 = vmatpush.bf16.msra.mxu0 %v2819
    %2931 = vmatpush.bf16.msra.mxu0 %v2811
    %2932 = vmatpush.bf16.msra.mxu0 %v2803
    %2933 = vmatpush.bf16.msra.mxu0 %v2795
    %2934 = vmatpush.bf16.msra.mxu0 %v2787
    %2935 = vmatmul.bf16.gmra.mxu0 %v546
    %v2936 = vpop.f32.mrf.mxu0
    %v2937 = vadd.f32 0.0, %v2936
    %v2938 = vpop.f32.mrf.mxu0
    %2939 = vdwg.mxu0
    %2940 = vmatpush.bf16.msra.mxu0 %v2844
    %2941 = vmatpush.bf16.msra.mxu0 %v2836
    %2942 = vmatpush.bf16.msra.mxu0 %v2828
    %2943 = vmatpush.bf16.msra.mxu0 %v2820
    %2944 = vmatpush.bf16.msra.mxu0 %v2812
    %2945 = vmatpush.bf16.msra.mxu0 %v2804
    %2946 = vmatpush.bf16.msra.mxu0 %v2796
    %2947 = vmatpush.bf16.msra.mxu0 %v2788
    %2948 = vmatmul.bf16.gmra.mxu0 %v546
    %v2949 = vpop.f32.mrf.mxu0
    %v2950 = vadd.f32 0.0, %v2949
    %v2951 = vpop.f32.mrf.mxu0
    %2952 = vdwg.mxu0
    %2953 = vmatpush.bf16.msra.mxu0 %v2845
    %2954 = vmatpush.bf16.msra.mxu0 %v2837
    %2955 = vmatpush.bf16.msra.mxu0 %v2829
    %2956 = vmatpush.bf16.msra.mxu0 %v2821
    %2957 = vmatpush.bf16.msra.mxu0 %v2813
    %2958 = vmatpush.bf16.msra.mxu0 %v2805
    %2959 = vmatpush.bf16.msra.mxu0 %v2797
    %2960 = vmatpush.bf16.msra.mxu0 %v2789
    %2961 = vmatmul.bf16.gmra.mxu0 %v546
    %v2962 = vpop.f32.mrf.mxu0
    %v2963 = vadd.f32 0.0, %v2962
    %v2964 = vpop.f32.mrf.mxu0
    %2965 = vdwg.mxu0
    %2966 = vmatpush.bf16.msra.mxu0 %v2846
    %2967 = vmatpush.bf16.msra.mxu0 %v2838
    %2968 = vmatpush.bf16.msra.mxu0 %v2830
    %2969 = vmatpush.bf16.msra.mxu0 %v2822
    %2970 = vmatpush.bf16.msra.mxu0 %v2814
    %2971 = vmatpush.bf16.msra.mxu0 %v2806
    %2972 = vmatpush.bf16.msra.mxu0 %v2798
    %2973 = vmatpush.bf16.msra.mxu0 %v2790
    %2974 = vmatmul.bf16.gmra.mxu0 %v546
    %v2975 = vpop.f32.mrf.mxu0
    %v2976 = vadd.f32 0.0, %v2975
    %v2977 = vpop.f32.mrf.mxu0
    %2978 = vdwg.mxu0
    %2979 = vmatpush.bf16.msra.mxu0 %v2847
    %2980 = vmatpush.bf16.msra.mxu0 %v2839
    %2981 = vmatpush.bf16.msra.mxu0 %v2831
    %2982 = vmatpush.bf16.msra.mxu0 %v2823
    %2983 = vmatpush.bf16.msra.mxu0 %v2815
    %2984 = vmatpush.bf16.msra.mxu0 %v2807
    %2985 = vmatpush.bf16.msra.mxu0 %v2799
    %2986 = vmatpush.bf16.msra.mxu0 %v2791
    %2987 = vmatmul.bf16.gmra.mxu0 %v546
    %v2988 = vpop.f32.mrf.mxu0
    %v2989 = vadd.f32 0.0, %v2988
    %v2990 = vpop.f32.mrf.mxu0
    %2991 = vdwg.mxu0
    %2992 = vmatpush.bf16.msra.mxu0 %v2848
    %2993 = vmatpush.bf16.msra.mxu0 %v2840
    %2994 = vmatpush.bf16.msra.mxu0 %v2832
    %2995 = vmatpush.bf16.msra.mxu0 %v2824
    %2996 = vmatpush.bf16.msra.mxu0 %v2816
    %2997 = vmatpush.bf16.msra.mxu0 %v2808
    %2998 = vmatpush.bf16.msra.mxu0 %v2800
    %2999 = vmatpush.bf16.msra.mxu0 %v2792
    %3000 = vmatmul.bf16.gmra.mxu0 %v546
    %v3001 = vpop.f32.mrf.mxu0
    %v3002 = vadd.f32 0.0, %v3001
    %v3003 = vpop.f32.mrf.mxu0
    %3004 = vdwg.mxu0
    %3005 = vmatpush.bf16.msra.mxu0 %v2849
    %3006 = vmatpush.bf16.msra.mxu0 %v2841
    %3007 = vmatpush.bf16.msra.mxu0 %v2833
    %3008 = vmatpush.bf16.msra.mxu0 %v2825
    %3009 = vmatpush.bf16.msra.mxu0 %v2817
    %3010 = vmatpush.bf16.msra.mxu0 %v2809
    %3011 = vmatpush.bf16.msra.mxu0 %v2801
    %3012 = vmatpush.bf16.msra.mxu0 %v2793
    %3013 = vmatmul.bf16.gmra.mxu0 %v546
    %v3014 = vpop.f32.mrf.mxu0
    %v3015 = vadd.f32 0.0, %v3014
    %v3016 = vpop.f32.mrf.mxu0
    %3017 = vdwg.mxu0
    %v3018 = vadd.f32 %v2521, %v2924
    %v3019 = vadd.f32 %v2522, %v2937
    %v3020 = vadd.f32 %v2523, %v2950
    %v3021 = vadd.f32 %v2524, %v2963
    %v3022 = vadd.f32 %v2525, %v2976
    %v3023 = vadd.f32 %v2526, %v2989
    %v3024 = vadd.f32 %v2527, %v3002
    %v3025 = vadd.f32 %v2528, %v3015
    %s3026 = scalar_lea.vmem [#allocation7], 2560
    %v3027 = vld [vmem:[%s3026] sm:$0xff]
    %v3028 = vld [vmem:[%s3026 + $0x8] sm:$0xff]
    %v3029 = vld [vmem:[%s3026 + $0x10] sm:$0xff]
    %v3030 = vld [vmem:[%s3026 + $0x18] sm:$0xff]
    %v3031 = vld [vmem:[%s3026 + $0x20] sm:$0xff]
    %v3032 = vld [vmem:[%s3026 + $0x28] sm:$0xff]
    %v3033 = vld [vmem:[%s3026 + $0x30] sm:$0xff]
    %v3034 = vld [vmem:[%s3026 + $0x38] sm:$0xff]
    %v3035 = vld [vmem:[%s3026 + $0x40] sm:$0xff]
    %v3036 = vld [vmem:[%s3026 + $0x48] sm:$0xff]
    %v3037 = vld [vmem:[%s3026 + $0x50] sm:$0xff]
    %v3038 = vld [vmem:[%s3026 + $0x58] sm:$0xff]
    %v3039 = vld [vmem:[%s3026 + $0x60] sm:$0xff]
    %v3040 = vld [vmem:[%s3026 + $0x68] sm:$0xff]
    %v3041 = vld [vmem:[%s3026 + $0x70] sm:$0xff]
    %v3042 = vld [vmem:[%s3026 + $0x78] sm:$0xff]
    %v3043 = vld [vmem:[%s3026 + $0x80] sm:$0xff]
    %v3044 = vld [vmem:[%s3026 + $0x88] sm:$0xff]
    %v3045 = vld [vmem:[%s3026 + $0x90] sm:$0xff]
    %v3046 = vld [vmem:[%s3026 + $0x98] sm:$0xff]
    %v3047 = vld [vmem:[%s3026 + $0xa0] sm:$0xff]
    %v3048 = vld [vmem:[%s3026 + $0xa8] sm:$0xff]
    %v3049 = vld [vmem:[%s3026 + $0xb0] sm:$0xff]
    %v3050 = vld [vmem:[%s3026 + $0xb8] sm:$0xff]
    %v3051 = vld [vmem:[%s3026 + $0xc0] sm:$0xff]
    %v3052 = vld [vmem:[%s3026 + $0xc8] sm:$0xff]
    %v3053 = vld [vmem:[%s3026 + $0xd0] sm:$0xff]
    %v3054 = vld [vmem:[%s3026 + $0xd8] sm:$0xff]
    %v3055 = vld [vmem:[%s3026 + $0xe0] sm:$0xff]
    %v3056 = vld [vmem:[%s3026 + $0xe8] sm:$0xff]
    %v3057 = vld [vmem:[%s3026 + $0xf0] sm:$0xff]
    %v3058 = vld [vmem:[%s3026 + $0xf8] sm:$0xff]
    %v3059 = vld [vmem:[%s3026 + $0x100] sm:$0xff]
    %v3060 = vld [vmem:[%s3026 + $0x108] sm:$0xff]
    %v3061 = vld [vmem:[%s3026 + $0x110] sm:$0xff]
    %v3062 = vld [vmem:[%s3026 + $0x118] sm:$0xff]
    %v3063 = vld [vmem:[%s3026 + $0x120] sm:$0xff]
    %v3064 = vld [vmem:[%s3026 + $0x128] sm:$0xff]
    %v3065 = vld [vmem:[%s3026 + $0x130] sm:$0xff]
    %v3066 = vld [vmem:[%s3026 + $0x138] sm:$0xff]
    %v3067 = vld [vmem:[%s3026 + $0x140] sm:$0xff]
    %v3068 = vld [vmem:[%s3026 + $0x148] sm:$0xff]
    %v3069 = vld [vmem:[%s3026 + $0x150] sm:$0xff]
    %v3070 = vld [vmem:[%s3026 + $0x158] sm:$0xff]
    %v3071 = vld [vmem:[%s3026 + $0x160] sm:$0xff]
    %v3072 = vld [vmem:[%s3026 + $0x168] sm:$0xff]
    %v3073 = vld [vmem:[%s3026 + $0x170] sm:$0xff]
    %v3074 = vld [vmem:[%s3026 + $0x178] sm:$0xff]
    %v3075 = vld [vmem:[%s3026 + $0x180] sm:$0xff]
    %v3076 = vld [vmem:[%s3026 + $0x188] sm:$0xff]
    %v3077 = vld [vmem:[%s3026 + $0x190] sm:$0xff]
    %v3078 = vld [vmem:[%s3026 + $0x198] sm:$0xff]
    %v3079 = vld [vmem:[%s3026 + $0x1a0] sm:$0xff]
    %v3080 = vld [vmem:[%s3026 + $0x1a8] sm:$0xff]
    %v3081 = vld [vmem:[%s3026 + $0x1b0] sm:$0xff]
    %v3082 = vld [vmem:[%s3026 + $0x1b8] sm:$0xff]
    %v3083 = vld [vmem:[%s3026 + $0x1c0] sm:$0xff]
    %v3084 = vld [vmem:[%s3026 + $0x1c8] sm:$0xff]
    %v3085 = vld [vmem:[%s3026 + $0x1d0] sm:$0xff]
    %v3086 = vld [vmem:[%s3026 + $0x1d8] sm:$0xff]
    %v3087 = vld [vmem:[%s3026 + $0x1e0] sm:$0xff]
    %v3088 = vld [vmem:[%s3026 + $0x1e8] sm:$0xff]
    %v3089 = vld [vmem:[%s3026 + $0x1f0] sm:$0xff]
    %v3090 = vld [vmem:[%s3026 + $0x1f8] sm:$0xff]
    %v3155 = vunpack.c.l.b16 %v3027
    %v3156 = vunpack.c.h.b16 %v3027
    %v3157 = vunpack.c.l.b16 %v3028
    %v3158 = vunpack.c.h.b16 %v3028
    %v3159 = vunpack.c.l.b16 %v3029
    %v3160 = vunpack.c.h.b16 %v3029
    %v3161 = vunpack.c.l.b16 %v3030
    %v3162 = vunpack.c.h.b16 %v3030
    %v3163 = vunpack.c.l.b16 %v3031
    %v3164 = vunpack.c.h.b16 %v3031
    %v3165 = vunpack.c.l.b16 %v3032
    %v3166 = vunpack.c.h.b16 %v3032
    %v3167 = vunpack.c.l.b16 %v3033
    %v3168 = vunpack.c.h.b16 %v3033
    %v3169 = vunpack.c.l.b16 %v3034
    %v3170 = vunpack.c.h.b16 %v3034
    %v3171 = vunpack.c.l.b16 %v3035
    %v3172 = vunpack.c.h.b16 %v3035
    %v3173 = vunpack.c.l.b16 %v3036
    %v3174 = vunpack.c.h.b16 %v3036
    %v3175 = vunpack.c.l.b16 %v3037
    %v3176 = vunpack.c.h.b16 %v3037
    %v3177 = vunpack.c.l.b16 %v3038
    %v3178 = vunpack.c.h.b16 %v3038
    %v3179 = vunpack.c.l.b16 %v3039
    %v3180 = vunpack.c.h.b16 %v3039
    %v3181 = vunpack.c.l.b16 %v3040
    %v3182 = vunpack.c.h.b16 %v3040
    %v3183 = vunpack.c.l.b16 %v3041
    %v3184 = vunpack.c.h.b16 %v3041
    %v3185 = vunpack.c.l.b16 %v3042
    %v3186 = vunpack.c.h.b16 %v3042
    %v3187 = vunpack.c.l.b16 %v3043
    %v3188 = vunpack.c.h.b16 %v3043
    %v3189 = vunpack.c.l.b16 %v3044
    %v3190 = vunpack.c.h.b16 %v3044
    %v3191 = vunpack.c.l.b16 %v3045
    %v3192 = vunpack.c.h.b16 %v3045
    %v3193 = vunpack.c.l.b16 %v3046
    %v3194 = vunpack.c.h.b16 %v3046
    %v3195 = vunpack.c.l.b16 %v3047
    %v3196 = vunpack.c.h.b16 %v3047
    %v3197 = vunpack.c.l.b16 %v3048
    %v3198 = vunpack.c.h.b16 %v3048
    %v3199 = vunpack.c.l.b16 %v3049
    %v3200 = vunpack.c.h.b16 %v3049
    %v3201 = vunpack.c.l.b16 %v3050
    %v3202 = vunpack.c.h.b16 %v3050
    %v3203 = vunpack.c.l.b16 %v3051
    %v3204 = vunpack.c.h.b16 %v3051
    %v3205 = vunpack.c.l.b16 %v3052
    %v3206 = vunpack.c.h.b16 %v3052
    %v3207 = vunpack.c.l.b16 %v3053
    %v3208 = vunpack.c.h.b16 %v3053
    %v3209 = vunpack.c.l.b16 %v3054
    %v3210 = vunpack.c.h.b16 %v3054
    %v3211 = vunpack.c.l.b16 %v3055
    %v3212 = vunpack.c.h.b16 %v3055
    %v3213 = vunpack.c.l.b16 %v3056
    %v3214 = vunpack.c.h.b16 %v3056
    %v3215 = vunpack.c.l.b16 %v3057
    %v3216 = vunpack.c.h.b16 %v3057
    %v3217 = vunpack.c.l.b16 %v3058
    %v3218 = vunpack.c.h.b16 %v3058
    %v3219 = vunpack.c.l.b16 %v3059
    %v3220 = vunpack.c.h.b16 %v3059
    %v3221 = vunpack.c.l.b16 %v3060
    %v3222 = vunpack.c.h.b16 %v3060
    %v3223 = vunpack.c.l.b16 %v3061
    %v3224 = vunpack.c.h.b16 %v3061
    %v3225 = vunpack.c.l.b16 %v3062
    %v3226 = vunpack.c.h.b16 %v3062
    %v3227 = vunpack.c.l.b16 %v3063
    %v3228 = vunpack.c.h.b16 %v3063
    %v3229 = vunpack.c.l.b16 %v3064
    %v3230 = vunpack.c.h.b16 %v3064
    %v3231 = vunpack.c.l.b16 %v3065
    %v3232 = vunpack.c.h.b16 %v3065
    %v3233 = vunpack.c.l.b16 %v3066
    %v3234 = vunpack.c.h.b16 %v3066
    %v3235 = vunpack.c.l.b16 %v3067
    %v3236 = vunpack.c.h.b16 %v3067
    %v3237 = vunpack.c.l.b16 %v3068
    %v3238 = vunpack.c.h.b16 %v3068
    %v3239 = vunpack.c.l.b16 %v3069
    %v3240 = vunpack.c.h.b16 %v3069
    %v3241 = vunpack.c.l.b16 %v3070
    %v3242 = vunpack.c.h.b16 %v3070
    %v3243 = vunpack.c.l.b16 %v3071
    %v3244 = vunpack.c.h.b16 %v3071
    %v3245 = vunpack.c.l.b16 %v3072
    %v3246 = vunpack.c.h.b16 %v3072
    %v3247 = vunpack.c.l.b16 %v3073
    %v3248 = vunpack.c.h.b16 %v3073
    %v3249 = vunpack.c.l.b16 %v3074
    %v3250 = vunpack.c.h.b16 %v3074
    %v3251 = vunpack.c.l.b16 %v3075
    %v3252 = vunpack.c.h.b16 %v3075
    %v3253 = vunpack.c.l.b16 %v3076
    %v3254 = vunpack.c.h.b16 %v3076
    %v3255 = vunpack.c.l.b16 %v3077
    %v3256 = vunpack.c.h.b16 %v3077
    %v3257 = vunpack.c.l.b16 %v3078
    %v3258 = vunpack.c.h.b16 %v3078
    %v3259 = vunpack.c.l.b16 %v3079
    %v3260 = vunpack.c.h.b16 %v3079
    %v3261 = vunpack.c.l.b16 %v3080
    %v3262 = vunpack.c.h.b16 %v3080
    %v3263 = vunpack.c.l.b16 %v3081
    %v3264 = vunpack.c.h.b16 %v3081
    %v3265 = vunpack.c.l.b16 %v3082
    %v3266 = vunpack.c.h.b16 %v3082
    %v3267 = vunpack.c.l.b16 %v3083
    %v3268 = vunpack.c.h.b16 %v3083
    %v3269 = vunpack.c.l.b16 %v3084
    %v3270 = vunpack.c.h.b16 %v3084
    %v3271 = vunpack.c.l.b16 %v3085
    %v3272 = vunpack.c.h.b16 %v3085
    %v3273 = vunpack.c.l.b16 %v3086
    %v3274 = vunpack.c.h.b16 %v3086
    %v3275 = vunpack.c.l.b16 %v3087
    %v3276 = vunpack.c.h.b16 %v3087
    %v3277 = vunpack.c.l.b16 %v3088
    %v3278 = vunpack.c.h.b16 %v3088
    %v3279 = vunpack.c.l.b16 %v3089
    %v3280 = vunpack.c.h.b16 %v3089
    %v3281 = vunpack.c.l.b16 %v3090
    %v3282 = vunpack.c.h.b16 %v3090
    %v3283 = vpack.c.b16 %v3163, %v3155
    %v3284 = vpack.c.b16 %v3164, %v3156
    %v3285 = vpack.c.b16 %v3165, %v3157
    %v3286 = vpack.c.b16 %v3166, %v3158
    %v3287 = vpack.c.b16 %v3167, %v3159
    %v3288 = vpack.c.b16 %v3168, %v3160
    %v3289 = vpack.c.b16 %v3169, %v3161
    %v3290 = vpack.c.b16 %v3170, %v3162
    %v3291 = vpack.c.b16 %v3179, %v3171
    %v3292 = vpack.c.b16 %v3180, %v3172
    %v3293 = vpack.c.b16 %v3181, %v3173
    %v3294 = vpack.c.b16 %v3182, %v3174
    %v3295 = vpack.c.b16 %v3183, %v3175
    %v3296 = vpack.c.b16 %v3184, %v3176
    %v3297 = vpack.c.b16 %v3185, %v3177
    %v3298 = vpack.c.b16 %v3186, %v3178
    %v3299 = vpack.c.b16 %v3195, %v3187
    %v3300 = vpack.c.b16 %v3196, %v3188
    %v3301 = vpack.c.b16 %v3197, %v3189
    %v3302 = vpack.c.b16 %v3198, %v3190
    %v3303 = vpack.c.b16 %v3199, %v3191
    %v3304 = vpack.c.b16 %v3200, %v3192
    %v3305 = vpack.c.b16 %v3201, %v3193
    %v3306 = vpack.c.b16 %v3202, %v3194
    %v3307 = vpack.c.b16 %v3211, %v3203
    %v3308 = vpack.c.b16 %v3212, %v3204
    %v3309 = vpack.c.b16 %v3213, %v3205
    %v3310 = vpack.c.b16 %v3214, %v3206
    %v3311 = vpack.c.b16 %v3215, %v3207
    %v3312 = vpack.c.b16 %v3216, %v3208
    %v3313 = vpack.c.b16 %v3217, %v3209
    %v3314 = vpack.c.b16 %v3218, %v3210
    %v3315 = vpack.c.b16 %v3227, %v3219
    %v3316 = vpack.c.b16 %v3228, %v3220
    %v3317 = vpack.c.b16 %v3229, %v3221
    %v3318 = vpack.c.b16 %v3230, %v3222
    %v3319 = vpack.c.b16 %v3231, %v3223
    %v3320 = vpack.c.b16 %v3232, %v3224
    %v3321 = vpack.c.b16 %v3233, %v3225
    %v3322 = vpack.c.b16 %v3234, %v3226
    %v3323 = vpack.c.b16 %v3243, %v3235
    %v3324 = vpack.c.b16 %v3244, %v3236
    %v3325 = vpack.c.b16 %v3245, %v3237
    %v3326 = vpack.c.b16 %v3246, %v3238
    %v3327 = vpack.c.b16 %v3247, %v3239
    %v3328 = vpack.c.b16 %v3248, %v3240
    %v3329 = vpack.c.b16 %v3249, %v3241
    %v3330 = vpack.c.b16 %v3250, %v3242
    %v3331 = vpack.c.b16 %v3259, %v3251
    %v3332 = vpack.c.b16 %v3260, %v3252
    %v3333 = vpack.c.b16 %v3261, %v3253
    %v3334 = vpack.c.b16 %v3262, %v3254
    %v3335 = vpack.c.b16 %v3263, %v3255
    %v3336 = vpack.c.b16 %v3264, %v3256
    %v3337 = vpack.c.b16 %v3265, %v3257
    %v3338 = vpack.c.b16 %v3266, %v3258
    %v3339 = vpack.c.b16 %v3275, %v3267
    %v3340 = vpack.c.b16 %v3276, %v3268
    %v3341 = vpack.c.b16 %v3277, %v3269
    %v3342 = vpack.c.b16 %v3278, %v3270
    %v3343 = vpack.c.b16 %v3279, %v3271
    %v3344 = vpack.c.b16 %v3280, %v3272
    %v3345 = vpack.c.b16 %v3281, %v3273
    %v3346 = vpack.c.b16 %v3282, %v3274
    %3411 = vmatpush.bf16.msra.mxu0 %v3339
    %3412 = vmatpush.bf16.msra.mxu0 %v3331
    %3413 = vmatpush.bf16.msra.mxu0 %v3323
    %3414 = vmatpush.bf16.msra.mxu0 %v3315
    %3415 = vmatpush.bf16.msra.mxu0 %v3307
    %3416 = vmatpush.bf16.msra.mxu0 %v3299
    %3417 = vmatpush.bf16.msra.mxu0 %v3291
    %3418 = vmatpush.bf16.msra.mxu0 %v3283
    %3419 = vmatmul.bf16.gmra.mxu0 %v547
    %v3420 = vpop.f32.mrf.mxu0
    %v3421 = vadd.f32 0.0, %v3420
    %v3422 = vpop.f32.mrf.mxu0
    %3423 = vdwg.mxu0
    %3424 = vmatpush.bf16.msra.mxu0 %v3340
    %3425 = vmatpush.bf16.msra.mxu0 %v3332
    %3426 = vmatpush.bf16.msra.mxu0 %v3324
    %3427 = vmatpush.bf16.msra.mxu0 %v3316
    %3428 = vmatpush.bf16.msra.mxu0 %v3308
    %3429 = vmatpush.bf16.msra.mxu0 %v3300
    %3430 = vmatpush.bf16.msra.mxu0 %v3292
    %3431 = vmatpush.bf16.msra.mxu0 %v3284
    %3432 = vmatmul.bf16.gmra.mxu0 %v547
    %v3433 = vpop.f32.mrf.mxu0
    %v3434 = vadd.f32 0.0, %v3433
    %v3435 = vpop.f32.mrf.mxu0
    %3436 = vdwg.mxu0
    %3437 = vmatpush.bf16.msra.mxu0 %v3341
    %3438 = vmatpush.bf16.msra.mxu0 %v3333
    %3439 = vmatpush.bf16.msra.mxu0 %v3325
    %3440 = vmatpush.bf16.msra.mxu0 %v3317
    %3441 = vmatpush.bf16.msra.mxu0 %v3309
    %3442 = vmatpush.bf16.msra.mxu0 %v3301
    %3443 = vmatpush.bf16.msra.mxu0 %v3293
    %3444 = vmatpush.bf16.msra.mxu0 %v3285
    %3445 = vmatmul.bf16.gmra.mxu0 %v547
    %v3446 = vpop.f32.mrf.mxu0
    %v3447 = vadd.f32 0.0, %v3446
    %v3448 = vpop.f32.mrf.mxu0
    %3449 = vdwg.mxu0
    %3450 = vmatpush.bf16.msra.mxu0 %v3342
    %3451 = vmatpush.bf16.msra.mxu0 %v3334
    %3452 = vmatpush.bf16.msra.mxu0 %v3326
    %3453 = vmatpush.bf16.msra.mxu0 %v3318
    %3454 = vmatpush.bf16.msra.mxu0 %v3310
    %3455 = vmatpush.bf16.msra.mxu0 %v3302
    %3456 = vmatpush.bf16.msra.mxu0 %v3294
    %3457 = vmatpush.bf16.msra.mxu0 %v3286
    %3458 = vmatmul.bf16.gmra.mxu0 %v547
    %v3459 = vpop.f32.mrf.mxu0
    %v3460 = vadd.f32 0.0, %v3459
    %v3461 = vpop.f32.mrf.mxu0
    %3462 = vdwg.mxu0
    %3463 = vmatpush.bf16.msra.mxu0 %v3343
    %3464 = vmatpush.bf16.msra.mxu0 %v3335
    %3465 = vmatpush.bf16.msra.mxu0 %v3327
    %3466 = vmatpush.bf16.msra.mxu0 %v3319
    %3467 = vmatpush.bf16.msra.mxu0 %v3311
    %3468 = vmatpush.bf16.msra.mxu0 %v3303
    %3469 = vmatpush.bf16.msra.mxu0 %v3295
    %3470 = vmatpush.bf16.msra.mxu0 %v3287
    %3471 = vmatmul.bf16.gmra.mxu0 %v547
    %v3472 = vpop.f32.mrf.mxu0
    %v3473 = vadd.f32 0.0, %v3472
    %v3474 = vpop.f32.mrf.mxu0
    %3475 = vdwg.mxu0
    %3476 = vmatpush.bf16.msra.mxu0 %v3344
    %3477 = vmatpush.bf16.msra.mxu0 %v3336
    %3478 = vmatpush.bf16.msra.mxu0 %v3328
    %3479 = vmatpush.bf16.msra.mxu0 %v3320
    %3480 = vmatpush.bf16.msra.mxu0 %v3312
    %3481 = vmatpush.bf16.msra.mxu0 %v3304
    %3482 = vmatpush.bf16.msra.mxu0 %v3296
    %3483 = vmatpush.bf16.msra.mxu0 %v3288
    %3484 = vmatmul.bf16.gmra.mxu0 %v547
    %v3485 = vpop.f32.mrf.mxu0
    %v3486 = vadd.f32 0.0, %v3485
    %v3487 = vpop.f32.mrf.mxu0
    %3488 = vdwg.mxu0
    %3489 = vmatpush.bf16.msra.mxu0 %v3345
    %3490 = vmatpush.bf16.msra.mxu0 %v3337
    %3491 = vmatpush.bf16.msra.mxu0 %v3329
    %3492 = vmatpush.bf16.msra.mxu0 %v3321
    %3493 = vmatpush.bf16.msra.mxu0 %v3313
    %3494 = vmatpush.bf16.msra.mxu0 %v3305
    %3495 = vmatpush.bf16.msra.mxu0 %v3297
    %3496 = vmatpush.bf16.msra.mxu0 %v3289
    %3497 = vmatmul.bf16.gmra.mxu0 %v547
    %v3498 = vpop.f32.mrf.mxu0
    %v3499 = vadd.f32 0.0, %v3498
    %v3500 = vpop.f32.mrf.mxu0
    %3501 = vdwg.mxu0
    %3502 = vmatpush.bf16.msra.mxu0 %v3346
    %3503 = vmatpush.bf16.msra.mxu0 %v3338
    %3504 = vmatpush.bf16.msra.mxu0 %v3330
    %3505 = vmatpush.bf16.msra.mxu0 %v3322
    %3506 = vmatpush.bf16.msra.mxu0 %v3314
    %3507 = vmatpush.bf16.msra.mxu0 %v3306
    %3508 = vmatpush.bf16.msra.mxu0 %v3298
    %3509 = vmatpush.bf16.msra.mxu0 %v3290
    %3510 = vmatmul.bf16.gmra.mxu0 %v547
    %v3511 = vpop.f32.mrf.mxu0
    %v3512 = vadd.f32 0.0, %v3511
    %v3513 = vpop.f32.mrf.mxu0
    %3514 = vdwg.mxu0
    %v3515 = vadd.f32 %v3018, %v3421
    %v3516 = vadd.f32 %v3019, %v3434
    %v3517 = vadd.f32 %v3020, %v3447
    %v3518 = vadd.f32 %v3021, %v3460
    %v3519 = vadd.f32 %v3022, %v3473
    %v3520 = vadd.f32 %v3023, %v3486
    %v3521 = vadd.f32 %v3024, %v3499
    %v3522 = vadd.f32 %v3025, %v3512
    %s3523 = scalar_lea.vmem [#allocation7], 3072
    %v3524 = vld [vmem:[%s3523] sm:$0xff]
    %v3525 = vld [vmem:[%s3523 + $0x8] sm:$0xff]
    %v3526 = vld [vmem:[%s3523 + $0x10] sm:$0xff]
    %v3527 = vld [vmem:[%s3523 + $0x18] sm:$0xff]
    %v3528 = vld [vmem:[%s3523 + $0x20] sm:$0xff]
    %v3529 = vld [vmem:[%s3523 + $0x28] sm:$0xff]
    %v3530 = vld [vmem:[%s3523 + $0x30] sm:$0xff]
    %v3531 = vld [vmem:[%s3523 + $0x38] sm:$0xff]
    %v3532 = vld [vmem:[%s3523 + $0x40] sm:$0xff]
    %v3533 = vld [vmem:[%s3523 + $0x48] sm:$0xff]
    %v3534 = vld [vmem:[%s3523 + $0x50] sm:$0xff]
    %v3535 = vld [vmem:[%s3523 + $0x58] sm:$0xff]
    %v3536 = vld [vmem:[%s3523 + $0x60] sm:$0xff]
    %v3537 = vld [vmem:[%s3523 + $0x68] sm:$0xff]
    %v3538 = vld [vmem:[%s3523 + $0x70] sm:$0xff]
    %v3539 = vld [vmem:[%s3523 + $0x78] sm:$0xff]
    %v3540 = vld [vmem:[%s3523 + $0x80] sm:$0xff]
    %v3541 = vld [vmem:[%s3523 + $0x88] sm:$0xff]
    %v3542 = vld [vmem:[%s3523 + $0x90] sm:$0xff]
    %v3543 = vld [vmem:[%s3523 + $0x98] sm:$0xff]
    %v3544 = vld [vmem:[%s3523 + $0xa0] sm:$0xff]
    %v3545 = vld [vmem:[%s3523 + $0xa8] sm:$0xff]
    %v3546 = vld [vmem:[%s3523 + $0xb0] sm:$0xff]
    %v3547 = vld [vmem:[%s3523 + $0xb8] sm:$0xff]
    %v3548 = vld [vmem:[%s3523 + $0xc0] sm:$0xff]
    %v3549 = vld [vmem:[%s3523 + $0xc8] sm:$0xff]
    %v3550 = vld [vmem:[%s3523 + $0xd0] sm:$0xff]
    %v3551 = vld [vmem:[%s3523 + $0xd8] sm:$0xff]
    %v3552 = vld [vmem:[%s3523 + $0xe0] sm:$0xff]
    %v3553 = vld [vmem:[%s3523 + $0xe8] sm:$0xff]
    %v3554 = vld [vmem:[%s3523 + $0xf0] sm:$0xff]
    %v3555 = vld [vmem:[%s3523 + $0xf8] sm:$0xff]
    %v3556 = vld [vmem:[%s3523 + $0x100] sm:$0xff]
    %v3557 = vld [vmem:[%s3523 + $0x108] sm:$0xff]
    %v3558 = vld [vmem:[%s3523 + $0x110] sm:$0xff]
    %v3559 = vld [vmem:[%s3523 + $0x118] sm:$0xff]
    %v3560 = vld [vmem:[%s3523 + $0x120] sm:$0xff]
    %v3561 = vld [vmem:[%s3523 + $0x128] sm:$0xff]
    %v3562 = vld [vmem:[%s3523 + $0x130] sm:$0xff]
    %v3563 = vld [vmem:[%s3523 + $0x138] sm:$0xff]
    %v3564 = vld [vmem:[%s3523 + $0x140] sm:$0xff]
    %v3565 = vld [vmem:[%s3523 + $0x148] sm:$0xff]
    %v3566 = vld [vmem:[%s3523 + $0x150] sm:$0xff]
    %v3567 = vld [vmem:[%s3523 + $0x158] sm:$0xff]
    %v3568 = vld [vmem:[%s3523 + $0x160] sm:$0xff]
    %v3569 = vld [vmem:[%s3523 + $0x168] sm:$0xff]
    %v3570 = vld [vmem:[%s3523 + $0x170] sm:$0xff]
    %v3571 = vld [vmem:[%s3523 + $0x178] sm:$0xff]
    %v3572 = vld [vmem:[%s3523 + $0x180] sm:$0xff]
    %v3573 = vld [vmem:[%s3523 + $0x188] sm:$0xff]
    %v3574 = vld [vmem:[%s3523 + $0x190] sm:$0xff]
    %v3575 = vld [vmem:[%s3523 + $0x198] sm:$0xff]
    %v3576 = vld [vmem:[%s3523 + $0x1a0] sm:$0xff]
    %v3577 = vld [vmem:[%s3523 + $0x1a8] sm:$0xff]
    %v3578 = vld [vmem:[%s3523 + $0x1b0] sm:$0xff]
    %v3579 = vld [vmem:[%s3523 + $0x1b8] sm:$0xff]
    %v3580 = vld [vmem:[%s3523 + $0x1c0] sm:$0xff]
    %v3581 = vld [vmem:[%s3523 + $0x1c8] sm:$0xff]
    %v3582 = vld [vmem:[%s3523 + $0x1d0] sm:$0xff]
    %v3583 = vld [vmem:[%s3523 + $0x1d8] sm:$0xff]
    %v3584 = vld [vmem:[%s3523 + $0x1e0] sm:$0xff]
    %v3585 = vld [vmem:[%s3523 + $0x1e8] sm:$0xff]
    %v3586 = vld [vmem:[%s3523 + $0x1f0] sm:$0xff]
    %v3587 = vld [vmem:[%s3523 + $0x1f8] sm:$0xff]
    %v3652 = vunpack.c.l.b16 %v3524
    %v3653 = vunpack.c.h.b16 %v3524
    %v3654 = vunpack.c.l.b16 %v3525
    %v3655 = vunpack.c.h.b16 %v3525
    %v3656 = vunpack.c.l.b16 %v3526
    %v3657 = vunpack.c.h.b16 %v3526
    %v3658 = vunpack.c.l.b16 %v3527
    %v3659 = vunpack.c.h.b16 %v3527
    %v3660 = vunpack.c.l.b16 %v3528
    %v3661 = vunpack.c.h.b16 %v3528
    %v3662 = vunpack.c.l.b16 %v3529
    %v3663 = vunpack.c.h.b16 %v3529
    %v3664 = vunpack.c.l.b16 %v3530
    %v3665 = vunpack.c.h.b16 %v3530
    %v3666 = vunpack.c.l.b16 %v3531
    %v3667 = vunpack.c.h.b16 %v3531
    %v3668 = vunpack.c.l.b16 %v3532
    %v3669 = vunpack.c.h.b16 %v3532
    %v3670 = vunpack.c.l.b16 %v3533
    %v3671 = vunpack.c.h.b16 %v3533
    %v3672 = vunpack.c.l.b16 %v3534
    %v3673 = vunpack.c.h.b16 %v3534
    %v3674 = vunpack.c.l.b16 %v3535
    %v3675 = vunpack.c.h.b16 %v3535
    %v3676 = vunpack.c.l.b16 %v3536
    %v3677 = vunpack.c.h.b16 %v3536
    %v3678 = vunpack.c.l.b16 %v3537
    %v3679 = vunpack.c.h.b16 %v3537
    %v3680 = vunpack.c.l.b16 %v3538
    %v3681 = vunpack.c.h.b16 %v3538
    %v3682 = vunpack.c.l.b16 %v3539
    %v3683 = vunpack.c.h.b16 %v3539
    %v3684 = vunpack.c.l.b16 %v3540
    %v3685 = vunpack.c.h.b16 %v3540
    %v3686 = vunpack.c.l.b16 %v3541
    %v3687 = vunpack.c.h.b16 %v3541
    %v3688 = vunpack.c.l.b16 %v3542
    %v3689 = vunpack.c.h.b16 %v3542
    %v3690 = vunpack.c.l.b16 %v3543
    %v3691 = vunpack.c.h.b16 %v3543
    %v3692 = vunpack.c.l.b16 %v3544
    %v3693 = vunpack.c.h.b16 %v3544
    %v3694 = vunpack.c.l.b16 %v3545
    %v3695 = vunpack.c.h.b16 %v3545
    %v3696 = vunpack.c.l.b16 %v3546
    %v3697 = vunpack.c.h.b16 %v3546
    %v3698 = vunpack.c.l.b16 %v3547
    %v3699 = vunpack.c.h.b16 %v3547
    %v3700 = vunpack.c.l.b16 %v3548
    %v3701 = vunpack.c.h.b16 %v3548
    %v3702 = vunpack.c.l.b16 %v3549
    %v3703 = vunpack.c.h.b16 %v3549
    %v3704 = vunpack.c.l.b16 %v3550
    %v3705 = vunpack.c.h.b16 %v3550
    %v3706 = vunpack.c.l.b16 %v3551
    %v3707 = vunpack.c.h.b16 %v3551
    %v3708 = vunpack.c.l.b16 %v3552
    %v3709 = vunpack.c.h.b16 %v3552
    %v3710 = vunpack.c.l.b16 %v3553
    %v3711 = vunpack.c.h.b16 %v3553
    %v3712 = vunpack.c.l.b16 %v3554
    %v3713 = vunpack.c.h.b16 %v3554
    %v3714 = vunpack.c.l.b16 %v3555
    %v3715 = vunpack.c.h.b16 %v3555
    %v3716 = vunpack.c.l.b16 %v3556
    %v3717 = vunpack.c.h.b16 %v3556
    %v3718 = vunpack.c.l.b16 %v3557
    %v3719 = vunpack.c.h.b16 %v3557
    %v3720 = vunpack.c.l.b16 %v3558
    %v3721 = vunpack.c.h.b16 %v3558
    %v3722 = vunpack.c.l.b16 %v3559
    %v3723 = vunpack.c.h.b16 %v3559
    %v3724 = vunpack.c.l.b16 %v3560
    %v3725 = vunpack.c.h.b16 %v3560
    %v3726 = vunpack.c.l.b16 %v3561
    %v3727 = vunpack.c.h.b16 %v3561
    %v3728 = vunpack.c.l.b16 %v3562
    %v3729 = vunpack.c.h.b16 %v3562
    %v3730 = vunpack.c.l.b16 %v3563
    %v3731 = vunpack.c.h.b16 %v3563
    %v3732 = vunpack.c.l.b16 %v3564
    %v3733 = vunpack.c.h.b16 %v3564
    %v3734 = vunpack.c.l.b16 %v3565
    %v3735 = vunpack.c.h.b16 %v3565
    %v3736 = vunpack.c.l.b16 %v3566
    %v3737 = vunpack.c.h.b16 %v3566
    %v3738 = vunpack.c.l.b16 %v3567
    %v3739 = vunpack.c.h.b16 %v3567
    %v3740 = vunpack.c.l.b16 %v3568
    %v3741 = vunpack.c.h.b16 %v3568
    %v3742 = vunpack.c.l.b16 %v3569
    %v3743 = vunpack.c.h.b16 %v3569
    %v3744 = vunpack.c.l.b16 %v3570
    %v3745 = vunpack.c.h.b16 %v3570
    %v3746 = vunpack.c.l.b16 %v3571
    %v3747 = vunpack.c.h.b16 %v3571
    %v3748 = vunpack.c.l.b16 %v3572
    %v3749 = vunpack.c.h.b16 %v3572
    %v3750 = vunpack.c.l.b16 %v3573
    %v3751 = vunpack.c.h.b16 %v3573
    %v3752 = vunpack.c.l.b16 %v3574
    %v3753 = vunpack.c.h.b16 %v3574
    %v3754 = vunpack.c.l.b16 %v3575
    %v3755 = vunpack.c.h.b16 %v3575
    %v3756 = vunpack.c.l.b16 %v3576
    %v3757 = vunpack.c.h.b16 %v3576
    %v3758 = vunpack.c.l.b16 %v3577
    %v3759 = vunpack.c.h.b16 %v3577
    %v3760 = vunpack.c.l.b16 %v3578
    %v3761 = vunpack.c.h.b16 %v3578
    %v3762 = vunpack.c.l.b16 %v3579
    %v3763 = vunpack.c.h.b16 %v3579
    %v3764 = vunpack.c.l.b16 %v3580
    %v3765 = vunpack.c.h.b16 %v3580
    %v3766 = vunpack.c.l.b16 %v3581
    %v3767 = vunpack.c.h.b16 %v3581
    %v3768 = vunpack.c.l.b16 %v3582
    %v3769 = vunpack.c.h.b16 %v3582
    %v3770 = vunpack.c.l.b16 %v3583
    %v3771 = vunpack.c.h.b16 %v3583
    %v3772 = vunpack.c.l.b16 %v3584
    %v3773 = vunpack.c.h.b16 %v3584
    %v3774 = vunpack.c.l.b16 %v3585
    %v3775 = vunpack.c.h.b16 %v3585
    %v3776 = vunpack.c.l.b16 %v3586
    %v3777 = vunpack.c.h.b16 %v3586
    %v3778 = vunpack.c.l.b16 %v3587
    %v3779 = vunpack.c.h.b16 %v3587
    %v3780 = vpack.c.b16 %v3660, %v3652
    %v3781 = vpack.c.b16 %v3661, %v3653
    %v3782 = vpack.c.b16 %v3662, %v3654
    %v3783 = vpack.c.b16 %v3663, %v3655
    %v3784 = vpack.c.b16 %v3664, %v3656
    %v3785 = vpack.c.b16 %v3665, %v3657
    %v3786 = vpack.c.b16 %v3666, %v3658
    %v3787 = vpack.c.b16 %v3667, %v3659
    %v3788 = vpack.c.b16 %v3676, %v3668
    %v3789 = vpack.c.b16 %v3677, %v3669
    %v3790 = vpack.c.b16 %v3678, %v3670
    %v3791 = vpack.c.b16 %v3679, %v3671
    %v3792 = vpack.c.b16 %v3680, %v3672
    %v3793 = vpack.c.b16 %v3681, %v3673
    %v3794 = vpack.c.b16 %v3682, %v3674
    %v3795 = vpack.c.b16 %v3683, %v3675
    %v3796 = vpack.c.b16 %v3692, %v3684
    %v3797 = vpack.c.b16 %v3693, %v3685
    %v3798 = vpack.c.b16 %v3694, %v3686
    %v3799 = vpack.c.b16 %v3695, %v3687
    %v3800 = vpack.c.b16 %v3696, %v3688
    %v3801 = vpack.c.b16 %v3697, %v3689
    %v3802 = vpack.c.b16 %v3698, %v3690
    %v3803 = vpack.c.b16 %v3699, %v3691
    %v3804 = vpack.c.b16 %v3708, %v3700
    %v3805 = vpack.c.b16 %v3709, %v3701
    %v3806 = vpack.c.b16 %v3710, %v3702
    %v3807 = vpack.c.b16 %v3711, %v3703
    %v3808 = vpack.c.b16 %v3712, %v3704
    %v3809 = vpack.c.b16 %v3713, %v3705
    %v3810 = vpack.c.b16 %v3714, %v3706
    %v3811 = vpack.c.b16 %v3715, %v3707
    %v3812 = vpack.c.b16 %v3724, %v3716
    %v3813 = vpack.c.b16 %v3725, %v3717
    %v3814 = vpack.c.b16 %v3726, %v3718
    %v3815 = vpack.c.b16 %v3727, %v3719
    %v3816 = vpack.c.b16 %v3728, %v3720
    %v3817 = vpack.c.b16 %v3729, %v3721
    %v3818 = vpack.c.b16 %v3730, %v3722
    %v3819 = vpack.c.b16 %v3731, %v3723
    %v3820 = vpack.c.b16 %v3740, %v3732
    %v3821 = vpack.c.b16 %v3741, %v3733
    %v3822 = vpack.c.b16 %v3742, %v3734
    %v3823 = vpack.c.b16 %v3743, %v3735
    %v3824 = vpack.c.b16 %v3744, %v3736
    %v3825 = vpack.c.b16 %v3745, %v3737
    %v3826 = vpack.c.b16 %v3746, %v3738
    %v3827 = vpack.c.b16 %v3747, %v3739
    %v3828 = vpack.c.b16 %v3756, %v3748
    %v3829 = vpack.c.b16 %v3757, %v3749
    %v3830 = vpack.c.b16 %v3758, %v3750
    %v3831 = vpack.c.b16 %v3759, %v3751
    %v3832 = vpack.c.b16 %v3760, %v3752
    %v3833 = vpack.c.b16 %v3761, %v3753
    %v3834 = vpack.c.b16 %v3762, %v3754
    %v3835 = vpack.c.b16 %v3763, %v3755
    %v3836 = vpack.c.b16 %v3772, %v3764
    %v3837 = vpack.c.b16 %v3773, %v3765
    %v3838 = vpack.c.b16 %v3774, %v3766
    %v3839 = vpack.c.b16 %v3775, %v3767
    %v3840 = vpack.c.b16 %v3776, %v3768
    %v3841 = vpack.c.b16 %v3777, %v3769
    %v3842 = vpack.c.b16 %v3778, %v3770
    %v3843 = vpack.c.b16 %v3779, %v3771
    %3908 = vmatpush.bf16.msra.mxu0 %v3836
    %3909 = vmatpush.bf16.msra.mxu0 %v3828
    %3910 = vmatpush.bf16.msra.mxu0 %v3820
    %3911 = vmatpush.bf16.msra.mxu0 %v3812
    %3912 = vmatpush.bf16.msra.mxu0 %v3804
    %3913 = vmatpush.bf16.msra.mxu0 %v3796
    %3914 = vmatpush.bf16.msra.mxu0 %v3788
    %3915 = vmatpush.bf16.msra.mxu0 %v3780
    %3916 = vmatmul.bf16.gmra.mxu0 %v548
    %v3917 = vpop.f32.mrf.mxu0
    %v3918 = vadd.f32 0.0, %v3917
    %v3919 = vpop.f32.mrf.mxu0
    %3920 = vdwg.mxu0
    %3921 = vmatpush.bf16.msra.mxu0 %v3837
    %3922 = vmatpush.bf16.msra.mxu0 %v3829
    %3923 = vmatpush.bf16.msra.mxu0 %v3821
    %3924 = vmatpush.bf16.msra.mxu0 %v3813
    %3925 = vmatpush.bf16.msra.mxu0 %v3805
    %3926 = vmatpush.bf16.msra.mxu0 %v3797
    %3927 = vmatpush.bf16.msra.mxu0 %v3789
    %3928 = vmatpush.bf16.msra.mxu0 %v3781
    %3929 = vmatmul.bf16.gmra.mxu0 %v548
    %v3930 = vpop.f32.mrf.mxu0
    %v3931 = vadd.f32 0.0, %v3930
    %v3932 = vpop.f32.mrf.mxu0
    %3933 = vdwg.mxu0
    %3934 = vmatpush.bf16.msra.mxu0 %v3838
    %3935 = vmatpush.bf16.msra.mxu0 %v3830
    %3936 = vmatpush.bf16.msra.mxu0 %v3822
    %3937 = vmatpush.bf16.msra.mxu0 %v3814
    %3938 = vmatpush.bf16.msra.mxu0 %v3806
    %3939 = vmatpush.bf16.msra.mxu0 %v3798
    %3940 = vmatpush.bf16.msra.mxu0 %v3790
    %3941 = vmatpush.bf16.msra.mxu0 %v3782
    %3942 = vmatmul.bf16.gmra.mxu0 %v548
    %v3943 = vpop.f32.mrf.mxu0
    %v3944 = vadd.f32 0.0, %v3943
    %v3945 = vpop.f32.mrf.mxu0
    %3946 = vdwg.mxu0
    %3947 = vmatpush.bf16.msra.mxu0 %v3839
    %3948 = vmatpush.bf16.msra.mxu0 %v3831
    %3949 = vmatpush.bf16.msra.mxu0 %v3823
    %3950 = vmatpush.bf16.msra.mxu0 %v3815
    %3951 = vmatpush.bf16.msra.mxu0 %v3807
    %3952 = vmatpush.bf16.msra.mxu0 %v3799
    %3953 = vmatpush.bf16.msra.mxu0 %v3791
    %3954 = vmatpush.bf16.msra.mxu0 %v3783
    %3955 = vmatmul.bf16.gmra.mxu0 %v548
    %v3956 = vpop.f32.mrf.mxu0
    %v3957 = vadd.f32 0.0, %v3956
    %v3958 = vpop.f32.mrf.mxu0
    %3959 = vdwg.mxu0
    %3960 = vmatpush.bf16.msra.mxu0 %v3840
    %3961 = vmatpush.bf16.msra.mxu0 %v3832
    %3962 = vmatpush.bf16.msra.mxu0 %v3824
    %3963 = vmatpush.bf16.msra.mxu0 %v3816
    %3964 = vmatpush.bf16.msra.mxu0 %v3808
    %3965 = vmatpush.bf16.msra.mxu0 %v3800
    %3966 = vmatpush.bf16.msra.mxu0 %v3792
    %3967 = vmatpush.bf16.msra.mxu0 %v3784
    %3968 = vmatmul.bf16.gmra.mxu0 %v548
    %v3969 = vpop.f32.mrf.mxu0
    %v3970 = vadd.f32 0.0, %v3969
    %v3971 = vpop.f32.mrf.mxu0
    %3972 = vdwg.mxu0
    %3973 = vmatpush.bf16.msra.mxu0 %v3841
    %3974 = vmatpush.bf16.msra.mxu0 %v3833
    %3975 = vmatpush.bf16.msra.mxu0 %v3825
    %3976 = vmatpush.bf16.msra.mxu0 %v3817
    %3977 = vmatpush.bf16.msra.mxu0 %v3809
    %3978 = vmatpush.bf16.msra.mxu0 %v3801
    %3979 = vmatpush.bf16.msra.mxu0 %v3793
    %3980 = vmatpush.bf16.msra.mxu0 %v3785
    %3981 = vmatmul.bf16.gmra.mxu0 %v548
    %v3982 = vpop.f32.mrf.mxu0
    %v3983 = vadd.f32 0.0, %v3982
    %v3984 = vpop.f32.mrf.mxu0
    %3985 = vdwg.mxu0
    %3986 = vmatpush.bf16.msra.mxu0 %v3842
    %3987 = vmatpush.bf16.msra.mxu0 %v3834
    %3988 = vmatpush.bf16.msra.mxu0 %v3826
    %3989 = vmatpush.bf16.msra.mxu0 %v3818
    %3990 = vmatpush.bf16.msra.mxu0 %v3810
    %3991 = vmatpush.bf16.msra.mxu0 %v3802
    %3992 = vmatpush.bf16.msra.mxu0 %v3794
    %3993 = vmatpush.bf16.msra.mxu0 %v3786
    %3994 = vmatmul.bf16.gmra.mxu0 %v548
    %v3995 = vpop.f32.mrf.mxu0
    %v3996 = vadd.f32 0.0, %v3995
    %v3997 = vpop.f32.mrf.mxu0
    %3998 = vdwg.mxu0
    %3999 = vmatpush.bf16.msra.mxu0 %v3843
    %4000 = vmatpush.bf16.msra.mxu0 %v3835
    %4001 = vmatpush.bf16.msra.mxu0 %v3827
    %4002 = vmatpush.bf16.msra.mxu0 %v3819
    %4003 = vmatpush.bf16.msra.mxu0 %v3811
    %4004 = vmatpush.bf16.msra.mxu0 %v3803
    %4005 = vmatpush.bf16.msra.mxu0 %v3795
    %4006 = vmatpush.bf16.msra.mxu0 %v3787
    %4007 = vmatmul.bf16.gmra.mxu0 %v548
    %v4008 = vpop.f32.mrf.mxu0
    %v4009 = vadd.f32 0.0, %v4008
    %v4010 = vpop.f32.mrf.mxu0
    %4011 = vdwg.mxu0
    %v4012 = vadd.f32 %v3515, %v3918
    %v4013 = vadd.f32 %v3516, %v3931
    %v4014 = vadd.f32 %v3517, %v3944
    %v4015 = vadd.f32 %v3518, %v3957
    %v4016 = vadd.f32 %v3519, %v3970
    %v4017 = vadd.f32 %v3520, %v3983
    %v4018 = vadd.f32 %v3521, %v3996
    %v4019 = vadd.f32 %v3522, %v4009
    %s4020 = scalar_lea.vmem [#allocation7], 3584
    %v4021 = vld [vmem:[%s4020] sm:$0xff]
    %v4022 = vld [vmem:[%s4020 + $0x8] sm:$0xff]
    %v4023 = vld [vmem:[%s4020 + $0x10] sm:$0xff]
    %v4024 = vld [vmem:[%s4020 + $0x18] sm:$0xff]
    %v4025 = vld [vmem:[%s4020 + $0x20] sm:$0xff]
    %v4026 = vld [vmem:[%s4020 + $0x28] sm:$0xff]
    %v4027 = vld [vmem:[%s4020 + $0x30] sm:$0xff]
    %v4028 = vld [vmem:[%s4020 + $0x38] sm:$0xff]
    %v4029 = vld [vmem:[%s4020 + $0x40] sm:$0xff]
    %v4030 = vld [vmem:[%s4020 + $0x48] sm:$0xff]
    %v4031 = vld [vmem:[%s4020 + $0x50] sm:$0xff]
    %v4032 = vld [vmem:[%s4020 + $0x58] sm:$0xff]
    %v4033 = vld [vmem:[%s4020 + $0x60] sm:$0xff]
    %v4034 = vld [vmem:[%s4020 + $0x68] sm:$0xff]
    %v4035 = vld [vmem:[%s4020 + $0x70] sm:$0xff]
    %v4036 = vld [vmem:[%s4020 + $0x78] sm:$0xff]
    %v4037 = vld [vmem:[%s4020 + $0x80] sm:$0xff]
    %v4038 = vld [vmem:[%s4020 + $0x88] sm:$0xff]
    %v4039 = vld [vmem:[%s4020 + $0x90] sm:$0xff]
    %v4040 = vld [vmem:[%s4020 + $0x98] sm:$0xff]
    %v4041 = vld [vmem:[%s4020 + $0xa0] sm:$0xff]
    %v4042 = vld [vmem:[%s4020 + $0xa8] sm:$0xff]
    %v4043 = vld [vmem:[%s4020 + $0xb0] sm:$0xff]
    %v4044 = vld [vmem:[%s4020 + $0xb8] sm:$0xff]
    %v4045 = vld [vmem:[%s4020 + $0xc0] sm:$0xff]
    %v4046 = vld [vmem:[%s4020 + $0xc8] sm:$0xff]
    %v4047 = vld [vmem:[%s4020 + $0xd0] sm:$0xff]
    %v4048 = vld [vmem:[%s4020 + $0xd8] sm:$0xff]
    %v4049 = vld [vmem:[%s4020 + $0xe0] sm:$0xff]
    %v4050 = vld [vmem:[%s4020 + $0xe8] sm:$0xff]
    %v4051 = vld [vmem:[%s4020 + $0xf0] sm:$0xff]
    %v4052 = vld [vmem:[%s4020 + $0xf8] sm:$0xff]
    %v4053 = vld [vmem:[%s4020 + $0x100] sm:$0xff]
    %v4054 = vld [vmem:[%s4020 + $0x108] sm:$0xff]
    %v4055 = vld [vmem:[%s4020 + $0x110] sm:$0xff]
    %v4056 = vld [vmem:[%s4020 + $0x118] sm:$0xff]
    %v4057 = vld [vmem:[%s4020 + $0x120] sm:$0xff]
    %v4058 = vld [vmem:[%s4020 + $0x128] sm:$0xff]
    %v4059 = vld [vmem:[%s4020 + $0x130] sm:$0xff]
    %v4060 = vld [vmem:[%s4020 + $0x138] sm:$0xff]
    %v4061 = vld [vmem:[%s4020 + $0x140] sm:$0xff]
    %v4062 = vld [vmem:[%s4020 + $0x148] sm:$0xff]
    %v4063 = vld [vmem:[%s4020 + $0x150] sm:$0xff]
    %v4064 = vld [vmem:[%s4020 + $0x158] sm:$0xff]
    %v4065 = vld [vmem:[%s4020 + $0x160] sm:$0xff]
    %v4066 = vld [vmem:[%s4020 + $0x168] sm:$0xff]
    %v4067 = vld [vmem:[%s4020 + $0x170] sm:$0xff]
    %v4068 = vld [vmem:[%s4020 + $0x178] sm:$0xff]
    %v4069 = vld [vmem:[%s4020 + $0x180] sm:$0xff]
    %v4070 = vld [vmem:[%s4020 + $0x188] sm:$0xff]
    %v4071 = vld [vmem:[%s4020 + $0x190] sm:$0xff]
    %v4072 = vld [vmem:[%s4020 + $0x198] sm:$0xff]
    %v4073 = vld [vmem:[%s4020 + $0x1a0] sm:$0xff]
    %v4074 = vld [vmem:[%s4020 + $0x1a8] sm:$0xff]
    %v4075 = vld [vmem:[%s4020 + $0x1b0] sm:$0xff]
    %v4076 = vld [vmem:[%s4020 + $0x1b8] sm:$0xff]
    %v4077 = vld [vmem:[%s4020 + $0x1c0] sm:$0xff]
    %v4078 = vld [vmem:[%s4020 + $0x1c8] sm:$0xff]
    %v4079 = vld [vmem:[%s4020 + $0x1d0] sm:$0xff]
    %v4080 = vld [vmem:[%s4020 + $0x1d8] sm:$0xff]
    %v4081 = vld [vmem:[%s4020 + $0x1e0] sm:$0xff]
    %v4082 = vld [vmem:[%s4020 + $0x1e8] sm:$0xff]
    %v4083 = vld [vmem:[%s4020 + $0x1f0] sm:$0xff]
    %v4084 = vld [vmem:[%s4020 + $0x1f8] sm:$0xff]
    %v4149 = vunpack.c.l.b16 %v4021
    %v4150 = vunpack.c.h.b16 %v4021
    %v4151 = vunpack.c.l.b16 %v4022
    %v4152 = vunpack.c.h.b16 %v4022
    %v4153 = vunpack.c.l.b16 %v4023
    %v4154 = vunpack.c.h.b16 %v4023
    %v4155 = vunpack.c.l.b16 %v4024
    %v4156 = vunpack.c.h.b16 %v4024
    %v4157 = vunpack.c.l.b16 %v4025
    %v4158 = vunpack.c.h.b16 %v4025
    %v4159 = vunpack.c.l.b16 %v4026
    %v4160 = vunpack.c.h.b16 %v4026
    %v4161 = vunpack.c.l.b16 %v4027
    %v4162 = vunpack.c.h.b16 %v4027
    %v4163 = vunpack.c.l.b16 %v4028
    %v4164 = vunpack.c.h.b16 %v4028
    %v4165 = vunpack.c.l.b16 %v4029
    %v4166 = vunpack.c.h.b16 %v4029
    %v4167 = vunpack.c.l.b16 %v4030
    %v4168 = vunpack.c.h.b16 %v4030
    %v4169 = vunpack.c.l.b16 %v4031
    %v4170 = vunpack.c.h.b16 %v4031
    %v4171 = vunpack.c.l.b16 %v4032
    %v4172 = vunpack.c.h.b16 %v4032
    %v4173 = vunpack.c.l.b16 %v4033
    %v4174 = vunpack.c.h.b16 %v4033
    %v4175 = vunpack.c.l.b16 %v4034
    %v4176 = vunpack.c.h.b16 %v4034
    %v4177 = vunpack.c.l.b16 %v4035
    %v4178 = vunpack.c.h.b16 %v4035
    %v4179 = vunpack.c.l.b16 %v4036
    %v4180 = vunpack.c.h.b16 %v4036
    %v4181 = vunpack.c.l.b16 %v4037
    %v4182 = vunpack.c.h.b16 %v4037
    %v4183 = vunpack.c.l.b16 %v4038
    %v4184 = vunpack.c.h.b16 %v4038
    %v4185 = vunpack.c.l.b16 %v4039
    %v4186 = vunpack.c.h.b16 %v4039
    %v4187 = vunpack.c.l.b16 %v4040
    %v4188 = vunpack.c.h.b16 %v4040
    %v4189 = vunpack.c.l.b16 %v4041
    %v4190 = vunpack.c.h.b16 %v4041
    %v4191 = vunpack.c.l.b16 %v4042
    %v4192 = vunpack.c.h.b16 %v4042
    %v4193 = vunpack.c.l.b16 %v4043
    %v4194 = vunpack.c.h.b16 %v4043
    %v4195 = vunpack.c.l.b16 %v4044
    %v4196 = vunpack.c.h.b16 %v4044
    %v4197 = vunpack.c.l.b16 %v4045
    %v4198 = vunpack.c.h.b16 %v4045
    %v4199 = vunpack.c.l.b16 %v4046
    %v4200 = vunpack.c.h.b16 %v4046
    %v4201 = vunpack.c.l.b16 %v4047
    %v4202 = vunpack.c.h.b16 %v4047
    %v4203 = vunpack.c.l.b16 %v4048
    %v4204 = vunpack.c.h.b16 %v4048
    %v4205 = vunpack.c.l.b16 %v4049
    %v4206 = vunpack.c.h.b16 %v4049
    %v4207 = vunpack.c.l.b16 %v4050
    %v4208 = vunpack.c.h.b16 %v4050
    %v4209 = vunpack.c.l.b16 %v4051
    %v4210 = vunpack.c.h.b16 %v4051
    %v4211 = vunpack.c.l.b16 %v4052
    %v4212 = vunpack.c.h.b16 %v4052
    %v4213 = vunpack.c.l.b16 %v4053
    %v4214 = vunpack.c.h.b16 %v4053
    %v4215 = vunpack.c.l.b16 %v4054
    %v4216 = vunpack.c.h.b16 %v4054
    %v4217 = vunpack.c.l.b16 %v4055
    %v4218 = vunpack.c.h.b16 %v4055
    %v4219 = vunpack.c.l.b16 %v4056
    %v4220 = vunpack.c.h.b16 %v4056
    %v4221 = vunpack.c.l.b16 %v4057
    %v4222 = vunpack.c.h.b16 %v4057
    %v4223 = vunpack.c.l.b16 %v4058
    %v4224 = vunpack.c.h.b16 %v4058
    %v4225 = vunpack.c.l.b16 %v4059
    %v4226 = vunpack.c.h.b16 %v4059
    %v4227 = vunpack.c.l.b16 %v4060
    %v4228 = vunpack.c.h.b16 %v4060
    %v4229 = vunpack.c.l.b16 %v4061
    %v4230 = vunpack.c.h.b16 %v4061
    %v4231 = vunpack.c.l.b16 %v4062
    %v4232 = vunpack.c.h.b16 %v4062
    %v4233 = vunpack.c.l.b16 %v4063
    %v4234 = vunpack.c.h.b16 %v4063
    %v4235 = vunpack.c.l.b16 %v4064
    %v4236 = vunpack.c.h.b16 %v4064
    %v4237 = vunpack.c.l.b16 %v4065
    %v4238 = vunpack.c.h.b16 %v4065
    %v4239 = vunpack.c.l.b16 %v4066
    %v4240 = vunpack.c.h.b16 %v4066
    %v4241 = vunpack.c.l.b16 %v4067
    %v4242 = vunpack.c.h.b16 %v4067
    %v4243 = vunpack.c.l.b16 %v4068
    %v4244 = vunpack.c.h.b16 %v4068
    %v4245 = vunpack.c.l.b16 %v4069
    %v4246 = vunpack.c.h.b16 %v4069
    %v4247 = vunpack.c.l.b16 %v4070
    %v4248 = vunpack.c.h.b16 %v4070
    %v4249 = vunpack.c.l.b16 %v4071
    %v4250 = vunpack.c.h.b16 %v4071
    %v4251 = vunpack.c.l.b16 %v4072
    %v4252 = vunpack.c.h.b16 %v4072
    %v4253 = vunpack.c.l.b16 %v4073
    %v4254 = vunpack.c.h.b16 %v4073
    %v4255 = vunpack.c.l.b16 %v4074
    %v4256 = vunpack.c.h.b16 %v4074
    %v4257 = vunpack.c.l.b16 %v4075
    %v4258 = vunpack.c.h.b16 %v4075
    %v4259 = vunpack.c.l.b16 %v4076
    %v4260 = vunpack.c.h.b16 %v4076
    %v4261 = vunpack.c.l.b16 %v4077
    %v4262 = vunpack.c.h.b16 %v4077
    %v4263 = vunpack.c.l.b16 %v4078
    %v4264 = vunpack.c.h.b16 %v4078
    %v4265 = vunpack.c.l.b16 %v4079
    %v4266 = vunpack.c.h.b16 %v4079
    %v4267 = vunpack.c.l.b16 %v4080
    %v4268 = vunpack.c.h.b16 %v4080
    %v4269 = vunpack.c.l.b16 %v4081
    %v4270 = vunpack.c.h.b16 %v4081
    %v4271 = vunpack.c.l.b16 %v4082
    %v4272 = vunpack.c.h.b16 %v4082
    %v4273 = vunpack.c.l.b16 %v4083
    %v4274 = vunpack.c.h.b16 %v4083
    %v4275 = vunpack.c.l.b16 %v4084
    %v4276 = vunpack.c.h.b16 %v4084
    %v4277 = vpack.c.b16 %v4157, %v4149
    %v4278 = vpack.c.b16 %v4158, %v4150
    %v4279 = vpack.c.b16 %v4159, %v4151
    %v4280 = vpack.c.b16 %v4160, %v4152
    %v4281 = vpack.c.b16 %v4161, %v4153
    %v4282 = vpack.c.b16 %v4162, %v4154
    %v4283 = vpack.c.b16 %v4163, %v4155
    %v4284 = vpack.c.b16 %v4164, %v4156
    %v4285 = vpack.c.b16 %v4173, %v4165
    %v4286 = vpack.c.b16 %v4174, %v4166
    %v4287 = vpack.c.b16 %v4175, %v4167
    %v4288 = vpack.c.b16 %v4176, %v4168
    %v4289 = vpack.c.b16 %v4177, %v4169
    %v4290 = vpack.c.b16 %v4178, %v4170
    %v4291 = vpack.c.b16 %v4179, %v4171
    %v4292 = vpack.c.b16 %v4180, %v4172
    %v4293 = vpack.c.b16 %v4189, %v4181
    %v4294 = vpack.c.b16 %v4190, %v4182
    %v4295 = vpack.c.b16 %v4191, %v4183
    %v4296 = vpack.c.b16 %v4192, %v4184
    %v4297 = vpack.c.b16 %v4193, %v4185
    %v4298 = vpack.c.b16 %v4194, %v4186
    %v4299 = vpack.c.b16 %v4195, %v4187
    %v4300 = vpack.c.b16 %v4196, %v4188
    %v4301 = vpack.c.b16 %v4205, %v4197
    %v4302 = vpack.c.b16 %v4206, %v4198
    %v4303 = vpack.c.b16 %v4207, %v4199
    %v4304 = vpack.c.b16 %v4208, %v4200
    %v4305 = vpack.c.b16 %v4209, %v4201
    %v4306 = vpack.c.b16 %v4210, %v4202
    %v4307 = vpack.c.b16 %v4211, %v4203
    %v4308 = vpack.c.b16 %v4212, %v4204
    %v4309 = vpack.c.b16 %v4221, %v4213
    %v4310 = vpack.c.b16 %v4222, %v4214
    %v4311 = vpack.c.b16 %v4223, %v4215
    %v4312 = vpack.c.b16 %v4224, %v4216
    %v4313 = vpack.c.b16 %v4225, %v4217
    %v4314 = vpack.c.b16 %v4226, %v4218
    %v4315 = vpack.c.b16 %v4227, %v4219
    %v4316 = vpack.c.b16 %v4228, %v4220
    %v4317 = vpack.c.b16 %v4237, %v4229
    %v4318 = vpack.c.b16 %v4238, %v4230
    %v4319 = vpack.c.b16 %v4239, %v4231
    %v4320 = vpack.c.b16 %v4240, %v4232
    %v4321 = vpack.c.b16 %v4241, %v4233
    %v4322 = vpack.c.b16 %v4242, %v4234
    %v4323 = vpack.c.b16 %v4243, %v4235
    %v4324 = vpack.c.b16 %v4244, %v4236
    %v4325 = vpack.c.b16 %v4253, %v4245
    %v4326 = vpack.c.b16 %v4254, %v4246
    %v4327 = vpack.c.b16 %v4255, %v4247
    %v4328 = vpack.c.b16 %v4256, %v4248
    %v4329 = vpack.c.b16 %v4257, %v4249
    %v4330 = vpack.c.b16 %v4258, %v4250
    %v4331 = vpack.c.b16 %v4259, %v4251
    %v4332 = vpack.c.b16 %v4260, %v4252
    %v4333 = vpack.c.b16 %v4269, %v4261
    %v4334 = vpack.c.b16 %v4270, %v4262
    %v4335 = vpack.c.b16 %v4271, %v4263
    %v4336 = vpack.c.b16 %v4272, %v4264
    %v4337 = vpack.c.b16 %v4273, %v4265
    %v4338 = vpack.c.b16 %v4274, %v4266
    %v4339 = vpack.c.b16 %v4275, %v4267
    %v4340 = vpack.c.b16 %v4276, %v4268
    %4405 = vmatpush.bf16.msra.mxu0 %v4333
    %4406 = vmatpush.bf16.msra.mxu0 %v4325
    %4407 = vmatpush.bf16.msra.mxu0 %v4317
    %4408 = vmatpush.bf16.msra.mxu0 %v4309
    %4409 = vmatpush.bf16.msra.mxu0 %v4301
    %4410 = vmatpush.bf16.msra.mxu0 %v4293
    %4411 = vmatpush.bf16.msra.mxu0 %v4285
    %4412 = vmatpush.bf16.msra.mxu0 %v4277
    %4413 = vmatmul.bf16.gmra.mxu0 %v549
    %v4414 = vpop.f32.mrf.mxu0
    %v4415 = vadd.f32 0.0, %v4414
    %v4416 = vpop.f32.mrf.mxu0
    %4417 = vdwg.mxu0
    %4418 = vmatpush.bf16.msra.mxu0 %v4334
    %4419 = vmatpush.bf16.msra.mxu0 %v4326
    %4420 = vmatpush.bf16.msra.mxu0 %v4318
    %4421 = vmatpush.bf16.msra.mxu0 %v4310
    %4422 = vmatpush.bf16.msra.mxu0 %v4302
    %4423 = vmatpush.bf16.msra.mxu0 %v4294
    %4424 = vmatpush.bf16.msra.mxu0 %v4286
    %4425 = vmatpush.bf16.msra.mxu0 %v4278
    %4426 = vmatmul.bf16.gmra.mxu0 %v549
    %v4427 = vpop.f32.mrf.mxu0
    %v4428 = vadd.f32 0.0, %v4427
    %v4429 = vpop.f32.mrf.mxu0
    %4430 = vdwg.mxu0
    %4431 = vmatpush.bf16.msra.mxu0 %v4335
    %4432 = vmatpush.bf16.msra.mxu0 %v4327
    %4433 = vmatpush.bf16.msra.mxu0 %v4319
    %4434 = vmatpush.bf16.msra.mxu0 %v4311
    %4435 = vmatpush.bf16.msra.mxu0 %v4303
    %4436 = vmatpush.bf16.msra.mxu0 %v4295
    %4437 = vmatpush.bf16.msra.mxu0 %v4287
    %4438 = vmatpush.bf16.msra.mxu0 %v4279
    %4439 = vmatmul.bf16.gmra.mxu0 %v549
    %v4440 = vpop.f32.mrf.mxu0
    %v4441 = vadd.f32 0.0, %v4440
    %v4442 = vpop.f32.mrf.mxu0
    %4443 = vdwg.mxu0
    %4444 = vmatpush.bf16.msra.mxu0 %v4336
    %4445 = vmatpush.bf16.msra.mxu0 %v4328
    %4446 = vmatpush.bf16.msra.mxu0 %v4320
    %4447 = vmatpush.bf16.msra.mxu0 %v4312
    %4448 = vmatpush.bf16.msra.mxu0 %v4304
    %4449 = vmatpush.bf16.msra.mxu0 %v4296
    %4450 = vmatpush.bf16.msra.mxu0 %v4288
    %4451 = vmatpush.bf16.msra.mxu0 %v4280
    %4452 = vmatmul.bf16.gmra.mxu0 %v549
    %v4453 = vpop.f32.mrf.mxu0
    %v4454 = vadd.f32 0.0, %v4453
    %v4455 = vpop.f32.mrf.mxu0
    %4456 = vdwg.mxu0
    %4457 = vmatpush.bf16.msra.mxu0 %v4337
    %4458 = vmatpush.bf16.msra.mxu0 %v4329
    %4459 = vmatpush.bf16.msra.mxu0 %v4321
    %4460 = vmatpush.bf16.msra.mxu0 %v4313
    %4461 = vmatpush.bf16.msra.mxu0 %v4305
    %4462 = vmatpush.bf16.msra.mxu0 %v4297
    %4463 = vmatpush.bf16.msra.mxu0 %v4289
    %4464 = vmatpush.bf16.msra.mxu0 %v4281
    %4465 = vmatmul.bf16.gmra.mxu0 %v549
    %v4466 = vpop.f32.mrf.mxu0
    %v4467 = vadd.f32 0.0, %v4466
    %v4468 = vpop.f32.mrf.mxu0
    %4469 = vdwg.mxu0
    %4470 = vmatpush.bf16.msra.mxu0 %v4338
    %4471 = vmatpush.bf16.msra.mxu0 %v4330
    %4472 = vmatpush.bf16.msra.mxu0 %v4322
    %4473 = vmatpush.bf16.msra.mxu0 %v4314
    %4474 = vmatpush.bf16.msra.mxu0 %v4306
    %4475 = vmatpush.bf16.msra.mxu0 %v4298
    %4476 = vmatpush.bf16.msra.mxu0 %v4290
    %4477 = vmatpush.bf16.msra.mxu0 %v4282
    %4478 = vmatmul.bf16.gmra.mxu0 %v549
    %v4479 = vpop.f32.mrf.mxu0
    %v4480 = vadd.f32 0.0, %v4479
    %v4481 = vpop.f32.mrf.mxu0
    %4482 = vdwg.mxu0
    %4483 = vmatpush.bf16.msra.mxu0 %v4339
    %4484 = vmatpush.bf16.msra.mxu0 %v4331
    %4485 = vmatpush.bf16.msra.mxu0 %v4323
    %4486 = vmatpush.bf16.msra.mxu0 %v4315
    %4487 = vmatpush.bf16.msra.mxu0 %v4307
    %4488 = vmatpush.bf16.msra.mxu0 %v4299
    %4489 = vmatpush.bf16.msra.mxu0 %v4291
    %4490 = vmatpush.bf16.msra.mxu0 %v4283
    %4491 = vmatmul.bf16.gmra.mxu0 %v549
    %v4492 = vpop.f32.mrf.mxu0
    %v4493 = vadd.f32 0.0, %v4492
    %v4494 = vpop.f32.mrf.mxu0
    %4495 = vdwg.mxu0
    %4496 = vmatpush.bf16.msra.mxu0 %v4340
    %4497 = vmatpush.bf16.msra.mxu0 %v4332
    %4498 = vmatpush.bf16.msra.mxu0 %v4324
    %4499 = vmatpush.bf16.msra.mxu0 %v4316
    %4500 = vmatpush.bf16.msra.mxu0 %v4308
    %4501 = vmatpush.bf16.msra.mxu0 %v4300
    %4502 = vmatpush.bf16.msra.mxu0 %v4292
    %4503 = vmatpush.bf16.msra.mxu0 %v4284
    %4504 = vmatmul.bf16.gmra.mxu0 %v549
    %v4505 = vpop.f32.mrf.mxu0
    %v4506 = vadd.f32 0.0, %v4505
    %v4507 = vpop.f32.mrf.mxu0
    %4508 = vdwg.mxu0
    %v4509 = vadd.f32 %v4012, %v4415
    %v4510 = vadd.f32 %v4013, %v4428
    %v4511 = vadd.f32 %v4014, %v4441
    %v4512 = vadd.f32 %v4015, %v4454
    %v4513 = vadd.f32 %v4016, %v4467
    %v4514 = vadd.f32 %v4017, %v4480
    %v4515 = vadd.f32 %v4018, %v4493
    %v4516 = vadd.f32 %v4019, %v4506
    %s4517 = scalar_lea.vmem [#allocation7], 4096
    %v4518 = vld [vmem:[%s4517] sm:$0xff]
    %v4519 = vld [vmem:[%s4517 + $0x8] sm:$0xff]
    %v4520 = vld [vmem:[%s4517 + $0x10] sm:$0xff]
    %v4521 = vld [vmem:[%s4517 + $0x18] sm:$0xff]
    %v4522 = vld [vmem:[%s4517 + $0x20] sm:$0xff]
    %v4523 = vld [vmem:[%s4517 + $0x28] sm:$0xff]
    %v4524 = vld [vmem:[%s4517 + $0x30] sm:$0xff]
    %v4525 = vld [vmem:[%s4517 + $0x38] sm:$0xff]
    %v4526 = vld [vmem:[%s4517 + $0x40] sm:$0xff]
    %v4527 = vld [vmem:[%s4517 + $0x48] sm:$0xff]
    %v4528 = vld [vmem:[%s4517 + $0x50] sm:$0xff]
    %v4529 = vld [vmem:[%s4517 + $0x58] sm:$0xff]
    %v4530 = vld [vmem:[%s4517 + $0x60] sm:$0xff]
    %v4531 = vld [vmem:[%s4517 + $0x68] sm:$0xff]
    %v4532 = vld [vmem:[%s4517 + $0x70] sm:$0xff]
    %v4533 = vld [vmem:[%s4517 + $0x78] sm:$0xff]
    %v4534 = vld [vmem:[%s4517 + $0x80] sm:$0xff]
    %v4535 = vld [vmem:[%s4517 + $0x88] sm:$0xff]
    %v4536 = vld [vmem:[%s4517 + $0x90] sm:$0xff]
    %v4537 = vld [vmem:[%s4517 + $0x98] sm:$0xff]
    %v4538 = vld [vmem:[%s4517 + $0xa0] sm:$0xff]
    %v4539 = vld [vmem:[%s4517 + $0xa8] sm:$0xff]
    %v4540 = vld [vmem:[%s4517 + $0xb0] sm:$0xff]
    %v4541 = vld [vmem:[%s4517 + $0xb8] sm:$0xff]
    %v4542 = vld [vmem:[%s4517 + $0xc0] sm:$0xff]
    %v4543 = vld [vmem:[%s4517 + $0xc8] sm:$0xff]
    %v4544 = vld [vmem:[%s4517 + $0xd0] sm:$0xff]
    %v4545 = vld [vmem:[%s4517 + $0xd8] sm:$0xff]
    %v4546 = vld [vmem:[%s4517 + $0xe0] sm:$0xff]
    %v4547 = vld [vmem:[%s4517 + $0xe8] sm:$0xff]
    %v4548 = vld [vmem:[%s4517 + $0xf0] sm:$0xff]
    %v4549 = vld [vmem:[%s4517 + $0xf8] sm:$0xff]
    %v4550 = vld [vmem:[%s4517 + $0x100] sm:$0xff]
    %v4551 = vld [vmem:[%s4517 + $0x108] sm:$0xff]
    %v4552 = vld [vmem:[%s4517 + $0x110] sm:$0xff]
    %v4553 = vld [vmem:[%s4517 + $0x118] sm:$0xff]
    %v4554 = vld [vmem:[%s4517 + $0x120] sm:$0xff]
    %v4555 = vld [vmem:[%s4517 + $0x128] sm:$0xff]
    %v4556 = vld [vmem:[%s4517 + $0x130] sm:$0xff]
    %v4557 = vld [vmem:[%s4517 + $0x138] sm:$0xff]
    %v4558 = vld [vmem:[%s4517 + $0x140] sm:$0xff]
    %v4559 = vld [vmem:[%s4517 + $0x148] sm:$0xff]
    %v4560 = vld [vmem:[%s4517 + $0x150] sm:$0xff]
    %v4561 = vld [vmem:[%s4517 + $0x158] sm:$0xff]
    %v4562 = vld [vmem:[%s4517 + $0x160] sm:$0xff]
    %v4563 = vld [vmem:[%s4517 + $0x168] sm:$0xff]
    %v4564 = vld [vmem:[%s4517 + $0x170] sm:$0xff]
    %v4565 = vld [vmem:[%s4517 + $0x178] sm:$0xff]
    %v4566 = vld [vmem:[%s4517 + $0x180] sm:$0xff]
    %v4567 = vld [vmem:[%s4517 + $0x188] sm:$0xff]
    %v4568 = vld [vmem:[%s4517 + $0x190] sm:$0xff]
    %v4569 = vld [vmem:[%s4517 + $0x198] sm:$0xff]
    %v4570 = vld [vmem:[%s4517 + $0x1a0] sm:$0xff]
    %v4571 = vld [vmem:[%s4517 + $0x1a8] sm:$0xff]
    %v4572 = vld [vmem:[%s4517 + $0x1b0] sm:$0xff]
    %v4573 = vld [vmem:[%s4517 + $0x1b8] sm:$0xff]
    %v4574 = vld [vmem:[%s4517 + $0x1c0] sm:$0xff]
    %v4575 = vld [vmem:[%s4517 + $0x1c8] sm:$0xff]
    %v4576 = vld [vmem:[%s4517 + $0x1d0] sm:$0xff]
    %v4577 = vld [vmem:[%s4517 + $0x1d8] sm:$0xff]
    %v4578 = vld [vmem:[%s4517 + $0x1e0] sm:$0xff]
    %v4579 = vld [vmem:[%s4517 + $0x1e8] sm:$0xff]
    %v4580 = vld [vmem:[%s4517 + $0x1f0] sm:$0xff]
    %v4581 = vld [vmem:[%s4517 + $0x1f8] sm:$0xff]
    %v4646 = vunpack.c.l.b16 %v4518
    %v4647 = vunpack.c.h.b16 %v4518
    %v4648 = vunpack.c.l.b16 %v4519
    %v4649 = vunpack.c.h.b16 %v4519
    %v4650 = vunpack.c.l.b16 %v4520
    %v4651 = vunpack.c.h.b16 %v4520
    %v4652 = vunpack.c.l.b16 %v4521
    %v4653 = vunpack.c.h.b16 %v4521
    %v4654 = vunpack.c.l.b16 %v4522
    %v4655 = vunpack.c.h.b16 %v4522
    %v4656 = vunpack.c.l.b16 %v4523
    %v4657 = vunpack.c.h.b16 %v4523
    %v4658 = vunpack.c.l.b16 %v4524
    %v4659 = vunpack.c.h.b16 %v4524
    %v4660 = vunpack.c.l.b16 %v4525
    %v4661 = vunpack.c.h.b16 %v4525
    %v4662 = vunpack.c.l.b16 %v4526
    %v4663 = vunpack.c.h.b16 %v4526
    %v4664 = vunpack.c.l.b16 %v4527
    %v4665 = vunpack.c.h.b16 %v4527
    %v4666 = vunpack.c.l.b16 %v4528
    %v4667 = vunpack.c.h.b16 %v4528
    %v4668 = vunpack.c.l.b16 %v4529
    %v4669 = vunpack.c.h.b16 %v4529
    %v4670 = vunpack.c.l.b16 %v4530
    %v4671 = vunpack.c.h.b16 %v4530
    %v4672 = vunpack.c.l.b16 %v4531
    %v4673 = vunpack.c.h.b16 %v4531
    %v4674 = vunpack.c.l.b16 %v4532
    %v4675 = vunpack.c.h.b16 %v4532
    %v4676 = vunpack.c.l.b16 %v4533
    %v4677 = vunpack.c.h.b16 %v4533
    %v4678 = vunpack.c.l.b16 %v4534
    %v4679 = vunpack.c.h.b16 %v4534
    %v4680 = vunpack.c.l.b16 %v4535
    %v4681 = vunpack.c.h.b16 %v4535
    %v4682 = vunpack.c.l.b16 %v4536
    %v4683 = vunpack.c.h.b16 %v4536
    %v4684 = vunpack.c.l.b16 %v4537
    %v4685 = vunpack.c.h.b16 %v4537
    %v4686 = vunpack.c.l.b16 %v4538
    %v4687 = vunpack.c.h.b16 %v4538
    %v4688 = vunpack.c.l.b16 %v4539
    %v4689 = vunpack.c.h.b16 %v4539
    %v4690 = vunpack.c.l.b16 %v4540
    %v4691 = vunpack.c.h.b16 %v4540
    %v4692 = vunpack.c.l.b16 %v4541
    %v4693 = vunpack.c.h.b16 %v4541
    %v4694 = vunpack.c.l.b16 %v4542
    %v4695 = vunpack.c.h.b16 %v4542
    %v4696 = vunpack.c.l.b16 %v4543
    %v4697 = vunpack.c.h.b16 %v4543
    %v4698 = vunpack.c.l.b16 %v4544
    %v4699 = vunpack.c.h.b16 %v4544
    %v4700 = vunpack.c.l.b16 %v4545
    %v4701 = vunpack.c.h.b16 %v4545
    %v4702 = vunpack.c.l.b16 %v4546
    %v4703 = vunpack.c.h.b16 %v4546
    %v4704 = vunpack.c.l.b16 %v4547
    %v4705 = vunpack.c.h.b16 %v4547
    %v4706 = vunpack.c.l.b16 %v4548
    %v4707 = vunpack.c.h.b16 %v4548
    %v4708 = vunpack.c.l.b16 %v4549
    %v4709 = vunpack.c.h.b16 %v4549
    %v4710 = vunpack.c.l.b16 %v4550
    %v4711 = vunpack.c.h.b16 %v4550
    %v4712 = vunpack.c.l.b16 %v4551
    %v4713 = vunpack.c.h.b16 %v4551
    %v4714 = vunpack.c.l.b16 %v4552
    %v4715 = vunpack.c.h.b16 %v4552
    %v4716 = vunpack.c.l.b16 %v4553
    %v4717 = vunpack.c.h.b16 %v4553
    %v4718 = vunpack.c.l.b16 %v4554
    %v4719 = vunpack.c.h.b16 %v4554
    %v4720 = vunpack.c.l.b16 %v4555
    %v4721 = vunpack.c.h.b16 %v4555
    %v4722 = vunpack.c.l.b16 %v4556
    %v4723 = vunpack.c.h.b16 %v4556
    %v4724 = vunpack.c.l.b16 %v4557
    %v4725 = vunpack.c.h.b16 %v4557
    %v4726 = vunpack.c.l.b16 %v4558
    %v4727 = vunpack.c.h.b16 %v4558
    %v4728 = vunpack.c.l.b16 %v4559
    %v4729 = vunpack.c.h.b16 %v4559
    %v4730 = vunpack.c.l.b16 %v4560
    %v4731 = vunpack.c.h.b16 %v4560
    %v4732 = vunpack.c.l.b16 %v4561
    %v4733 = vunpack.c.h.b16 %v4561
    %v4734 = vunpack.c.l.b16 %v4562
    %v4735 = vunpack.c.h.b16 %v4562
    %v4736 = vunpack.c.l.b16 %v4563
    %v4737 = vunpack.c.h.b16 %v4563
    %v4738 = vunpack.c.l.b16 %v4564
    %v4739 = vunpack.c.h.b16 %v4564
    %v4740 = vunpack.c.l.b16 %v4565
    %v4741 = vunpack.c.h.b16 %v4565
    %v4742 = vunpack.c.l.b16 %v4566
    %v4743 = vunpack.c.h.b16 %v4566
    %v4744 = vunpack.c.l.b16 %v4567
    %v4745 = vunpack.c.h.b16 %v4567
    %v4746 = vunpack.c.l.b16 %v4568
    %v4747 = vunpack.c.h.b16 %v4568
    %v4748 = vunpack.c.l.b16 %v4569
    %v4749 = vunpack.c.h.b16 %v4569
    %v4750 = vunpack.c.l.b16 %v4570
    %v4751 = vunpack.c.h.b16 %v4570
    %v4752 = vunpack.c.l.b16 %v4571
    %v4753 = vunpack.c.h.b16 %v4571
    %v4754 = vunpack.c.l.b16 %v4572
    %v4755 = vunpack.c.h.b16 %v4572
    %v4756 = vunpack.c.l.b16 %v4573
    %v4757 = vunpack.c.h.b16 %v4573
    %v4758 = vunpack.c.l.b16 %v4574
    %v4759 = vunpack.c.h.b16 %v4574
    %v4760 = vunpack.c.l.b16 %v4575
    %v4761 = vunpack.c.h.b16 %v4575
    %v4762 = vunpack.c.l.b16 %v4576
    %v4763 = vunpack.c.h.b16 %v4576
    %v4764 = vunpack.c.l.b16 %v4577
    %v4765 = vunpack.c.h.b16 %v4577
    %v4766 = vunpack.c.l.b16 %v4578
    %v4767 = vunpack.c.h.b16 %v4578
    %v4768 = vunpack.c.l.b16 %v4579
    %v4769 = vunpack.c.h.b16 %v4579
    %v4770 = vunpack.c.l.b16 %v4580
    %v4771 = vunpack.c.h.b16 %v4580
    %v4772 = vunpack.c.l.b16 %v4581
    %v4773 = vunpack.c.h.b16 %v4581
    %v4774 = vpack.c.b16 %v4654, %v4646
    %v4775 = vpack.c.b16 %v4655, %v4647
    %v4776 = vpack.c.b16 %v4656, %v4648
    %v4777 = vpack.c.b16 %v4657, %v4649
    %v4778 = vpack.c.b16 %v4658, %v4650
    %v4779 = vpack.c.b16 %v4659, %v4651
    %v4780 = vpack.c.b16 %v4660, %v4652
    %v4781 = vpack.c.b16 %v4661, %v4653
    %v4782 = vpack.c.b16 %v4670, %v4662
    %v4783 = vpack.c.b16 %v4671, %v4663
    %v4784 = vpack.c.b16 %v4672, %v4664
    %v4785 = vpack.c.b16 %v4673, %v4665
    %v4786 = vpack.c.b16 %v4674, %v4666
    %v4787 = vpack.c.b16 %v4675, %v4667
    %v4788 = vpack.c.b16 %v4676, %v4668
    %v4789 = vpack.c.b16 %v4677, %v4669
    %v4790 = vpack.c.b16 %v4686, %v4678
    %v4791 = vpack.c.b16 %v4687, %v4679
    %v4792 = vpack.c.b16 %v4688, %v4680
    %v4793 = vpack.c.b16 %v4689, %v4681
    %v4794 = vpack.c.b16 %v4690, %v4682
    %v4795 = vpack.c.b16 %v4691, %v4683
    %v4796 = vpack.c.b16 %v4692, %v4684
    %v4797 = vpack.c.b16 %v4693, %v4685
    %v4798 = vpack.c.b16 %v4702, %v4694
    %v4799 = vpack.c.b16 %v4703, %v4695
    %v4800 = vpack.c.b16 %v4704, %v4696
    %v4801 = vpack.c.b16 %v4705, %v4697
    %v4802 = vpack.c.b16 %v4706, %v4698
    %v4803 = vpack.c.b16 %v4707, %v4699
    %v4804 = vpack.c.b16 %v4708, %v4700
    %v4805 = vpack.c.b16 %v4709, %v4701
    %v4806 = vpack.c.b16 %v4718, %v4710
    %v4807 = vpack.c.b16 %v4719, %v4711
    %v4808 = vpack.c.b16 %v4720, %v4712
    %v4809 = vpack.c.b16 %v4721, %v4713
    %v4810 = vpack.c.b16 %v4722, %v4714
    %v4811 = vpack.c.b16 %v4723, %v4715
    %v4812 = vpack.c.b16 %v4724, %v4716
    %v4813 = vpack.c.b16 %v4725, %v4717
    %v4814 = vpack.c.b16 %v4734, %v4726
    %v4815 = vpack.c.b16 %v4735, %v4727
    %v4816 = vpack.c.b16 %v4736, %v4728
    %v4817 = vpack.c.b16 %v4737, %v4729
    %v4818 = vpack.c.b16 %v4738, %v4730
    %v4819 = vpack.c.b16 %v4739, %v4731
    %v4820 = vpack.c.b16 %v4740, %v4732
    %v4821 = vpack.c.b16 %v4741, %v4733
    %v4822 = vpack.c.b16 %v4750, %v4742
    %v4823 = vpack.c.b16 %v4751, %v4743
    %v4824 = vpack.c.b16 %v4752, %v4744
    %v4825 = vpack.c.b16 %v4753, %v4745
    %v4826 = vpack.c.b16 %v4754, %v4746
    %v4827 = vpack.c.b16 %v4755, %v4747
    %v4828 = vpack.c.b16 %v4756, %v4748
    %v4829 = vpack.c.b16 %v4757, %v4749
    %v4830 = vpack.c.b16 %v4766, %v4758
    %v4831 = vpack.c.b16 %v4767, %v4759
    %v4832 = vpack.c.b16 %v4768, %v4760
    %v4833 = vpack.c.b16 %v4769, %v4761
    %v4834 = vpack.c.b16 %v4770, %v4762
    %v4835 = vpack.c.b16 %v4771, %v4763
    %v4836 = vpack.c.b16 %v4772, %v4764
    %v4837 = vpack.c.b16 %v4773, %v4765
    %4902 = vmatpush.bf16.msra.mxu0 %v4830
    %4903 = vmatpush.bf16.msra.mxu0 %v4822
    %4904 = vmatpush.bf16.msra.mxu0 %v4814
    %4905 = vmatpush.bf16.msra.mxu0 %v4806
    %4906 = vmatpush.bf16.msra.mxu0 %v4798
    %4907 = vmatpush.bf16.msra.mxu0 %v4790
    %4908 = vmatpush.bf16.msra.mxu0 %v4782
    %4909 = vmatpush.bf16.msra.mxu0 %v4774
    %4910 = vmatmul.bf16.gmra.mxu0 %v550
    %v4911 = vpop.f32.mrf.mxu0
    %v4912 = vadd.f32 0.0, %v4911
    %v4913 = vpop.f32.mrf.mxu0
    %4914 = vdwg.mxu0
    %4915 = vmatpush.bf16.msra.mxu0 %v4831
    %4916 = vmatpush.bf16.msra.mxu0 %v4823
    %4917 = vmatpush.bf16.msra.mxu0 %v4815
    %4918 = vmatpush.bf16.msra.mxu0 %v4807
    %4919 = vmatpush.bf16.msra.mxu0 %v4799
    %4920 = vmatpush.bf16.msra.mxu0 %v4791
    %4921 = vmatpush.bf16.msra.mxu0 %v4783
    %4922 = vmatpush.bf16.msra.mxu0 %v4775
    %4923 = vmatmul.bf16.gmra.mxu0 %v550
    %v4924 = vpop.f32.mrf.mxu0
    %v4925 = vadd.f32 0.0, %v4924
    %v4926 = vpop.f32.mrf.mxu0
    %4927 = vdwg.mxu0
    %4928 = vmatpush.bf16.msra.mxu0 %v4832
    %4929 = vmatpush.bf16.msra.mxu0 %v4824
    %4930 = vmatpush.bf16.msra.mxu0 %v4816
    %4931 = vmatpush.bf16.msra.mxu0 %v4808
    %4932 = vmatpush.bf16.msra.mxu0 %v4800
    %4933 = vmatpush.bf16.msra.mxu0 %v4792
    %4934 = vmatpush.bf16.msra.mxu0 %v4784
    %4935 = vmatpush.bf16.msra.mxu0 %v4776
    %4936 = vmatmul.bf16.gmra.mxu0 %v550
    %v4937 = vpop.f32.mrf.mxu0
    %v4938 = vadd.f32 0.0, %v4937
    %v4939 = vpop.f32.mrf.mxu0
    %4940 = vdwg.mxu0
    %4941 = vmatpush.bf16.msra.mxu0 %v4833
    %4942 = vmatpush.bf16.msra.mxu0 %v4825
    %4943 = vmatpush.bf16.msra.mxu0 %v4817
    %4944 = vmatpush.bf16.msra.mxu0 %v4809
    %4945 = vmatpush.bf16.msra.mxu0 %v4801
    %4946 = vmatpush.bf16.msra.mxu0 %v4793
    %4947 = vmatpush.bf16.msra.mxu0 %v4785
    %4948 = vmatpush.bf16.msra.mxu0 %v4777
    %4949 = vmatmul.bf16.gmra.mxu0 %v550
    %v4950 = vpop.f32.mrf.mxu0
    %v4951 = vadd.f32 0.0, %v4950
    %v4952 = vpop.f32.mrf.mxu0
    %4953 = vdwg.mxu0
    %4954 = vmatpush.bf16.msra.mxu0 %v4834
    %4955 = vmatpush.bf16.msra.mxu0 %v4826
    %4956 = vmatpush.bf16.msra.mxu0 %v4818
    %4957 = vmatpush.bf16.msra.mxu0 %v4810
    %4958 = vmatpush.bf16.msra.mxu0 %v4802
    %4959 = vmatpush.bf16.msra.mxu0 %v4794
    %4960 = vmatpush.bf16.msra.mxu0 %v4786
    %4961 = vmatpush.bf16.msra.mxu0 %v4778
    %4962 = vmatmul.bf16.gmra.mxu0 %v550
    %v4963 = vpop.f32.mrf.mxu0
    %v4964 = vadd.f32 0.0, %v4963
    %v4965 = vpop.f32.mrf.mxu0
    %4966 = vdwg.mxu0
    %4967 = vmatpush.bf16.msra.mxu0 %v4835
    %4968 = vmatpush.bf16.msra.mxu0 %v4827
    %4969 = vmatpush.bf16.msra.mxu0 %v4819
    %4970 = vmatpush.bf16.msra.mxu0 %v4811
    %4971 = vmatpush.bf16.msra.mxu0 %v4803
    %4972 = vmatpush.bf16.msra.mxu0 %v4795
    %4973 = vmatpush.bf16.msra.mxu0 %v4787
    %4974 = vmatpush.bf16.msra.mxu0 %v4779
    %4975 = vmatmul.bf16.gmra.mxu0 %v550
    %v4976 = vpop.f32.mrf.mxu0
    %v4977 = vadd.f32 0.0, %v4976
    %v4978 = vpop.f32.mrf.mxu0
    %4979 = vdwg.mxu0
    %4980 = vmatpush.bf16.msra.mxu0 %v4836
    %4981 = vmatpush.bf16.msra.mxu0 %v4828
    %4982 = vmatpush.bf16.msra.mxu0 %v4820
    %4983 = vmatpush.bf16.msra.mxu0 %v4812
    %4984 = vmatpush.bf16.msra.mxu0 %v4804
    %4985 = vmatpush.bf16.msra.mxu0 %v4796
    %4986 = vmatpush.bf16.msra.mxu0 %v4788
    %4987 = vmatpush.bf16.msra.mxu0 %v4780
    %4988 = vmatmul.bf16.gmra.mxu0 %v550
    %v4989 = vpop.f32.mrf.mxu0
    %v4990 = vadd.f32 0.0, %v4989
    %v4991 = vpop.f32.mrf.mxu0
    %4992 = vdwg.mxu0
    %4993 = vmatpush.bf16.msra.mxu0 %v4837
    %4994 = vmatpush.bf16.msra.mxu0 %v4829
    %4995 = vmatpush.bf16.msra.mxu0 %v4821
    %4996 = vmatpush.bf16.msra.mxu0 %v4813
    %4997 = vmatpush.bf16.msra.mxu0 %v4805
    %4998 = vmatpush.bf16.msra.mxu0 %v4797
    %4999 = vmatpush.bf16.msra.mxu0 %v4789
    %5000 = vmatpush.bf16.msra.mxu0 %v4781
    %5001 = vmatmul.bf16.gmra.mxu0 %v550
    %v5002 = vpop.f32.mrf.mxu0
    %v5003 = vadd.f32 0.0, %v5002
    %v5004 = vpop.f32.mrf.mxu0
    %5005 = vdwg.mxu0
    %v5006 = vadd.f32 %v4509, %v4912
    %v5007 = vadd.f32 %v4510, %v4925
    %v5008 = vadd.f32 %v4511, %v4938
    %v5009 = vadd.f32 %v4512, %v4951
    %v5010 = vadd.f32 %v4513, %v4964
    %v5011 = vadd.f32 %v4514, %v4977
    %v5012 = vadd.f32 %v4515, %v4990
    %v5013 = vadd.f32 %v4516, %v5003
    %s5014 = scalar_lea.vmem [#allocation7], 4608
    %v5015 = vld [vmem:[%s5014] sm:$0xff]
    %v5016 = vld [vmem:[%s5014 + $0x8] sm:$0xff]
    %v5017 = vld [vmem:[%s5014 + $0x10] sm:$0xff]
    %v5018 = vld [vmem:[%s5014 + $0x18] sm:$0xff]
    %v5019 = vld [vmem:[%s5014 + $0x20] sm:$0xff]
    %v5020 = vld [vmem:[%s5014 + $0x28] sm:$0xff]
    %v5021 = vld [vmem:[%s5014 + $0x30] sm:$0xff]
    %v5022 = vld [vmem:[%s5014 + $0x38] sm:$0xff]
    %v5023 = vld [vmem:[%s5014 + $0x40] sm:$0xff]
    %v5024 = vld [vmem:[%s5014 + $0x48] sm:$0xff]
    %v5025 = vld [vmem:[%s5014 + $0x50] sm:$0xff]
    %v5026 = vld [vmem:[%s5014 + $0x58] sm:$0xff]
    %v5027 = vld [vmem:[%s5014 + $0x60] sm:$0xff]
    %v5028 = vld [vmem:[%s5014 + $0x68] sm:$0xff]
    %v5029 = vld [vmem:[%s5014 + $0x70] sm:$0xff]
    %v5030 = vld [vmem:[%s5014 + $0x78] sm:$0xff]
    %v5031 = vld [vmem:[%s5014 + $0x80] sm:$0xff]
    %v5032 = vld [vmem:[%s5014 + $0x88] sm:$0xff]
    %v5033 = vld [vmem:[%s5014 + $0x90] sm:$0xff]
    %v5034 = vld [vmem:[%s5014 + $0x98] sm:$0xff]
    %v5035 = vld [vmem:[%s5014 + $0xa0] sm:$0xff]
    %v5036 = vld [vmem:[%s5014 + $0xa8] sm:$0xff]
    %v5037 = vld [vmem:[%s5014 + $0xb0] sm:$0xff]
    %v5038 = vld [vmem:[%s5014 + $0xb8] sm:$0xff]
    %v5039 = vld [vmem:[%s5014 + $0xc0] sm:$0xff]
    %v5040 = vld [vmem:[%s5014 + $0xc8] sm:$0xff]
    %v5041 = vld [vmem:[%s5014 + $0xd0] sm:$0xff]
    %v5042 = vld [vmem:[%s5014 + $0xd8] sm:$0xff]
    %v5043 = vld [vmem:[%s5014 + $0xe0] sm:$0xff]
    %v5044 = vld [vmem:[%s5014 + $0xe8] sm:$0xff]
    %v5045 = vld [vmem:[%s5014 + $0xf0] sm:$0xff]
    %v5046 = vld [vmem:[%s5014 + $0xf8] sm:$0xff]
    %v5047 = vld [vmem:[%s5014 + $0x100] sm:$0xff]
    %v5048 = vld [vmem:[%s5014 + $0x108] sm:$0xff]
    %v5049 = vld [vmem:[%s5014 + $0x110] sm:$0xff]
    %v5050 = vld [vmem:[%s5014 + $0x118] sm:$0xff]
    %v5051 = vld [vmem:[%s5014 + $0x120] sm:$0xff]
    %v5052 = vld [vmem:[%s5014 + $0x128] sm:$0xff]
    %v5053 = vld [vmem:[%s5014 + $0x130] sm:$0xff]
    %v5054 = vld [vmem:[%s5014 + $0x138] sm:$0xff]
    %v5055 = vld [vmem:[%s5014 + $0x140] sm:$0xff]
    %v5056 = vld [vmem:[%s5014 + $0x148] sm:$0xff]
    %v5057 = vld [vmem:[%s5014 + $0x150] sm:$0xff]
    %v5058 = vld [vmem:[%s5014 + $0x158] sm:$0xff]
    %v5059 = vld [vmem:[%s5014 + $0x160] sm:$0xff]
    %v5060 = vld [vmem:[%s5014 + $0x168] sm:$0xff]
    %v5061 = vld [vmem:[%s5014 + $0x170] sm:$0xff]
    %v5062 = vld [vmem:[%s5014 + $0x178] sm:$0xff]
    %v5063 = vld [vmem:[%s5014 + $0x180] sm:$0xff]
    %v5064 = vld [vmem:[%s5014 + $0x188] sm:$0xff]
    %v5065 = vld [vmem:[%s5014 + $0x190] sm:$0xff]
    %v5066 = vld [vmem:[%s5014 + $0x198] sm:$0xff]
    %v5067 = vld [vmem:[%s5014 + $0x1a0] sm:$0xff]
    %v5068 = vld [vmem:[%s5014 + $0x1a8] sm:$0xff]
    %v5069 = vld [vmem:[%s5014 + $0x1b0] sm:$0xff]
    %v5070 = vld [vmem:[%s5014 + $0x1b8] sm:$0xff]
    %v5071 = vld [vmem:[%s5014 + $0x1c0] sm:$0xff]
    %v5072 = vld [vmem:[%s5014 + $0x1c8] sm:$0xff]
    %v5073 = vld [vmem:[%s5014 + $0x1d0] sm:$0xff]
    %v5074 = vld [vmem:[%s5014 + $0x1d8] sm:$0xff]
    %v5075 = vld [vmem:[%s5014 + $0x1e0] sm:$0xff]
    %v5076 = vld [vmem:[%s5014 + $0x1e8] sm:$0xff]
    %v5077 = vld [vmem:[%s5014 + $0x1f0] sm:$0xff]
    %v5078 = vld [vmem:[%s5014 + $0x1f8] sm:$0xff]
    %v5143 = vunpack.c.l.b16 %v5015
    %v5144 = vunpack.c.h.b16 %v5015
    %v5145 = vunpack.c.l.b16 %v5016
    %v5146 = vunpack.c.h.b16 %v5016
    %v5147 = vunpack.c.l.b16 %v5017
    %v5148 = vunpack.c.h.b16 %v5017
    %v5149 = vunpack.c.l.b16 %v5018
    %v5150 = vunpack.c.h.b16 %v5018
    %v5151 = vunpack.c.l.b16 %v5019
    %v5152 = vunpack.c.h.b16 %v5019
    %v5153 = vunpack.c.l.b16 %v5020
    %v5154 = vunpack.c.h.b16 %v5020
    %v5155 = vunpack.c.l.b16 %v5021
    %v5156 = vunpack.c.h.b16 %v5021
    %v5157 = vunpack.c.l.b16 %v5022
    %v5158 = vunpack.c.h.b16 %v5022
    %v5159 = vunpack.c.l.b16 %v5023
    %v5160 = vunpack.c.h.b16 %v5023
    %v5161 = vunpack.c.l.b16 %v5024
    %v5162 = vunpack.c.h.b16 %v5024
    %v5163 = vunpack.c.l.b16 %v5025
    %v5164 = vunpack.c.h.b16 %v5025
    %v5165 = vunpack.c.l.b16 %v5026
    %v5166 = vunpack.c.h.b16 %v5026
    %v5167 = vunpack.c.l.b16 %v5027
    %v5168 = vunpack.c.h.b16 %v5027
    %v5169 = vunpack.c.l.b16 %v5028
    %v5170 = vunpack.c.h.b16 %v5028
    %v5171 = vunpack.c.l.b16 %v5029
    %v5172 = vunpack.c.h.b16 %v5029
    %v5173 = vunpack.c.l.b16 %v5030
    %v5174 = vunpack.c.h.b16 %v5030
    %v5175 = vunpack.c.l.b16 %v5031
    %v5176 = vunpack.c.h.b16 %v5031
    %v5177 = vunpack.c.l.b16 %v5032
    %v5178 = vunpack.c.h.b16 %v5032
    %v5179 = vunpack.c.l.b16 %v5033
    %v5180 = vunpack.c.h.b16 %v5033
    %v5181 = vunpack.c.l.b16 %v5034
    %v5182 = vunpack.c.h.b16 %v5034
    %v5183 = vunpack.c.l.b16 %v5035
    %v5184 = vunpack.c.h.b16 %v5035
    %v5185 = vunpack.c.l.b16 %v5036
    %v5186 = vunpack.c.h.b16 %v5036
    %v5187 = vunpack.c.l.b16 %v5037
    %v5188 = vunpack.c.h.b16 %v5037
    %v5189 = vunpack.c.l.b16 %v5038
    %v5190 = vunpack.c.h.b16 %v5038
    %v5191 = vunpack.c.l.b16 %v5039
    %v5192 = vunpack.c.h.b16 %v5039
    %v5193 = vunpack.c.l.b16 %v5040
    %v5194 = vunpack.c.h.b16 %v5040
    %v5195 = vunpack.c.l.b16 %v5041
    %v5196 = vunpack.c.h.b16 %v5041
    %v5197 = vunpack.c.l.b16 %v5042
    %v5198 = vunpack.c.h.b16 %v5042
    %v5199 = vunpack.c.l.b16 %v5043
    %v5200 = vunpack.c.h.b16 %v5043
    %v5201 = vunpack.c.l.b16 %v5044
    %v5202 = vunpack.c.h.b16 %v5044
    %v5203 = vunpack.c.l.b16 %v5045
    %v5204 = vunpack.c.h.b16 %v5045
    %v5205 = vunpack.c.l.b16 %v5046
    %v5206 = vunpack.c.h.b16 %v5046
    %v5207 = vunpack.c.l.b16 %v5047
    %v5208 = vunpack.c.h.b16 %v5047
    %v5209 = vunpack.c.l.b16 %v5048
    %v5210 = vunpack.c.h.b16 %v5048
    %v5211 = vunpack.c.l.b16 %v5049
    %v5212 = vunpack.c.h.b16 %v5049
    %v5213 = vunpack.c.l.b16 %v5050
    %v5214 = vunpack.c.h.b16 %v5050
    %v5215 = vunpack.c.l.b16 %v5051
    %v5216 = vunpack.c.h.b16 %v5051
    %v5217 = vunpack.c.l.b16 %v5052
    %v5218 = vunpack.c.h.b16 %v5052
    %v5219 = vunpack.c.l.b16 %v5053
    %v5220 = vunpack.c.h.b16 %v5053
    %v5221 = vunpack.c.l.b16 %v5054
    %v5222 = vunpack.c.h.b16 %v5054
    %v5223 = vunpack.c.l.b16 %v5055
    %v5224 = vunpack.c.h.b16 %v5055
    %v5225 = vunpack.c.l.b16 %v5056
    %v5226 = vunpack.c.h.b16 %v5056
    %v5227 = vunpack.c.l.b16 %v5057
    %v5228 = vunpack.c.h.b16 %v5057
    %v5229 = vunpack.c.l.b16 %v5058
    %v5230 = vunpack.c.h.b16 %v5058
    %v5231 = vunpack.c.l.b16 %v5059
    %v5232 = vunpack.c.h.b16 %v5059
    %v5233 = vunpack.c.l.b16 %v5060
    %v5234 = vunpack.c.h.b16 %v5060
    %v5235 = vunpack.c.l.b16 %v5061
    %v5236 = vunpack.c.h.b16 %v5061
    %v5237 = vunpack.c.l.b16 %v5062
    %v5238 = vunpack.c.h.b16 %v5062
    %v5239 = vunpack.c.l.b16 %v5063
    %v5240 = vunpack.c.h.b16 %v5063
    %v5241 = vunpack.c.l.b16 %v5064
    %v5242 = vunpack.c.h.b16 %v5064
    %v5243 = vunpack.c.l.b16 %v5065
    %v5244 = vunpack.c.h.b16 %v5065
    %v5245 = vunpack.c.l.b16 %v5066
    %v5246 = vunpack.c.h.b16 %v5066
    %v5247 = vunpack.c.l.b16 %v5067
    %v5248 = vunpack.c.h.b16 %v5067
    %v5249 = vunpack.c.l.b16 %v5068
    %v5250 = vunpack.c.h.b16 %v5068
    %v5251 = vunpack.c.l.b16 %v5069
    %v5252 = vunpack.c.h.b16 %v5069
    %v5253 = vunpack.c.l.b16 %v5070
    %v5254 = vunpack.c.h.b16 %v5070
    %v5255 = vunpack.c.l.b16 %v5071
    %v5256 = vunpack.c.h.b16 %v5071
    %v5257 = vunpack.c.l.b16 %v5072
    %v5258 = vunpack.c.h.b16 %v5072
    %v5259 = vunpack.c.l.b16 %v5073
    %v5260 = vunpack.c.h.b16 %v5073
    %v5261 = vunpack.c.l.b16 %v5074
    %v5262 = vunpack.c.h.b16 %v5074
    %v5263 = vunpack.c.l.b16 %v5075
    %v5264 = vunpack.c.h.b16 %v5075
    %v5265 = vunpack.c.l.b16 %v5076
    %v5266 = vunpack.c.h.b16 %v5076
    %v5267 = vunpack.c.l.b16 %v5077
    %v5268 = vunpack.c.h.b16 %v5077
    %v5269 = vunpack.c.l.b16 %v5078
    %v5270 = vunpack.c.h.b16 %v5078
    %v5271 = vpack.c.b16 %v5151, %v5143
    %v5272 = vpack.c.b16 %v5152, %v5144
    %v5273 = vpack.c.b16 %v5153, %v5145
    %v5274 = vpack.c.b16 %v5154, %v5146
    %v5275 = vpack.c.b16 %v5155, %v5147
    %v5276 = vpack.c.b16 %v5156, %v5148
    %v5277 = vpack.c.b16 %v5157, %v5149
    %v5278 = vpack.c.b16 %v5158, %v5150
    %v5279 = vpack.c.b16 %v5167, %v5159
    %v5280 = vpack.c.b16 %v5168, %v5160
    %v5281 = vpack.c.b16 %v5169, %v5161
    %v5282 = vpack.c.b16 %v5170, %v5162
    %v5283 = vpack.c.b16 %v5171, %v5163
    %v5284 = vpack.c.b16 %v5172, %v5164
    %v5285 = vpack.c.b16 %v5173, %v5165
    %v5286 = vpack.c.b16 %v5174, %v5166
    %v5287 = vpack.c.b16 %v5183, %v5175
    %v5288 = vpack.c.b16 %v5184, %v5176
    %v5289 = vpack.c.b16 %v5185, %v5177
    %v5290 = vpack.c.b16 %v5186, %v5178
    %v5291 = vpack.c.b16 %v5187, %v5179
    %v5292 = vpack.c.b16 %v5188, %v5180
    %v5293 = vpack.c.b16 %v5189, %v5181
    %v5294 = vpack.c.b16 %v5190, %v5182
    %v5295 = vpack.c.b16 %v5199, %v5191
    %v5296 = vpack.c.b16 %v5200, %v5192
    %v5297 = vpack.c.b16 %v5201, %v5193
    %v5298 = vpack.c.b16 %v5202, %v5194
    %v5299 = vpack.c.b16 %v5203, %v5195
    %v5300 = vpack.c.b16 %v5204, %v5196
    %v5301 = vpack.c.b16 %v5205, %v5197
    %v5302 = vpack.c.b16 %v5206, %v5198
    %v5303 = vpack.c.b16 %v5215, %v5207
    %v5304 = vpack.c.b16 %v5216, %v5208
    %v5305 = vpack.c.b16 %v5217, %v5209
    %v5306 = vpack.c.b16 %v5218, %v5210
    %v5307 = vpack.c.b16 %v5219, %v5211
    %v5308 = vpack.c.b16 %v5220, %v5212
    %v5309 = vpack.c.b16 %v5221, %v5213
    %v5310 = vpack.c.b16 %v5222, %v5214
    %v5311 = vpack.c.b16 %v5231, %v5223
    %v5312 = vpack.c.b16 %v5232, %v5224
    %v5313 = vpack.c.b16 %v5233, %v5225
    %v5314 = vpack.c.b16 %v5234, %v5226
    %v5315 = vpack.c.b16 %v5235, %v5227
    %v5316 = vpack.c.b16 %v5236, %v5228
    %v5317 = vpack.c.b16 %v5237, %v5229
    %v5318 = vpack.c.b16 %v5238, %v5230
    %v5319 = vpack.c.b16 %v5247, %v5239
    %v5320 = vpack.c.b16 %v5248, %v5240
    %v5321 = vpack.c.b16 %v5249, %v5241
    %v5322 = vpack.c.b16 %v5250, %v5242
    %v5323 = vpack.c.b16 %v5251, %v5243
    %v5324 = vpack.c.b16 %v5252, %v5244
    %v5325 = vpack.c.b16 %v5253, %v5245
    %v5326 = vpack.c.b16 %v5254, %v5246
    %v5327 = vpack.c.b16 %v5263, %v5255
    %v5328 = vpack.c.b16 %v5264, %v5256
    %v5329 = vpack.c.b16 %v5265, %v5257
    %v5330 = vpack.c.b16 %v5266, %v5258
    %v5331 = vpack.c.b16 %v5267, %v5259
    %v5332 = vpack.c.b16 %v5268, %v5260
    %v5333 = vpack.c.b16 %v5269, %v5261
    %v5334 = vpack.c.b16 %v5270, %v5262
    %5399 = vmatpush.bf16.msra.mxu0 %v5327
    %5400 = vmatpush.bf16.msra.mxu0 %v5319
    %5401 = vmatpush.bf16.msra.mxu0 %v5311
    %5402 = vmatpush.bf16.msra.mxu0 %v5303
    %5403 = vmatpush.bf16.msra.mxu0 %v5295
    %5404 = vmatpush.bf16.msra.mxu0 %v5287
    %5405 = vmatpush.bf16.msra.mxu0 %v5279
    %5406 = vmatpush.bf16.msra.mxu0 %v5271
    %5407 = vmatmul.bf16.gmra.mxu0 %v551
    %v5408 = vpop.f32.mrf.mxu0
    %v5409 = vadd.f32 0.0, %v5408
    %v5410 = vpop.f32.mrf.mxu0
    %5411 = vdwg.mxu0
    %5412 = vmatpush.bf16.msra.mxu0 %v5328
    %5413 = vmatpush.bf16.msra.mxu0 %v5320
    %5414 = vmatpush.bf16.msra.mxu0 %v5312
    %5415 = vmatpush.bf16.msra.mxu0 %v5304
    %5416 = vmatpush.bf16.msra.mxu0 %v5296
    %5417 = vmatpush.bf16.msra.mxu0 %v5288
    %5418 = vmatpush.bf16.msra.mxu0 %v5280
    %5419 = vmatpush.bf16.msra.mxu0 %v5272
    %5420 = vmatmul.bf16.gmra.mxu0 %v551
    %v5421 = vpop.f32.mrf.mxu0
    %v5422 = vadd.f32 0.0, %v5421
    %v5423 = vpop.f32.mrf.mxu0
    %5424 = vdwg.mxu0
    %5425 = vmatpush.bf16.msra.mxu0 %v5329
    %5426 = vmatpush.bf16.msra.mxu0 %v5321
    %5427 = vmatpush.bf16.msra.mxu0 %v5313
    %5428 = vmatpush.bf16.msra.mxu0 %v5305
    %5429 = vmatpush.bf16.msra.mxu0 %v5297
    %5430 = vmatpush.bf16.msra.mxu0 %v5289
    %5431 = vmatpush.bf16.msra.mxu0 %v5281
    %5432 = vmatpush.bf16.msra.mxu0 %v5273
    %5433 = vmatmul.bf16.gmra.mxu0 %v551
    %v5434 = vpop.f32.mrf.mxu0
    %v5435 = vadd.f32 0.0, %v5434
    %v5436 = vpop.f32.mrf.mxu0
    %5437 = vdwg.mxu0
    %5438 = vmatpush.bf16.msra.mxu0 %v5330
    %5439 = vmatpush.bf16.msra.mxu0 %v5322
    %5440 = vmatpush.bf16.msra.mxu0 %v5314
    %5441 = vmatpush.bf16.msra.mxu0 %v5306
    %5442 = vmatpush.bf16.msra.mxu0 %v5298
    %5443 = vmatpush.bf16.msra.mxu0 %v5290
    %5444 = vmatpush.bf16.msra.mxu0 %v5282
    %5445 = vmatpush.bf16.msra.mxu0 %v5274
    %5446 = vmatmul.bf16.gmra.mxu0 %v551
    %v5447 = vpop.f32.mrf.mxu0
    %v5448 = vadd.f32 0.0, %v5447
    %v5449 = vpop.f32.mrf.mxu0
    %5450 = vdwg.mxu0
    %5451 = vmatpush.bf16.msra.mxu0 %v5331
    %5452 = vmatpush.bf16.msra.mxu0 %v5323
    %5453 = vmatpush.bf16.msra.mxu0 %v5315
    %5454 = vmatpush.bf16.msra.mxu0 %v5307
    %5455 = vmatpush.bf16.msra.mxu0 %v5299
    %5456 = vmatpush.bf16.msra.mxu0 %v5291
    %5457 = vmatpush.bf16.msra.mxu0 %v5283
    %5458 = vmatpush.bf16.msra.mxu0 %v5275
    %5459 = vmatmul.bf16.gmra.mxu0 %v551
    %v5460 = vpop.f32.mrf.mxu0
    %v5461 = vadd.f32 0.0, %v5460
    %v5462 = vpop.f32.mrf.mxu0
    %5463 = vdwg.mxu0
    %5464 = vmatpush.bf16.msra.mxu0 %v5332
    %5465 = vmatpush.bf16.msra.mxu0 %v5324
    %5466 = vmatpush.bf16.msra.mxu0 %v5316
    %5467 = vmatpush.bf16.msra.mxu0 %v5308
    %5468 = vmatpush.bf16.msra.mxu0 %v5300
    %5469 = vmatpush.bf16.msra.mxu0 %v5292
    %5470 = vmatpush.bf16.msra.mxu0 %v5284
    %5471 = vmatpush.bf16.msra.mxu0 %v5276
    %5472 = vmatmul.bf16.gmra.mxu0 %v551
    %v5473 = vpop.f32.mrf.mxu0
    %v5474 = vadd.f32 0.0, %v5473
    %v5475 = vpop.f32.mrf.mxu0
    %5476 = vdwg.mxu0
    %5477 = vmatpush.bf16.msra.mxu0 %v5333
    %5478 = vmatpush.bf16.msra.mxu0 %v5325
    %5479 = vmatpush.bf16.msra.mxu0 %v5317
    %5480 = vmatpush.bf16.msra.mxu0 %v5309
    %5481 = vmatpush.bf16.msra.mxu0 %v5301
    %5482 = vmatpush.bf16.msra.mxu0 %v5293
    %5483 = vmatpush.bf16.msra.mxu0 %v5285
    %5484 = vmatpush.bf16.msra.mxu0 %v5277
    %5485 = vmatmul.bf16.gmra.mxu0 %v551
    %v5486 = vpop.f32.mrf.mxu0
    %v5487 = vadd.f32 0.0, %v5486
    %v5488 = vpop.f32.mrf.mxu0
    %5489 = vdwg.mxu0
    %5490 = vmatpush.bf16.msra.mxu0 %v5334
    %5491 = vmatpush.bf16.msra.mxu0 %v5326
    %5492 = vmatpush.bf16.msra.mxu0 %v5318
    %5493 = vmatpush.bf16.msra.mxu0 %v5310
    %5494 = vmatpush.bf16.msra.mxu0 %v5302
    %5495 = vmatpush.bf16.msra.mxu0 %v5294
    %5496 = vmatpush.bf16.msra.mxu0 %v5286
    %5497 = vmatpush.bf16.msra.mxu0 %v5278
    %5498 = vmatmul.bf16.gmra.mxu0 %v551
    %v5499 = vpop.f32.mrf.mxu0
    %v5500 = vadd.f32 0.0, %v5499
    %v5501 = vpop.f32.mrf.mxu0
    %5502 = vdwg.mxu0
    %v5503 = vadd.f32 %v5006, %v5409
    %v5504 = vadd.f32 %v5007, %v5422
    %v5505 = vadd.f32 %v5008, %v5435
    %v5506 = vadd.f32 %v5009, %v5448
    %v5507 = vadd.f32 %v5010, %v5461
    %v5508 = vadd.f32 %v5011, %v5474
    %v5509 = vadd.f32 %v5012, %v5487
    %v5510 = vadd.f32 %v5013, %v5500
    %s5511 = scalar_lea.vmem [#allocation7], 5120
    %v5512 = vld [vmem:[%s5511] sm:$0xff]
    %v5513 = vld [vmem:[%s5511 + $0x8] sm:$0xff]
    %v5514 = vld [vmem:[%s5511 + $0x10] sm:$0xff]
    %v5515 = vld [vmem:[%s5511 + $0x18] sm:$0xff]
    %v5516 = vld [vmem:[%s5511 + $0x20] sm:$0xff]
    %v5517 = vld [vmem:[%s5511 + $0x28] sm:$0xff]
    %v5518 = vld [vmem:[%s5511 + $0x30] sm:$0xff]
    %v5519 = vld [vmem:[%s5511 + $0x38] sm:$0xff]
    %v5520 = vld [vmem:[%s5511 + $0x40] sm:$0xff]
    %v5521 = vld [vmem:[%s5511 + $0x48] sm:$0xff]
    %v5522 = vld [vmem:[%s5511 + $0x50] sm:$0xff]
    %v5523 = vld [vmem:[%s5511 + $0x58] sm:$0xff]
    %v5524 = vld [vmem:[%s5511 + $0x60] sm:$0xff]
    %v5525 = vld [vmem:[%s5511 + $0x68] sm:$0xff]
    %v5526 = vld [vmem:[%s5511 + $0x70] sm:$0xff]
    %v5527 = vld [vmem:[%s5511 + $0x78] sm:$0xff]
    %v5528 = vld [vmem:[%s5511 + $0x80] sm:$0xff]
    %v5529 = vld [vmem:[%s5511 + $0x88] sm:$0xff]
    %v5530 = vld [vmem:[%s5511 + $0x90] sm:$0xff]
    %v5531 = vld [vmem:[%s5511 + $0x98] sm:$0xff]
    %v5532 = vld [vmem:[%s5511 + $0xa0] sm:$0xff]
    %v5533 = vld [vmem:[%s5511 + $0xa8] sm:$0xff]
    %v5534 = vld [vmem:[%s5511 + $0xb0] sm:$0xff]
    %v5535 = vld [vmem:[%s5511 + $0xb8] sm:$0xff]
    %v5536 = vld [vmem:[%s5511 + $0xc0] sm:$0xff]
    %v5537 = vld [vmem:[%s5511 + $0xc8] sm:$0xff]
    %v5538 = vld [vmem:[%s5511 + $0xd0] sm:$0xff]
    %v5539 = vld [vmem:[%s5511 + $0xd8] sm:$0xff]
    %v5540 = vld [vmem:[%s5511 + $0xe0] sm:$0xff]
    %v5541 = vld [vmem:[%s5511 + $0xe8] sm:$0xff]
    %v5542 = vld [vmem:[%s5511 + $0xf0] sm:$0xff]
    %v5543 = vld [vmem:[%s5511 + $0xf8] sm:$0xff]
    %v5544 = vld [vmem:[%s5511 + $0x100] sm:$0xff]
    %v5545 = vld [vmem:[%s5511 + $0x108] sm:$0xff]
    %v5546 = vld [vmem:[%s5511 + $0x110] sm:$0xff]
    %v5547 = vld [vmem:[%s5511 + $0x118] sm:$0xff]
    %v5548 = vld [vmem:[%s5511 + $0x120] sm:$0xff]
    %v5549 = vld [vmem:[%s5511 + $0x128] sm:$0xff]
    %v5550 = vld [vmem:[%s5511 + $0x130] sm:$0xff]
    %v5551 = vld [vmem:[%s5511 + $0x138] sm:$0xff]
    %v5552 = vld [vmem:[%s5511 + $0x140] sm:$0xff]
    %v5553 = vld [vmem:[%s5511 + $0x148] sm:$0xff]
    %v5554 = vld [vmem:[%s5511 + $0x150] sm:$0xff]
    %v5555 = vld [vmem:[%s5511 + $0x158] sm:$0xff]
    %v5556 = vld [vmem:[%s5511 + $0x160] sm:$0xff]
    %v5557 = vld [vmem:[%s5511 + $0x168] sm:$0xff]
    %v5558 = vld [vmem:[%s5511 + $0x170] sm:$0xff]
    %v5559 = vld [vmem:[%s5511 + $0x178] sm:$0xff]
    %v5560 = vld [vmem:[%s5511 + $0x180] sm:$0xff]
    %v5561 = vld [vmem:[%s5511 + $0x188] sm:$0xff]
    %v5562 = vld [vmem:[%s5511 + $0x190] sm:$0xff]
    %v5563 = vld [vmem:[%s5511 + $0x198] sm:$0xff]
    %v5564 = vld [vmem:[%s5511 + $0x1a0] sm:$0xff]
    %v5565 = vld [vmem:[%s5511 + $0x1a8] sm:$0xff]
    %v5566 = vld [vmem:[%s5511 + $0x1b0] sm:$0xff]
    %v5567 = vld [vmem:[%s5511 + $0x1b8] sm:$0xff]
    %v5568 = vld [vmem:[%s5511 + $0x1c0] sm:$0xff]
    %v5569 = vld [vmem:[%s5511 + $0x1c8] sm:$0xff]
    %v5570 = vld [vmem:[%s5511 + $0x1d0] sm:$0xff]
    %v5571 = vld [vmem:[%s5511 + $0x1d8] sm:$0xff]
    %v5572 = vld [vmem:[%s5511 + $0x1e0] sm:$0xff]
    %v5573 = vld [vmem:[%s5511 + $0x1e8] sm:$0xff]
    %v5574 = vld [vmem:[%s5511 + $0x1f0] sm:$0xff]
    %v5575 = vld [vmem:[%s5511 + $0x1f8] sm:$0xff]
    %v5640 = vunpack.c.l.b16 %v5512
    %v5641 = vunpack.c.h.b16 %v5512
    %v5642 = vunpack.c.l.b16 %v5513
    %v5643 = vunpack.c.h.b16 %v5513
    %v5644 = vunpack.c.l.b16 %v5514
    %v5645 = vunpack.c.h.b16 %v5514
    %v5646 = vunpack.c.l.b16 %v5515
    %v5647 = vunpack.c.h.b16 %v5515
    %v5648 = vunpack.c.l.b16 %v5516
    %v5649 = vunpack.c.h.b16 %v5516
    %v5650 = vunpack.c.l.b16 %v5517
    %v5651 = vunpack.c.h.b16 %v5517
    %v5652 = vunpack.c.l.b16 %v5518
    %v5653 = vunpack.c.h.b16 %v5518
    %v5654 = vunpack.c.l.b16 %v5519
    %v5655 = vunpack.c.h.b16 %v5519
    %v5656 = vunpack.c.l.b16 %v5520
    %v5657 = vunpack.c.h.b16 %v5520
    %v5658 = vunpack.c.l.b16 %v5521
    %v5659 = vunpack.c.h.b16 %v5521
    %v5660 = vunpack.c.l.b16 %v5522
    %v5661 = vunpack.c.h.b16 %v5522
    %v5662 = vunpack.c.l.b16 %v5523
    %v5663 = vunpack.c.h.b16 %v5523
    %v5664 = vunpack.c.l.b16 %v5524
    %v5665 = vunpack.c.h.b16 %v5524
    %v5666 = vunpack.c.l.b16 %v5525
    %v5667 = vunpack.c.h.b16 %v5525
    %v5668 = vunpack.c.l.b16 %v5526
    %v5669 = vunpack.c.h.b16 %v5526
    %v5670 = vunpack.c.l.b16 %v5527
    %v5671 = vunpack.c.h.b16 %v5527
    %v5672 = vunpack.c.l.b16 %v5528
    %v5673 = vunpack.c.h.b16 %v5528
    %v5674 = vunpack.c.l.b16 %v5529
    %v5675 = vunpack.c.h.b16 %v5529
    %v5676 = vunpack.c.l.b16 %v5530
    %v5677 = vunpack.c.h.b16 %v5530
    %v5678 = vunpack.c.l.b16 %v5531
    %v5679 = vunpack.c.h.b16 %v5531
    %v5680 = vunpack.c.l.b16 %v5532
    %v5681 = vunpack.c.h.b16 %v5532
    %v5682 = vunpack.c.l.b16 %v5533
    %v5683 = vunpack.c.h.b16 %v5533
    %v5684 = vunpack.c.l.b16 %v5534
    %v5685 = vunpack.c.h.b16 %v5534
    %v5686 = vunpack.c.l.b16 %v5535
    %v5687 = vunpack.c.h.b16 %v5535
    %v5688 = vunpack.c.l.b16 %v5536
    %v5689 = vunpack.c.h.b16 %v5536
    %v5690 = vunpack.c.l.b16 %v5537
    %v5691 = vunpack.c.h.b16 %v5537
    %v5692 = vunpack.c.l.b16 %v5538
    %v5693 = vunpack.c.h.b16 %v5538
    %v5694 = vunpack.c.l.b16 %v5539
    %v5695 = vunpack.c.h.b16 %v5539
    %v5696 = vunpack.c.l.b16 %v5540
    %v5697 = vunpack.c.h.b16 %v5540
    %v5698 = vunpack.c.l.b16 %v5541
    %v5699 = vunpack.c.h.b16 %v5541
    %v5700 = vunpack.c.l.b16 %v5542
    %v5701 = vunpack.c.h.b16 %v5542
    %v5702 = vunpack.c.l.b16 %v5543
    %v5703 = vunpack.c.h.b16 %v5543
    %v5704 = vunpack.c.l.b16 %v5544
    %v5705 = vunpack.c.h.b16 %v5544
    %v5706 = vunpack.c.l.b16 %v5545
    %v5707 = vunpack.c.h.b16 %v5545
    %v5708 = vunpack.c.l.b16 %v5546
    %v5709 = vunpack.c.h.b16 %v5546
    %v5710 = vunpack.c.l.b16 %v5547
    %v5711 = vunpack.c.h.b16 %v5547
    %v5712 = vunpack.c.l.b16 %v5548
    %v5713 = vunpack.c.h.b16 %v5548
    %v5714 = vunpack.c.l.b16 %v5549
    %v5715 = vunpack.c.h.b16 %v5549
    %v5716 = vunpack.c.l.b16 %v5550
    %v5717 = vunpack.c.h.b16 %v5550
    %v5718 = vunpack.c.l.b16 %v5551
    %v5719 = vunpack.c.h.b16 %v5551
    %v5720 = vunpack.c.l.b16 %v5552
    %v5721 = vunpack.c.h.b16 %v5552
    %v5722 = vunpack.c.l.b16 %v5553
    %v5723 = vunpack.c.h.b16 %v5553
    %v5724 = vunpack.c.l.b16 %v5554
    %v5725 = vunpack.c.h.b16 %v5554
    %v5726 = vunpack.c.l.b16 %v5555
    %v5727 = vunpack.c.h.b16 %v5555
    %v5728 = vunpack.c.l.b16 %v5556
    %v5729 = vunpack.c.h.b16 %v5556
    %v5730 = vunpack.c.l.b16 %v5557
    %v5731 = vunpack.c.h.b16 %v5557
    %v5732 = vunpack.c.l.b16 %v5558
    %v5733 = vunpack.c.h.b16 %v5558
    %v5734 = vunpack.c.l.b16 %v5559
    %v5735 = vunpack.c.h.b16 %v5559
    %v5736 = vunpack.c.l.b16 %v5560
    %v5737 = vunpack.c.h.b16 %v5560
    %v5738 = vunpack.c.l.b16 %v5561
    %v5739 = vunpack.c.h.b16 %v5561
    %v5740 = vunpack.c.l.b16 %v5562
    %v5741 = vunpack.c.h.b16 %v5562
    %v5742 = vunpack.c.l.b16 %v5563
    %v5743 = vunpack.c.h.b16 %v5563
    %v5744 = vunpack.c.l.b16 %v5564
    %v5745 = vunpack.c.h.b16 %v5564
    %v5746 = vunpack.c.l.b16 %v5565
    %v5747 = vunpack.c.h.b16 %v5565
    %v5748 = vunpack.c.l.b16 %v5566
    %v5749 = vunpack.c.h.b16 %v5566
    %v5750 = vunpack.c.l.b16 %v5567
    %v5751 = vunpack.c.h.b16 %v5567
    %v5752 = vunpack.c.l.b16 %v5568
    %v5753 = vunpack.c.h.b16 %v5568
    %v5754 = vunpack.c.l.b16 %v5569
    %v5755 = vunpack.c.h.b16 %v5569
    %v5756 = vunpack.c.l.b16 %v5570
    %v5757 = vunpack.c.h.b16 %v5570
    %v5758 = vunpack.c.l.b16 %v5571
    %v5759 = vunpack.c.h.b16 %v5571
    %v5760 = vunpack.c.l.b16 %v5572
    %v5761 = vunpack.c.h.b16 %v5572
    %v5762 = vunpack.c.l.b16 %v5573
    %v5763 = vunpack.c.h.b16 %v5573
    %v5764 = vunpack.c.l.b16 %v5574
    %v5765 = vunpack.c.h.b16 %v5574
    %v5766 = vunpack.c.l.b16 %v5575
    %v5767 = vunpack.c.h.b16 %v5575
    %v5768 = vpack.c.b16 %v5648, %v5640
    %v5769 = vpack.c.b16 %v5649, %v5641
    %v5770 = vpack.c.b16 %v5650, %v5642
    %v5771 = vpack.c.b16 %v5651, %v5643
    %v5772 = vpack.c.b16 %v5652, %v5644
    %v5773 = vpack.c.b16 %v5653, %v5645
    %v5774 = vpack.c.b16 %v5654, %v5646
    %v5775 = vpack.c.b16 %v5655, %v5647
    %v5776 = vpack.c.b16 %v5664, %v5656
    %v5777 = vpack.c.b16 %v5665, %v5657
    %v5778 = vpack.c.b16 %v5666, %v5658
    %v5779 = vpack.c.b16 %v5667, %v5659
    %v5780 = vpack.c.b16 %v5668, %v5660
    %v5781 = vpack.c.b16 %v5669, %v5661
    %v5782 = vpack.c.b16 %v5670, %v5662
    %v5783 = vpack.c.b16 %v5671, %v5663
    %v5784 = vpack.c.b16 %v5680, %v5672
    %v5785 = vpack.c.b16 %v5681, %v5673
    %v5786 = vpack.c.b16 %v5682, %v5674
    %v5787 = vpack.c.b16 %v5683, %v5675
    %v5788 = vpack.c.b16 %v5684, %v5676
    %v5789 = vpack.c.b16 %v5685, %v5677
    %v5790 = vpack.c.b16 %v5686, %v5678
    %v5791 = vpack.c.b16 %v5687, %v5679
    %v5792 = vpack.c.b16 %v5696, %v5688
    %v5793 = vpack.c.b16 %v5697, %v5689
    %v5794 = vpack.c.b16 %v5698, %v5690
    %v5795 = vpack.c.b16 %v5699, %v5691
    %v5796 = vpack.c.b16 %v5700, %v5692
    %v5797 = vpack.c.b16 %v5701, %v5693
    %v5798 = vpack.c.b16 %v5702, %v5694
    %v5799 = vpack.c.b16 %v5703, %v5695
    %v5800 = vpack.c.b16 %v5712, %v5704
    %v5801 = vpack.c.b16 %v5713, %v5705
    %v5802 = vpack.c.b16 %v5714, %v5706
    %v5803 = vpack.c.b16 %v5715, %v5707
    %v5804 = vpack.c.b16 %v5716, %v5708
    %v5805 = vpack.c.b16 %v5717, %v5709
    %v5806 = vpack.c.b16 %v5718, %v5710
    %v5807 = vpack.c.b16 %v5719, %v5711
    %v5808 = vpack.c.b16 %v5728, %v5720
    %v5809 = vpack.c.b16 %v5729, %v5721
    %v5810 = vpack.c.b16 %v5730, %v5722
    %v5811 = vpack.c.b16 %v5731, %v5723
    %v5812 = vpack.c.b16 %v5732, %v5724
    %v5813 = vpack.c.b16 %v5733, %v5725
    %v5814 = vpack.c.b16 %v5734, %v5726
    %v5815 = vpack.c.b16 %v5735, %v5727
    %v5816 = vpack.c.b16 %v5744, %v5736
    %v5817 = vpack.c.b16 %v5745, %v5737
    %v5818 = vpack.c.b16 %v5746, %v5738
    %v5819 = vpack.c.b16 %v5747, %v5739
    %v5820 = vpack.c.b16 %v5748, %v5740
    %v5821 = vpack.c.b16 %v5749, %v5741
    %v5822 = vpack.c.b16 %v5750, %v5742
    %v5823 = vpack.c.b16 %v5751, %v5743
    %v5824 = vpack.c.b16 %v5760, %v5752
    %v5825 = vpack.c.b16 %v5761, %v5753
    %v5826 = vpack.c.b16 %v5762, %v5754
    %v5827 = vpack.c.b16 %v5763, %v5755
    %v5828 = vpack.c.b16 %v5764, %v5756
    %v5829 = vpack.c.b16 %v5765, %v5757
    %v5830 = vpack.c.b16 %v5766, %v5758
    %v5831 = vpack.c.b16 %v5767, %v5759
    %5896 = vmatpush.bf16.msra.mxu0 %v5824
    %5897 = vmatpush.bf16.msra.mxu0 %v5816
    %5898 = vmatpush.bf16.msra.mxu0 %v5808
    %5899 = vmatpush.bf16.msra.mxu0 %v5800
    %5900 = vmatpush.bf16.msra.mxu0 %v5792
    %5901 = vmatpush.bf16.msra.mxu0 %v5784
    %5902 = vmatpush.bf16.msra.mxu0 %v5776
    %5903 = vmatpush.bf16.msra.mxu0 %v5768
    %5904 = vmatmul.bf16.gmra.mxu0 %v552
    %v5905 = vpop.f32.mrf.mxu0
    %v5906 = vadd.f32 0.0, %v5905
    %v5907 = vpop.f32.mrf.mxu0
    %5908 = vdwg.mxu0
    %5909 = vmatpush.bf16.msra.mxu0 %v5825
    %5910 = vmatpush.bf16.msra.mxu0 %v5817
    %5911 = vmatpush.bf16.msra.mxu0 %v5809
    %5912 = vmatpush.bf16.msra.mxu0 %v5801
    %5913 = vmatpush.bf16.msra.mxu0 %v5793
    %5914 = vmatpush.bf16.msra.mxu0 %v5785
    %5915 = vmatpush.bf16.msra.mxu0 %v5777
    %5916 = vmatpush.bf16.msra.mxu0 %v5769
    %5917 = vmatmul.bf16.gmra.mxu0 %v552
    %v5918 = vpop.f32.mrf.mxu0
    %v5919 = vadd.f32 0.0, %v5918
    %v5920 = vpop.f32.mrf.mxu0
    %5921 = vdwg.mxu0
    %5922 = vmatpush.bf16.msra.mxu0 %v5826
    %5923 = vmatpush.bf16.msra.mxu0 %v5818
    %5924 = vmatpush.bf16.msra.mxu0 %v5810
    %5925 = vmatpush.bf16.msra.mxu0 %v5802
    %5926 = vmatpush.bf16.msra.mxu0 %v5794
    %5927 = vmatpush.bf16.msra.mxu0 %v5786
    %5928 = vmatpush.bf16.msra.mxu0 %v5778
    %5929 = vmatpush.bf16.msra.mxu0 %v5770
    %5930 = vmatmul.bf16.gmra.mxu0 %v552
    %v5931 = vpop.f32.mrf.mxu0
    %v5932 = vadd.f32 0.0, %v5931
    %v5933 = vpop.f32.mrf.mxu0
    %5934 = vdwg.mxu0
    %5935 = vmatpush.bf16.msra.mxu0 %v5827
    %5936 = vmatpush.bf16.msra.mxu0 %v5819
    %5937 = vmatpush.bf16.msra.mxu0 %v5811
    %5938 = vmatpush.bf16.msra.mxu0 %v5803
    %5939 = vmatpush.bf16.msra.mxu0 %v5795
    %5940 = vmatpush.bf16.msra.mxu0 %v5787
    %5941 = vmatpush.bf16.msra.mxu0 %v5779
    %5942 = vmatpush.bf16.msra.mxu0 %v5771
    %5943 = vmatmul.bf16.gmra.mxu0 %v552
    %v5944 = vpop.f32.mrf.mxu0
    %v5945 = vadd.f32 0.0, %v5944
    %v5946 = vpop.f32.mrf.mxu0
    %5947 = vdwg.mxu0
    %5948 = vmatpush.bf16.msra.mxu0 %v5828
    %5949 = vmatpush.bf16.msra.mxu0 %v5820
    %5950 = vmatpush.bf16.msra.mxu0 %v5812
    %5951 = vmatpush.bf16.msra.mxu0 %v5804
    %5952 = vmatpush.bf16.msra.mxu0 %v5796
    %5953 = vmatpush.bf16.msra.mxu0 %v5788
    %5954 = vmatpush.bf16.msra.mxu0 %v5780
    %5955 = vmatpush.bf16.msra.mxu0 %v5772
    %5956 = vmatmul.bf16.gmra.mxu0 %v552
    %v5957 = vpop.f32.mrf.mxu0
    %v5958 = vadd.f32 0.0, %v5957
    %v5959 = vpop.f32.mrf.mxu0
    %5960 = vdwg.mxu0
    %5961 = vmatpush.bf16.msra.mxu0 %v5829
    %5962 = vmatpush.bf16.msra.mxu0 %v5821
    %5963 = vmatpush.bf16.msra.mxu0 %v5813
    %5964 = vmatpush.bf16.msra.mxu0 %v5805
    %5965 = vmatpush.bf16.msra.mxu0 %v5797
    %5966 = vmatpush.bf16.msra.mxu0 %v5789
    %5967 = vmatpush.bf16.msra.mxu0 %v5781
    %5968 = vmatpush.bf16.msra.mxu0 %v5773
    %5969 = vmatmul.bf16.gmra.mxu0 %v552
    %v5970 = vpop.f32.mrf.mxu0
    %v5971 = vadd.f32 0.0, %v5970
    %v5972 = vpop.f32.mrf.mxu0
    %5973 = vdwg.mxu0
    %5974 = vmatpush.bf16.msra.mxu0 %v5830
    %5975 = vmatpush.bf16.msra.mxu0 %v5822
    %5976 = vmatpush.bf16.msra.mxu0 %v5814
    %5977 = vmatpush.bf16.msra.mxu0 %v5806
    %5978 = vmatpush.bf16.msra.mxu0 %v5798
    %5979 = vmatpush.bf16.msra.mxu0 %v5790
    %5980 = vmatpush.bf16.msra.mxu0 %v5782
    %5981 = vmatpush.bf16.msra.mxu0 %v5774
    %5982 = vmatmul.bf16.gmra.mxu0 %v552
    %v5983 = vpop.f32.mrf.mxu0
    %v5984 = vadd.f32 0.0, %v5983
    %v5985 = vpop.f32.mrf.mxu0
    %5986 = vdwg.mxu0
    %5987 = vmatpush.bf16.msra.mxu0 %v5831
    %5988 = vmatpush.bf16.msra.mxu0 %v5823
    %5989 = vmatpush.bf16.msra.mxu0 %v5815
    %5990 = vmatpush.bf16.msra.mxu0 %v5807
    %5991 = vmatpush.bf16.msra.mxu0 %v5799
    %5992 = vmatpush.bf16.msra.mxu0 %v5791
    %5993 = vmatpush.bf16.msra.mxu0 %v5783
    %5994 = vmatpush.bf16.msra.mxu0 %v5775
    %5995 = vmatmul.bf16.gmra.mxu0 %v552
    %v5996 = vpop.f32.mrf.mxu0
    %v5997 = vadd.f32 0.0, %v5996
    %v5998 = vpop.f32.mrf.mxu0
    %5999 = vdwg.mxu0
    %v6000 = vadd.f32 %v5503, %v5906
    %v6001 = vadd.f32 %v5504, %v5919
    %v6002 = vadd.f32 %v5505, %v5932
    %v6003 = vadd.f32 %v5506, %v5945
    %v6004 = vadd.f32 %v5507, %v5958
    %v6005 = vadd.f32 %v5508, %v5971
    %v6006 = vadd.f32 %v5509, %v5984
    %v6007 = vadd.f32 %v5510, %v5997
    %s6008 = scalar_lea.vmem [#allocation7], 5632
    %v6009 = vld [vmem:[%s6008] sm:$0xff]
    %v6010 = vld [vmem:[%s6008 + $0x8] sm:$0xff]
    %v6011 = vld [vmem:[%s6008 + $0x10] sm:$0xff]
    %v6012 = vld [vmem:[%s6008 + $0x18] sm:$0xff]
    %v6013 = vld [vmem:[%s6008 + $0x20] sm:$0xff]
    %v6014 = vld [vmem:[%s6008 + $0x28] sm:$0xff]
    %v6015 = vld [vmem:[%s6008 + $0x30] sm:$0xff]
    %v6016 = vld [vmem:[%s6008 + $0x38] sm:$0xff]
    %v6017 = vld [vmem:[%s6008 + $0x40] sm:$0xff]
    %v6018 = vld [vmem:[%s6008 + $0x48] sm:$0xff]
    %v6019 = vld [vmem:[%s6008 + $0x50] sm:$0xff]
    %v6020 = vld [vmem:[%s6008 + $0x58] sm:$0xff]
    %v6021 = vld [vmem:[%s6008 + $0x60] sm:$0xff]
    %v6022 = vld [vmem:[%s6008 + $0x68] sm:$0xff]
    %v6023 = vld [vmem:[%s6008 + $0x70] sm:$0xff]
    %v6024 = vld [vmem:[%s6008 + $0x78] sm:$0xff]
    %v6025 = vld [vmem:[%s6008 + $0x80] sm:$0xff]
    %v6026 = vld [vmem:[%s6008 + $0x88] sm:$0xff]
    %v6027 = vld [vmem:[%s6008 + $0x90] sm:$0xff]
    %v6028 = vld [vmem:[%s6008 + $0x98] sm:$0xff]
    %v6029 = vld [vmem:[%s6008 + $0xa0] sm:$0xff]
    %v6030 = vld [vmem:[%s6008 + $0xa8] sm:$0xff]
    %v6031 = vld [vmem:[%s6008 + $0xb0] sm:$0xff]
    %v6032 = vld [vmem:[%s6008 + $0xb8] sm:$0xff]
    %v6033 = vld [vmem:[%s6008 + $0xc0] sm:$0xff]
    %v6034 = vld [vmem:[%s6008 + $0xc8] sm:$0xff]
    %v6035 = vld [vmem:[%s6008 + $0xd0] sm:$0xff]
    %v6036 = vld [vmem:[%s6008 + $0xd8] sm:$0xff]
    %v6037 = vld [vmem:[%s6008 + $0xe0] sm:$0xff]
    %v6038 = vld [vmem:[%s6008 + $0xe8] sm:$0xff]
    %v6039 = vld [vmem:[%s6008 + $0xf0] sm:$0xff]
    %v6040 = vld [vmem:[%s6008 + $0xf8] sm:$0xff]
    %v6041 = vld [vmem:[%s6008 + $0x100] sm:$0xff]
    %v6042 = vld [vmem:[%s6008 + $0x108] sm:$0xff]
    %v6043 = vld [vmem:[%s6008 + $0x110] sm:$0xff]
    %v6044 = vld [vmem:[%s6008 + $0x118] sm:$0xff]
    %v6045 = vld [vmem:[%s6008 + $0x120] sm:$0xff]
    %v6046 = vld [vmem:[%s6008 + $0x128] sm:$0xff]
    %v6047 = vld [vmem:[%s6008 + $0x130] sm:$0xff]
    %v6048 = vld [vmem:[%s6008 + $0x138] sm:$0xff]
    %v6049 = vld [vmem:[%s6008 + $0x140] sm:$0xff]
    %v6050 = vld [vmem:[%s6008 + $0x148] sm:$0xff]
    %v6051 = vld [vmem:[%s6008 + $0x150] sm:$0xff]
    %v6052 = vld [vmem:[%s6008 + $0x158] sm:$0xff]
    %v6053 = vld [vmem:[%s6008 + $0x160] sm:$0xff]
    %v6054 = vld [vmem:[%s6008 + $0x168] sm:$0xff]
    %v6055 = vld [vmem:[%s6008 + $0x170] sm:$0xff]
    %v6056 = vld [vmem:[%s6008 + $0x178] sm:$0xff]
    %v6057 = vld [vmem:[%s6008 + $0x180] sm:$0xff]
    %v6058 = vld [vmem:[%s6008 + $0x188] sm:$0xff]
    %v6059 = vld [vmem:[%s6008 + $0x190] sm:$0xff]
    %v6060 = vld [vmem:[%s6008 + $0x198] sm:$0xff]
    %v6061 = vld [vmem:[%s6008 + $0x1a0] sm:$0xff]
    %v6062 = vld [vmem:[%s6008 + $0x1a8] sm:$0xff]
    %v6063 = vld [vmem:[%s6008 + $0x1b0] sm:$0xff]
    %v6064 = vld [vmem:[%s6008 + $0x1b8] sm:$0xff]
    %v6065 = vld [vmem:[%s6008 + $0x1c0] sm:$0xff]
    %v6066 = vld [vmem:[%s6008 + $0x1c8] sm:$0xff]
    %v6067 = vld [vmem:[%s6008 + $0x1d0] sm:$0xff]
    %v6068 = vld [vmem:[%s6008 + $0x1d8] sm:$0xff]
    %v6069 = vld [vmem:[%s6008 + $0x1e0] sm:$0xff]
    %v6070 = vld [vmem:[%s6008 + $0x1e8] sm:$0xff]
    %v6071 = vld [vmem:[%s6008 + $0x1f0] sm:$0xff]
    %v6072 = vld [vmem:[%s6008 + $0x1f8] sm:$0xff]
    %v6137 = vunpack.c.l.b16 %v6009
    %v6138 = vunpack.c.h.b16 %v6009
    %v6139 = vunpack.c.l.b16 %v6010
    %v6140 = vunpack.c.h.b16 %v6010
    %v6141 = vunpack.c.l.b16 %v6011
    %v6142 = vunpack.c.h.b16 %v6011
    %v6143 = vunpack.c.l.b16 %v6012
    %v6144 = vunpack.c.h.b16 %v6012
    %v6145 = vunpack.c.l.b16 %v6013
    %v6146 = vunpack.c.h.b16 %v6013
    %v6147 = vunpack.c.l.b16 %v6014
    %v6148 = vunpack.c.h.b16 %v6014
    %v6149 = vunpack.c.l.b16 %v6015
    %v6150 = vunpack.c.h.b16 %v6015
    %v6151 = vunpack.c.l.b16 %v6016
    %v6152 = vunpack.c.h.b16 %v6016
    %v6153 = vunpack.c.l.b16 %v6017
    %v6154 = vunpack.c.h.b16 %v6017
    %v6155 = vunpack.c.l.b16 %v6018
    %v6156 = vunpack.c.h.b16 %v6018
    %v6157 = vunpack.c.l.b16 %v6019
    %v6158 = vunpack.c.h.b16 %v6019
    %v6159 = vunpack.c.l.b16 %v6020
    %v6160 = vunpack.c.h.b16 %v6020
    %v6161 = vunpack.c.l.b16 %v6021
    %v6162 = vunpack.c.h.b16 %v6021
    %v6163 = vunpack.c.l.b16 %v6022
    %v6164 = vunpack.c.h.b16 %v6022
    %v6165 = vunpack.c.l.b16 %v6023
    %v6166 = vunpack.c.h.b16 %v6023
    %v6167 = vunpack.c.l.b16 %v6024
    %v6168 = vunpack.c.h.b16 %v6024
    %v6169 = vunpack.c.l.b16 %v6025
    %v6170 = vunpack.c.h.b16 %v6025
    %v6171 = vunpack.c.l.b16 %v6026
    %v6172 = vunpack.c.h.b16 %v6026
    %v6173 = vunpack.c.l.b16 %v6027
    %v6174 = vunpack.c.h.b16 %v6027
    %v6175 = vunpack.c.l.b16 %v6028
    %v6176 = vunpack.c.h.b16 %v6028
    %v6177 = vunpack.c.l.b16 %v6029
    %v6178 = vunpack.c.h.b16 %v6029
    %v6179 = vunpack.c.l.b16 %v6030
    %v6180 = vunpack.c.h.b16 %v6030
    %v6181 = vunpack.c.l.b16 %v6031
    %v6182 = vunpack.c.h.b16 %v6031
    %v6183 = vunpack.c.l.b16 %v6032
    %v6184 = vunpack.c.h.b16 %v6032
    %v6185 = vunpack.c.l.b16 %v6033
    %v6186 = vunpack.c.h.b16 %v6033
    %v6187 = vunpack.c.l.b16 %v6034
    %v6188 = vunpack.c.h.b16 %v6034
    %v6189 = vunpack.c.l.b16 %v6035
    %v6190 = vunpack.c.h.b16 %v6035
    %v6191 = vunpack.c.l.b16 %v6036
    %v6192 = vunpack.c.h.b16 %v6036
    %v6193 = vunpack.c.l.b16 %v6037
    %v6194 = vunpack.c.h.b16 %v6037
    %v6195 = vunpack.c.l.b16 %v6038
    %v6196 = vunpack.c.h.b16 %v6038
    %v6197 = vunpack.c.l.b16 %v6039
    %v6198 = vunpack.c.h.b16 %v6039
    %v6199 = vunpack.c.l.b16 %v6040
    %v6200 = vunpack.c.h.b16 %v6040
    %v6201 = vunpack.c.l.b16 %v6041
    %v6202 = vunpack.c.h.b16 %v6041
    %v6203 = vunpack.c.l.b16 %v6042
    %v6204 = vunpack.c.h.b16 %v6042
    %v6205 = vunpack.c.l.b16 %v6043
    %v6206 = vunpack.c.h.b16 %v6043
    %v6207 = vunpack.c.l.b16 %v6044
    %v6208 = vunpack.c.h.b16 %v6044
    %v6209 = vunpack.c.l.b16 %v6045
    %v6210 = vunpack.c.h.b16 %v6045
    %v6211 = vunpack.c.l.b16 %v6046
    %v6212 = vunpack.c.h.b16 %v6046
    %v6213 = vunpack.c.l.b16 %v6047
    %v6214 = vunpack.c.h.b16 %v6047
    %v6215 = vunpack.c.l.b16 %v6048
    %v6216 = vunpack.c.h.b16 %v6048
    %v6217 = vunpack.c.l.b16 %v6049
    %v6218 = vunpack.c.h.b16 %v6049
    %v6219 = vunpack.c.l.b16 %v6050
    %v6220 = vunpack.c.h.b16 %v6050
    %v6221 = vunpack.c.l.b16 %v6051
    %v6222 = vunpack.c.h.b16 %v6051
    %v6223 = vunpack.c.l.b16 %v6052
    %v6224 = vunpack.c.h.b16 %v6052
    %v6225 = vunpack.c.l.b16 %v6053
    %v6226 = vunpack.c.h.b16 %v6053
    %v6227 = vunpack.c.l.b16 %v6054
    %v6228 = vunpack.c.h.b16 %v6054
    %v6229 = vunpack.c.l.b16 %v6055
    %v6230 = vunpack.c.h.b16 %v6055
    %v6231 = vunpack.c.l.b16 %v6056
    %v6232 = vunpack.c.h.b16 %v6056
    %v6233 = vunpack.c.l.b16 %v6057
    %v6234 = vunpack.c.h.b16 %v6057
    %v6235 = vunpack.c.l.b16 %v6058
    %v6236 = vunpack.c.h.b16 %v6058
    %v6237 = vunpack.c.l.b16 %v6059
    %v6238 = vunpack.c.h.b16 %v6059
    %v6239 = vunpack.c.l.b16 %v6060
    %v6240 = vunpack.c.h.b16 %v6060
    %v6241 = vunpack.c.l.b16 %v6061
    %v6242 = vunpack.c.h.b16 %v6061
    %v6243 = vunpack.c.l.b16 %v6062
    %v6244 = vunpack.c.h.b16 %v6062
    %v6245 = vunpack.c.l.b16 %v6063
    %v6246 = vunpack.c.h.b16 %v6063
    %v6247 = vunpack.c.l.b16 %v6064
    %v6248 = vunpack.c.h.b16 %v6064
    %v6249 = vunpack.c.l.b16 %v6065
    %v6250 = vunpack.c.h.b16 %v6065
    %v6251 = vunpack.c.l.b16 %v6066
    %v6252 = vunpack.c.h.b16 %v6066
    %v6253 = vunpack.c.l.b16 %v6067
    %v6254 = vunpack.c.h.b16 %v6067
    %v6255 = vunpack.c.l.b16 %v6068
    %v6256 = vunpack.c.h.b16 %v6068
    %v6257 = vunpack.c.l.b16 %v6069
    %v6258 = vunpack.c.h.b16 %v6069
    %v6259 = vunpack.c.l.b16 %v6070
    %v6260 = vunpack.c.h.b16 %v6070
    %v6261 = vunpack.c.l.b16 %v6071
    %v6262 = vunpack.c.h.b16 %v6071
    %v6263 = vunpack.c.l.b16 %v6072
    %v6264 = vunpack.c.h.b16 %v6072
    %v6265 = vpack.c.b16 %v6145, %v6137
    %v6266 = vpack.c.b16 %v6146, %v6138
    %v6267 = vpack.c.b16 %v6147, %v6139
    %v6268 = vpack.c.b16 %v6148, %v6140
    %v6269 = vpack.c.b16 %v6149, %v6141
    %v6270 = vpack.c.b16 %v6150, %v6142
    %v6271 = vpack.c.b16 %v6151, %v6143
    %v6272 = vpack.c.b16 %v6152, %v6144
    %v6273 = vpack.c.b16 %v6161, %v6153
    %v6274 = vpack.c.b16 %v6162, %v6154
    %v6275 = vpack.c.b16 %v6163, %v6155
    %v6276 = vpack.c.b16 %v6164, %v6156
    %v6277 = vpack.c.b16 %v6165, %v6157
    %v6278 = vpack.c.b16 %v6166, %v6158
    %v6279 = vpack.c.b16 %v6167, %v6159
    %v6280 = vpack.c.b16 %v6168, %v6160
    %v6281 = vpack.c.b16 %v6177, %v6169
    %v6282 = vpack.c.b16 %v6178, %v6170
    %v6283 = vpack.c.b16 %v6179, %v6171
    %v6284 = vpack.c.b16 %v6180, %v6172
    %v6285 = vpack.c.b16 %v6181, %v6173
    %v6286 = vpack.c.b16 %v6182, %v6174
    %v6287 = vpack.c.b16 %v6183, %v6175
    %v6288 = vpack.c.b16 %v6184, %v6176
    %v6289 = vpack.c.b16 %v6193, %v6185
    %v6290 = vpack.c.b16 %v6194, %v6186
    %v6291 = vpack.c.b16 %v6195, %v6187
    %v6292 = vpack.c.b16 %v6196, %v6188
    %v6293 = vpack.c.b16 %v6197, %v6189
    %v6294 = vpack.c.b16 %v6198, %v6190
    %v6295 = vpack.c.b16 %v6199, %v6191
    %v6296 = vpack.c.b16 %v6200, %v6192
    %v6297 = vpack.c.b16 %v6209, %v6201
    %v6298 = vpack.c.b16 %v6210, %v6202
    %v6299 = vpack.c.b16 %v6211, %v6203
    %v6300 = vpack.c.b16 %v6212, %v6204
    %v6301 = vpack.c.b16 %v6213, %v6205
    %v6302 = vpack.c.b16 %v6214, %v6206
    %v6303 = vpack.c.b16 %v6215, %v6207
    %v6304 = vpack.c.b16 %v6216, %v6208
    %v6305 = vpack.c.b16 %v6225, %v6217
    %v6306 = vpack.c.b16 %v6226, %v6218
    %v6307 = vpack.c.b16 %v6227, %v6219
    %v6308 = vpack.c.b16 %v6228, %v6220
    %v6309 = vpack.c.b16 %v6229, %v6221
    %v6310 = vpack.c.b16 %v6230, %v6222
    %v6311 = vpack.c.b16 %v6231, %v6223
    %v6312 = vpack.c.b16 %v6232, %v6224
    %v6313 = vpack.c.b16 %v6241, %v6233
    %v6314 = vpack.c.b16 %v6242, %v6234
    %v6315 = vpack.c.b16 %v6243, %v6235
    %v6316 = vpack.c.b16 %v6244, %v6236
    %v6317 = vpack.c.b16 %v6245, %v6237
    %v6318 = vpack.c.b16 %v6246, %v6238
    %v6319 = vpack.c.b16 %v6247, %v6239
    %v6320 = vpack.c.b16 %v6248, %v6240
    %v6321 = vpack.c.b16 %v6257, %v6249
    %v6322 = vpack.c.b16 %v6258, %v6250
    %v6323 = vpack.c.b16 %v6259, %v6251
    %v6324 = vpack.c.b16 %v6260, %v6252
    %v6325 = vpack.c.b16 %v6261, %v6253
    %v6326 = vpack.c.b16 %v6262, %v6254
    %v6327 = vpack.c.b16 %v6263, %v6255
    %v6328 = vpack.c.b16 %v6264, %v6256
    %6393 = vmatpush.bf16.msra.mxu0 %v6321
    %6394 = vmatpush.bf16.msra.mxu0 %v6313
    %6395 = vmatpush.bf16.msra.mxu0 %v6305
    %6396 = vmatpush.bf16.msra.mxu0 %v6297
    %6397 = vmatpush.bf16.msra.mxu0 %v6289
    %6398 = vmatpush.bf16.msra.mxu0 %v6281
    %6399 = vmatpush.bf16.msra.mxu0 %v6273
    %6400 = vmatpush.bf16.msra.mxu0 %v6265
    %6401 = vmatmul.bf16.gmra.mxu0 %v553
    %v6402 = vpop.f32.mrf.mxu0
    %v6403 = vadd.f32 0.0, %v6402
    %v6404 = vpop.f32.mrf.mxu0
    %6405 = vdwg.mxu0
    %6406 = vmatpush.bf16.msra.mxu0 %v6322
    %6407 = vmatpush.bf16.msra.mxu0 %v6314
    %6408 = vmatpush.bf16.msra.mxu0 %v6306
    %6409 = vmatpush.bf16.msra.mxu0 %v6298
    %6410 = vmatpush.bf16.msra.mxu0 %v6290
    %6411 = vmatpush.bf16.msra.mxu0 %v6282
    %6412 = vmatpush.bf16.msra.mxu0 %v6274
    %6413 = vmatpush.bf16.msra.mxu0 %v6266
    %6414 = vmatmul.bf16.gmra.mxu0 %v553
    %v6415 = vpop.f32.mrf.mxu0
    %v6416 = vadd.f32 0.0, %v6415
    %v6417 = vpop.f32.mrf.mxu0
    %6418 = vdwg.mxu0
    %6419 = vmatpush.bf16.msra.mxu0 %v6323
    %6420 = vmatpush.bf16.msra.mxu0 %v6315
    %6421 = vmatpush.bf16.msra.mxu0 %v6307
    %6422 = vmatpush.bf16.msra.mxu0 %v6299
    %6423 = vmatpush.bf16.msra.mxu0 %v6291
    %6424 = vmatpush.bf16.msra.mxu0 %v6283
    %6425 = vmatpush.bf16.msra.mxu0 %v6275
    %6426 = vmatpush.bf16.msra.mxu0 %v6267
    %6427 = vmatmul.bf16.gmra.mxu0 %v553
    %v6428 = vpop.f32.mrf.mxu0
    %v6429 = vadd.f32 0.0, %v6428
    %v6430 = vpop.f32.mrf.mxu0
    %6431 = vdwg.mxu0
    %6432 = vmatpush.bf16.msra.mxu0 %v6324
    %6433 = vmatpush.bf16.msra.mxu0 %v6316
    %6434 = vmatpush.bf16.msra.mxu0 %v6308
    %6435 = vmatpush.bf16.msra.mxu0 %v6300
    %6436 = vmatpush.bf16.msra.mxu0 %v6292
    %6437 = vmatpush.bf16.msra.mxu0 %v6284
    %6438 = vmatpush.bf16.msra.mxu0 %v6276
    %6439 = vmatpush.bf16.msra.mxu0 %v6268
    %6440 = vmatmul.bf16.gmra.mxu0 %v553
    %v6441 = vpop.f32.mrf.mxu0
    %v6442 = vadd.f32 0.0, %v6441
    %v6443 = vpop.f32.mrf.mxu0
    %6444 = vdwg.mxu0
    %6445 = vmatpush.bf16.msra.mxu0 %v6325
    %6446 = vmatpush.bf16.msra.mxu0 %v6317
    %6447 = vmatpush.bf16.msra.mxu0 %v6309
    %6448 = vmatpush.bf16.msra.mxu0 %v6301
    %6449 = vmatpush.bf16.msra.mxu0 %v6293
    %6450 = vmatpush.bf16.msra.mxu0 %v6285
    %6451 = vmatpush.bf16.msra.mxu0 %v6277
    %6452 = vmatpush.bf16.msra.mxu0 %v6269
    %6453 = vmatmul.bf16.gmra.mxu0 %v553
    %v6454 = vpop.f32.mrf.mxu0
    %v6455 = vadd.f32 0.0, %v6454
    %v6456 = vpop.f32.mrf.mxu0
    %6457 = vdwg.mxu0
    %6458 = vmatpush.bf16.msra.mxu0 %v6326
    %6459 = vmatpush.bf16.msra.mxu0 %v6318
    %6460 = vmatpush.bf16.msra.mxu0 %v6310
    %6461 = vmatpush.bf16.msra.mxu0 %v6302
    %6462 = vmatpush.bf16.msra.mxu0 %v6294
    %6463 = vmatpush.bf16.msra.mxu0 %v6286
    %6464 = vmatpush.bf16.msra.mxu0 %v6278
    %6465 = vmatpush.bf16.msra.mxu0 %v6270
    %6466 = vmatmul.bf16.gmra.mxu0 %v553
    %v6467 = vpop.f32.mrf.mxu0
    %v6468 = vadd.f32 0.0, %v6467
    %v6469 = vpop.f32.mrf.mxu0
    %6470 = vdwg.mxu0
    %6471 = vmatpush.bf16.msra.mxu0 %v6327
    %6472 = vmatpush.bf16.msra.mxu0 %v6319
    %6473 = vmatpush.bf16.msra.mxu0 %v6311
    %6474 = vmatpush.bf16.msra.mxu0 %v6303
    %6475 = vmatpush.bf16.msra.mxu0 %v6295
    %6476 = vmatpush.bf16.msra.mxu0 %v6287
    %6477 = vmatpush.bf16.msra.mxu0 %v6279
    %6478 = vmatpush.bf16.msra.mxu0 %v6271
    %6479 = vmatmul.bf16.gmra.mxu0 %v553
    %v6480 = vpop.f32.mrf.mxu0
    %v6481 = vadd.f32 0.0, %v6480
    %v6482 = vpop.f32.mrf.mxu0
    %6483 = vdwg.mxu0
    %6484 = vmatpush.bf16.msra.mxu0 %v6328
    %6485 = vmatpush.bf16.msra.mxu0 %v6320
    %6486 = vmatpush.bf16.msra.mxu0 %v6312
    %6487 = vmatpush.bf16.msra.mxu0 %v6304
    %6488 = vmatpush.bf16.msra.mxu0 %v6296
    %6489 = vmatpush.bf16.msra.mxu0 %v6288
    %6490 = vmatpush.bf16.msra.mxu0 %v6280
    %6491 = vmatpush.bf16.msra.mxu0 %v6272
    %6492 = vmatmul.bf16.gmra.mxu0 %v553
    %v6493 = vpop.f32.mrf.mxu0
    %v6494 = vadd.f32 0.0, %v6493
    %v6495 = vpop.f32.mrf.mxu0
    %6496 = vdwg.mxu0
    %v6497 = vadd.f32 %v6000, %v6403
    %v6498 = vadd.f32 %v6001, %v6416
    %v6499 = vadd.f32 %v6002, %v6429
    %v6500 = vadd.f32 %v6003, %v6442
    %v6501 = vadd.f32 %v6004, %v6455
    %v6502 = vadd.f32 %v6005, %v6468
    %v6503 = vadd.f32 %v6006, %v6481
    %v6504 = vadd.f32 %v6007, %v6494
    %s6505 = scalar_lea.vmem [#allocation7], 6144
    %v6506 = vld [vmem:[%s6505] sm:$0xff]
    %v6507 = vld [vmem:[%s6505 + $0x8] sm:$0xff]
    %v6508 = vld [vmem:[%s6505 + $0x10] sm:$0xff]
    %v6509 = vld [vmem:[%s6505 + $0x18] sm:$0xff]
    %v6510 = vld [vmem:[%s6505 + $0x20] sm:$0xff]
    %v6511 = vld [vmem:[%s6505 + $0x28] sm:$0xff]
    %v6512 = vld [vmem:[%s6505 + $0x30] sm:$0xff]
    %v6513 = vld [vmem:[%s6505 + $0x38] sm:$0xff]
    %v6514 = vld [vmem:[%s6505 + $0x40] sm:$0xff]
    %v6515 = vld [vmem:[%s6505 + $0x48] sm:$0xff]
    %v6516 = vld [vmem:[%s6505 + $0x50] sm:$0xff]
    %v6517 = vld [vmem:[%s6505 + $0x58] sm:$0xff]
    %v6518 = vld [vmem:[%s6505 + $0x60] sm:$0xff]
    %v6519 = vld [vmem:[%s6505 + $0x68] sm:$0xff]
    %v6520 = vld [vmem:[%s6505 + $0x70] sm:$0xff]
    %v6521 = vld [vmem:[%s6505 + $0x78] sm:$0xff]
    %v6522 = vld [vmem:[%s6505 + $0x80] sm:$0xff]
    %v6523 = vld [vmem:[%s6505 + $0x88] sm:$0xff]
    %v6524 = vld [vmem:[%s6505 + $0x90] sm:$0xff]
    %v6525 = vld [vmem:[%s6505 + $0x98] sm:$0xff]
    %v6526 = vld [vmem:[%s6505 + $0xa0] sm:$0xff]
    %v6527 = vld [vmem:[%s6505 + $0xa8] sm:$0xff]
    %v6528 = vld [vmem:[%s6505 + $0xb0] sm:$0xff]
    %v6529 = vld [vmem:[%s6505 + $0xb8] sm:$0xff]
    %v6530 = vld [vmem:[%s6505 + $0xc0] sm:$0xff]
    %v6531 = vld [vmem:[%s6505 + $0xc8] sm:$0xff]
    %v6532 = vld [vmem:[%s6505 + $0xd0] sm:$0xff]
    %v6533 = vld [vmem:[%s6505 + $0xd8] sm:$0xff]
    %v6534 = vld [vmem:[%s6505 + $0xe0] sm:$0xff]
    %v6535 = vld [vmem:[%s6505 + $0xe8] sm:$0xff]
    %v6536 = vld [vmem:[%s6505 + $0xf0] sm:$0xff]
    %v6537 = vld [vmem:[%s6505 + $0xf8] sm:$0xff]
    %v6538 = vld [vmem:[%s6505 + $0x100] sm:$0xff]
    %v6539 = vld [vmem:[%s6505 + $0x108] sm:$0xff]
    %v6540 = vld [vmem:[%s6505 + $0x110] sm:$0xff]
    %v6541 = vld [vmem:[%s6505 + $0x118] sm:$0xff]
    %v6542 = vld [vmem:[%s6505 + $0x120] sm:$0xff]
    %v6543 = vld [vmem:[%s6505 + $0x128] sm:$0xff]
    %v6544 = vld [vmem:[%s6505 + $0x130] sm:$0xff]
    %v6545 = vld [vmem:[%s6505 + $0x138] sm:$0xff]
    %v6546 = vld [vmem:[%s6505 + $0x140] sm:$0xff]
    %v6547 = vld [vmem:[%s6505 + $0x148] sm:$0xff]
    %v6548 = vld [vmem:[%s6505 + $0x150] sm:$0xff]
    %v6549 = vld [vmem:[%s6505 + $0x158] sm:$0xff]
    %v6550 = vld [vmem:[%s6505 + $0x160] sm:$0xff]
    %v6551 = vld [vmem:[%s6505 + $0x168] sm:$0xff]
    %v6552 = vld [vmem:[%s6505 + $0x170] sm:$0xff]
    %v6553 = vld [vmem:[%s6505 + $0x178] sm:$0xff]
    %v6554 = vld [vmem:[%s6505 + $0x180] sm:$0xff]
    %v6555 = vld [vmem:[%s6505 + $0x188] sm:$0xff]
    %v6556 = vld [vmem:[%s6505 + $0x190] sm:$0xff]
    %v6557 = vld [vmem:[%s6505 + $0x198] sm:$0xff]
    %v6558 = vld [vmem:[%s6505 + $0x1a0] sm:$0xff]
    %v6559 = vld [vmem:[%s6505 + $0x1a8] sm:$0xff]
    %v6560 = vld [vmem:[%s6505 + $0x1b0] sm:$0xff]
    %v6561 = vld [vmem:[%s6505 + $0x1b8] sm:$0xff]
    %v6562 = vld [vmem:[%s6505 + $0x1c0] sm:$0xff]
    %v6563 = vld [vmem:[%s6505 + $0x1c8] sm:$0xff]
    %v6564 = vld [vmem:[%s6505 + $0x1d0] sm:$0xff]
    %v6565 = vld [vmem:[%s6505 + $0x1d8] sm:$0xff]
    %v6566 = vld [vmem:[%s6505 + $0x1e0] sm:$0xff]
    %v6567 = vld [vmem:[%s6505 + $0x1e8] sm:$0xff]
    %v6568 = vld [vmem:[%s6505 + $0x1f0] sm:$0xff]
    %v6569 = vld [vmem:[%s6505 + $0x1f8] sm:$0xff]
    %v6634 = vunpack.c.l.b16 %v6506
    %v6635 = vunpack.c.h.b16 %v6506
    %v6636 = vunpack.c.l.b16 %v6507
    %v6637 = vunpack.c.h.b16 %v6507
    %v6638 = vunpack.c.l.b16 %v6508
    %v6639 = vunpack.c.h.b16 %v6508
    %v6640 = vunpack.c.l.b16 %v6509
    %v6641 = vunpack.c.h.b16 %v6509
    %v6642 = vunpack.c.l.b16 %v6510
    %v6643 = vunpack.c.h.b16 %v6510
    %v6644 = vunpack.c.l.b16 %v6511
    %v6645 = vunpack.c.h.b16 %v6511
    %v6646 = vunpack.c.l.b16 %v6512
    %v6647 = vunpack.c.h.b16 %v6512
    %v6648 = vunpack.c.l.b16 %v6513
    %v6649 = vunpack.c.h.b16 %v6513
    %v6650 = vunpack.c.l.b16 %v6514
    %v6651 = vunpack.c.h.b16 %v6514
    %v6652 = vunpack.c.l.b16 %v6515
    %v6653 = vunpack.c.h.b16 %v6515
    %v6654 = vunpack.c.l.b16 %v6516
    %v6655 = vunpack.c.h.b16 %v6516
    %v6656 = vunpack.c.l.b16 %v6517
    %v6657 = vunpack.c.h.b16 %v6517
    %v6658 = vunpack.c.l.b16 %v6518
    %v6659 = vunpack.c.h.b16 %v6518
    %v6660 = vunpack.c.l.b16 %v6519
    %v6661 = vunpack.c.h.b16 %v6519
    %v6662 = vunpack.c.l.b16 %v6520
    %v6663 = vunpack.c.h.b16 %v6520
    %v6664 = vunpack.c.l.b16 %v6521
    %v6665 = vunpack.c.h.b16 %v6521
    %v6666 = vunpack.c.l.b16 %v6522
    %v6667 = vunpack.c.h.b16 %v6522
    %v6668 = vunpack.c.l.b16 %v6523
    %v6669 = vunpack.c.h.b16 %v6523
    %v6670 = vunpack.c.l.b16 %v6524
    %v6671 = vunpack.c.h.b16 %v6524
    %v6672 = vunpack.c.l.b16 %v6525
    %v6673 = vunpack.c.h.b16 %v6525
    %v6674 = vunpack.c.l.b16 %v6526
    %v6675 = vunpack.c.h.b16 %v6526
    %v6676 = vunpack.c.l.b16 %v6527
    %v6677 = vunpack.c.h.b16 %v6527
    %v6678 = vunpack.c.l.b16 %v6528
    %v6679 = vunpack.c.h.b16 %v6528
    %v6680 = vunpack.c.l.b16 %v6529
    %v6681 = vunpack.c.h.b16 %v6529
    %v6682 = vunpack.c.l.b16 %v6530
    %v6683 = vunpack.c.h.b16 %v6530
    %v6684 = vunpack.c.l.b16 %v6531
    %v6685 = vunpack.c.h.b16 %v6531
    %v6686 = vunpack.c.l.b16 %v6532
    %v6687 = vunpack.c.h.b16 %v6532
    %v6688 = vunpack.c.l.b16 %v6533
    %v6689 = vunpack.c.h.b16 %v6533
    %v6690 = vunpack.c.l.b16 %v6534
    %v6691 = vunpack.c.h.b16 %v6534
    %v6692 = vunpack.c.l.b16 %v6535
    %v6693 = vunpack.c.h.b16 %v6535
    %v6694 = vunpack.c.l.b16 %v6536
    %v6695 = vunpack.c.h.b16 %v6536
    %v6696 = vunpack.c.l.b16 %v6537
    %v6697 = vunpack.c.h.b16 %v6537
    %v6698 = vunpack.c.l.b16 %v6538
    %v6699 = vunpack.c.h.b16 %v6538
    %v6700 = vunpack.c.l.b16 %v6539
    %v6701 = vunpack.c.h.b16 %v6539
    %v6702 = vunpack.c.l.b16 %v6540
    %v6703 = vunpack.c.h.b16 %v6540
    %v6704 = vunpack.c.l.b16 %v6541
    %v6705 = vunpack.c.h.b16 %v6541
    %v6706 = vunpack.c.l.b16 %v6542
    %v6707 = vunpack.c.h.b16 %v6542
    %v6708 = vunpack.c.l.b16 %v6543
    %v6709 = vunpack.c.h.b16 %v6543
    %v6710 = vunpack.c.l.b16 %v6544
    %v6711 = vunpack.c.h.b16 %v6544
    %v6712 = vunpack.c.l.b16 %v6545
    %v6713 = vunpack.c.h.b16 %v6545
    %v6714 = vunpack.c.l.b16 %v6546
    %v6715 = vunpack.c.h.b16 %v6546
    %v6716 = vunpack.c.l.b16 %v6547
    %v6717 = vunpack.c.h.b16 %v6547
    %v6718 = vunpack.c.l.b16 %v6548
    %v6719 = vunpack.c.h.b16 %v6548
    %v6720 = vunpack.c.l.b16 %v6549
    %v6721 = vunpack.c.h.b16 %v6549
    %v6722 = vunpack.c.l.b16 %v6550
    %v6723 = vunpack.c.h.b16 %v6550
    %v6724 = vunpack.c.l.b16 %v6551
    %v6725 = vunpack.c.h.b16 %v6551
    %v6726 = vunpack.c.l.b16 %v6552
    %v6727 = vunpack.c.h.b16 %v6552
    %v6728 = vunpack.c.l.b16 %v6553
    %v6729 = vunpack.c.h.b16 %v6553
    %v6730 = vunpack.c.l.b16 %v6554
    %v6731 = vunpack.c.h.b16 %v6554
    %v6732 = vunpack.c.l.b16 %v6555
    %v6733 = vunpack.c.h.b16 %v6555
    %v6734 = vunpack.c.l.b16 %v6556
    %v6735 = vunpack.c.h.b16 %v6556
    %v6736 = vunpack.c.l.b16 %v6557
    %v6737 = vunpack.c.h.b16 %v6557
    %v6738 = vunpack.c.l.b16 %v6558
    %v6739 = vunpack.c.h.b16 %v6558
    %v6740 = vunpack.c.l.b16 %v6559
    %v6741 = vunpack.c.h.b16 %v6559
    %v6742 = vunpack.c.l.b16 %v6560
    %v6743 = vunpack.c.h.b16 %v6560
    %v6744 = vunpack.c.l.b16 %v6561
    %v6745 = vunpack.c.h.b16 %v6561
    %v6746 = vunpack.c.l.b16 %v6562
    %v6747 = vunpack.c.h.b16 %v6562
    %v6748 = vunpack.c.l.b16 %v6563
    %v6749 = vunpack.c.h.b16 %v6563
    %v6750 = vunpack.c.l.b16 %v6564
    %v6751 = vunpack.c.h.b16 %v6564
    %v6752 = vunpack.c.l.b16 %v6565
    %v6753 = vunpack.c.h.b16 %v6565
    %v6754 = vunpack.c.l.b16 %v6566
    %v6755 = vunpack.c.h.b16 %v6566
    %v6756 = vunpack.c.l.b16 %v6567
    %v6757 = vunpack.c.h.b16 %v6567
    %v6758 = vunpack.c.l.b16 %v6568
    %v6759 = vunpack.c.h.b16 %v6568
    %v6760 = vunpack.c.l.b16 %v6569
    %v6761 = vunpack.c.h.b16 %v6569
    %v6762 = vpack.c.b16 %v6642, %v6634
    %v6763 = vpack.c.b16 %v6643, %v6635
    %v6764 = vpack.c.b16 %v6644, %v6636
    %v6765 = vpack.c.b16 %v6645, %v6637
    %v6766 = vpack.c.b16 %v6646, %v6638
    %v6767 = vpack.c.b16 %v6647, %v6639
    %v6768 = vpack.c.b16 %v6648, %v6640
    %v6769 = vpack.c.b16 %v6649, %v6641
    %v6770 = vpack.c.b16 %v6658, %v6650
    %v6771 = vpack.c.b16 %v6659, %v6651
    %v6772 = vpack.c.b16 %v6660, %v6652
    %v6773 = vpack.c.b16 %v6661, %v6653
    %v6774 = vpack.c.b16 %v6662, %v6654
    %v6775 = vpack.c.b16 %v6663, %v6655
    %v6776 = vpack.c.b16 %v6664, %v6656
    %v6777 = vpack.c.b16 %v6665, %v6657
    %v6778 = vpack.c.b16 %v6674, %v6666
    %v6779 = vpack.c.b16 %v6675, %v6667
    %v6780 = vpack.c.b16 %v6676, %v6668
    %v6781 = vpack.c.b16 %v6677, %v6669
    %v6782 = vpack.c.b16 %v6678, %v6670
    %v6783 = vpack.c.b16 %v6679, %v6671
    %v6784 = vpack.c.b16 %v6680, %v6672
    %v6785 = vpack.c.b16 %v6681, %v6673
    %v6786 = vpack.c.b16 %v6690, %v6682
    %v6787 = vpack.c.b16 %v6691, %v6683
    %v6788 = vpack.c.b16 %v6692, %v6684
    %v6789 = vpack.c.b16 %v6693, %v6685
    %v6790 = vpack.c.b16 %v6694, %v6686
    %v6791 = vpack.c.b16 %v6695, %v6687
    %v6792 = vpack.c.b16 %v6696, %v6688
    %v6793 = vpack.c.b16 %v6697, %v6689
    %v6794 = vpack.c.b16 %v6706, %v6698
    %v6795 = vpack.c.b16 %v6707, %v6699
    %v6796 = vpack.c.b16 %v6708, %v6700
    %v6797 = vpack.c.b16 %v6709, %v6701
    %v6798 = vpack.c.b16 %v6710, %v6702
    %v6799 = vpack.c.b16 %v6711, %v6703
    %v6800 = vpack.c.b16 %v6712, %v6704
    %v6801 = vpack.c.b16 %v6713, %v6705
    %v6802 = vpack.c.b16 %v6722, %v6714
    %v6803 = vpack.c.b16 %v6723, %v6715
    %v6804 = vpack.c.b16 %v6724, %v6716
    %v6805 = vpack.c.b16 %v6725, %v6717
    %v6806 = vpack.c.b16 %v6726, %v6718
    %v6807 = vpack.c.b16 %v6727, %v6719
    %v6808 = vpack.c.b16 %v6728, %v6720
    %v6809 = vpack.c.b16 %v6729, %v6721
    %v6810 = vpack.c.b16 %v6738, %v6730
    %v6811 = vpack.c.b16 %v6739, %v6731
    %v6812 = vpack.c.b16 %v6740, %v6732
    %v6813 = vpack.c.b16 %v6741, %v6733
    %v6814 = vpack.c.b16 %v6742, %v6734
    %v6815 = vpack.c.b16 %v6743, %v6735
    %v6816 = vpack.c.b16 %v6744, %v6736
    %v6817 = vpack.c.b16 %v6745, %v6737
    %v6818 = vpack.c.b16 %v6754, %v6746
    %v6819 = vpack.c.b16 %v6755, %v6747
    %v6820 = vpack.c.b16 %v6756, %v6748
    %v6821 = vpack.c.b16 %v6757, %v6749
    %v6822 = vpack.c.b16 %v6758, %v6750
    %v6823 = vpack.c.b16 %v6759, %v6751
    %v6824 = vpack.c.b16 %v6760, %v6752
    %v6825 = vpack.c.b16 %v6761, %v6753
    %6890 = vmatpush.bf16.msra.mxu0 %v6818
    %6891 = vmatpush.bf16.msra.mxu0 %v6810
    %6892 = vmatpush.bf16.msra.mxu0 %v6802
    %6893 = vmatpush.bf16.msra.mxu0 %v6794
    %6894 = vmatpush.bf16.msra.mxu0 %v6786
    %6895 = vmatpush.bf16.msra.mxu0 %v6778
    %6896 = vmatpush.bf16.msra.mxu0 %v6770
    %6897 = vmatpush.bf16.msra.mxu0 %v6762
    %6898 = vmatmul.bf16.gmra.mxu0 %v554
    %v6899 = vpop.f32.mrf.mxu0
    %v6900 = vadd.f32 0.0, %v6899
    %v6901 = vpop.f32.mrf.mxu0
    %6902 = vdwg.mxu0
    %6903 = vmatpush.bf16.msra.mxu0 %v6819
    %6904 = vmatpush.bf16.msra.mxu0 %v6811
    %6905 = vmatpush.bf16.msra.mxu0 %v6803
    %6906 = vmatpush.bf16.msra.mxu0 %v6795
    %6907 = vmatpush.bf16.msra.mxu0 %v6787
    %6908 = vmatpush.bf16.msra.mxu0 %v6779
    %6909 = vmatpush.bf16.msra.mxu0 %v6771
    %6910 = vmatpush.bf16.msra.mxu0 %v6763
    %6911 = vmatmul.bf16.gmra.mxu0 %v554
    %v6912 = vpop.f32.mrf.mxu0
    %v6913 = vadd.f32 0.0, %v6912
    %v6914 = vpop.f32.mrf.mxu0
    %6915 = vdwg.mxu0
    %6916 = vmatpush.bf16.msra.mxu0 %v6820
    %6917 = vmatpush.bf16.msra.mxu0 %v6812
    %6918 = vmatpush.bf16.msra.mxu0 %v6804
    %6919 = vmatpush.bf16.msra.mxu0 %v6796
    %6920 = vmatpush.bf16.msra.mxu0 %v6788
    %6921 = vmatpush.bf16.msra.mxu0 %v6780
    %6922 = vmatpush.bf16.msra.mxu0 %v6772
    %6923 = vmatpush.bf16.msra.mxu0 %v6764
    %6924 = vmatmul.bf16.gmra.mxu0 %v554
    %v6925 = vpop.f32.mrf.mxu0
    %v6926 = vadd.f32 0.0, %v6925
    %v6927 = vpop.f32.mrf.mxu0
    %6928 = vdwg.mxu0
    %6929 = vmatpush.bf16.msra.mxu0 %v6821
    %6930 = vmatpush.bf16.msra.mxu0 %v6813
    %6931 = vmatpush.bf16.msra.mxu0 %v6805
    %6932 = vmatpush.bf16.msra.mxu0 %v6797
    %6933 = vmatpush.bf16.msra.mxu0 %v6789
    %6934 = vmatpush.bf16.msra.mxu0 %v6781
    %6935 = vmatpush.bf16.msra.mxu0 %v6773
    %6936 = vmatpush.bf16.msra.mxu0 %v6765
    %6937 = vmatmul.bf16.gmra.mxu0 %v554
    %v6938 = vpop.f32.mrf.mxu0
    %v6939 = vadd.f32 0.0, %v6938
    %v6940 = vpop.f32.mrf.mxu0
    %6941 = vdwg.mxu0
    %6942 = vmatpush.bf16.msra.mxu0 %v6822
    %6943 = vmatpush.bf16.msra.mxu0 %v6814
    %6944 = vmatpush.bf16.msra.mxu0 %v6806
    %6945 = vmatpush.bf16.msra.mxu0 %v6798
    %6946 = vmatpush.bf16.msra.mxu0 %v6790
    %6947 = vmatpush.bf16.msra.mxu0 %v6782
    %6948 = vmatpush.bf16.msra.mxu0 %v6774
    %6949 = vmatpush.bf16.msra.mxu0 %v6766
    %6950 = vmatmul.bf16.gmra.mxu0 %v554
    %v6951 = vpop.f32.mrf.mxu0
    %v6952 = vadd.f32 0.0, %v6951
    %v6953 = vpop.f32.mrf.mxu0
    %6954 = vdwg.mxu0
    %6955 = vmatpush.bf16.msra.mxu0 %v6823
    %6956 = vmatpush.bf16.msra.mxu0 %v6815
    %6957 = vmatpush.bf16.msra.mxu0 %v6807
    %6958 = vmatpush.bf16.msra.mxu0 %v6799
    %6959 = vmatpush.bf16.msra.mxu0 %v6791
    %6960 = vmatpush.bf16.msra.mxu0 %v6783
    %6961 = vmatpush.bf16.msra.mxu0 %v6775
    %6962 = vmatpush.bf16.msra.mxu0 %v6767
    %6963 = vmatmul.bf16.gmra.mxu0 %v554
    %v6964 = vpop.f32.mrf.mxu0
    %v6965 = vadd.f32 0.0, %v6964
    %v6966 = vpop.f32.mrf.mxu0
    %6967 = vdwg.mxu0
    %6968 = vmatpush.bf16.msra.mxu0 %v6824
    %6969 = vmatpush.bf16.msra.mxu0 %v6816
    %6970 = vmatpush.bf16.msra.mxu0 %v6808
    %6971 = vmatpush.bf16.msra.mxu0 %v6800
    %6972 = vmatpush.bf16.msra.mxu0 %v6792
    %6973 = vmatpush.bf16.msra.mxu0 %v6784
    %6974 = vmatpush.bf16.msra.mxu0 %v6776
    %6975 = vmatpush.bf16.msra.mxu0 %v6768
    %6976 = vmatmul.bf16.gmra.mxu0 %v554
    %v6977 = vpop.f32.mrf.mxu0
    %v6978 = vadd.f32 0.0, %v6977
    %v6979 = vpop.f32.mrf.mxu0
    %6980 = vdwg.mxu0
    %6981 = vmatpush.bf16.msra.mxu0 %v6825
    %6982 = vmatpush.bf16.msra.mxu0 %v6817
    %6983 = vmatpush.bf16.msra.mxu0 %v6809
    %6984 = vmatpush.bf16.msra.mxu0 %v6801
    %6985 = vmatpush.bf16.msra.mxu0 %v6793
    %6986 = vmatpush.bf16.msra.mxu0 %v6785
    %6987 = vmatpush.bf16.msra.mxu0 %v6777
    %6988 = vmatpush.bf16.msra.mxu0 %v6769
    %6989 = vmatmul.bf16.gmra.mxu0 %v554
    %v6990 = vpop.f32.mrf.mxu0
    %v6991 = vadd.f32 0.0, %v6990
    %v6992 = vpop.f32.mrf.mxu0
    %6993 = vdwg.mxu0
    %v6994 = vadd.f32 %v6497, %v6900
    %v6995 = vadd.f32 %v6498, %v6913
    %v6996 = vadd.f32 %v6499, %v6926
    %v6997 = vadd.f32 %v6500, %v6939
    %v6998 = vadd.f32 %v6501, %v6952
    %v6999 = vadd.f32 %v6502, %v6965
    %v7000 = vadd.f32 %v6503, %v6978
    %v7001 = vadd.f32 %v6504, %v6991
    %s7002 = scalar_lea.vmem [#allocation7], 6656
    %v7003 = vld [vmem:[%s7002] sm:$0xff]
    %v7004 = vld [vmem:[%s7002 + $0x8] sm:$0xff]
    %v7005 = vld [vmem:[%s7002 + $0x10] sm:$0xff]
    %v7006 = vld [vmem:[%s7002 + $0x18] sm:$0xff]
    %v7007 = vld [vmem:[%s7002 + $0x20] sm:$0xff]
    %v7008 = vld [vmem:[%s7002 + $0x28] sm:$0xff]
    %v7009 = vld [vmem:[%s7002 + $0x30] sm:$0xff]
    %v7010 = vld [vmem:[%s7002 + $0x38] sm:$0xff]
    %v7011 = vld [vmem:[%s7002 + $0x40] sm:$0xff]
    %v7012 = vld [vmem:[%s7002 + $0x48] sm:$0xff]
    %v7013 = vld [vmem:[%s7002 + $0x50] sm:$0xff]
    %v7014 = vld [vmem:[%s7002 + $0x58] sm:$0xff]
    %v7015 = vld [vmem:[%s7002 + $0x60] sm:$0xff]
    %v7016 = vld [vmem:[%s7002 + $0x68] sm:$0xff]
    %v7017 = vld [vmem:[%s7002 + $0x70] sm:$0xff]
    %v7018 = vld [vmem:[%s7002 + $0x78] sm:$0xff]
    %v7019 = vld [vmem:[%s7002 + $0x80] sm:$0xff]
    %v7020 = vld [vmem:[%s7002 + $0x88] sm:$0xff]
    %v7021 = vld [vmem:[%s7002 + $0x90] sm:$0xff]
    %v7022 = vld [vmem:[%s7002 + $0x98] sm:$0xff]
    %v7023 = vld [vmem:[%s7002 + $0xa0] sm:$0xff]
    %v7024 = vld [vmem:[%s7002 + $0xa8] sm:$0xff]
    %v7025 = vld [vmem:[%s7002 + $0xb0] sm:$0xff]
    %v7026 = vld [vmem:[%s7002 + $0xb8] sm:$0xff]
    %v7027 = vld [vmem:[%s7002 + $0xc0] sm:$0xff]
    %v7028 = vld [vmem:[%s7002 + $0xc8] sm:$0xff]
    %v7029 = vld [vmem:[%s7002 + $0xd0] sm:$0xff]
    %v7030 = vld [vmem:[%s7002 + $0xd8] sm:$0xff]
    %v7031 = vld [vmem:[%s7002 + $0xe0] sm:$0xff]
    %v7032 = vld [vmem:[%s7002 + $0xe8] sm:$0xff]
    %v7033 = vld [vmem:[%s7002 + $0xf0] sm:$0xff]
    %v7034 = vld [vmem:[%s7002 + $0xf8] sm:$0xff]
    %v7035 = vld [vmem:[%s7002 + $0x100] sm:$0xff]
    %v7036 = vld [vmem:[%s7002 + $0x108] sm:$0xff]
    %v7037 = vld [vmem:[%s7002 + $0x110] sm:$0xff]
    %v7038 = vld [vmem:[%s7002 + $0x118] sm:$0xff]
    %v7039 = vld [vmem:[%s7002 + $0x120] sm:$0xff]
    %v7040 = vld [vmem:[%s7002 + $0x128] sm:$0xff]
    %v7041 = vld [vmem:[%s7002 + $0x130] sm:$0xff]
    %v7042 = vld [vmem:[%s7002 + $0x138] sm:$0xff]
    %v7043 = vld [vmem:[%s7002 + $0x140] sm:$0xff]
    %v7044 = vld [vmem:[%s7002 + $0x148] sm:$0xff]
    %v7045 = vld [vmem:[%s7002 + $0x150] sm:$0xff]
    %v7046 = vld [vmem:[%s7002 + $0x158] sm:$0xff]
    %v7047 = vld [vmem:[%s7002 + $0x160] sm:$0xff]
    %v7048 = vld [vmem:[%s7002 + $0x168] sm:$0xff]
    %v7049 = vld [vmem:[%s7002 + $0x170] sm:$0xff]
    %v7050 = vld [vmem:[%s7002 + $0x178] sm:$0xff]
    %v7051 = vld [vmem:[%s7002 + $0x180] sm:$0xff]
    %v7052 = vld [vmem:[%s7002 + $0x188] sm:$0xff]
    %v7053 = vld [vmem:[%s7002 + $0x190] sm:$0xff]
    %v7054 = vld [vmem:[%s7002 + $0x198] sm:$0xff]
    %v7055 = vld [vmem:[%s7002 + $0x1a0] sm:$0xff]
    %v7056 = vld [vmem:[%s7002 + $0x1a8] sm:$0xff]
    %v7057 = vld [vmem:[%s7002 + $0x1b0] sm:$0xff]
    %v7058 = vld [vmem:[%s7002 + $0x1b8] sm:$0xff]
    %v7059 = vld [vmem:[%s7002 + $0x1c0] sm:$0xff]
    %v7060 = vld [vmem:[%s7002 + $0x1c8] sm:$0xff]
    %v7061 = vld [vmem:[%s7002 + $0x1d0] sm:$0xff]
    %v7062 = vld [vmem:[%s7002 + $0x1d8] sm:$0xff]
    %v7063 = vld [vmem:[%s7002 + $0x1e0] sm:$0xff]
    %v7064 = vld [vmem:[%s7002 + $0x1e8] sm:$0xff]
    %v7065 = vld [vmem:[%s7002 + $0x1f0] sm:$0xff]
    %v7066 = vld [vmem:[%s7002 + $0x1f8] sm:$0xff]
    %v7131 = vunpack.c.l.b16 %v7003
    %v7132 = vunpack.c.h.b16 %v7003
    %v7133 = vunpack.c.l.b16 %v7004
    %v7134 = vunpack.c.h.b16 %v7004
    %v7135 = vunpack.c.l.b16 %v7005
    %v7136 = vunpack.c.h.b16 %v7005
    %v7137 = vunpack.c.l.b16 %v7006
    %v7138 = vunpack.c.h.b16 %v7006
    %v7139 = vunpack.c.l.b16 %v7007
    %v7140 = vunpack.c.h.b16 %v7007
    %v7141 = vunpack.c.l.b16 %v7008
    %v7142 = vunpack.c.h.b16 %v7008
    %v7143 = vunpack.c.l.b16 %v7009
    %v7144 = vunpack.c.h.b16 %v7009
    %v7145 = vunpack.c.l.b16 %v7010
    %v7146 = vunpack.c.h.b16 %v7010
    %v7147 = vunpack.c.l.b16 %v7011
    %v7148 = vunpack.c.h.b16 %v7011
    %v7149 = vunpack.c.l.b16 %v7012
    %v7150 = vunpack.c.h.b16 %v7012
    %v7151 = vunpack.c.l.b16 %v7013
    %v7152 = vunpack.c.h.b16 %v7013
    %v7153 = vunpack.c.l.b16 %v7014
    %v7154 = vunpack.c.h.b16 %v7014
    %v7155 = vunpack.c.l.b16 %v7015
    %v7156 = vunpack.c.h.b16 %v7015
    %v7157 = vunpack.c.l.b16 %v7016
    %v7158 = vunpack.c.h.b16 %v7016
    %v7159 = vunpack.c.l.b16 %v7017
    %v7160 = vunpack.c.h.b16 %v7017
    %v7161 = vunpack.c.l.b16 %v7018
    %v7162 = vunpack.c.h.b16 %v7018
    %v7163 = vunpack.c.l.b16 %v7019
    %v7164 = vunpack.c.h.b16 %v7019
    %v7165 = vunpack.c.l.b16 %v7020
    %v7166 = vunpack.c.h.b16 %v7020
    %v7167 = vunpack.c.l.b16 %v7021
    %v7168 = vunpack.c.h.b16 %v7021
    %v7169 = vunpack.c.l.b16 %v7022
    %v7170 = vunpack.c.h.b16 %v7022
    %v7171 = vunpack.c.l.b16 %v7023
    %v7172 = vunpack.c.h.b16 %v7023
    %v7173 = vunpack.c.l.b16 %v7024
    %v7174 = vunpack.c.h.b16 %v7024
    %v7175 = vunpack.c.l.b16 %v7025
    %v7176 = vunpack.c.h.b16 %v7025
    %v7177 = vunpack.c.l.b16 %v7026
    %v7178 = vunpack.c.h.b16 %v7026
    %v7179 = vunpack.c.l.b16 %v7027
    %v7180 = vunpack.c.h.b16 %v7027
    %v7181 = vunpack.c.l.b16 %v7028
    %v7182 = vunpack.c.h.b16 %v7028
    %v7183 = vunpack.c.l.b16 %v7029
    %v7184 = vunpack.c.h.b16 %v7029
    %v7185 = vunpack.c.l.b16 %v7030
    %v7186 = vunpack.c.h.b16 %v7030
    %v7187 = vunpack.c.l.b16 %v7031
    %v7188 = vunpack.c.h.b16 %v7031
    %v7189 = vunpack.c.l.b16 %v7032
    %v7190 = vunpack.c.h.b16 %v7032
    %v7191 = vunpack.c.l.b16 %v7033
    %v7192 = vunpack.c.h.b16 %v7033
    %v7193 = vunpack.c.l.b16 %v7034
    %v7194 = vunpack.c.h.b16 %v7034
    %v7195 = vunpack.c.l.b16 %v7035
    %v7196 = vunpack.c.h.b16 %v7035
    %v7197 = vunpack.c.l.b16 %v7036
    %v7198 = vunpack.c.h.b16 %v7036
    %v7199 = vunpack.c.l.b16 %v7037
    %v7200 = vunpack.c.h.b16 %v7037
    %v7201 = vunpack.c.l.b16 %v7038
    %v7202 = vunpack.c.h.b16 %v7038
    %v7203 = vunpack.c.l.b16 %v7039
    %v7204 = vunpack.c.h.b16 %v7039
    %v7205 = vunpack.c.l.b16 %v7040
    %v7206 = vunpack.c.h.b16 %v7040
    %v7207 = vunpack.c.l.b16 %v7041
    %v7208 = vunpack.c.h.b16 %v7041
    %v7209 = vunpack.c.l.b16 %v7042
    %v7210 = vunpack.c.h.b16 %v7042
    %v7211 = vunpack.c.l.b16 %v7043
    %v7212 = vunpack.c.h.b16 %v7043
    %v7213 = vunpack.c.l.b16 %v7044
    %v7214 = vunpack.c.h.b16 %v7044
    %v7215 = vunpack.c.l.b16 %v7045
    %v7216 = vunpack.c.h.b16 %v7045
    %v7217 = vunpack.c.l.b16 %v7046
    %v7218 = vunpack.c.h.b16 %v7046
    %v7219 = vunpack.c.l.b16 %v7047
    %v7220 = vunpack.c.h.b16 %v7047
    %v7221 = vunpack.c.l.b16 %v7048
    %v7222 = vunpack.c.h.b16 %v7048
    %v7223 = vunpack.c.l.b16 %v7049
    %v7224 = vunpack.c.h.b16 %v7049
    %v7225 = vunpack.c.l.b16 %v7050
    %v7226 = vunpack.c.h.b16 %v7050
    %v7227 = vunpack.c.l.b16 %v7051
    %v7228 = vunpack.c.h.b16 %v7051
    %v7229 = vunpack.c.l.b16 %v7052
    %v7230 = vunpack.c.h.b16 %v7052
    %v7231 = vunpack.c.l.b16 %v7053
    %v7232 = vunpack.c.h.b16 %v7053
    %v7233 = vunpack.c.l.b16 %v7054
    %v7234 = vunpack.c.h.b16 %v7054
    %v7235 = vunpack.c.l.b16 %v7055
    %v7236 = vunpack.c.h.b16 %v7055
    %v7237 = vunpack.c.l.b16 %v7056
    %v7238 = vunpack.c.h.b16 %v7056
    %v7239 = vunpack.c.l.b16 %v7057
    %v7240 = vunpack.c.h.b16 %v7057
    %v7241 = vunpack.c.l.b16 %v7058
    %v7242 = vunpack.c.h.b16 %v7058
    %v7243 = vunpack.c.l.b16 %v7059
    %v7244 = vunpack.c.h.b16 %v7059
    %v7245 = vunpack.c.l.b16 %v7060
    %v7246 = vunpack.c.h.b16 %v7060
    %v7247 = vunpack.c.l.b16 %v7061
    %v7248 = vunpack.c.h.b16 %v7061
    %v7249 = vunpack.c.l.b16 %v7062
    %v7250 = vunpack.c.h.b16 %v7062
    %v7251 = vunpack.c.l.b16 %v7063
    %v7252 = vunpack.c.h.b16 %v7063
    %v7253 = vunpack.c.l.b16 %v7064
    %v7254 = vunpack.c.h.b16 %v7064
    %v7255 = vunpack.c.l.b16 %v7065
    %v7256 = vunpack.c.h.b16 %v7065
    %v7257 = vunpack.c.l.b16 %v7066
    %v7258 = vunpack.c.h.b16 %v7066
    %v7259 = vpack.c.b16 %v7139, %v7131
    %v7260 = vpack.c.b16 %v7140, %v7132
    %v7261 = vpack.c.b16 %v7141, %v7133
    %v7262 = vpack.c.b16 %v7142, %v7134
    %v7263 = vpack.c.b16 %v7143, %v7135
    %v7264 = vpack.c.b16 %v7144, %v7136
    %v7265 = vpack.c.b16 %v7145, %v7137
    %v7266 = vpack.c.b16 %v7146, %v7138
    %v7267 = vpack.c.b16 %v7155, %v7147
    %v7268 = vpack.c.b16 %v7156, %v7148
    %v7269 = vpack.c.b16 %v7157, %v7149
    %v7270 = vpack.c.b16 %v7158, %v7150
    %v7271 = vpack.c.b16 %v7159, %v7151
    %v7272 = vpack.c.b16 %v7160, %v7152
    %v7273 = vpack.c.b16 %v7161, %v7153
    %v7274 = vpack.c.b16 %v7162, %v7154
    %v7275 = vpack.c.b16 %v7171, %v7163
    %v7276 = vpack.c.b16 %v7172, %v7164
    %v7277 = vpack.c.b16 %v7173, %v7165
    %v7278 = vpack.c.b16 %v7174, %v7166
    %v7279 = vpack.c.b16 %v7175, %v7167
    %v7280 = vpack.c.b16 %v7176, %v7168
    %v7281 = vpack.c.b16 %v7177, %v7169
    %v7282 = vpack.c.b16 %v7178, %v7170
    %v7283 = vpack.c.b16 %v7187, %v7179
    %v7284 = vpack.c.b16 %v7188, %v7180
    %v7285 = vpack.c.b16 %v7189, %v7181
    %v7286 = vpack.c.b16 %v7190, %v7182
    %v7287 = vpack.c.b16 %v7191, %v7183
    %v7288 = vpack.c.b16 %v7192, %v7184
    %v7289 = vpack.c.b16 %v7193, %v7185
    %v7290 = vpack.c.b16 %v7194, %v7186
    %v7291 = vpack.c.b16 %v7203, %v7195
    %v7292 = vpack.c.b16 %v7204, %v7196
    %v7293 = vpack.c.b16 %v7205, %v7197
    %v7294 = vpack.c.b16 %v7206, %v7198
    %v7295 = vpack.c.b16 %v7207, %v7199
    %v7296 = vpack.c.b16 %v7208, %v7200
    %v7297 = vpack.c.b16 %v7209, %v7201
    %v7298 = vpack.c.b16 %v7210, %v7202
    %v7299 = vpack.c.b16 %v7219, %v7211
    %v7300 = vpack.c.b16 %v7220, %v7212
    %v7301 = vpack.c.b16 %v7221, %v7213
    %v7302 = vpack.c.b16 %v7222, %v7214
    %v7303 = vpack.c.b16 %v7223, %v7215
    %v7304 = vpack.c.b16 %v7224, %v7216
    %v7305 = vpack.c.b16 %v7225, %v7217
    %v7306 = vpack.c.b16 %v7226, %v7218
    %v7307 = vpack.c.b16 %v7235, %v7227
    %v7308 = vpack.c.b16 %v7236, %v7228
    %v7309 = vpack.c.b16 %v7237, %v7229
    %v7310 = vpack.c.b16 %v7238, %v7230
    %v7311 = vpack.c.b16 %v7239, %v7231
    %v7312 = vpack.c.b16 %v7240, %v7232
    %v7313 = vpack.c.b16 %v7241, %v7233
    %v7314 = vpack.c.b16 %v7242, %v7234
    %v7315 = vpack.c.b16 %v7251, %v7243
    %v7316 = vpack.c.b16 %v7252, %v7244
    %v7317 = vpack.c.b16 %v7253, %v7245
    %v7318 = vpack.c.b16 %v7254, %v7246
    %v7319 = vpack.c.b16 %v7255, %v7247
    %v7320 = vpack.c.b16 %v7256, %v7248
    %v7321 = vpack.c.b16 %v7257, %v7249
    %v7322 = vpack.c.b16 %v7258, %v7250
    %7387 = vmatpush.bf16.msra.mxu0 %v7315
    %7388 = vmatpush.bf16.msra.mxu0 %v7307
    %7389 = vmatpush.bf16.msra.mxu0 %v7299
    %7390 = vmatpush.bf16.msra.mxu0 %v7291
    %7391 = vmatpush.bf16.msra.mxu0 %v7283
    %7392 = vmatpush.bf16.msra.mxu0 %v7275
    %7393 = vmatpush.bf16.msra.mxu0 %v7267
    %7394 = vmatpush.bf16.msra.mxu0 %v7259
    %7395 = vmatmul.bf16.gmra.mxu0 %v555
    %v7396 = vpop.f32.mrf.mxu0
    %v7397 = vadd.f32 0.0, %v7396
    %v7398 = vpop.f32.mrf.mxu0
    %7399 = vdwg.mxu0
    %7400 = vmatpush.bf16.msra.mxu0 %v7316
    %7401 = vmatpush.bf16.msra.mxu0 %v7308
    %7402 = vmatpush.bf16.msra.mxu0 %v7300
    %7403 = vmatpush.bf16.msra.mxu0 %v7292
    %7404 = vmatpush.bf16.msra.mxu0 %v7284
    %7405 = vmatpush.bf16.msra.mxu0 %v7276
    %7406 = vmatpush.bf16.msra.mxu0 %v7268
    %7407 = vmatpush.bf16.msra.mxu0 %v7260
    %7408 = vmatmul.bf16.gmra.mxu0 %v555
    %v7409 = vpop.f32.mrf.mxu0
    %v7410 = vadd.f32 0.0, %v7409
    %v7411 = vpop.f32.mrf.mxu0
    %7412 = vdwg.mxu0
    %7413 = vmatpush.bf16.msra.mxu0 %v7317
    %7414 = vmatpush.bf16.msra.mxu0 %v7309
    %7415 = vmatpush.bf16.msra.mxu0 %v7301
    %7416 = vmatpush.bf16.msra.mxu0 %v7293
    %7417 = vmatpush.bf16.msra.mxu0 %v7285
    %7418 = vmatpush.bf16.msra.mxu0 %v7277
    %7419 = vmatpush.bf16.msra.mxu0 %v7269
    %7420 = vmatpush.bf16.msra.mxu0 %v7261
    %7421 = vmatmul.bf16.gmra.mxu0 %v555
    %v7422 = vpop.f32.mrf.mxu0
    %v7423 = vadd.f32 0.0, %v7422
    %v7424 = vpop.f32.mrf.mxu0
    %7425 = vdwg.mxu0
    %7426 = vmatpush.bf16.msra.mxu0 %v7318
    %7427 = vmatpush.bf16.msra.mxu0 %v7310
    %7428 = vmatpush.bf16.msra.mxu0 %v7302
    %7429 = vmatpush.bf16.msra.mxu0 %v7294
    %7430 = vmatpush.bf16.msra.mxu0 %v7286
    %7431 = vmatpush.bf16.msra.mxu0 %v7278
    %7432 = vmatpush.bf16.msra.mxu0 %v7270
    %7433 = vmatpush.bf16.msra.mxu0 %v7262
    %7434 = vmatmul.bf16.gmra.mxu0 %v555
    %v7435 = vpop.f32.mrf.mxu0
    %v7436 = vadd.f32 0.0, %v7435
    %v7437 = vpop.f32.mrf.mxu0
    %7438 = vdwg.mxu0
    %7439 = vmatpush.bf16.msra.mxu0 %v7319
    %7440 = vmatpush.bf16.msra.mxu0 %v7311
    %7441 = vmatpush.bf16.msra.mxu0 %v7303
    %7442 = vmatpush.bf16.msra.mxu0 %v7295
    %7443 = vmatpush.bf16.msra.mxu0 %v7287
    %7444 = vmatpush.bf16.msra.mxu0 %v7279
    %7445 = vmatpush.bf16.msra.mxu0 %v7271
    %7446 = vmatpush.bf16.msra.mxu0 %v7263
    %7447 = vmatmul.bf16.gmra.mxu0 %v555
    %v7448 = vpop.f32.mrf.mxu0
    %v7449 = vadd.f32 0.0, %v7448
    %v7450 = vpop.f32.mrf.mxu0
    %7451 = vdwg.mxu0
    %7452 = vmatpush.bf16.msra.mxu0 %v7320
    %7453 = vmatpush.bf16.msra.mxu0 %v7312
    %7454 = vmatpush.bf16.msra.mxu0 %v7304
    %7455 = vmatpush.bf16.msra.mxu0 %v7296
    %7456 = vmatpush.bf16.msra.mxu0 %v7288
    %7457 = vmatpush.bf16.msra.mxu0 %v7280
    %7458 = vmatpush.bf16.msra.mxu0 %v7272
    %7459 = vmatpush.bf16.msra.mxu0 %v7264
    %7460 = vmatmul.bf16.gmra.mxu0 %v555
    %v7461 = vpop.f32.mrf.mxu0
    %v7462 = vadd.f32 0.0, %v7461
    %v7463 = vpop.f32.mrf.mxu0
    %7464 = vdwg.mxu0
    %7465 = vmatpush.bf16.msra.mxu0 %v7321
    %7466 = vmatpush.bf16.msra.mxu0 %v7313
    %7467 = vmatpush.bf16.msra.mxu0 %v7305
    %7468 = vmatpush.bf16.msra.mxu0 %v7297
    %7469 = vmatpush.bf16.msra.mxu0 %v7289
    %7470 = vmatpush.bf16.msra.mxu0 %v7281
    %7471 = vmatpush.bf16.msra.mxu0 %v7273
    %7472 = vmatpush.bf16.msra.mxu0 %v7265
    %7473 = vmatmul.bf16.gmra.mxu0 %v555
    %v7474 = vpop.f32.mrf.mxu0
    %v7475 = vadd.f32 0.0, %v7474
    %v7476 = vpop.f32.mrf.mxu0
    %7477 = vdwg.mxu0
    %7478 = vmatpush.bf16.msra.mxu0 %v7322
    %7479 = vmatpush.bf16.msra.mxu0 %v7314
    %7480 = vmatpush.bf16.msra.mxu0 %v7306
    %7481 = vmatpush.bf16.msra.mxu0 %v7298
    %7482 = vmatpush.bf16.msra.mxu0 %v7290
    %7483 = vmatpush.bf16.msra.mxu0 %v7282
    %7484 = vmatpush.bf16.msra.mxu0 %v7274
    %7485 = vmatpush.bf16.msra.mxu0 %v7266
    %7486 = vmatmul.bf16.gmra.mxu0 %v555
    %v7487 = vpop.f32.mrf.mxu0
    %v7488 = vadd.f32 0.0, %v7487
    %v7489 = vpop.f32.mrf.mxu0
    %7490 = vdwg.mxu0
    %v7491 = vadd.f32 %v6994, %v7397
    %v7492 = vadd.f32 %v6995, %v7410
    %v7493 = vadd.f32 %v6996, %v7423
    %v7494 = vadd.f32 %v6997, %v7436
    %v7495 = vadd.f32 %v6998, %v7449
    %v7496 = vadd.f32 %v6999, %v7462
    %v7497 = vadd.f32 %v7000, %v7475
    %v7498 = vadd.f32 %v7001, %v7488
    %s7499 = scalar_lea.vmem [#allocation7], 7168
    %v7500 = vld [vmem:[%s7499] sm:$0xff]
    %v7501 = vld [vmem:[%s7499 + $0x8] sm:$0xff]
    %v7502 = vld [vmem:[%s7499 + $0x10] sm:$0xff]
    %v7503 = vld [vmem:[%s7499 + $0x18] sm:$0xff]
    %v7504 = vld [vmem:[%s7499 + $0x20] sm:$0xff]
    %v7505 = vld [vmem:[%s7499 + $0x28] sm:$0xff]
    %v7506 = vld [vmem:[%s7499 + $0x30] sm:$0xff]
    %v7507 = vld [vmem:[%s7499 + $0x38] sm:$0xff]
    %v7508 = vld [vmem:[%s7499 + $0x40] sm:$0xff]
    %v7509 = vld [vmem:[%s7499 + $0x48] sm:$0xff]
    %v7510 = vld [vmem:[%s7499 + $0x50] sm:$0xff]
    %v7511 = vld [vmem:[%s7499 + $0x58] sm:$0xff]
    %v7512 = vld [vmem:[%s7499 + $0x60] sm:$0xff]
    %v7513 = vld [vmem:[%s7499 + $0x68] sm:$0xff]
    %v7514 = vld [vmem:[%s7499 + $0x70] sm:$0xff]
    %v7515 = vld [vmem:[%s7499 + $0x78] sm:$0xff]
    %v7516 = vld [vmem:[%s7499 + $0x80] sm:$0xff]
    %v7517 = vld [vmem:[%s7499 + $0x88] sm:$0xff]
    %v7518 = vld [vmem:[%s7499 + $0x90] sm:$0xff]
    %v7519 = vld [vmem:[%s7499 + $0x98] sm:$0xff]
    %v7520 = vld [vmem:[%s7499 + $0xa0] sm:$0xff]
    %v7521 = vld [vmem:[%s7499 + $0xa8] sm:$0xff]
    %v7522 = vld [vmem:[%s7499 + $0xb0] sm:$0xff]
    %v7523 = vld [vmem:[%s7499 + $0xb8] sm:$0xff]
    %v7524 = vld [vmem:[%s7499 + $0xc0] sm:$0xff]
    %v7525 = vld [vmem:[%s7499 + $0xc8] sm:$0xff]
    %v7526 = vld [vmem:[%s7499 + $0xd0] sm:$0xff]
    %v7527 = vld [vmem:[%s7499 + $0xd8] sm:$0xff]
    %v7528 = vld [vmem:[%s7499 + $0xe0] sm:$0xff]
    %v7529 = vld [vmem:[%s7499 + $0xe8] sm:$0xff]
    %v7530 = vld [vmem:[%s7499 + $0xf0] sm:$0xff]
    %v7531 = vld [vmem:[%s7499 + $0xf8] sm:$0xff]
    %v7532 = vld [vmem:[%s7499 + $0x100] sm:$0xff]
    %v7533 = vld [vmem:[%s7499 + $0x108] sm:$0xff]
    %v7534 = vld [vmem:[%s7499 + $0x110] sm:$0xff]
    %v7535 = vld [vmem:[%s7499 + $0x118] sm:$0xff]
    %v7536 = vld [vmem:[%s7499 + $0x120] sm:$0xff]
    %v7537 = vld [vmem:[%s7499 + $0x128] sm:$0xff]
    %v7538 = vld [vmem:[%s7499 + $0x130] sm:$0xff]
    %v7539 = vld [vmem:[%s7499 + $0x138] sm:$0xff]
    %v7540 = vld [vmem:[%s7499 + $0x140] sm:$0xff]
    %v7541 = vld [vmem:[%s7499 + $0x148] sm:$0xff]
    %v7542 = vld [vmem:[%s7499 + $0x150] sm:$0xff]
    %v7543 = vld [vmem:[%s7499 + $0x158] sm:$0xff]
    %v7544 = vld [vmem:[%s7499 + $0x160] sm:$0xff]
    %v7545 = vld [vmem:[%s7499 + $0x168] sm:$0xff]
    %v7546 = vld [vmem:[%s7499 + $0x170] sm:$0xff]
    %v7547 = vld [vmem:[%s7499 + $0x178] sm:$0xff]
    %v7548 = vld [vmem:[%s7499 + $0x180] sm:$0xff]
    %v7549 = vld [vmem:[%s7499 + $0x188] sm:$0xff]
    %v7550 = vld [vmem:[%s7499 + $0x190] sm:$0xff]
    %v7551 = vld [vmem:[%s7499 + $0x198] sm:$0xff]
    %v7552 = vld [vmem:[%s7499 + $0x1a0] sm:$0xff]
    %v7553 = vld [vmem:[%s7499 + $0x1a8] sm:$0xff]
    %v7554 = vld [vmem:[%s7499 + $0x1b0] sm:$0xff]
    %v7555 = vld [vmem:[%s7499 + $0x1b8] sm:$0xff]
    %v7556 = vld [vmem:[%s7499 + $0x1c0] sm:$0xff]
    %v7557 = vld [vmem:[%s7499 + $0x1c8] sm:$0xff]
    %v7558 = vld [vmem:[%s7499 + $0x1d0] sm:$0xff]
    %v7559 = vld [vmem:[%s7499 + $0x1d8] sm:$0xff]
    %v7560 = vld [vmem:[%s7499 + $0x1e0] sm:$0xff]
    %v7561 = vld [vmem:[%s7499 + $0x1e8] sm:$0xff]
    %v7562 = vld [vmem:[%s7499 + $0x1f0] sm:$0xff]
    %v7563 = vld [vmem:[%s7499 + $0x1f8] sm:$0xff]
    %v7628 = vunpack.c.l.b16 %v7500
    %v7629 = vunpack.c.h.b16 %v7500
    %v7630 = vunpack.c.l.b16 %v7501
    %v7631 = vunpack.c.h.b16 %v7501
    %v7632 = vunpack.c.l.b16 %v7502
    %v7633 = vunpack.c.h.b16 %v7502
    %v7634 = vunpack.c.l.b16 %v7503
    %v7635 = vunpack.c.h.b16 %v7503
    %v7636 = vunpack.c.l.b16 %v7504
    %v7637 = vunpack.c.h.b16 %v7504
    %v7638 = vunpack.c.l.b16 %v7505
    %v7639 = vunpack.c.h.b16 %v7505
    %v7640 = vunpack.c.l.b16 %v7506
    %v7641 = vunpack.c.h.b16 %v7506
    %v7642 = vunpack.c.l.b16 %v7507
    %v7643 = vunpack.c.h.b16 %v7507
    %v7644 = vunpack.c.l.b16 %v7508
    %v7645 = vunpack.c.h.b16 %v7508
    %v7646 = vunpack.c.l.b16 %v7509
    %v7647 = vunpack.c.h.b16 %v7509
    %v7648 = vunpack.c.l.b16 %v7510
    %v7649 = vunpack.c.h.b16 %v7510
    %v7650 = vunpack.c.l.b16 %v7511
    %v7651 = vunpack.c.h.b16 %v7511
    %v7652 = vunpack.c.l.b16 %v7512
    %v7653 = vunpack.c.h.b16 %v7512
    %v7654 = vunpack.c.l.b16 %v7513
    %v7655 = vunpack.c.h.b16 %v7513
    %v7656 = vunpack.c.l.b16 %v7514
    %v7657 = vunpack.c.h.b16 %v7514
    %v7658 = vunpack.c.l.b16 %v7515
    %v7659 = vunpack.c.h.b16 %v7515
    %v7660 = vunpack.c.l.b16 %v7516
    %v7661 = vunpack.c.h.b16 %v7516
    %v7662 = vunpack.c.l.b16 %v7517
    %v7663 = vunpack.c.h.b16 %v7517
    %v7664 = vunpack.c.l.b16 %v7518
    %v7665 = vunpack.c.h.b16 %v7518
    %v7666 = vunpack.c.l.b16 %v7519
    %v7667 = vunpack.c.h.b16 %v7519
    %v7668 = vunpack.c.l.b16 %v7520
    %v7669 = vunpack.c.h.b16 %v7520
    %v7670 = vunpack.c.l.b16 %v7521
    %v7671 = vunpack.c.h.b16 %v7521
    %v7672 = vunpack.c.l.b16 %v7522
    %v7673 = vunpack.c.h.b16 %v7522
    %v7674 = vunpack.c.l.b16 %v7523
    %v7675 = vunpack.c.h.b16 %v7523
    %v7676 = vunpack.c.l.b16 %v7524
    %v7677 = vunpack.c.h.b16 %v7524
    %v7678 = vunpack.c.l.b16 %v7525
    %v7679 = vunpack.c.h.b16 %v7525
    %v7680 = vunpack.c.l.b16 %v7526
    %v7681 = vunpack.c.h.b16 %v7526
    %v7682 = vunpack.c.l.b16 %v7527
    %v7683 = vunpack.c.h.b16 %v7527
    %v7684 = vunpack.c.l.b16 %v7528
    %v7685 = vunpack.c.h.b16 %v7528
    %v7686 = vunpack.c.l.b16 %v7529
    %v7687 = vunpack.c.h.b16 %v7529
    %v7688 = vunpack.c.l.b16 %v7530
    %v7689 = vunpack.c.h.b16 %v7530
    %v7690 = vunpack.c.l.b16 %v7531
    %v7691 = vunpack.c.h.b16 %v7531
    %v7692 = vunpack.c.l.b16 %v7532
    %v7693 = vunpack.c.h.b16 %v7532
    %v7694 = vunpack.c.l.b16 %v7533
    %v7695 = vunpack.c.h.b16 %v7533
    %v7696 = vunpack.c.l.b16 %v7534
    %v7697 = vunpack.c.h.b16 %v7534
    %v7698 = vunpack.c.l.b16 %v7535
    %v7699 = vunpack.c.h.b16 %v7535
    %v7700 = vunpack.c.l.b16 %v7536
    %v7701 = vunpack.c.h.b16 %v7536
    %v7702 = vunpack.c.l.b16 %v7537
    %v7703 = vunpack.c.h.b16 %v7537
    %v7704 = vunpack.c.l.b16 %v7538
    %v7705 = vunpack.c.h.b16 %v7538
    %v7706 = vunpack.c.l.b16 %v7539
    %v7707 = vunpack.c.h.b16 %v7539
    %v7708 = vunpack.c.l.b16 %v7540
    %v7709 = vunpack.c.h.b16 %v7540
    %v7710 = vunpack.c.l.b16 %v7541
    %v7711 = vunpack.c.h.b16 %v7541
    %v7712 = vunpack.c.l.b16 %v7542
    %v7713 = vunpack.c.h.b16 %v7542
    %v7714 = vunpack.c.l.b16 %v7543
    %v7715 = vunpack.c.h.b16 %v7543
    %v7716 = vunpack.c.l.b16 %v7544
    %v7717 = vunpack.c.h.b16 %v7544
    %v7718 = vunpack.c.l.b16 %v7545
    %v7719 = vunpack.c.h.b16 %v7545
    %v7720 = vunpack.c.l.b16 %v7546
    %v7721 = vunpack.c.h.b16 %v7546
    %v7722 = vunpack.c.l.b16 %v7547
    %v7723 = vunpack.c.h.b16 %v7547
    %v7724 = vunpack.c.l.b16 %v7548
    %v7725 = vunpack.c.h.b16 %v7548
    %v7726 = vunpack.c.l.b16 %v7549
    %v7727 = vunpack.c.h.b16 %v7549
    %v7728 = vunpack.c.l.b16 %v7550
    %v7729 = vunpack.c.h.b16 %v7550
    %v7730 = vunpack.c.l.b16 %v7551
    %v7731 = vunpack.c.h.b16 %v7551
    %v7732 = vunpack.c.l.b16 %v7552
    %v7733 = vunpack.c.h.b16 %v7552
    %v7734 = vunpack.c.l.b16 %v7553
    %v7735 = vunpack.c.h.b16 %v7553
    %v7736 = vunpack.c.l.b16 %v7554
    %v7737 = vunpack.c.h.b16 %v7554
    %v7738 = vunpack.c.l.b16 %v7555
    %v7739 = vunpack.c.h.b16 %v7555
    %v7740 = vunpack.c.l.b16 %v7556
    %v7741 = vunpack.c.h.b16 %v7556
    %v7742 = vunpack.c.l.b16 %v7557
    %v7743 = vunpack.c.h.b16 %v7557
    %v7744 = vunpack.c.l.b16 %v7558
    %v7745 = vunpack.c.h.b16 %v7558
    %v7746 = vunpack.c.l.b16 %v7559
    %v7747 = vunpack.c.h.b16 %v7559
    %v7748 = vunpack.c.l.b16 %v7560
    %v7749 = vunpack.c.h.b16 %v7560
    %v7750 = vunpack.c.l.b16 %v7561
    %v7751 = vunpack.c.h.b16 %v7561
    %v7752 = vunpack.c.l.b16 %v7562
    %v7753 = vunpack.c.h.b16 %v7562
    %v7754 = vunpack.c.l.b16 %v7563
    %v7755 = vunpack.c.h.b16 %v7563
    %v7756 = vpack.c.b16 %v7636, %v7628
    %v7757 = vpack.c.b16 %v7637, %v7629
    %v7758 = vpack.c.b16 %v7638, %v7630
    %v7759 = vpack.c.b16 %v7639, %v7631
    %v7760 = vpack.c.b16 %v7640, %v7632
    %v7761 = vpack.c.b16 %v7641, %v7633
    %v7762 = vpack.c.b16 %v7642, %v7634
    %v7763 = vpack.c.b16 %v7643, %v7635
    %v7764 = vpack.c.b16 %v7652, %v7644
    %v7765 = vpack.c.b16 %v7653, %v7645
    %v7766 = vpack.c.b16 %v7654, %v7646
    %v7767 = vpack.c.b16 %v7655, %v7647
    %v7768 = vpack.c.b16 %v7656, %v7648
    %v7769 = vpack.c.b16 %v7657, %v7649
    %v7770 = vpack.c.b16 %v7658, %v7650
    %v7771 = vpack.c.b16 %v7659, %v7651
    %v7772 = vpack.c.b16 %v7668, %v7660
    %v7773 = vpack.c.b16 %v7669, %v7661
    %v7774 = vpack.c.b16 %v7670, %v7662
    %v7775 = vpack.c.b16 %v7671, %v7663
    %v7776 = vpack.c.b16 %v7672, %v7664
    %v7777 = vpack.c.b16 %v7673, %v7665
    %v7778 = vpack.c.b16 %v7674, %v7666
    %v7779 = vpack.c.b16 %v7675, %v7667
    %v7780 = vpack.c.b16 %v7684, %v7676
    %v7781 = vpack.c.b16 %v7685, %v7677
    %v7782 = vpack.c.b16 %v7686, %v7678
    %v7783 = vpack.c.b16 %v7687, %v7679
    %v7784 = vpack.c.b16 %v7688, %v7680
    %v7785 = vpack.c.b16 %v7689, %v7681
    %v7786 = vpack.c.b16 %v7690, %v7682
    %v7787 = vpack.c.b16 %v7691, %v7683
    %v7788 = vpack.c.b16 %v7700, %v7692
    %v7789 = vpack.c.b16 %v7701, %v7693
    %v7790 = vpack.c.b16 %v7702, %v7694
    %v7791 = vpack.c.b16 %v7703, %v7695
    %v7792 = vpack.c.b16 %v7704, %v7696
    %v7793 = vpack.c.b16 %v7705, %v7697
    %v7794 = vpack.c.b16 %v7706, %v7698
    %v7795 = vpack.c.b16 %v7707, %v7699
    %v7796 = vpack.c.b16 %v7716, %v7708
    %v7797 = vpack.c.b16 %v7717, %v7709
    %v7798 = vpack.c.b16 %v7718, %v7710
    %v7799 = vpack.c.b16 %v7719, %v7711
    %v7800 = vpack.c.b16 %v7720, %v7712
    %v7801 = vpack.c.b16 %v7721, %v7713
    %v7802 = vpack.c.b16 %v7722, %v7714
    %v7803 = vpack.c.b16 %v7723, %v7715
    %v7804 = vpack.c.b16 %v7732, %v7724
    %v7805 = vpack.c.b16 %v7733, %v7725
    %v7806 = vpack.c.b16 %v7734, %v7726
    %v7807 = vpack.c.b16 %v7735, %v7727
    %v7808 = vpack.c.b16 %v7736, %v7728
    %v7809 = vpack.c.b16 %v7737, %v7729
    %v7810 = vpack.c.b16 %v7738, %v7730
    %v7811 = vpack.c.b16 %v7739, %v7731
    %v7812 = vpack.c.b16 %v7748, %v7740
    %v7813 = vpack.c.b16 %v7749, %v7741
    %v7814 = vpack.c.b16 %v7750, %v7742
    %v7815 = vpack.c.b16 %v7751, %v7743
    %v7816 = vpack.c.b16 %v7752, %v7744
    %v7817 = vpack.c.b16 %v7753, %v7745
    %v7818 = vpack.c.b16 %v7754, %v7746
    %v7819 = vpack.c.b16 %v7755, %v7747
    %7884 = vmatpush.bf16.msra.mxu0 %v7812
    %7885 = vmatpush.bf16.msra.mxu0 %v7804
    %7886 = vmatpush.bf16.msra.mxu0 %v7796
    %7887 = vmatpush.bf16.msra.mxu0 %v7788
    %7888 = vmatpush.bf16.msra.mxu0 %v7780
    %7889 = vmatpush.bf16.msra.mxu0 %v7772
    %7890 = vmatpush.bf16.msra.mxu0 %v7764
    %7891 = vmatpush.bf16.msra.mxu0 %v7756
    %7892 = vmatmul.bf16.gmra.mxu0 %v556
    %v7893 = vpop.f32.mrf.mxu0
    %v7894 = vadd.f32 0.0, %v7893
    %v7895 = vpop.f32.mrf.mxu0
    %7896 = vdwg.mxu0
    %7897 = vmatpush.bf16.msra.mxu0 %v7813
    %7898 = vmatpush.bf16.msra.mxu0 %v7805
    %7899 = vmatpush.bf16.msra.mxu0 %v7797
    %7900 = vmatpush.bf16.msra.mxu0 %v7789
    %7901 = vmatpush.bf16.msra.mxu0 %v7781
    %7902 = vmatpush.bf16.msra.mxu0 %v7773
    %7903 = vmatpush.bf16.msra.mxu0 %v7765
    %7904 = vmatpush.bf16.msra.mxu0 %v7757
    %7905 = vmatmul.bf16.gmra.mxu0 %v556
    %v7906 = vpop.f32.mrf.mxu0
    %v7907 = vadd.f32 0.0, %v7906
    %v7908 = vpop.f32.mrf.mxu0
    %7909 = vdwg.mxu0
    %7910 = vmatpush.bf16.msra.mxu0 %v7814
    %7911 = vmatpush.bf16.msra.mxu0 %v7806
    %7912 = vmatpush.bf16.msra.mxu0 %v7798
    %7913 = vmatpush.bf16.msra.mxu0 %v7790
    %7914 = vmatpush.bf16.msra.mxu0 %v7782
    %7915 = vmatpush.bf16.msra.mxu0 %v7774
    %7916 = vmatpush.bf16.msra.mxu0 %v7766
    %7917 = vmatpush.bf16.msra.mxu0 %v7758
    %7918 = vmatmul.bf16.gmra.mxu0 %v556
    %v7919 = vpop.f32.mrf.mxu0
    %v7920 = vadd.f32 0.0, %v7919
    %v7921 = vpop.f32.mrf.mxu0
    %7922 = vdwg.mxu0
    %7923 = vmatpush.bf16.msra.mxu0 %v7815
    %7924 = vmatpush.bf16.msra.mxu0 %v7807
    %7925 = vmatpush.bf16.msra.mxu0 %v7799
    %7926 = vmatpush.bf16.msra.mxu0 %v7791
    %7927 = vmatpush.bf16.msra.mxu0 %v7783
    %7928 = vmatpush.bf16.msra.mxu0 %v7775
    %7929 = vmatpush.bf16.msra.mxu0 %v7767
    %7930 = vmatpush.bf16.msra.mxu0 %v7759
    %7931 = vmatmul.bf16.gmra.mxu0 %v556
    %v7932 = vpop.f32.mrf.mxu0
    %v7933 = vadd.f32 0.0, %v7932
    %v7934 = vpop.f32.mrf.mxu0
    %7935 = vdwg.mxu0
    %7936 = vmatpush.bf16.msra.mxu0 %v7816
    %7937 = vmatpush.bf16.msra.mxu0 %v7808
    %7938 = vmatpush.bf16.msra.mxu0 %v7800
    %7939 = vmatpush.bf16.msra.mxu0 %v7792
    %7940 = vmatpush.bf16.msra.mxu0 %v7784
    %7941 = vmatpush.bf16.msra.mxu0 %v7776
    %7942 = vmatpush.bf16.msra.mxu0 %v7768
    %7943 = vmatpush.bf16.msra.mxu0 %v7760
    %7944 = vmatmul.bf16.gmra.mxu0 %v556
    %v7945 = vpop.f32.mrf.mxu0
    %v7946 = vadd.f32 0.0, %v7945
    %v7947 = vpop.f32.mrf.mxu0
    %7948 = vdwg.mxu0
    %7949 = vmatpush.bf16.msra.mxu0 %v7817
    %7950 = vmatpush.bf16.msra.mxu0 %v7809
    %7951 = vmatpush.bf16.msra.mxu0 %v7801
    %7952 = vmatpush.bf16.msra.mxu0 %v7793
    %7953 = vmatpush.bf16.msra.mxu0 %v7785
    %7954 = vmatpush.bf16.msra.mxu0 %v7777
    %7955 = vmatpush.bf16.msra.mxu0 %v7769
    %7956 = vmatpush.bf16.msra.mxu0 %v7761
    %7957 = vmatmul.bf16.gmra.mxu0 %v556
    %v7958 = vpop.f32.mrf.mxu0
    %v7959 = vadd.f32 0.0, %v7958
    %v7960 = vpop.f32.mrf.mxu0
    %7961 = vdwg.mxu0
    %7962 = vmatpush.bf16.msra.mxu0 %v7818
    %7963 = vmatpush.bf16.msra.mxu0 %v7810
    %7964 = vmatpush.bf16.msra.mxu0 %v7802
    %7965 = vmatpush.bf16.msra.mxu0 %v7794
    %7966 = vmatpush.bf16.msra.mxu0 %v7786
    %7967 = vmatpush.bf16.msra.mxu0 %v7778
    %7968 = vmatpush.bf16.msra.mxu0 %v7770
    %7969 = vmatpush.bf16.msra.mxu0 %v7762
    %7970 = vmatmul.bf16.gmra.mxu0 %v556
    %v7971 = vpop.f32.mrf.mxu0
    %v7972 = vadd.f32 0.0, %v7971
    %v7973 = vpop.f32.mrf.mxu0
    %7974 = vdwg.mxu0
    %7975 = vmatpush.bf16.msra.mxu0 %v7819
    %7976 = vmatpush.bf16.msra.mxu0 %v7811
    %7977 = vmatpush.bf16.msra.mxu0 %v7803
    %7978 = vmatpush.bf16.msra.mxu0 %v7795
    %7979 = vmatpush.bf16.msra.mxu0 %v7787
    %7980 = vmatpush.bf16.msra.mxu0 %v7779
    %7981 = vmatpush.bf16.msra.mxu0 %v7771
    %7982 = vmatpush.bf16.msra.mxu0 %v7763
    %7983 = vmatmul.bf16.gmra.mxu0 %v556
    %v7984 = vpop.f32.mrf.mxu0
    %v7985 = vadd.f32 0.0, %v7984
    %v7986 = vpop.f32.mrf.mxu0
    %7987 = vdwg.mxu0
    %v7988 = vadd.f32 %v7491, %v7894
    %v7989 = vadd.f32 %v7492, %v7907
    %v7990 = vadd.f32 %v7493, %v7920
    %v7991 = vadd.f32 %v7494, %v7933
    %v7992 = vadd.f32 %v7495, %v7946
    %v7993 = vadd.f32 %v7496, %v7959
    %v7994 = vadd.f32 %v7497, %v7972
    %v7995 = vadd.f32 %v7498, %v7985
    %s7996 = scalar_lea.vmem [#allocation7], 7680
    %v7997 = vld [vmem:[%s7996] sm:$0xff]
    %v7998 = vld [vmem:[%s7996 + $0x8] sm:$0xff]
    %v7999 = vld [vmem:[%s7996 + $0x10] sm:$0xff]
    %v8000 = vld [vmem:[%s7996 + $0x18] sm:$0xff]
    %v8001 = vld [vmem:[%s7996 + $0x20] sm:$0xff]
    %v8002 = vld [vmem:[%s7996 + $0x28] sm:$0xff]
    %v8003 = vld [vmem:[%s7996 + $0x30] sm:$0xff]
    %v8004 = vld [vmem:[%s7996 + $0x38] sm:$0xff]
    %v8005 = vld [vmem:[%s7996 + $0x40] sm:$0xff]
    %v8006 = vld [vmem:[%s7996 + $0x48] sm:$0xff]
    %v8007 = vld [vmem:[%s7996 + $0x50] sm:$0xff]
    %v8008 = vld [vmem:[%s7996 + $0x58] sm:$0xff]
    %v8009 = vld [vmem:[%s7996 + $0x60] sm:$0xff]
    %v8010 = vld [vmem:[%s7996 + $0x68] sm:$0xff]
    %v8011 = vld [vmem:[%s7996 + $0x70] sm:$0xff]
    %v8012 = vld [vmem:[%s7996 + $0x78] sm:$0xff]
    %v8013 = vld [vmem:[%s7996 + $0x80] sm:$0xff]
    %v8014 = vld [vmem:[%s7996 + $0x88] sm:$0xff]
    %v8015 = vld [vmem:[%s7996 + $0x90] sm:$0xff]
    %v8016 = vld [vmem:[%s7996 + $0x98] sm:$0xff]
    %v8017 = vld [vmem:[%s7996 + $0xa0] sm:$0xff]
    %v8018 = vld [vmem:[%s7996 + $0xa8] sm:$0xff]
    %v8019 = vld [vmem:[%s7996 + $0xb0] sm:$0xff]
    %v8020 = vld [vmem:[%s7996 + $0xb8] sm:$0xff]
    %v8021 = vld [vmem:[%s7996 + $0xc0] sm:$0xff]
    %v8022 = vld [vmem:[%s7996 + $0xc8] sm:$0xff]
    %v8023 = vld [vmem:[%s7996 + $0xd0] sm:$0xff]
    %v8024 = vld [vmem:[%s7996 + $0xd8] sm:$0xff]
    %v8025 = vld [vmem:[%s7996 + $0xe0] sm:$0xff]
    %v8026 = vld [vmem:[%s7996 + $0xe8] sm:$0xff]
    %v8027 = vld [vmem:[%s7996 + $0xf0] sm:$0xff]
    %v8028 = vld [vmem:[%s7996 + $0xf8] sm:$0xff]
    %v8029 = vld [vmem:[%s7996 + $0x100] sm:$0xff]
    %v8030 = vld [vmem:[%s7996 + $0x108] sm:$0xff]
    %v8031 = vld [vmem:[%s7996 + $0x110] sm:$0xff]
    %v8032 = vld [vmem:[%s7996 + $0x118] sm:$0xff]
    %v8033 = vld [vmem:[%s7996 + $0x120] sm:$0xff]
    %v8034 = vld [vmem:[%s7996 + $0x128] sm:$0xff]
    %v8035 = vld [vmem:[%s7996 + $0x130] sm:$0xff]
    %v8036 = vld [vmem:[%s7996 + $0x138] sm:$0xff]
    %v8037 = vld [vmem:[%s7996 + $0x140] sm:$0xff]
    %v8038 = vld [vmem:[%s7996 + $0x148] sm:$0xff]
    %v8039 = vld [vmem:[%s7996 + $0x150] sm:$0xff]
    %v8040 = vld [vmem:[%s7996 + $0x158] sm:$0xff]
    %v8041 = vld [vmem:[%s7996 + $0x160] sm:$0xff]
    %v8042 = vld [vmem:[%s7996 + $0x168] sm:$0xff]
    %v8043 = vld [vmem:[%s7996 + $0x170] sm:$0xff]
    %v8044 = vld [vmem:[%s7996 + $0x178] sm:$0xff]
    %v8045 = vld [vmem:[%s7996 + $0x180] sm:$0xff]
    %v8046 = vld [vmem:[%s7996 + $0x188] sm:$0xff]
    %v8047 = vld [vmem:[%s7996 + $0x190] sm:$0xff]
    %v8048 = vld [vmem:[%s7996 + $0x198] sm:$0xff]
    %v8049 = vld [vmem:[%s7996 + $0x1a0] sm:$0xff]
    %v8050 = vld [vmem:[%s7996 + $0x1a8] sm:$0xff]
    %v8051 = vld [vmem:[%s7996 + $0x1b0] sm:$0xff]
    %v8052 = vld [vmem:[%s7996 + $0x1b8] sm:$0xff]
    %v8053 = vld [vmem:[%s7996 + $0x1c0] sm:$0xff]
    %v8054 = vld [vmem:[%s7996 + $0x1c8] sm:$0xff]
    %v8055 = vld [vmem:[%s7996 + $0x1d0] sm:$0xff]
    %v8056 = vld [vmem:[%s7996 + $0x1d8] sm:$0xff]
    %v8057 = vld [vmem:[%s7996 + $0x1e0] sm:$0xff]
    %v8058 = vld [vmem:[%s7996 + $0x1e8] sm:$0xff]
    %v8059 = vld [vmem:[%s7996 + $0x1f0] sm:$0xff]
    %v8060 = vld [vmem:[%s7996 + $0x1f8] sm:$0xff]
    %v8125 = vunpack.c.l.b16 %v7997
    %v8126 = vunpack.c.h.b16 %v7997
    %v8127 = vunpack.c.l.b16 %v7998
    %v8128 = vunpack.c.h.b16 %v7998
    %v8129 = vunpack.c.l.b16 %v7999
    %v8130 = vunpack.c.h.b16 %v7999
    %v8131 = vunpack.c.l.b16 %v8000
    %v8132 = vunpack.c.h.b16 %v8000
    %v8133 = vunpack.c.l.b16 %v8001
    %v8134 = vunpack.c.h.b16 %v8001
    %v8135 = vunpack.c.l.b16 %v8002
    %v8136 = vunpack.c.h.b16 %v8002
    %v8137 = vunpack.c.l.b16 %v8003
    %v8138 = vunpack.c.h.b16 %v8003
    %v8139 = vunpack.c.l.b16 %v8004
    %v8140 = vunpack.c.h.b16 %v8004
    %v8141 = vunpack.c.l.b16 %v8005
    %v8142 = vunpack.c.h.b16 %v8005
    %v8143 = vunpack.c.l.b16 %v8006
    %v8144 = vunpack.c.h.b16 %v8006
    %v8145 = vunpack.c.l.b16 %v8007
    %v8146 = vunpack.c.h.b16 %v8007
    %v8147 = vunpack.c.l.b16 %v8008
    %v8148 = vunpack.c.h.b16 %v8008
    %v8149 = vunpack.c.l.b16 %v8009
    %v8150 = vunpack.c.h.b16 %v8009
    %v8151 = vunpack.c.l.b16 %v8010
    %v8152 = vunpack.c.h.b16 %v8010
    %v8153 = vunpack.c.l.b16 %v8011
    %v8154 = vunpack.c.h.b16 %v8011
    %v8155 = vunpack.c.l.b16 %v8012
    %v8156 = vunpack.c.h.b16 %v8012
    %v8157 = vunpack.c.l.b16 %v8013
    %v8158 = vunpack.c.h.b16 %v8013
    %v8159 = vunpack.c.l.b16 %v8014
    %v8160 = vunpack.c.h.b16 %v8014
    %v8161 = vunpack.c.l.b16 %v8015
    %v8162 = vunpack.c.h.b16 %v8015
    %v8163 = vunpack.c.l.b16 %v8016
    %v8164 = vunpack.c.h.b16 %v8016
    %v8165 = vunpack.c.l.b16 %v8017
    %v8166 = vunpack.c.h.b16 %v8017
    %v8167 = vunpack.c.l.b16 %v8018
    %v8168 = vunpack.c.h.b16 %v8018
    %v8169 = vunpack.c.l.b16 %v8019
    %v8170 = vunpack.c.h.b16 %v8019
    %v8171 = vunpack.c.l.b16 %v8020
    %v8172 = vunpack.c.h.b16 %v8020
    %v8173 = vunpack.c.l.b16 %v8021
    %v8174 = vunpack.c.h.b16 %v8021
    %v8175 = vunpack.c.l.b16 %v8022
    %v8176 = vunpack.c.h.b16 %v8022
    %v8177 = vunpack.c.l.b16 %v8023
    %v8178 = vunpack.c.h.b16 %v8023
    %v8179 = vunpack.c.l.b16 %v8024
    %v8180 = vunpack.c.h.b16 %v8024
    %v8181 = vunpack.c.l.b16 %v8025
    %v8182 = vunpack.c.h.b16 %v8025
    %v8183 = vunpack.c.l.b16 %v8026
    %v8184 = vunpack.c.h.b16 %v8026
    %v8185 = vunpack.c.l.b16 %v8027
    %v8186 = vunpack.c.h.b16 %v8027
    %v8187 = vunpack.c.l.b16 %v8028
    %v8188 = vunpack.c.h.b16 %v8028
    %v8189 = vunpack.c.l.b16 %v8029
    %v8190 = vunpack.c.h.b16 %v8029
    %v8191 = vunpack.c.l.b16 %v8030
    %v8192 = vunpack.c.h.b16 %v8030
    %v8193 = vunpack.c.l.b16 %v8031
    %v8194 = vunpack.c.h.b16 %v8031
    %v8195 = vunpack.c.l.b16 %v8032
    %v8196 = vunpack.c.h.b16 %v8032
    %v8197 = vunpack.c.l.b16 %v8033
    %v8198 = vunpack.c.h.b16 %v8033
    %v8199 = vunpack.c.l.b16 %v8034
    %v8200 = vunpack.c.h.b16 %v8034
    %v8201 = vunpack.c.l.b16 %v8035
    %v8202 = vunpack.c.h.b16 %v8035
    %v8203 = vunpack.c.l.b16 %v8036
    %v8204 = vunpack.c.h.b16 %v8036
    %v8205 = vunpack.c.l.b16 %v8037
    %v8206 = vunpack.c.h.b16 %v8037
    %v8207 = vunpack.c.l.b16 %v8038
    %v8208 = vunpack.c.h.b16 %v8038
    %v8209 = vunpack.c.l.b16 %v8039
    %v8210 = vunpack.c.h.b16 %v8039
    %v8211 = vunpack.c.l.b16 %v8040
    %v8212 = vunpack.c.h.b16 %v8040
    %v8213 = vunpack.c.l.b16 %v8041
    %v8214 = vunpack.c.h.b16 %v8041
    %v8215 = vunpack.c.l.b16 %v8042
    %v8216 = vunpack.c.h.b16 %v8042
    %v8217 = vunpack.c.l.b16 %v8043
    %v8218 = vunpack.c.h.b16 %v8043
    %v8219 = vunpack.c.l.b16 %v8044
    %v8220 = vunpack.c.h.b16 %v8044
    %v8221 = vunpack.c.l.b16 %v8045
    %v8222 = vunpack.c.h.b16 %v8045
    %v8223 = vunpack.c.l.b16 %v8046
    %v8224 = vunpack.c.h.b16 %v8046
    %v8225 = vunpack.c.l.b16 %v8047
    %v8226 = vunpack.c.h.b16 %v8047
    %v8227 = vunpack.c.l.b16 %v8048
    %v8228 = vunpack.c.h.b16 %v8048
    %v8229 = vunpack.c.l.b16 %v8049
    %v8230 = vunpack.c.h.b16 %v8049
    %v8231 = vunpack.c.l.b16 %v8050
    %v8232 = vunpack.c.h.b16 %v8050
    %v8233 = vunpack.c.l.b16 %v8051
    %v8234 = vunpack.c.h.b16 %v8051
    %v8235 = vunpack.c.l.b16 %v8052
    %v8236 = vunpack.c.h.b16 %v8052
    %v8237 = vunpack.c.l.b16 %v8053
    %v8238 = vunpack.c.h.b16 %v8053
    %v8239 = vunpack.c.l.b16 %v8054
    %v8240 = vunpack.c.h.b16 %v8054
    %v8241 = vunpack.c.l.b16 %v8055
    %v8242 = vunpack.c.h.b16 %v8055
    %v8243 = vunpack.c.l.b16 %v8056
    %v8244 = vunpack.c.h.b16 %v8056
    %v8245 = vunpack.c.l.b16 %v8057
    %v8246 = vunpack.c.h.b16 %v8057
    %v8247 = vunpack.c.l.b16 %v8058
    %v8248 = vunpack.c.h.b16 %v8058
    %v8249 = vunpack.c.l.b16 %v8059
    %v8250 = vunpack.c.h.b16 %v8059
    %v8251 = vunpack.c.l.b16 %v8060
    %v8252 = vunpack.c.h.b16 %v8060
    %v8253 = vpack.c.b16 %v8133, %v8125
    %v8254 = vpack.c.b16 %v8134, %v8126
    %v8255 = vpack.c.b16 %v8135, %v8127
    %v8256 = vpack.c.b16 %v8136, %v8128
    %v8257 = vpack.c.b16 %v8137, %v8129
    %v8258 = vpack.c.b16 %v8138, %v8130
    %v8259 = vpack.c.b16 %v8139, %v8131
    %v8260 = vpack.c.b16 %v8140, %v8132
    %v8261 = vpack.c.b16 %v8149, %v8141
    %v8262 = vpack.c.b16 %v8150, %v8142
    %v8263 = vpack.c.b16 %v8151, %v8143
    %v8264 = vpack.c.b16 %v8152, %v8144
    %v8265 = vpack.c.b16 %v8153, %v8145
    %v8266 = vpack.c.b16 %v8154, %v8146
    %v8267 = vpack.c.b16 %v8155, %v8147
    %v8268 = vpack.c.b16 %v8156, %v8148
    %v8269 = vpack.c.b16 %v8165, %v8157
    %v8270 = vpack.c.b16 %v8166, %v8158
    %v8271 = vpack.c.b16 %v8167, %v8159
    %v8272 = vpack.c.b16 %v8168, %v8160
    %v8273 = vpack.c.b16 %v8169, %v8161
    %v8274 = vpack.c.b16 %v8170, %v8162
    %v8275 = vpack.c.b16 %v8171, %v8163
    %v8276 = vpack.c.b16 %v8172, %v8164
    %v8277 = vpack.c.b16 %v8181, %v8173
    %v8278 = vpack.c.b16 %v8182, %v8174
    %v8279 = vpack.c.b16 %v8183, %v8175
    %v8280 = vpack.c.b16 %v8184, %v8176
    %v8281 = vpack.c.b16 %v8185, %v8177
    %v8282 = vpack.c.b16 %v8186, %v8178
    %v8283 = vpack.c.b16 %v8187, %v8179
    %v8284 = vpack.c.b16 %v8188, %v8180
    %v8285 = vpack.c.b16 %v8197, %v8189
    %v8286 = vpack.c.b16 %v8198, %v8190
    %v8287 = vpack.c.b16 %v8199, %v8191
    %v8288 = vpack.c.b16 %v8200, %v8192
    %v8289 = vpack.c.b16 %v8201, %v8193
    %v8290 = vpack.c.b16 %v8202, %v8194
    %v8291 = vpack.c.b16 %v8203, %v8195
    %v8292 = vpack.c.b16 %v8204, %v8196
    %v8293 = vpack.c.b16 %v8213, %v8205
    %v8294 = vpack.c.b16 %v8214, %v8206
    %v8295 = vpack.c.b16 %v8215, %v8207
    %v8296 = vpack.c.b16 %v8216, %v8208
    %v8297 = vpack.c.b16 %v8217, %v8209
    %v8298 = vpack.c.b16 %v8218, %v8210
    %v8299 = vpack.c.b16 %v8219, %v8211
    %v8300 = vpack.c.b16 %v8220, %v8212
    %v8301 = vpack.c.b16 %v8229, %v8221
    %v8302 = vpack.c.b16 %v8230, %v8222
    %v8303 = vpack.c.b16 %v8231, %v8223
    %v8304 = vpack.c.b16 %v8232, %v8224
    %v8305 = vpack.c.b16 %v8233, %v8225
    %v8306 = vpack.c.b16 %v8234, %v8226
    %v8307 = vpack.c.b16 %v8235, %v8227
    %v8308 = vpack.c.b16 %v8236, %v8228
    %v8309 = vpack.c.b16 %v8245, %v8237
    %v8310 = vpack.c.b16 %v8246, %v8238
    %v8311 = vpack.c.b16 %v8247, %v8239
    %v8312 = vpack.c.b16 %v8248, %v8240
    %v8313 = vpack.c.b16 %v8249, %v8241
    %v8314 = vpack.c.b16 %v8250, %v8242
    %v8315 = vpack.c.b16 %v8251, %v8243
    %v8316 = vpack.c.b16 %v8252, %v8244
    %8381 = vmatpush.bf16.msra.mxu0 %v8309
    %8382 = vmatpush.bf16.msra.mxu0 %v8301
    %8383 = vmatpush.bf16.msra.mxu0 %v8293
    %8384 = vmatpush.bf16.msra.mxu0 %v8285
    %8385 = vmatpush.bf16.msra.mxu0 %v8277
    %8386 = vmatpush.bf16.msra.mxu0 %v8269
    %8387 = vmatpush.bf16.msra.mxu0 %v8261
    %8388 = vmatpush.bf16.msra.mxu0 %v8253
    %8389 = vmatmul.bf16.gmra.mxu0 %v557
    %v8390 = vpop.f32.mrf.mxu0
    %v8391 = vadd.f32 0.0, %v8390
    %v8392 = vpop.f32.mrf.mxu0
    %8393 = vdwg.mxu0
    %8394 = vmatpush.bf16.msra.mxu0 %v8310
    %8395 = vmatpush.bf16.msra.mxu0 %v8302
    %8396 = vmatpush.bf16.msra.mxu0 %v8294
    %8397 = vmatpush.bf16.msra.mxu0 %v8286
    %8398 = vmatpush.bf16.msra.mxu0 %v8278
    %8399 = vmatpush.bf16.msra.mxu0 %v8270
    %8400 = vmatpush.bf16.msra.mxu0 %v8262
    %8401 = vmatpush.bf16.msra.mxu0 %v8254
    %8402 = vmatmul.bf16.gmra.mxu0 %v557
    %v8403 = vpop.f32.mrf.mxu0
    %v8404 = vadd.f32 0.0, %v8403
    %v8405 = vpop.f32.mrf.mxu0
    %8406 = vdwg.mxu0
    %8407 = vmatpush.bf16.msra.mxu0 %v8311
    %8408 = vmatpush.bf16.msra.mxu0 %v8303
    %8409 = vmatpush.bf16.msra.mxu0 %v8295
    %8410 = vmatpush.bf16.msra.mxu0 %v8287
    %8411 = vmatpush.bf16.msra.mxu0 %v8279
    %8412 = vmatpush.bf16.msra.mxu0 %v8271
    %8413 = vmatpush.bf16.msra.mxu0 %v8263
    %8414 = vmatpush.bf16.msra.mxu0 %v8255
    %8415 = vmatmul.bf16.gmra.mxu0 %v557
    %v8416 = vpop.f32.mrf.mxu0
    %v8417 = vadd.f32 0.0, %v8416
    %v8418 = vpop.f32.mrf.mxu0
    %8419 = vdwg.mxu0
    %8420 = vmatpush.bf16.msra.mxu0 %v8312
    %8421 = vmatpush.bf16.msra.mxu0 %v8304
    %8422 = vmatpush.bf16.msra.mxu0 %v8296
    %8423 = vmatpush.bf16.msra.mxu0 %v8288
    %8424 = vmatpush.bf16.msra.mxu0 %v8280
    %8425 = vmatpush.bf16.msra.mxu0 %v8272
    %8426 = vmatpush.bf16.msra.mxu0 %v8264
    %8427 = vmatpush.bf16.msra.mxu0 %v8256
    %8428 = vmatmul.bf16.gmra.mxu0 %v557
    %v8429 = vpop.f32.mrf.mxu0
    %v8430 = vadd.f32 0.0, %v8429
    %v8431 = vpop.f32.mrf.mxu0
    %8432 = vdwg.mxu0
    %8433 = vmatpush.bf16.msra.mxu0 %v8313
    %8434 = vmatpush.bf16.msra.mxu0 %v8305
    %8435 = vmatpush.bf16.msra.mxu0 %v8297
    %8436 = vmatpush.bf16.msra.mxu0 %v8289
    %8437 = vmatpush.bf16.msra.mxu0 %v8281
    %8438 = vmatpush.bf16.msra.mxu0 %v8273
    %8439 = vmatpush.bf16.msra.mxu0 %v8265
    %8440 = vmatpush.bf16.msra.mxu0 %v8257
    %8441 = vmatmul.bf16.gmra.mxu0 %v557
    %v8442 = vpop.f32.mrf.mxu0
    %v8443 = vadd.f32 0.0, %v8442
    %v8444 = vpop.f32.mrf.mxu0
    %8445 = vdwg.mxu0
    %8446 = vmatpush.bf16.msra.mxu0 %v8314
    %8447 = vmatpush.bf16.msra.mxu0 %v8306
    %8448 = vmatpush.bf16.msra.mxu0 %v8298
    %8449 = vmatpush.bf16.msra.mxu0 %v8290
    %8450 = vmatpush.bf16.msra.mxu0 %v8282
    %8451 = vmatpush.bf16.msra.mxu0 %v8274
    %8452 = vmatpush.bf16.msra.mxu0 %v8266
    %8453 = vmatpush.bf16.msra.mxu0 %v8258
    %8454 = vmatmul.bf16.gmra.mxu0 %v557
    %v8455 = vpop.f32.mrf.mxu0
    %v8456 = vadd.f32 0.0, %v8455
    %v8457 = vpop.f32.mrf.mxu0
    %8458 = vdwg.mxu0
    %8459 = vmatpush.bf16.msra.mxu0 %v8315
    %8460 = vmatpush.bf16.msra.mxu0 %v8307
    %8461 = vmatpush.bf16.msra.mxu0 %v8299
    %8462 = vmatpush.bf16.msra.mxu0 %v8291
    %8463 = vmatpush.bf16.msra.mxu0 %v8283
    %8464 = vmatpush.bf16.msra.mxu0 %v8275
    %8465 = vmatpush.bf16.msra.mxu0 %v8267
    %8466 = vmatpush.bf16.msra.mxu0 %v8259
    %8467 = vmatmul.bf16.gmra.mxu0 %v557
    %v8468 = vpop.f32.mrf.mxu0
    %v8469 = vadd.f32 0.0, %v8468
    %v8470 = vpop.f32.mrf.mxu0
    %8471 = vdwg.mxu0
    %8472 = vmatpush.bf16.msra.mxu0 %v8316
    %8473 = vmatpush.bf16.msra.mxu0 %v8308
    %8474 = vmatpush.bf16.msra.mxu0 %v8300
    %8475 = vmatpush.bf16.msra.mxu0 %v8292
    %8476 = vmatpush.bf16.msra.mxu0 %v8284
    %8477 = vmatpush.bf16.msra.mxu0 %v8276
    %8478 = vmatpush.bf16.msra.mxu0 %v8268
    %8479 = vmatpush.bf16.msra.mxu0 %v8260
    %8480 = vmatmul.bf16.gmra.mxu0 %v557
    %v8481 = vpop.f32.mrf.mxu0
    %v8482 = vadd.f32 0.0, %v8481
    %v8483 = vpop.f32.mrf.mxu0
    %8484 = vdwg.mxu0
    %v8485 = vadd.f32 %v7988, %v8391
    %v8486 = vadd.f32 %v7989, %v8404
    %v8487 = vadd.f32 %v7990, %v8417
    %v8488 = vadd.f32 %v7991, %v8430
    %v8489 = vadd.f32 %v7992, %v8443
    %v8490 = vadd.f32 %v7993, %v8456
    %v8491 = vadd.f32 %v7994, %v8469
    %v8492 = vadd.f32 %v7995, %v8482
    %v8493 = vld [vmem:[#allocation8] sm:$0xff]
    %v8495 = vperm.slane %v8493, 0
    %v8496 = vperm.slane %v8493, 1
    %v8497 = vperm.slane %v8493, 2
    %v8498 = vperm.slane %v8493, 3
    %v8499 = vperm.slane %v8493, 4
    %v8500 = vperm.slane %v8493, 5
    %v8501 = vperm.slane %v8493, 6
    %v8502 = vperm.slane %v8493, 7
    %v8511 = vadd.f32 %v8485, %v8495
    %v8512 = vadd.f32 %v8486, %v8496
    %v8513 = vadd.f32 %v8487, %v8497
    %v8514 = vadd.f32 %v8488, %v8498
    %v8515 = vadd.f32 %v8489, %v8499
    %v8516 = vadd.f32 %v8490, %v8500
    %v8517 = vadd.f32 %v8491, %v8501
    %v8518 = vadd.f32 %v8492, %v8502
    %v8519 = vmax.f32 %v8511, 0.0
    %v8520 = vmax.f32 %v8512, 0.0
    %v8521 = vmax.f32 %v8513, 0.0
    %v8522 = vmax.f32 %v8514, 0.0
    %v8523 = vmax.f32 %v8515, 0.0
    %v8524 = vmax.f32 %v8516, 0.0
    %v8525 = vmax.f32 %v8517, 0.0
    %v8526 = vmax.f32 %v8518, 0.0
    %v8527 = vld [vmem:[%s6] sm:$0xff]
    %v8528 = vld [vmem:[%s6 + $0x8] sm:$0xff]
    %v8529 = vld [vmem:[%s6 + $0x10] sm:$0xff]
    %v8530 = vld [vmem:[%s6 + $0x18] sm:$0xff]
    %v8531 = vld [vmem:[%s6 + $0x20] sm:$0xff]
    %v8532 = vld [vmem:[%s6 + $0x28] sm:$0xff]
    %v8533 = vld [vmem:[%s6 + $0x30] sm:$0xff]
    %v8534 = vld [vmem:[%s6 + $0x38] sm:$0xff]
    %v8535 = vld [vmem:[%s6 + $0x40] sm:$0xff]
    %v8536 = vld [vmem:[%s6 + $0x48] sm:$0xff]
    %v8537 = vld [vmem:[%s6 + $0x50] sm:$0xff]
    %v8538 = vld [vmem:[%s6 + $0x58] sm:$0xff]
    %v8539 = vld [vmem:[%s6 + $0x60] sm:$0xff]
    %v8540 = vld [vmem:[%s6 + $0x68] sm:$0xff]
    %v8541 = vld [vmem:[%s6 + $0x70] sm:$0xff]
    %v8542 = vld [vmem:[%s6 + $0x78] sm:$0xff]
    %v8543 = vld [vmem:[%s6 + $0x80] sm:$0xff]
    %v8544 = vld [vmem:[%s6 + $0x88] sm:$0xff]
    %v8545 = vld [vmem:[%s6 + $0x90] sm:$0xff]
    %v8546 = vld [vmem:[%s6 + $0x98] sm:$0xff]
    %v8547 = vld [vmem:[%s6 + $0xa0] sm:$0xff]
    %v8548 = vld [vmem:[%s6 + $0xa8] sm:$0xff]
    %v8549 = vld [vmem:[%s6 + $0xb0] sm:$0xff]
    %v8550 = vld [vmem:[%s6 + $0xb8] sm:$0xff]
    %v8551 = vld [vmem:[%s6 + $0xc0] sm:$0xff]
    %v8552 = vld [vmem:[%s6 + $0xc8] sm:$0xff]
    %v8553 = vld [vmem:[%s6 + $0xd0] sm:$0xff]
    %v8554 = vld [vmem:[%s6 + $0xd8] sm:$0xff]
    %v8555 = vld [vmem:[%s6 + $0xe0] sm:$0xff]
    %v8556 = vld [vmem:[%s6 + $0xe8] sm:$0xff]
    %v8557 = vld [vmem:[%s6 + $0xf0] sm:$0xff]
    %v8558 = vld [vmem:[%s6 + $0xf8] sm:$0xff]
    %v8559 = vld [vmem:[%s6 + $0x100] sm:$0xff]
    %v8560 = vld [vmem:[%s6 + $0x108] sm:$0xff]
    %v8561 = vld [vmem:[%s6 + $0x110] sm:$0xff]
    %v8562 = vld [vmem:[%s6 + $0x118] sm:$0xff]
    %v8563 = vld [vmem:[%s6 + $0x120] sm:$0xff]
    %v8564 = vld [vmem:[%s6 + $0x128] sm:$0xff]
    %v8565 = vld [vmem:[%s6 + $0x130] sm:$0xff]
    %v8566 = vld [vmem:[%s6 + $0x138] sm:$0xff]
    %v8567 = vld [vmem:[%s6 + $0x140] sm:$0xff]
    %v8568 = vld [vmem:[%s6 + $0x148] sm:$0xff]
    %v8569 = vld [vmem:[%s6 + $0x150] sm:$0xff]
    %v8570 = vld [vmem:[%s6 + $0x158] sm:$0xff]
    %v8571 = vld [vmem:[%s6 + $0x160] sm:$0xff]
    %v8572 = vld [vmem:[%s6 + $0x168] sm:$0xff]
    %v8573 = vld [vmem:[%s6 + $0x170] sm:$0xff]
    %v8574 = vld [vmem:[%s6 + $0x178] sm:$0xff]
    %v8575 = vld [vmem:[%s6 + $0x180] sm:$0xff]
    %v8576 = vld [vmem:[%s6 + $0x188] sm:$0xff]
    %v8577 = vld [vmem:[%s6 + $0x190] sm:$0xff]
    %v8578 = vld [vmem:[%s6 + $0x198] sm:$0xff]
    %v8579 = vld [vmem:[%s6 + $0x1a0] sm:$0xff]
    %v8580 = vld [vmem:[%s6 + $0x1a8] sm:$0xff]
    %v8581 = vld [vmem:[%s6 + $0x1b0] sm:$0xff]
    %v8582 = vld [vmem:[%s6 + $0x1b8] sm:$0xff]
    %v8583 = vld [vmem:[%s6 + $0x1c0] sm:$0xff]
    %v8584 = vld [vmem:[%s6 + $0x1c8] sm:$0xff]
    %v8585 = vld [vmem:[%s6 + $0x1d0] sm:$0xff]
    %v8586 = vld [vmem:[%s6 + $0x1d8] sm:$0xff]
    %v8587 = vld [vmem:[%s6 + $0x1e0] sm:$0xff]
    %v8588 = vld [vmem:[%s6 + $0x1e8] sm:$0xff]
    %v8589 = vld [vmem:[%s6 + $0x1f0] sm:$0xff]
    %v8590 = vld [vmem:[%s6 + $0x1f8] sm:$0xff]
    %v8591 = vld [vmem:[%s6 + $0x200] sm:$0xff]
    %v8592 = vld [vmem:[%s6 + $0x208] sm:$0xff]
    %v8593 = vld [vmem:[%s6 + $0x210] sm:$0xff]
    %v8594 = vld [vmem:[%s6 + $0x218] sm:$0xff]
    %v8595 = vld [vmem:[%s6 + $0x220] sm:$0xff]
    %v8596 = vld [vmem:[%s6 + $0x228] sm:$0xff]
    %v8597 = vld [vmem:[%s6 + $0x230] sm:$0xff]
    %v8598 = vld [vmem:[%s6 + $0x238] sm:$0xff]
    %v8599 = vld [vmem:[%s6 + $0x240] sm:$0xff]
    %v8600 = vld [vmem:[%s6 + $0x248] sm:$0xff]
    %v8601 = vld [vmem:[%s6 + $0x250] sm:$0xff]
    %v8602 = vld [vmem:[%s6 + $0x258] sm:$0xff]
    %v8603 = vld [vmem:[%s6 + $0x260] sm:$0xff]
    %v8604 = vld [vmem:[%s6 + $0x268] sm:$0xff]
    %v8605 = vld [vmem:[%s6 + $0x270] sm:$0xff]
    %v8606 = vld [vmem:[%s6 + $0x278] sm:$0xff]
    %v8607 = vld [vmem:[%s6 + $0x280] sm:$0xff]
    %v8608 = vld [vmem:[%s6 + $0x288] sm:$0xff]
    %v8609 = vld [vmem:[%s6 + $0x290] sm:$0xff]
    %v8610 = vld [vmem:[%s6 + $0x298] sm:$0xff]
    %v8611 = vld [vmem:[%s6 + $0x2a0] sm:$0xff]
    %v8612 = vld [vmem:[%s6 + $0x2a8] sm:$0xff]
    %v8613 = vld [vmem:[%s6 + $0x2b0] sm:$0xff]
    %v8614 = vld [vmem:[%s6 + $0x2b8] sm:$0xff]
    %v8615 = vld [vmem:[%s6 + $0x2c0] sm:$0xff]
    %v8616 = vld [vmem:[%s6 + $0x2c8] sm:$0xff]
    %v8617 = vld [vmem:[%s6 + $0x2d0] sm:$0xff]
    %v8618 = vld [vmem:[%s6 + $0x2d8] sm:$0xff]
    %v8619 = vld [vmem:[%s6 + $0x2e0] sm:$0xff]
    %v8620 = vld [vmem:[%s6 + $0x2e8] sm:$0xff]
    %v8621 = vld [vmem:[%s6 + $0x2f0] sm:$0xff]
    %v8622 = vld [vmem:[%s6 + $0x2f8] sm:$0xff]
    %v8623 = vld [vmem:[%s6 + $0x300] sm:$0xff]
    %v8624 = vld [vmem:[%s6 + $0x308] sm:$0xff]
    %v8625 = vld [vmem:[%s6 + $0x310] sm:$0xff]
    %v8626 = vld [vmem:[%s6 + $0x318] sm:$0xff]
    %v8627 = vld [vmem:[%s6 + $0x320] sm:$0xff]
    %v8628 = vld [vmem:[%s6 + $0x328] sm:$0xff]
    %v8629 = vld [vmem:[%s6 + $0x330] sm:$0xff]
    %v8630 = vld [vmem:[%s6 + $0x338] sm:$0xff]
    %v8631 = vld [vmem:[%s6 + $0x340] sm:$0xff]
    %v8632 = vld [vmem:[%s6 + $0x348] sm:$0xff]
    %v8633 = vld [vmem:[%s6 + $0x350] sm:$0xff]
    %v8634 = vld [vmem:[%s6 + $0x358] sm:$0xff]
    %v8635 = vld [vmem:[%s6 + $0x360] sm:$0xff]
    %v8636 = vld [vmem:[%s6 + $0x368] sm:$0xff]
    %v8637 = vld [vmem:[%s6 + $0x370] sm:$0xff]
    %v8638 = vld [vmem:[%s6 + $0x378] sm:$0xff]
    %v8639 = vld [vmem:[%s6 + $0x380] sm:$0xff]
    %v8640 = vld [vmem:[%s6 + $0x388] sm:$0xff]
    %v8641 = vld [vmem:[%s6 + $0x390] sm:$0xff]
    %v8642 = vld [vmem:[%s6 + $0x398] sm:$0xff]
    %v8643 = vld [vmem:[%s6 + $0x3a0] sm:$0xff]
    %v8644 = vld [vmem:[%s6 + $0x3a8] sm:$0xff]
    %v8645 = vld [vmem:[%s6 + $0x3b0] sm:$0xff]
    %v8646 = vld [vmem:[%s6 + $0x3b8] sm:$0xff]
    %v8647 = vld [vmem:[%s6 + $0x3c0] sm:$0xff]
    %v8648 = vld [vmem:[%s6 + $0x3c8] sm:$0xff]
    %v8649 = vld [vmem:[%s6 + $0x3d0] sm:$0xff]
    %v8650 = vld [vmem:[%s6 + $0x3d8] sm:$0xff]
    %v8651 = vld [vmem:[%s6 + $0x3e0] sm:$0xff]
    %v8652 = vld [vmem:[%s6 + $0x3e8] sm:$0xff]
    %v8653 = vld [vmem:[%s6 + $0x3f0] sm:$0xff]
    %v8654 = vld [vmem:[%s6 + $0x3f8] sm:$0xff]
    %p8655 = scmp.eq.s32.totalorder 0, 0
    %s8656 = scalar_select %p8655, 1, 0
    %s8657 = scvt.s32.f32 %s8656
    %v8658 = vld [vmem:[#allocation10] sm:$0x1]
    %v8659 = vstv %s8657
    %v8660 = vmul.f32 %v8659, %v8658
    %v8662 = vperm.slane %v8660, 0
    %8664 = vmatpush.msra.mxu0 %v8542
    %8665 = vmatpush.msra.mxu0 %v8541
    %8666 = vmatpush.msra.mxu0 %v8540
    %8667 = vmatpush.msra.mxu0 %v8539
    %8668 = vmatpush.msra.mxu0 %v8538
    %8669 = vmatpush.msra.mxu0 %v8537
    %8670 = vmatpush.msra.mxu0 %v8536
    %8671 = vmatpush.msra.mxu0 %v8535
    %8672 = vmatpush.msra.mxu0 %v8534
    %8673 = vmatpush.msra.mxu0 %v8533
    %8674 = vmatpush.msra.mxu0 %v8532
    %8675 = vmatpush.msra.mxu0 %v8531
    %8676 = vmatpush.msra.mxu0 %v8530
    %8677 = vmatpush.msra.mxu0 %v8529
    %8678 = vmatpush.msra.mxu0 %v8528
    %8679 = vmatpush.msra.mxu0 %v8527
    %8680 = vmatmul.f32.gmra.mxu0 %v8519
    %v8681 = vpop.f32.mrf.mxu0
    %v8682 = vadd.f32 %v8662, %v8681
    %8683 = vdwg.mxu0
    %8684 = vmatpush.msra.mxu0 %v8558
    %8685 = vmatpush.msra.mxu0 %v8557
    %8686 = vmatpush.msra.mxu0 %v8556
    %8687 = vmatpush.msra.mxu0 %v8555
    %8688 = vmatpush.msra.mxu0 %v8554
    %8689 = vmatpush.msra.mxu0 %v8553
    %8690 = vmatpush.msra.mxu0 %v8552
    %8691 = vmatpush.msra.mxu0 %v8551
    %8692 = vmatpush.msra.mxu0 %v8550
    %8693 = vmatpush.msra.mxu0 %v8549
    %8694 = vmatpush.msra.mxu0 %v8548
    %8695 = vmatpush.msra.mxu0 %v8547
    %8696 = vmatpush.msra.mxu0 %v8546
    %8697 = vmatpush.msra.mxu0 %v8545
    %8698 = vmatpush.msra.mxu0 %v8544
    %8699 = vmatpush.msra.mxu0 %v8543
    %8700 = vmatmul.f32.gmra.mxu0 %v8520
    %v8701 = vpop.f32.mrf.mxu0
    %v8702 = vadd.f32 %v8682, %v8701
    %8703 = vdwg.mxu0
    %8704 = vmatpush.msra.mxu0 %v8574
    %8705 = vmatpush.msra.mxu0 %v8573
    %8706 = vmatpush.msra.mxu0 %v8572
    %8707 = vmatpush.msra.mxu0 %v8571
    %8708 = vmatpush.msra.mxu0 %v8570
    %8709 = vmatpush.msra.mxu0 %v8569
    %8710 = vmatpush.msra.mxu0 %v8568
    %8711 = vmatpush.msra.mxu0 %v8567
    %8712 = vmatpush.msra.mxu0 %v8566
    %8713 = vmatpush.msra.mxu0 %v8565
    %8714 = vmatpush.msra.mxu0 %v8564
    %8715 = vmatpush.msra.mxu0 %v8563
    %8716 = vmatpush.msra.mxu0 %v8562
    %8717 = vmatpush.msra.mxu0 %v8561
    %8718 = vmatpush.msra.mxu0 %v8560
    %8719 = vmatpush.msra.mxu0 %v8559
    %8720 = vmatmul.f32.gmra.mxu0 %v8521
    %v8721 = vpop.f32.mrf.mxu0
    %v8722 = vadd.f32 %v8702, %v8721
    %8723 = vdwg.mxu0
    %8724 = vmatpush.msra.mxu0 %v8590
    %8725 = vmatpush.msra.mxu0 %v8589
    %8726 = vmatpush.msra.mxu0 %v8588
    %8727 = vmatpush.msra.mxu0 %v8587
    %8728 = vmatpush.msra.mxu0 %v8586
    %8729 = vmatpush.msra.mxu0 %v8585
    %8730 = vmatpush.msra.mxu0 %v8584
    %8731 = vmatpush.msra.mxu0 %v8583
    %8732 = vmatpush.msra.mxu0 %v8582
    %8733 = vmatpush.msra.mxu0 %v8581
    %8734 = vmatpush.msra.mxu0 %v8580
    %8735 = vmatpush.msra.mxu0 %v8579
    %8736 = vmatpush.msra.mxu0 %v8578
    %8737 = vmatpush.msra.mxu0 %v8577
    %8738 = vmatpush.msra.mxu0 %v8576
    %8739 = vmatpush.msra.mxu0 %v8575
    %8740 = vmatmul.f32.gmra.mxu0 %v8522
    %v8741 = vpop.f32.mrf.mxu0
    %v8742 = vadd.f32 %v8722, %v8741
    %8743 = vdwg.mxu0
    %8744 = vmatpush.msra.mxu0 %v8606
    %8745 = vmatpush.msra.mxu0 %v8605
    %8746 = vmatpush.msra.mxu0 %v8604
    %8747 = vmatpush.msra.mxu0 %v8603
    %8748 = vmatpush.msra.mxu0 %v8602
    %8749 = vmatpush.msra.mxu0 %v8601
    %8750 = vmatpush.msra.mxu0 %v8600
    %8751 = vmatpush.msra.mxu0 %v8599
    %8752 = vmatpush.msra.mxu0 %v8598
    %8753 = vmatpush.msra.mxu0 %v8597
    %8754 = vmatpush.msra.mxu0 %v8596
    %8755 = vmatpush.msra.mxu0 %v8595
    %8756 = vmatpush.msra.mxu0 %v8594
    %8757 = vmatpush.msra.mxu0 %v8593
    %8758 = vmatpush.msra.mxu0 %v8592
    %8759 = vmatpush.msra.mxu0 %v8591
    %8760 = vmatmul.f32.gmra.mxu0 %v8523
    %v8761 = vpop.f32.mrf.mxu0
    %v8762 = vadd.f32 %v8742, %v8761
    %8763 = vdwg.mxu0
    %8764 = vmatpush.msra.mxu0 %v8622
    %8765 = vmatpush.msra.mxu0 %v8621
    %8766 = vmatpush.msra.mxu0 %v8620
    %8767 = vmatpush.msra.mxu0 %v8619
    %8768 = vmatpush.msra.mxu0 %v8618
    %8769 = vmatpush.msra.mxu0 %v8617
    %8770 = vmatpush.msra.mxu0 %v8616
    %8771 = vmatpush.msra.mxu0 %v8615
    %8772 = vmatpush.msra.mxu0 %v8614
    %8773 = vmatpush.msra.mxu0 %v8613
    %8774 = vmatpush.msra.mxu0 %v8612
    %8775 = vmatpush.msra.mxu0 %v8611
    %8776 = vmatpush.msra.mxu0 %v8610
    %8777 = vmatpush.msra.mxu0 %v8609
    %8778 = vmatpush.msra.mxu0 %v8608
    %8779 = vmatpush.msra.mxu0 %v8607
    %8780 = vmatmul.f32.gmra.mxu0 %v8524
    %v8781 = vpop.f32.mrf.mxu0
    %v8782 = vadd.f32 %v8762, %v8781
    %8783 = vdwg.mxu0
    %8784 = vmatpush.msra.mxu0 %v8638
    %8785 = vmatpush.msra.mxu0 %v8637
    %8786 = vmatpush.msra.mxu0 %v8636
    %8787 = vmatpush.msra.mxu0 %v8635
    %8788 = vmatpush.msra.mxu0 %v8634
    %8789 = vmatpush.msra.mxu0 %v8633
    %8790 = vmatpush.msra.mxu0 %v8632
    %8791 = vmatpush.msra.mxu0 %v8631
    %8792 = vmatpush.msra.mxu0 %v8630
    %8793 = vmatpush.msra.mxu0 %v8629
    %8794 = vmatpush.msra.mxu0 %v8628
    %8795 = vmatpush.msra.mxu0 %v8627
    %8796 = vmatpush.msra.mxu0 %v8626
    %8797 = vmatpush.msra.mxu0 %v8625
    %8798 = vmatpush.msra.mxu0 %v8624
    %8799 = vmatpush.msra.mxu0 %v8623
    %8800 = vmatmul.f32.gmra.mxu0 %v8525
    %v8801 = vpop.f32.mrf.mxu0
    %v8802 = vadd.f32 %v8782, %v8801
    %8803 = vdwg.mxu0
    %8804 = vmatpush.msra.mxu0 %v8654
    %8805 = vmatpush.msra.mxu0 %v8653
    %8806 = vmatpush.msra.mxu0 %v8652
    %8807 = vmatpush.msra.mxu0 %v8651
    %8808 = vmatpush.msra.mxu0 %v8650
    %8809 = vmatpush.msra.mxu0 %v8649
    %8810 = vmatpush.msra.mxu0 %v8648
    %8811 = vmatpush.msra.mxu0 %v8647
    %8812 = vmatpush.msra.mxu0 %v8646
    %8813 = vmatpush.msra.mxu0 %v8645
    %8814 = vmatpush.msra.mxu0 %v8644
    %8815 = vmatpush.msra.mxu0 %v8643
    %8816 = vmatpush.msra.mxu0 %v8642
    %8817 = vmatpush.msra.mxu0 %v8641
    %8818 = vmatpush.msra.mxu0 %v8640
    %8819 = vmatpush.msra.mxu0 %v8639
    %8820 = vmatmul.f32.gmra.mxu0 %v8526
    %v8821 = vpop.f32.mrf.mxu0
    %v8822 = vadd.f32 %v8802, %v8821
    %8823 = vdwg.mxu0
    %vm8824 = vcmask 74752
    %8825 = vst.msk [vmem:[#allocation11] sm:$0x3] %vm8824, %v8822
    // Predicated region
    $region54: #{inception_aux_forward.1} parent=1 // pred_check
      _
    $region55: #{inception_aux_forward.1} parent=1 // pred_check_branch
      %8827 = sbr.rel (0) target = $region57
    $region56: #{inception_aux_forward.1} parent=1 // pred_region
      %8829 = vsyncadd [#allocation4], 0
      %s8831 = sshll.u32 [#allocation11], 4
      %s8832 = int_to_ptr.vmem [resolvable:$true] %s8831
      %s8833 = sshll.u32 %s8, 4
      %s8834 = int_to_ptr.hbm [resolvable:$true] %s8833
      %8836 = dma.vmem_to_hbm [thread:$0]  %s8832, 32, %s8834, [#allocation4]
    $region57: #{inception_aux_forward.1} parent=1 // pred_fallthru
      _
    // Predicated region
    $region58: #{inception_aux_forward.1} parent=1 // pred_check
      _
    $region59: #{inception_aux_forward.1} parent=1 // pred_check_branch
      %8838 = sbr.rel (0) target = $region61
    $region60: #{inception_aux_forward.1} parent=1 // pred_region
      %8840 = dma.done [#allocation4], 32
    $region61: #{inception_aux_forward.1} parent=1 // pred_fallthru
      _
    %8841 = vsyncpa [#allocation3], 1
    %8842 = vsyncpa [#allocation6], 1
    %8843 = vsyncpa [#allocation9], 1
    %8844 = vsyncpa [#allocation4], 1

</llo_original>
